<compile_context>
chip_gen: v7x
topology: tpu7x:2x2x1
jax: 0.10.0
libtpu: 0.0.40
codegen_flags: <defaults>
</compile_context>

<pallas_src>
import functools

import jax
import jax.numpy as jnp
from jax.experimental import pallas as pl
from jax.experimental.pallas import tpu as pltpu

EPS = 1e-5          # nn.InstanceNorm2d default eps
NEG_SLOPE = 0.01    # nn.LeakyReLU default negative_slope


def _round_up(x, m):
    return ((x + m - 1) // m) * m


def _vmem_limit_bytes():
    """Generation-aware scoped-VMEM limit (safe fallback if query unavailable)."""
    try:
        cap = pltpu.get_tpu_info().vmem_capacity_bytes
    except Exception:
        cap = 64 * 1024 * 1024  # conservative (v7x per-core VMEM)
    return max(32 * 1024 * 1024, min(int(cap) * 3 // 4, 96 * 1024 * 1024))


def single_conv_kernel(x_ref, w_ref, mask_ref, o_ref, *, row_stride, inv_hw):
    # x_ref:    (C_in, Lp_pad)      zero-padded input, rows of length W+2 flattened
    # w_ref:    (9, C_out, C_in)    per-tap conv weights, tap index = kh*3 + kw
    # mask_ref: (1, Lband_pad)      1.0 on valid output pixels, 0.0 on junk/pad lanes
    # o_ref:    (C_out, Lband_pad)  lane-dense output band (row stride = W+2)
    c_out, l_out = o_ref.shape

    # 3x3 conv = nine K=C_in MXU matmuls against lane-shifted views of the padded slab,
    # accumulated in f32 (no im2col copies, no HBM tap slab).
    acc = jnp.zeros((c_out, l_out), jnp.float32)
    for kh in range(3):
        for kw in range(3):
            off = kh * row_stride + kw                       # static offset
            tap = x_ref[:, pl.ds(off, l_out)]                # (C_in, Lband_pad)
            acc = acc + jnp.dot(
                w_ref[kh * 3 + kw], tap,
                preferred_element_type=jnp.float32,
                precision=jax.lax.Precision.HIGHEST)

    # InstanceNorm2d (affine=False): per-channel stats over the H*W valid pixels,
    # biased variance, single pass.  Junk band columns / lane padding are masked.
    m = mask_ref[...]                                        # (1, Lband_pad)
    s1 = jnp.sum(acc * m, axis=1, keepdims=True)             # (C_out, 1)
    s2 = jnp.sum(acc * acc * m, axis=1, keepdims=True)
    mean = s1 * inv_hw
    var = jnp.maximum(s2 * inv_hw - mean * mean, 0.0)        # guard cancellation
    y = (acc - mean) * jax.lax.rsqrt(var + EPS)

    # LeakyReLU(negative_slope=0.01)
    y = jnp.where(y >= 0, y, NEG_SLOPE * y)

    o_ref[...] = y.astype(o_ref.dtype)                       # fully lane-dense store


def single_conv(x_nchw, weight_oihw, bias=None):
    """Forward pass of SingleConv. x: (N, C_in, H, W) -> (N, C_out, H, W).

    `bias` is accepted for API parity with nn.Conv2d but is mathematically cancelled
    by InstanceNorm2d(affine=False), so it is not used in the kernel.
    """
    del bias
    N, C_in, H, W = x_nchw.shape
    C_out = weight_oihw.shape[0]

    Wp = W + 2                                   # padded row length
    Lband = H * Wp                               # output band: H rows x (W valid + 2 junk)
    Lband_pad = _round_up(Lband, 128)            # lane-dense output stores
    Lp = (H + 2) * Wp                            # flattened padded sample length
    # Every tap slice [off, off + Lband_pad) must stay in bounds (off_max = 2*Wp + 2).
    Lp_pad = _round_up(max(Lp, Lband_pad + 2 * Wp + 2), 128)

    # --- wrapper glue (plain JAX, ~1x input traffic) --------------------------
    # Zero-pad spatially (pad=1), flatten rows, pad the lane axis with zeros.
    xp = jnp.pad(x_nchw, ((0, 0), (0, 0), (1, 1), (1, 1))).reshape(N, C_in, Lp)
    xp = jnp.pad(xp, ((0, 0), (0, 0), (0, Lp_pad - Lp)))

    # (C_out, C_in, 3, 3) -> (9, C_out, C_in), tap-major (kh, kw).
    w9 = jnp.transpose(weight_oihw, (2, 3, 0, 1)).reshape(9, C_out, C_in)

    # Valid-pixel mask over the band: column c is valid iff (c % Wp) < W and c < Lband.
    col = jnp.arange(Lband_pad, dtype=jnp.int32)
    mask = (((col % Wp) < W) & (col < Lband)).astype(x_nchw.dtype).reshape(1, Lband_pad)

    kernel = functools.partial(single_conv_kernel,
                               row_stride=Wp, inv_hw=1.0 / float(H * W))

    out = pl.pallas_call(
        kernel,
        out_shape=jax.ShapeDtypeStruct((N, C_out, Lband_pad), x_nchw.dtype),
        grid=(N,),                                # batch on the parallel grid axis
        in_specs=[
            pl.BlockSpec((None, C_in, Lp_pad), lambda i: (i, 0, 0)),
            pl.BlockSpec((9, C_out, C_in), lambda i: (0, 0, 0)),
            pl.BlockSpec((1, Lband_pad), lambda i: (0, 0)),
        ],
        out_specs=pl.BlockSpec((None, C_out, Lband_pad), lambda i: (i, 0, 0)),
        compiler_params=pltpu.CompilerParams(
            dimension_semantics=("parallel",),
            vmem_limit_bytes=_vmem_limit_bytes(),
        ),
    )(xp, w9, mask)

    # Drop lane padding and the 2 junk columns per row; reshape straight to NCHW.
    return out[:, :, :Lband].reshape(N, C_out, H, Wp)[:, :, :, :W]


def ref_forward(x, weight, bias):
    """Pure-JAX reference (matches PyTorch SingleConv semantics, bias included)."""
    y = jax.lax.conv_general_dilated(
        x, weight, window_strides=(1, 1), padding=((1, 1), (1, 1)),
        dimension_numbers=("NCHW", "OIHW", "NCHW"),
        precision=jax.lax.Precision.HIGHEST)
    y = y + bias[None, :, None, None]
    mean = y.mean(axis=(2, 3), keepdims=True)
    var = ((y - mean) ** 2).mean(axis=(2, 3), keepdims=True)
    y = (y - mean) / jnp.sqrt(var + EPS)
    return jnp.where(y >= 0, y, NEG_SLOPE * y)


if __name__ == "__main__":
    # Small deterministic setup: batch=2, in_channels=4, out_channels=8, 16x16 spatial.
    N, C_in, C_out, H, W = 2, 4, 8, 16, 16
    key = jax.random.PRNGKey(0)
    kx, kw, kb = jax.random.split(key, 3)

    x = jax.random.normal(kx, (N, C_in, H, W), dtype=jnp.float32)
    weight = jax.random.normal(kw, (C_out, C_in, 3, 3), dtype=jnp.float32) * 0.1
    bias = jax.random.normal(kb, (C_out,), dtype=jnp.float32) * 0.1

    out = jax.block_until_ready(single_conv(x, weight, bias))
    ref = jax.block_until_ready(ref_forward(x, weight, bias))

    assert out.shape == (N, C_out, H, W), out.shape
    max_err = float(jnp.abs(out - ref).max())
    assert jnp.allclose(out, ref, atol=1e-3, rtol=1e-3), max_err
    print("KERNEL_OK")
</pallas_src>

<mosaic_0001>
module attributes {stable_mosaic.version = 11 : i64} {
  func.func @single_conv_kernel(%arg0: i32, %arg1: memref<1x4x512xf32, #tpu.memory_space<vmem>>, %arg2: memref<9x8x4xf32, #tpu.memory_space<vmem>>, %arg3: memref<1x384xf32, #tpu.memory_space<vmem>>, %arg4: memref<1x8x384xf32, #tpu.memory_space<vmem>>) attributes {dimension_semantics = [#tpu.dimension_semantics<parallel>], iteration_bounds = array<i64: 2>, scalar_prefetch = 0 : i64, scratch_operands = 0 : i64, tpu.core_type = #tpu.core_type<tc>, window_params = [{transform_indices = @transform_0, window_bounds = array<i64: 1, 4, 512>}, {pipeline_mode = #tpu.pipeline_mode<synchronous>, transform_indices = @transform_1, window_bounds = array<i64: 9, 8, 4>}, {pipeline_mode = #tpu.pipeline_mode<synchronous>, transform_indices = @transform_2, window_bounds = array<i64: 1, 384>}, {transform_indices = @transform_3, window_bounds = array<i64: 1, 8, 384>}]} {
    %cst = arith.constant 0.000000e+00 : f32
    %0 = vector.broadcast %cst : f32 to vector<8x384xf32>
    %c0 = arith.constant 0 : index
    %c0_0 = arith.constant 0 : index
    %c0_1 = arith.constant 0 : index
    %1 = vector.load %arg1[%c0, %c0_0, %c0_1] : memref<1x4x512xf32, #tpu.memory_space<vmem>>, vector<1x4x384xf32>
    %2 = vector.shape_cast %1 : vector<1x4x384xf32> to vector<4x384xf32>
    %c0_2 = arith.constant 0 : index
    %c0_3 = arith.constant 0 : index
    %c0_4 = arith.constant 0 : index
    %3 = vector.load %arg2[%c0_2, %c0_3, %c0_4] : memref<9x8x4xf32, #tpu.memory_space<vmem>>, vector<1x8x4xf32>
    %4 = vector.shape_cast %3 : vector<1x8x4xf32> to vector<8x4xf32>
    %cst_5 = arith.constant dense<0.000000e+00> : vector<8x384xf32>
    %5 = tpu.matmul %4, %2, %cst_5 {dimension_numbers = #tpu.dot_dimension_numbers<[1], [0], [0], [1], [0, 0, 1, 1], [], []>, precision = #tpu.contract_precision<fp32>} : vector<8x4xf32>, vector<4x384xf32>, vector<8x384xf32> -> vector<8x384xf32>
    %6 = arith.addf %0, %5 : vector<8x384xf32>
    %c0_6 = arith.constant 0 : index
    %c0_7 = arith.constant 0 : index
    %c1 = arith.constant 1 : index
    %7 = vector.load %arg1[%c0_6, %c0_7, %c1] : memref<1x4x512xf32, #tpu.memory_space<vmem>>, vector<1x4x384xf32>
    %8 = vector.shape_cast %7 : vector<1x4x384xf32> to vector<4x384xf32>
    %c1_8 = arith.constant 1 : index
    %c0_9 = arith.constant 0 : index
    %c0_10 = arith.constant 0 : index
    %9 = vector.load %arg2[%c1_8, %c0_9, %c0_10] : memref<9x8x4xf32, #tpu.memory_space<vmem>>, vector<1x8x4xf32>
    %10 = vector.shape_cast %9 : vector<1x8x4xf32> to vector<8x4xf32>
    %cst_11 = arith.constant dense<0.000000e+00> : vector<8x384xf32>
    %11 = tpu.matmul %10, %8, %cst_11 {dimension_numbers = #tpu.dot_dimension_numbers<[1], [0], [0], [1], [0, 0, 1, 1], [], []>, precision = #tpu.contract_precision<fp32>} : vector<8x4xf32>, vector<4x384xf32>, vector<8x384xf32> -> vector<8x384xf32>
    %12 = arith.addf %6, %11 : vector<8x384xf32>
    %c0_12 = arith.constant 0 : index
    %c0_13 = arith.constant 0 : index
    %c2 = arith.constant 2 : index
    %13 = vector.load %arg1[%c0_12, %c0_13, %c2] : memref<1x4x512xf32, #tpu.memory_space<vmem>>, vector<1x4x384xf32>
    %14 = vector.shape_cast %13 : vector<1x4x384xf32> to vector<4x384xf32>
    %c2_14 = arith.constant 2 : index
    %c0_15 = arith.constant 0 : index
    %c0_16 = arith.constant 0 : index
    %15 = vector.load %arg2[%c2_14, %c0_15, %c0_16] : memref<9x8x4xf32, #tpu.memory_space<vmem>>, vector<1x8x4xf32>
    %16 = vector.shape_cast %15 : vector<1x8x4xf32> to vector<8x4xf32>
    %cst_17 = arith.constant dense<0.000000e+00> : vector<8x384xf32>
    %17 = tpu.matmul %16, %14, %cst_17 {dimension_numbers = #tpu.dot_dimension_numbers<[1], [0], [0], [1], [0, 0, 1, 1], [], []>, precision = #tpu.contract_precision<fp32>} : vector<8x4xf32>, vector<4x384xf32>, vector<8x384xf32> -> vector<8x384xf32>
    %18 = arith.addf %12, %17 : vector<8x384xf32>
    %c0_18 = arith.constant 0 : index
    %c0_19 = arith.constant 0 : index
    %c18 = arith.constant 18 : index
    %19 = vector.load %arg1[%c0_18, %c0_19, %c18] : memref<1x4x512xf32, #tpu.memory_space<vmem>>, vector<1x4x384xf32>
    %20 = vector.shape_cast %19 : vector<1x4x384xf32> to vector<4x384xf32>
    %c3 = arith.constant 3 : index
    %c0_20 = arith.constant 0 : index
    %c0_21 = arith.constant 0 : index
    %21 = vector.load %arg2[%c3, %c0_20, %c0_21] : memref<9x8x4xf32, #tpu.memory_space<vmem>>, vector<1x8x4xf32>
    %22 = vector.shape_cast %21 : vector<1x8x4xf32> to vector<8x4xf32>
    %cst_22 = arith.constant dense<0.000000e+00> : vector<8x384xf32>
    %23 = tpu.matmul %22, %20, %cst_22 {dimension_numbers = #tpu.dot_dimension_numbers<[1], [0], [0], [1], [0, 0, 1, 1], [], []>, precision = #tpu.contract_precision<fp32>} : vector<8x4xf32>, vector<4x384xf32>, vector<8x384xf32> -> vector<8x384xf32>
    %24 = arith.addf %18, %23 : vector<8x384xf32>
    %c0_23 = arith.constant 0 : index
    %c0_24 = arith.constant 0 : index
    %c19 = arith.constant 19 : index
    %25 = vector.load %arg1[%c0_23, %c0_24, %c19] : memref<1x4x512xf32, #tpu.memory_space<vmem>>, vector<1x4x384xf32>
    %26 = vector.shape_cast %25 : vector<1x4x384xf32> to vector<4x384xf32>
    %c4 = arith.constant 4 : index
    %c0_25 = arith.constant 0 : index
    %c0_26 = arith.constant 0 : index
    %27 = vector.load %arg2[%c4, %c0_25, %c0_26] : memref<9x8x4xf32, #tpu.memory_space<vmem>>, vector<1x8x4xf32>
    %28 = vector.shape_cast %27 : vector<1x8x4xf32> to vector<8x4xf32>
    %cst_27 = arith.constant dense<0.000000e+00> : vector<8x384xf32>
    %29 = tpu.matmul %28, %26, %cst_27 {dimension_numbers = #tpu.dot_dimension_numbers<[1], [0], [0], [1], [0, 0, 1, 1], [], []>, precision = #tpu.contract_precision<fp32>} : vector<8x4xf32>, vector<4x384xf32>, vector<8x384xf32> -> vector<8x384xf32>
    %30 = arith.addf %24, %29 : vector<8x384xf32>
    %c0_28 = arith.constant 0 : index
    %c0_29 = arith.constant 0 : index
    %c20 = arith.constant 20 : index
    %31 = vector.load %arg1[%c0_28, %c0_29, %c20] : memref<1x4x512xf32, #tpu.memory_space<vmem>>, vector<1x4x384xf32>
    %32 = vector.shape_cast %31 : vector<1x4x384xf32> to vector<4x384xf32>
    %c5 = arith.constant 5 : index
    %c0_30 = arith.constant 0 : index
    %c0_31 = arith.constant 0 : index
    %33 = vector.load %arg2[%c5, %c0_30, %c0_31] : memref<9x8x4xf32, #tpu.memory_space<vmem>>, vector<1x8x4xf32>
    %34 = vector.shape_cast %33 : vector<1x8x4xf32> to vector<8x4xf32>
    %cst_32 = arith.constant dense<0.000000e+00> : vector<8x384xf32>
    %35 = tpu.matmul %34, %32, %cst_32 {dimension_numbers = #tpu.dot_dimension_numbers<[1], [0], [0], [1], [0, 0, 1, 1], [], []>, precision = #tpu.contract_precision<fp32>} : vector<8x4xf32>, vector<4x384xf32>, vector<8x384xf32> -> vector<8x384xf32>
    %36 = arith.addf %30, %35 : vector<8x384xf32>
    %c0_33 = arith.constant 0 : index
    %c0_34 = arith.constant 0 : index
    %c36 = arith.constant 36 : index
    %37 = vector.load %arg1[%c0_33, %c0_34, %c36] : memref<1x4x512xf32, #tpu.memory_space<vmem>>, vector<1x4x384xf32>
    %38 = vector.shape_cast %37 : vector<1x4x384xf32> to vector<4x384xf32>
    %c6 = arith.constant 6 : index
    %c0_35 = arith.constant 0 : index
    %c0_36 = arith.constant 0 : index
    %39 = vector.load %arg2[%c6, %c0_35, %c0_36] : memref<9x8x4xf32, #tpu.memory_space<vmem>>, vector<1x8x4xf32>
    %40 = vector.shape_cast %39 : vector<1x8x4xf32> to vector<8x4xf32>
    %cst_37 = arith.constant dense<0.000000e+00> : vector<8x384xf32>
    %41 = tpu.matmul %40, %38, %cst_37 {dimension_numbers = #tpu.dot_dimension_numbers<[1], [0], [0], [1], [0, 0, 1, 1], [], []>, precision = #tpu.contract_precision<fp32>} : vector<8x4xf32>, vector<4x384xf32>, vector<8x384xf32> -> vector<8x384xf32>
    %42 = arith.addf %36, %41 : vector<8x384xf32>
    %c0_38 = arith.constant 0 : index
    %c0_39 = arith.constant 0 : index
    %c37 = arith.constant 37 : index
    %43 = vector.load %arg1[%c0_38, %c0_39, %c37] : memref<1x4x512xf32, #tpu.memory_space<vmem>>, vector<1x4x384xf32>
    %44 = vector.shape_cast %43 : vector<1x4x384xf32> to vector<4x384xf32>
    %c7 = arith.constant 7 : index
    %c0_40 = arith.constant 0 : index
    %c0_41 = arith.constant 0 : index
    %45 = vector.load %arg2[%c7, %c0_40, %c0_41] : memref<9x8x4xf32, #tpu.memory_space<vmem>>, vector<1x8x4xf32>
    %46 = vector.shape_cast %45 : vector<1x8x4xf32> to vector<8x4xf32>
    %cst_42 = arith.constant dense<0.000000e+00> : vector<8x384xf32>
    %47 = tpu.matmul %46, %44, %cst_42 {dimension_numbers = #tpu.dot_dimension_numbers<[1], [0], [0], [1], [0, 0, 1, 1], [], []>, precision = #tpu.contract_precision<fp32>} : vector<8x4xf32>, vector<4x384xf32>, vector<8x384xf32> -> vector<8x384xf32>
    %48 = arith.addf %42, %47 : vector<8x384xf32>
    %c0_43 = arith.constant 0 : index
    %c0_44 = arith.constant 0 : index
    %c38 = arith.constant 38 : index
    %49 = vector.load %arg1[%c0_43, %c0_44, %c38] : memref<1x4x512xf32, #tpu.memory_space<vmem>>, vector<1x4x384xf32>
    %50 = vector.shape_cast %49 : vector<1x4x384xf32> to vector<4x384xf32>
    %c8 = arith.constant 8 : index
    %c0_45 = arith.constant 0 : index
    %c0_46 = arith.constant 0 : index
    %51 = vector.load %arg2[%c8, %c0_45, %c0_46] : memref<9x8x4xf32, #tpu.memory_space<vmem>>, vector<1x8x4xf32>
    %52 = vector.shape_cast %51 : vector<1x8x4xf32> to vector<8x4xf32>
    %cst_47 = arith.constant dense<0.000000e+00> : vector<8x384xf32>
    %53 = tpu.matmul %52, %50, %cst_47 {dimension_numbers = #tpu.dot_dimension_numbers<[1], [0], [0], [1], [0, 0, 1, 1], [], []>, precision = #tpu.contract_precision<fp32>} : vector<8x4xf32>, vector<4x384xf32>, vector<8x384xf32> -> vector<8x384xf32>
    %54 = arith.addf %48, %53 : vector<8x384xf32>
    %c0_48 = arith.constant 0 : index
    %c0_49 = arith.constant 0 : index
    %55 = vector.load %arg3[%c0_48, %c0_49] : memref<1x384xf32, #tpu.memory_space<vmem>>, vector<1x384xf32>
    %56 = vector.broadcast %55 : vector<1x384xf32> to vector<8x384xf32>
    %57 = arith.mulf %54, %56 : vector<8x384xf32>
    %cst_50 = arith.constant dense<0.000000e+00> : vector<8xf32>
    %58 = vector.multi_reduction <add>, %57, %cst_50 [1] : vector<8x384xf32> to vector<8xf32>
    %59 = vector.shape_cast %58 : vector<8xf32> to vector<8x1xf32>
    %60 = arith.mulf %54, %54 : vector<8x384xf32>
    %61 = vector.broadcast %55 : vector<1x384xf32> to vector<8x384xf32>
    %62 = arith.mulf %60, %61 : vector<8x384xf32>
    %cst_51 = arith.constant dense<0.000000e+00> : vector<8xf32>
    %63 = vector.multi_reduction <add>, %62, %cst_51 [1] : vector<8x384xf32> to vector<8xf32>
    %64 = vector.shape_cast %63 : vector<8xf32> to vector<8x1xf32>
    %cst_52 = arith.constant 3.906250e-03 : f32
    %65 = vector.broadcast %cst_52 : f32 to vector<8x1xf32>
    %66 = arith.mulf %59, %65 : vector<8x1xf32>
    %cst_53 = arith.constant 3.906250e-03 : f32
    %67 = vector.broadcast %cst_53 : f32 to vector<8x1xf32>
    %68 = arith.mulf %64, %67 : vector<8x1xf32>
    %69 = arith.mulf %66, %66 : vector<8x1xf32>
    %70 = arith.subf %68, %69 : vector<8x1xf32>
    %cst_54 = arith.constant 0.000000e+00 : f32
    %71 = vector.broadcast %cst_54 : f32 to vector<8x1xf32>
    %72 = arith.maximumf %70, %71 : vector<8x1xf32>
    %73 = vector.broadcast %66 : vector<8x1xf32> to vector<8x384xf32>
    %74 = arith.subf %54, %73 : vector<8x384xf32>
    %cst_55 = arith.constant 9.99999974E-6 : f32
    %75 = vector.broadcast %cst_55 : f32 to vector<8x1xf32>
    %76 = arith.addf %72, %75 : vector<8x1xf32>
    %77 = math.rsqrt %76 : vector<8x1xf32>
    %78 = vector.broadcast %77 : vector<8x1xf32> to vector<8x384xf32>
    %79 = arith.mulf %74, %78 : vector<8x384xf32>
    %cst_56 = arith.constant 0.000000e+00 : f32
    %80 = vector.broadcast %cst_56 : f32 to vector<8x384xf32>
    %81 = arith.cmpf oge, %79, %80 : vector<8x384xf32>
    %cst_57 = arith.constant 0.00999999977 : f32
    %82 = vector.broadcast %cst_57 : f32 to vector<8x384xf32>
    %83 = arith.mulf %82, %79 : vector<8x384xf32>
    %84 = arith.select %81, %79, %83 : vector<8x384xi1>, vector<8x384xf32>
    %c0_58 = arith.constant 0 : index
    %c0_59 = arith.constant 0 : index
    %c0_60 = arith.constant 0 : index
    %85 = vector.load %arg4[%c0_58, %c0_59, %c0_60] : memref<1x8x384xf32, #tpu.memory_space<vmem>>, vector<1x8x384xf32>
    %86 = vector.shape_cast %85 : vector<1x8x384xf32> to vector<8x384xf32>
    %87 = vector.shape_cast %84 : vector<8x384xf32> to vector<1x8x384xf32>
    tpu.vector_store %arg4[%c0_58, %c0_59, %c0_60], %87 {strides = array<i32>} : memref<1x8x384xf32, #tpu.memory_space<vmem>>, vector<1x8x384xf32>,
    return
  }
  func.func @transform_0(%arg0: i32) -> (i32, i32, i32) {
    %c0_i32 = arith.constant 0 : i32
    %c0_i32_0 = arith.constant 0 : i32
    %c0_i32_1 = arith.constant 0 : i32
    return %arg0, %c0_i32, %c0_i32_0 : i32, i32, i32
  }
  func.func @transform_1(%arg0: i32) -> (i32, i32, i32) {
    %c0_i32 = arith.constant 0 : i32
    %c0_i32_0 = arith.constant 0 : i32
    %c0_i32_1 = arith.constant 0 : i32
    %c0_i32_2 = arith.constant 0 : i32
    return %c0_i32, %c0_i32_0, %c0_i32_1 : i32, i32, i32
  }
  func.func @transform_2(%arg0: i32) -> (i32, i32) {
    %c0_i32 = arith.constant 0 : i32
    %c0_i32_0 = arith.constant 0 : i32
    %c0_i32_1 = arith.constant 0 : i32
    return %c0_i32, %c0_i32_0 : i32, i32
  }
  func.func @transform_3(%arg0: i32) -> (i32, i32, i32) {
    %c0_i32 = arith.constant 0 : i32
    %c0_i32_0 = arith.constant 0 : i32
    %c0_i32_1 = arith.constant 0 : i32
    return %arg0, %c0_i32, %c0_i32_0 : i32, i32, i32
  }
}

</mosaic_0001>

<llo_original>
// kernel: tpu_custom_call.1
$region0: #{tpu_custom_call.1}
  #allocation0 [shape = 'u32[]', space=smem, size = 0x4, offset = 0x4, fixed_abs, tag = 'smem constant byte address 0x4 - core index']
  #allocation1 [shape = 'u32[144,128]{1,0:T(1,128)}', space=vmem, size = 0x12000, scoped, tag = 'internal scratch']
  %s0 = inlined_call_operand.vmem [shape: f32[2,4,512], index: 0, kind: input, shape index: {}]
  %s1 = inlined_call_operand.vmem [shape: f32[9,8,4], index: 1, kind: input, shape index: {}]
  %s2 = inlined_call_operand.vmem [shape: f32[1,384], index: 2, kind: input, shape index: {}]
  %s3 = inlined_call_operand.hbm [shape: f32[2,8,384], index: 3, kind: output, shape index: {}]
  %s4 = sld [smem:[#allocation0]]
  $region45: #{tpu_custom_call.1} parent=0
    _
  %s6 = ssub.s32 1, %s4
  %s7 = scalar_select 0, %s6, %s4
  $region1: #{tpu_custom_call.1} parent=0
    #allocation2 [shape = 'u8[24576]{0}', space=vmem, size = 0x6000, scoped, tag = 'output window, operand 0']
    #allocation3 [shape = 's32[2]{0}', space=sflag, size = 0x8, scoped, tag = 'scoped memory for tpu_custom_call.1']
    %8 = vsyncpa [#allocation3], 0
    %s9 = scalar_lea.sflag [#allocation3], 1
    %10 = vsyncpa %s9, 0
    loop: start=0, step=1, limit=4
    $region2: #{tpu_custom_call.1} parent=1 // loop_pre_header
      _
    $region3: #{tpu_custom_call.1} parent=1 // loop_header
      %s12 = sphi 0, %s16
      %p13 = scmp.ge.s32.totalorder %s12, 4
      %s22 = sphi 0, %s24
      %s25 = sphi 0, %s22
      %s26 = sphi 0, %s25
      %s42 = sphi 0, %s26
      %s46 = sphi 0, %s46
      %s48 = sphi 0, %s46
      %s49 = sphi 0, %s48
      %s63 = sphi 0, %s49
      %s67 = sphi 0, %s67
      %s69 = sphi 0, %s67
      %s70 = sphi 0, %s69
      %s84 = sphi 0, %s70
      %s90 = sphi 0, %s92
      %s93 = sphi 0, %s90
      %s94 = sphi 0, %s93
      %s110 = sphi 0, %s94
    $region4: #{tpu_custom_call.1} parent=1 // loop_header_branch
      %15 = sbr.rel (%p13) target = $region8
    $region5: #{tpu_custom_call.1} parent=1 // loop_body
      %s17 = ssub.s32 %s12, 1
      %s18 = ssub.s32 %s12, 2
      %s19 = sadd.s32 %s12, 1
      %s20 = ssub.s32 %s12, %s19
      %p21 = scmp.eq.s32.totalorder %s20, 0
      %s23 = sadd.s32 %s22, 1
      %s24 = scalar_select %p21, %s22, %s23
      %p27 = pneg %p21
      %p28 = scmp.eq.s32.totalorder %s12, 1
      %p29 = por %p27, %p28
      %p30 = scmp.ne.s32.totalorder %s22, %s25
      %p31 = scmp.eq.s32.totalorder %s12, 0
      %p32 = por %p30, %p31
      %p33 = scmp.ne.s32.totalorder %s22, %s25
      %p34 = scmp.eq.s32.totalorder %s17, 1
      %p35 = por %p33, %p34
      %p36 = scmp.ne.s32.totalorder %s25, %s26
      %p37 = scmp.eq.s32.totalorder %s17, 0
      %p38 = por %p36, %p37
      %p39 = scmp.ne.s32.totalorder %s25, %s26
      %p40 = scmp.eq.s32.totalorder %s18, 1
      %p41 = por %p39, %p40
      %p43 = scmp.ne.s32.totalorder %s26, %s42
      %p44 = scmp.eq.s32.totalorder %s18, 0
      %p45 = por %p43, %p44
      %s47 = sadd.s32 %s46, 1
      %p50 = scmp.eq.s32.totalorder %s12, 1
      %p51 = scmp.ne.s32.totalorder %s46, %s48
      %p52 = scmp.eq.s32.totalorder %s12, 0
      %p53 = por %p51, %p52
      %p54 = scmp.ne.s32.totalorder %s46, %s48
      %p55 = scmp.eq.s32.totalorder %s17, 1
      %p56 = por %p54, %p55
      %p57 = scmp.ne.s32.totalorder %s48, %s49
      %p58 = scmp.eq.s32.totalorder %s17, 0
      %p59 = por %p57, %p58
      %p60 = scmp.ne.s32.totalorder %s48, %s49
      %p61 = scmp.eq.s32.totalorder %s18, 1
      %p62 = por %p60, %p61
      %p64 = scmp.ne.s32.totalorder %s49, %s63
      %p65 = scmp.eq.s32.totalorder %s18, 0
      %p66 = por %p64, %p65
      %s68 = sadd.s32 %s67, 1
      %p71 = scmp.eq.s32.totalorder %s12, 1
      %p72 = scmp.ne.s32.totalorder %s67, %s69
      %p73 = scmp.eq.s32.totalorder %s12, 0
      %p74 = por %p72, %p73
      %p75 = scmp.ne.s32.totalorder %s67, %s69
      %p76 = scmp.eq.s32.totalorder %s17, 1
      %p77 = por %p75, %p76
      %p78 = scmp.ne.s32.totalorder %s69, %s70
      %p79 = scmp.eq.s32.totalorder %s17, 0
      %p80 = por %p78, %p79
      %p81 = scmp.ne.s32.totalorder %s69, %s70
      %p82 = scmp.eq.s32.totalorder %s18, 1
      %p83 = por %p81, %p82
      %p85 = scmp.ne.s32.totalorder %s70, %s84
      %p86 = scmp.eq.s32.totalorder %s18, 0
      %p87 = por %p85, %p86
      %s88 = ssub.s32 %s12, %s19
      %p89 = scmp.eq.s32.totalorder %s88, 0
      %s91 = sadd.s32 %s90, 1
      %s92 = scalar_select %p89, %s90, %s91
      %p95 = pneg %p89
      %p96 = scmp.eq.s32.totalorder %s12, 1
      %p97 = por %p95, %p96
      %p98 = scmp.ne.s32.totalorder %s90, %s93
      %p99 = scmp.eq.s32.totalorder %s12, 0
      %p100 = por %p98, %p99
      %p101 = scmp.ne.s32.totalorder %s90, %s93
      %p102 = scmp.eq.s32.totalorder %s17, 1
      %p103 = por %p101, %p102
      %p104 = scmp.ne.s32.totalorder %s93, %s94
      %p105 = scmp.eq.s32.totalorder %s17, 0
      %p106 = por %p104, %p105
      %p107 = scmp.ne.s32.totalorder %s93, %s94
      %p108 = scmp.eq.s32.totalorder %s18, 1
      %p109 = por %p107, %p108
      %p111 = scmp.ne.s32.totalorder %s94, %s110
      %p112 = scmp.eq.s32.totalorder %s18, 0
      %p113 = por %p111, %p112
      %p114 = scmp.le.s32.totalorder 1, %s12
      %p115 = scmp.lt.s32.totalorder %s12, 3
      %p116 = pnand %p114, %p115
      %p117 = pneg %p116
      // Predicated region
      $region9: #{tpu_custom_call.1} parent=5 // pred_check
        _
      $region10: #{tpu_custom_call.1} parent=5 // pred_check_branch
        %119 = sbr.rel (%p116) target = $region12
      $region11: #{tpu_custom_call.1} parent=5 // pred_region
        %s120 = ssub.s32 %s12, 1
        // Predicated region
        $region13: #{tpu_custom_call.1} parent=11 // pred_check
          %p121 = pneg %p59
        $region14: #{tpu_custom_call.1} parent=11 // pred_check_branch
          %123 = sbr.rel (%p121) target = $region16
        $region15: #{tpu_custom_call.1} parent=11 // pred_region
          _
        $region16: #{tpu_custom_call.1} parent=11 // pred_fallthru
          _
        // Predicated region
        $region17: #{tpu_custom_call.1} parent=11 // pred_check
          %p124 = pneg %p80
        $region18: #{tpu_custom_call.1} parent=11 // pred_check_branch
          %126 = sbr.rel (%p124) target = $region20
        $region19: #{tpu_custom_call.1} parent=11 // pred_region
          _
        $region20: #{tpu_custom_call.1} parent=11 // pred_fallthru
          _
      $region12: #{tpu_custom_call.1} parent=5 // pred_fallthru
        _
      %p127 = scmp.lt.s32.totalorder %s12, 2
      // Predicated region
      $region21: #{tpu_custom_call.1} parent=5 // pred_check
        %p128 = pneg %p127
      $region22: #{tpu_custom_call.1} parent=5 // pred_check_branch
        %130 = sbr.rel (%p128) target = $region24
      $region23: #{tpu_custom_call.1} parent=5 // pred_region
        // Predicated region
        $region25: #{tpu_custom_call.1} parent=23 // pred_check
          %p131 = pneg %p32
        $region26: #{tpu_custom_call.1} parent=23 // pred_check_branch
          %133 = sbr.rel (%p131) target = $region28
        $region27: #{tpu_custom_call.1} parent=23 // pred_region
          %p134 = scmp.lt.s32.totalorder %s12, 1
          %s135 = scalar_select %p134, %s12, 1
          %s136 = smul.addr %s135, 4
          %s137 = smul.addr %s136, 4
          %s138 = scalar_lea.vmem %s0, %s137
        $region28: #{tpu_custom_call.1} parent=23 // pred_fallthru
          _
      $region24: #{tpu_custom_call.1} parent=5 // pred_fallthru
        _
      %p139 = scmp.le.s32.totalorder 1, %s12
      %p140 = scmp.lt.s32.totalorder %s12, 3
      %p141 = pnand %p139, %p140
      %p142 = pneg %p141
      // Predicated region
      $region29: #{tpu_custom_call.1} parent=5 // pred_check
        _
      $region30: #{tpu_custom_call.1} parent=5 // pred_check_branch
        %144 = sbr.rel (%p141) target = $region32
      $region31: #{tpu_custom_call.1} parent=5 // pred_region
        %s145 = ssub.s32 %s12, 1
        %p146 = scmp.lt.s32.totalorder %s17, 1
        %s147 = scalar_select %p146, %s17, 1
        %s148 = smul.addr %s147, 4
        %s149 = smul.addr %s148, 4
        %s150 = scalar_lea.vmem %s0, %s149
        %p151 = pneg %p38
        %p152 = pneg %p35
        %p153 = pneg %p59
        %p154 = pneg %p56
        %p155 = pneg %p80
        %p156 = pneg %p77
        %p157 = pneg %p106
        %p158 = pneg %p103
        %s159 = sand.u32 %s93, 1
        %s160 = scalar_lea.sflag [#allocation3], %s159
        %s161 = sand.u32 %s93, 1
        %s162 = smul.addr %s161, 24
        %s163 = scalar_lea.vmem [#allocation2], %s162
        %p164 = scmp.lt.s32.totalorder %s17, 1
        %s165 = scalar_select %p164, %s17, 1
        %s166 = smul.addr %s165, 4
        %s167 = smul.addr %s166, 4
        %s168 = scalar_lea.vmem %s0, %s167
        %v169 = vld [vmem:[%s168] sm:$0xff]
        %v170 = vld [vmem:[%s168 + $0x8] sm:$0xf]
        %v171 = vld [vmem:[%s1] sm:$0xff]
        %v172 = vld [vmem:[%s168] sm:$0xff]
        %v173 = vld [vmem:[%s168 + $0x8] sm:$0xff]
        %s174 = scalar_lea.vmem %s1, 8
        %v175 = vld [vmem:[%s174] sm:$0xff]
        %v178 = vcombine.high %v172, %v172
        %v179 = vcombine.high %v173, %v173
        %180 = vrot.lane.b32.xlu0 %v172, 127
        %v181 = vpop.permute.xlu0 %180
        %182 = vrot.lane.b32.xlu0 %v178, 127
        %v183 = vpop.permute.xlu0 %182
        %184 = vrot.lane.b32.xlu0 %v173, 127
        %v185 = vpop.permute.xlu0 %184
        %186 = vrot.lane.b32.xlu0 %v179, 127
        %v187 = vpop.permute.xlu0 %186
        %vm188 = vcmask 1039360
        %v189 = vsel %vm188, %v181, %v183
        %v190 = vsel %vm188, %v183, %v185
        %v191 = vsel %vm188, %v185, %v187
        %vm192 = vcmask 31744
        %v194 = vsel %vm192, %v175, 0
        %vm196 = vcmask 1043456
        %v197 = vsel %vm196, %v189, 0
        %v199 = vsel %vm196, %v190, 0
        %v201 = vsel %vm196, %v191, 0
        %v203 = vand.u32 %v199, 4294901760
        %204 = vmatprep.subr.mxu0 %v203
        %v205 = vand.u32 %v197, 4294901760
        %206 = vmatpush1.msra.mxu0 %v205
        %207 = vmatprep.subr.mxu0 0.0
        %208 = vmatpush1.msra.mxu0 0.0
        %209 = vmatprep.subr.mxu0 0.0
        %210 = vmatpush1.msra.mxu0 0.0
        %211 = vmatprep.subr.mxu0 0.0
        %212 = vmatpush1.msra.mxu0 0.0
        %213 = vmatprep.subr.mxu0 0.0
        %214 = vmatpush1.msra.mxu0 0.0
        %215 = vmatprep.subr.mxu0 0.0
        %216 = vmatpush1.msra.mxu0 0.0
        %217 = vmatprep.subr.mxu0 0.0
        %218 = vmatpush1.msra.mxu0 0.0
        %219 = vmatprep.subr.mxu0 0.0
        %220 = vmatpush1.msra.mxu0 0.0
        %221 = vmatprep.subr.mxu0 0.0
        %222 = vmatpush1.msra.mxu0 0.0
        %223 = vmatprep.subr.mxu0 0.0
        %224 = vmatpush1.msra.mxu0 0.0
        %225 = vmatprep.subr.mxu0 0.0
        %226 = vmatpush1.msra.mxu0 0.0
        %227 = vmatprep.subr.mxu0 0.0
        %228 = vmatpush1.msra.mxu0 0.0
        %229 = vmatprep.subr.mxu0 0.0
        %230 = vmatpush1.msra.mxu0 0.0
        %231 = vmatprep.subr.mxu0 0.0
        %232 = vmatpush1.msra.mxu0 0.0
        %233 = vmatprep.subr.mxu0 0.0
        %234 = vmatpush1.msra.mxu0 0.0
        %235 = vmatprep.subr.mxu0 0.0
        %236 = vmatpush1.msra.mxu0 0.0
        %237 = vmatprep.subr.mxu0 0.0
        %238 = vmatpush1.msra.mxu0 0.0
        %239 = vmatprep.subr.mxu0 0.0
        %240 = vmatpush1.msra.mxu0 0.0
        %241 = vmatprep.subr.mxu0 0.0
        %242 = vmatpush1.msra.mxu0 0.0
        %243 = vmatprep.subr.mxu0 0.0
        %244 = vmatpush1.msra.mxu0 0.0
        %245 = vmatprep.subr.mxu0 0.0
        %246 = vmatpush1.msra.mxu0 0.0
        %247 = vmatprep.subr.mxu0 0.0
        %248 = vmatpush1.msra.mxu0 0.0
        %249 = vmatprep.subr.mxu0 0.0
        %250 = vmatpush1.msra.mxu0 0.0
        %251 = vmatprep.subr.mxu0 0.0
        %252 = vmatpush1.msra.mxu0 0.0
        %253 = vmatprep.subr.mxu0 0.0
        %254 = vmatpush1.msra.mxu0 0.0
        %255 = vmatprep.subr.mxu0 0.0
        %256 = vmatpush1.msra.mxu0 0.0
        %257 = vmatprep.subr.mxu0 0.0
        %258 = vmatpush1.msra.mxu0 0.0
        %259 = vmatprep.subr.mxu0 0.0
        %260 = vmatpush1.msra.mxu0 0.0
        %261 = vmatprep.subr.mxu0 0.0
        %262 = vmatpush1.msra.mxu0 0.0
        %263 = vmatprep.subr.mxu0 0.0
        %264 = vmatpush1.msra.mxu0 0.0
        %265 = vmatprep.subr.mxu0 0.0
        %266 = vmatpush1.msra.mxu0 0.0
        %267 = vmatprep.subr.mxu0 0.0
        %268 = vmatpush1.msra.mxu0 0.0
        %269 = vmatprep.mubr.f32.mxu0 0.0
        %v270 = vand.u32 %v194, 4294901760
        %v271 = vsub.f32 %v194, %v270
        %v272 = vand.u32 %v271, 4294901760
        %v273 = vsub.f32 %v271, %v272
        %v274 = vand.u32 %v273, 4294901760
        %275 = vmatmul.mubr.f32.gmra.mrb[0].mxu0 %v274
        %v276 = vpop.f32.mrb[0].mxu0
        %v277 = vadd.f32 0.0, %v276
        %v278 = vpop.f32.mrb[0].mxu0
        %v279 = vadd.f32 0.0, %v278
        %280 = vdwg.mxu0
        %v281 = vand.u32 %v199, 4294901760
        %v282 = vsub.f32 %v199, %v281
        %v283 = vand.u32 %v282, 4294901760
        %v284 = vsub.f32 %v282, %v283
        %v285 = vand.u32 %v284, 4294901760
        %286 = vmatprep.subr.mxu0 %v285
        %v287 = vand.u32 %v197, 4294901760
        %v288 = vsub.f32 %v197, %v287
        %v289 = vand.u32 %v288, 4294901760
        %v290 = vsub.f32 %v288, %v289
        %v291 = vand.u32 %v290, 4294901760
        %292 = vmatpush1.msra.mxu0 %v291
        %293 = vmatprep.subr.mxu0 0.0
        %294 = vmatpush1.msra.mxu0 0.0
        %295 = vmatprep.subr.mxu0 0.0
        %296 = vmatpush1.msra.mxu0 0.0
        %297 = vmatprep.subr.mxu0 0.0
        %298 = vmatpush1.msra.mxu0 0.0
        %299 = vmatprep.subr.mxu0 0.0
        %300 = vmatpush1.msra.mxu0 0.0
        %301 = vmatprep.subr.mxu0 0.0
        %302 = vmatpush1.msra.mxu0 0.0
        %303 = vmatprep.subr.mxu0 0.0
        %304 = vmatpush1.msra.mxu0 0.0
        %305 = vmatprep.subr.mxu0 0.0
        %306 = vmatpush1.msra.mxu0 0.0
        %307 = vmatprep.subr.mxu0 0.0
        %308 = vmatpush1.msra.mxu0 0.0
        %309 = vmatprep.subr.mxu0 0.0
        %310 = vmatpush1.msra.mxu0 0.0
        %311 = vmatprep.subr.mxu0 0.0
        %312 = vmatpush1.msra.mxu0 0.0
        %313 = vmatprep.subr.mxu0 0.0
        %314 = vmatpush1.msra.mxu0 0.0
        %315 = vmatprep.subr.mxu0 0.0
        %316 = vmatpush1.msra.mxu0 0.0
        %317 = vmatprep.subr.mxu0 0.0
        %318 = vmatpush1.msra.mxu0 0.0
        %319 = vmatprep.subr.mxu0 0.0
        %320 = vmatpush1.msra.mxu0 0.0
        %321 = vmatprep.subr.mxu0 0.0
        %322 = vmatpush1.msra.mxu0 0.0
        %323 = vmatprep.subr.mxu0 0.0
        %324 = vmatpush1.msra.mxu0 0.0
        %325 = vmatprep.subr.mxu0 0.0
        %326 = vmatpush1.msra.mxu0 0.0
        %327 = vmatprep.subr.mxu0 0.0
        %328 = vmatpush1.msra.mxu0 0.0
        %329 = vmatprep.subr.mxu0 0.0
        %330 = vmatpush1.msra.mxu0 0.0
        %331 = vmatprep.subr.mxu0 0.0
        %332 = vmatpush1.msra.mxu0 0.0
        %333 = vmatprep.subr.mxu0 0.0
        %334 = vmatpush1.msra.mxu0 0.0
        %335 = vmatprep.subr.mxu0 0.0
        %336 = vmatpush1.msra.mxu0 0.0
        %337 = vmatprep.subr.mxu0 0.0
        %338 = vmatpush1.msra.mxu0 0.0
        %339 = vmatprep.subr.mxu0 0.0
        %340 = vmatpush1.msra.mxu0 0.0
        %341 = vmatprep.subr.mxu0 0.0
        %342 = vmatpush1.msra.mxu0 0.0
        %343 = vmatprep.subr.mxu0 0.0
        %344 = vmatpush1.msra.mxu0 0.0
        %345 = vmatprep.subr.mxu0 0.0
        %346 = vmatpush1.msra.mxu0 0.0
        %347 = vmatprep.subr.mxu0 0.0
        %348 = vmatpush1.msra.mxu0 0.0
        %349 = vmatprep.subr.mxu0 0.0
        %350 = vmatpush1.msra.mxu0 0.0
        %351 = vmatprep.subr.mxu0 0.0
        %352 = vmatpush1.msra.mxu0 0.0
        %353 = vmatprep.subr.mxu0 0.0
        %354 = vmatpush1.msra.mxu0 0.0
        %355 = vmatprep.mubr.f32.mxu0 0.0
        %v356 = vand.u32 %v194, 4294901760
        %357 = vmatmul.mubr.f32.gmra.mrb[0].mxu0 %v356
        %v358 = vpop.f32.mrb[0].mxu0
        %v359 = vadd.f32 %v277, %v358
        %v360 = vpop.f32.mrb[0].mxu0
        %v361 = vadd.f32 %v279, %v360
        %362 = vdwg.mxu0
        %v363 = vand.u32 %v199, 4294901760
        %v364 = vsub.f32 %v199, %v363
        %365 = vmatprep.subr.mxu0 %v364
        %v366 = vand.u32 %v197, 4294901760
        %v367 = vsub.f32 %v197, %v366
        %368 = vmatpush1.msra.mxu0 %v367
        %369 = vmatprep.subr.mxu0 0.0
        %370 = vmatpush1.msra.mxu0 0.0
        %371 = vmatprep.subr.mxu0 0.0
        %372 = vmatpush1.msra.mxu0 0.0
        %373 = vmatprep.subr.mxu0 0.0
        %374 = vmatpush1.msra.mxu0 0.0
        %375 = vmatprep.subr.mxu0 0.0
        %376 = vmatpush1.msra.mxu0 0.0
        %377 = vmatprep.subr.mxu0 0.0
        %378 = vmatpush1.msra.mxu0 0.0
        %379 = vmatprep.subr.mxu0 0.0
        %380 = vmatpush1.msra.mxu0 0.0
        %381 = vmatprep.subr.mxu0 0.0
        %382 = vmatpush1.msra.mxu0 0.0
        %383 = vmatprep.subr.mxu0 0.0
        %384 = vmatpush1.msra.mxu0 0.0
        %385 = vmatprep.subr.mxu0 0.0
        %386 = vmatpush1.msra.mxu0 0.0
        %387 = vmatprep.subr.mxu0 0.0
        %388 = vmatpush1.msra.mxu0 0.0
        %389 = vmatprep.subr.mxu0 0.0
        %390 = vmatpush1.msra.mxu0 0.0
        %391 = vmatprep.subr.mxu0 0.0
        %392 = vmatpush1.msra.mxu0 0.0
        %393 = vmatprep.subr.mxu0 0.0
        %394 = vmatpush1.msra.mxu0 0.0
        %395 = vmatprep.subr.mxu0 0.0
        %396 = vmatpush1.msra.mxu0 0.0
        %397 = vmatprep.subr.mxu0 0.0
        %398 = vmatpush1.msra.mxu0 0.0
        %399 = vmatprep.subr.mxu0 0.0
        %400 = vmatpush1.msra.mxu0 0.0
        %401 = vmatprep.subr.mxu0 0.0
        %402 = vmatpush1.msra.mxu0 0.0
        %403 = vmatprep.subr.mxu0 0.0
        %404 = vmatpush1.msra.mxu0 0.0
        %405 = vmatprep.subr.mxu0 0.0
        %406 = vmatpush1.msra.mxu0 0.0
        %407 = vmatprep.subr.mxu0 0.0
        %408 = vmatpush1.msra.mxu0 0.0
        %409 = vmatprep.subr.mxu0 0.0
        %410 = vmatpush1.msra.mxu0 0.0
        %411 = vmatprep.subr.mxu0 0.0
        %412 = vmatpush1.msra.mxu0 0.0
        %413 = vmatprep.subr.mxu0 0.0
        %414 = vmatpush1.msra.mxu0 0.0
        %415 = vmatprep.subr.mxu0 0.0
        %416 = vmatpush1.msra.mxu0 0.0
        %417 = vmatprep.subr.mxu0 0.0
        %418 = vmatpush1.msra.mxu0 0.0
        %419 = vmatprep.subr.mxu0 0.0
        %420 = vmatpush1.msra.mxu0 0.0
        %421 = vmatprep.subr.mxu0 0.0
        %422 = vmatpush1.msra.mxu0 0.0
        %423 = vmatprep.subr.mxu0 0.0
        %424 = vmatpush1.msra.mxu0 0.0
        %425 = vmatprep.subr.mxu0 0.0
        %426 = vmatpush1.msra.mxu0 0.0
        %427 = vmatprep.subr.mxu0 0.0
        %428 = vmatpush1.msra.mxu0 0.0
        %429 = vmatprep.subr.mxu0 0.0
        %430 = vmatpush1.msra.mxu0 0.0
        %431 = vmatprep.mubr.f32.mxu0 0.0
        %v432 = vand.u32 %v194, 4294901760
        %v433 = vsub.f32 %v194, %v432
        %434 = vmatmul.mubr.f32.gmra.mrb[0].mxu0 %v433
        %v435 = vpop.f32.mrb[0].mxu0
        %v436 = vadd.f32 %v359, %v435
        %v437 = vpop.f32.mrb[0].mxu0
        %v438 = vadd.f32 %v361, %v437
        %439 = vdwg.mxu0
        %v440 = vand.u32 %v199, 4294901760
        %441 = vmatprep.subr.mxu0 %v440
        %v442 = vand.u32 %v197, 4294901760
        %443 = vmatpush1.msra.mxu0 %v442
        %444 = vmatprep.subr.mxu0 0.0
        %445 = vmatpush1.msra.mxu0 0.0
        %446 = vmatprep.subr.mxu0 0.0
        %447 = vmatpush1.msra.mxu0 0.0
        %448 = vmatprep.subr.mxu0 0.0
        %449 = vmatpush1.msra.mxu0 0.0
        %450 = vmatprep.subr.mxu0 0.0
        %451 = vmatpush1.msra.mxu0 0.0
        %452 = vmatprep.subr.mxu0 0.0
        %453 = vmatpush1.msra.mxu0 0.0
        %454 = vmatprep.subr.mxu0 0.0
        %455 = vmatpush1.msra.mxu0 0.0
        %456 = vmatprep.subr.mxu0 0.0
        %457 = vmatpush1.msra.mxu0 0.0
        %458 = vmatprep.subr.mxu0 0.0
        %459 = vmatpush1.msra.mxu0 0.0
        %460 = vmatprep.subr.mxu0 0.0
        %461 = vmatpush1.msra.mxu0 0.0
        %462 = vmatprep.subr.mxu0 0.0
        %463 = vmatpush1.msra.mxu0 0.0
        %464 = vmatprep.subr.mxu0 0.0
        %465 = vmatpush1.msra.mxu0 0.0
        %466 = vmatprep.subr.mxu0 0.0
        %467 = vmatpush1.msra.mxu0 0.0
        %468 = vmatprep.subr.mxu0 0.0
        %469 = vmatpush1.msra.mxu0 0.0
        %470 = vmatprep.subr.mxu0 0.0
        %471 = vmatpush1.msra.mxu0 0.0
        %472 = vmatprep.subr.mxu0 0.0
        %473 = vmatpush1.msra.mxu0 0.0
        %474 = vmatprep.subr.mxu0 0.0
        %475 = vmatpush1.msra.mxu0 0.0
        %476 = vmatprep.subr.mxu0 0.0
        %477 = vmatpush1.msra.mxu0 0.0
        %478 = vmatprep.subr.mxu0 0.0
        %479 = vmatpush1.msra.mxu0 0.0
        %480 = vmatprep.subr.mxu0 0.0
        %481 = vmatpush1.msra.mxu0 0.0
        %482 = vmatprep.subr.mxu0 0.0
        %483 = vmatpush1.msra.mxu0 0.0
        %484 = vmatprep.subr.mxu0 0.0
        %485 = vmatpush1.msra.mxu0 0.0
        %486 = vmatprep.subr.mxu0 0.0
        %487 = vmatpush1.msra.mxu0 0.0
        %488 = vmatprep.subr.mxu0 0.0
        %489 = vmatpush1.msra.mxu0 0.0
        %490 = vmatprep.subr.mxu0 0.0
        %491 = vmatpush1.msra.mxu0 0.0
        %492 = vmatprep.subr.mxu0 0.0
        %493 = vmatpush1.msra.mxu0 0.0
        %494 = vmatprep.subr.mxu0 0.0
        %495 = vmatpush1.msra.mxu0 0.0
        %496 = vmatprep.subr.mxu0 0.0
        %497 = vmatpush1.msra.mxu0 0.0
        %498 = vmatprep.subr.mxu0 0.0
        %499 = vmatpush1.msra.mxu0 0.0
        %500 = vmatprep.subr.mxu0 0.0
        %501 = vmatpush1.msra.mxu0 0.0
        %502 = vmatprep.subr.mxu0 0.0
        %503 = vmatpush1.msra.mxu0 0.0
        %504 = vmatprep.subr.mxu0 0.0
        %505 = vmatpush1.msra.mxu0 0.0
        %506 = vmatprep.mubr.f32.mxu0 0.0
        %v507 = vand.u32 %v194, 4294901760
        %v508 = vsub.f32 %v194, %v507
        %v509 = vand.u32 %v508, 4294901760
        %510 = vmatmul.mubr.f32.gmra.mrb[0].mxu0 %v509
        %v511 = vpop.f32.mrb[0].mxu0
        %v512 = vadd.f32 %v436, %v511
        %v513 = vpop.f32.mrb[0].mxu0
        %v514 = vadd.f32 %v438, %v513
        %515 = vdwg.mxu0
        %v516 = vand.u32 %v199, 4294901760
        %v517 = vsub.f32 %v199, %v516
        %v518 = vand.u32 %v517, 4294901760
        %519 = vmatprep.subr.mxu0 %v518
        %v520 = vand.u32 %v197, 4294901760
        %v521 = vsub.f32 %v197, %v520
        %v522 = vand.u32 %v521, 4294901760
        %523 = vmatpush1.msra.mxu0 %v522
        %524 = vmatprep.subr.mxu0 0.0
        %525 = vmatpush1.msra.mxu0 0.0
        %526 = vmatprep.subr.mxu0 0.0
        %527 = vmatpush1.msra.mxu0 0.0
        %528 = vmatprep.subr.mxu0 0.0
        %529 = vmatpush1.msra.mxu0 0.0
        %530 = vmatprep.subr.mxu0 0.0
        %531 = vmatpush1.msra.mxu0 0.0
        %532 = vmatprep.subr.mxu0 0.0
        %533 = vmatpush1.msra.mxu0 0.0
        %534 = vmatprep.subr.mxu0 0.0
        %535 = vmatpush1.msra.mxu0 0.0
        %536 = vmatprep.subr.mxu0 0.0
        %537 = vmatpush1.msra.mxu0 0.0
        %538 = vmatprep.subr.mxu0 0.0
        %539 = vmatpush1.msra.mxu0 0.0
        %540 = vmatprep.subr.mxu0 0.0
        %541 = vmatpush1.msra.mxu0 0.0
        %542 = vmatprep.subr.mxu0 0.0
        %543 = vmatpush1.msra.mxu0 0.0
        %544 = vmatprep.subr.mxu0 0.0
        %545 = vmatpush1.msra.mxu0 0.0
        %546 = vmatprep.subr.mxu0 0.0
        %547 = vmatpush1.msra.mxu0 0.0
        %548 = vmatprep.subr.mxu0 0.0
        %549 = vmatpush1.msra.mxu0 0.0
        %550 = vmatprep.subr.mxu0 0.0
        %551 = vmatpush1.msra.mxu0 0.0
        %552 = vmatprep.subr.mxu0 0.0
        %553 = vmatpush1.msra.mxu0 0.0
        %554 = vmatprep.subr.mxu0 0.0
        %555 = vmatpush1.msra.mxu0 0.0
        %556 = vmatprep.subr.mxu0 0.0
        %557 = vmatpush1.msra.mxu0 0.0
        %558 = vmatprep.subr.mxu0 0.0
        %559 = vmatpush1.msra.mxu0 0.0
        %560 = vmatprep.subr.mxu0 0.0
        %561 = vmatpush1.msra.mxu0 0.0
        %562 = vmatprep.subr.mxu0 0.0
        %563 = vmatpush1.msra.mxu0 0.0
        %564 = vmatprep.subr.mxu0 0.0
        %565 = vmatpush1.msra.mxu0 0.0
        %566 = vmatprep.subr.mxu0 0.0
        %567 = vmatpush1.msra.mxu0 0.0
        %568 = vmatprep.subr.mxu0 0.0
        %569 = vmatpush1.msra.mxu0 0.0
        %570 = vmatprep.subr.mxu0 0.0
        %571 = vmatpush1.msra.mxu0 0.0
        %572 = vmatprep.subr.mxu0 0.0
        %573 = vmatpush1.msra.mxu0 0.0
        %574 = vmatprep.subr.mxu0 0.0
        %575 = vmatpush1.msra.mxu0 0.0
        %576 = vmatprep.subr.mxu0 0.0
        %577 = vmatpush1.msra.mxu0 0.0
        %578 = vmatprep.subr.mxu0 0.0
        %579 = vmatpush1.msra.mxu0 0.0
        %580 = vmatprep.subr.mxu0 0.0
        %581 = vmatpush1.msra.mxu0 0.0
        %582 = vmatprep.subr.mxu0 0.0
        %583 = vmatpush1.msra.mxu0 0.0
        %584 = vmatprep.subr.mxu0 0.0
        %585 = vmatpush1.msra.mxu0 0.0
        %586 = vmatprep.mubr.f32.mxu0 0.0
        %v587 = vand.u32 %v194, 4294901760
        %588 = vmatmul.mubr.f32.gmra.mrb[0].mxu0 %v587
        %v589 = vpop.f32.mrb[0].mxu0
        %v590 = vadd.f32 %v512, %v589
        %v591 = vpop.f32.mrb[0].mxu0
        %v592 = vadd.f32 %v514, %v591
        %593 = vdwg.mxu0
        %v594 = vand.u32 %v199, 4294901760
        %595 = vmatprep.subr.mxu0 %v594
        %v596 = vand.u32 %v197, 4294901760
        %597 = vmatpush1.msra.mxu0 %v596
        %598 = vmatprep.subr.mxu0 0.0
        %599 = vmatpush1.msra.mxu0 0.0
        %600 = vmatprep.subr.mxu0 0.0
        %601 = vmatpush1.msra.mxu0 0.0
        %602 = vmatprep.subr.mxu0 0.0
        %603 = vmatpush1.msra.mxu0 0.0
        %604 = vmatprep.subr.mxu0 0.0
        %605 = vmatpush1.msra.mxu0 0.0
        %606 = vmatprep.subr.mxu0 0.0
        %607 = vmatpush1.msra.mxu0 0.0
        %608 = vmatprep.subr.mxu0 0.0
        %609 = vmatpush1.msra.mxu0 0.0
        %610 = vmatprep.subr.mxu0 0.0
        %611 = vmatpush1.msra.mxu0 0.0
        %612 = vmatprep.subr.mxu0 0.0
        %613 = vmatpush1.msra.mxu0 0.0
        %614 = vmatprep.subr.mxu0 0.0
        %615 = vmatpush1.msra.mxu0 0.0
        %616 = vmatprep.subr.mxu0 0.0
        %617 = vmatpush1.msra.mxu0 0.0
        %618 = vmatprep.subr.mxu0 0.0
        %619 = vmatpush1.msra.mxu0 0.0
        %620 = vmatprep.subr.mxu0 0.0
        %621 = vmatpush1.msra.mxu0 0.0
        %622 = vmatprep.subr.mxu0 0.0
        %623 = vmatpush1.msra.mxu0 0.0
        %624 = vmatprep.subr.mxu0 0.0
        %625 = vmatpush1.msra.mxu0 0.0
        %626 = vmatprep.subr.mxu0 0.0
        %627 = vmatpush1.msra.mxu0 0.0
        %628 = vmatprep.subr.mxu0 0.0
        %629 = vmatpush1.msra.mxu0 0.0
        %630 = vmatprep.subr.mxu0 0.0
        %631 = vmatpush1.msra.mxu0 0.0
        %632 = vmatprep.subr.mxu0 0.0
        %633 = vmatpush1.msra.mxu0 0.0
        %634 = vmatprep.subr.mxu0 0.0
        %635 = vmatpush1.msra.mxu0 0.0
        %636 = vmatprep.subr.mxu0 0.0
        %637 = vmatpush1.msra.mxu0 0.0
        %638 = vmatprep.subr.mxu0 0.0
        %639 = vmatpush1.msra.mxu0 0.0
        %640 = vmatprep.subr.mxu0 0.0
        %641 = vmatpush1.msra.mxu0 0.0
        %642 = vmatprep.subr.mxu0 0.0
        %643 = vmatpush1.msra.mxu0 0.0
        %644 = vmatprep.subr.mxu0 0.0
        %645 = vmatpush1.msra.mxu0 0.0
        %646 = vmatprep.subr.mxu0 0.0
        %647 = vmatpush1.msra.mxu0 0.0
        %648 = vmatprep.subr.mxu0 0.0
        %649 = vmatpush1.msra.mxu0 0.0
        %650 = vmatprep.subr.mxu0 0.0
        %651 = vmatpush1.msra.mxu0 0.0
        %652 = vmatprep.subr.mxu0 0.0
        %653 = vmatpush1.msra.mxu0 0.0
        %654 = vmatprep.subr.mxu0 0.0
        %655 = vmatpush1.msra.mxu0 0.0
        %656 = vmatprep.subr.mxu0 0.0
        %657 = vmatpush1.msra.mxu0 0.0
        %658 = vmatprep.subr.mxu0 0.0
        %659 = vmatpush1.msra.mxu0 0.0
        %660 = vmatprep.mubr.f32.mxu0 0.0
        %v661 = vand.u32 %v194, 4294901760
        %662 = vmatmul.mubr.f32.gmra.mrb[0].mxu0 %v661
        %v663 = vpop.f32.mrb[0].mxu0
        %v664 = vadd.f32 %v590, %v663
        %v665 = vpop.f32.mrb[0].mxu0
        %v666 = vadd.f32 %v592, %v665
        %667 = vdwg.mxu0
        %668 = vmatprep.subr.mxu0 0.0
        %v669 = vand.u32 %v201, 4294901760
        %670 = vmatpush1.msra.mxu0 %v669
        %671 = vmatprep.subr.mxu0 0.0
        %672 = vmatpush1.msra.mxu0 0.0
        %673 = vmatprep.subr.mxu0 0.0
        %674 = vmatpush1.msra.mxu0 0.0
        %675 = vmatprep.subr.mxu0 0.0
        %676 = vmatpush1.msra.mxu0 0.0
        %677 = vmatprep.subr.mxu0 0.0
        %678 = vmatpush1.msra.mxu0 0.0
        %679 = vmatprep.subr.mxu0 0.0
        %680 = vmatpush1.msra.mxu0 0.0
        %681 = vmatprep.subr.mxu0 0.0
        %682 = vmatpush1.msra.mxu0 0.0
        %683 = vmatprep.subr.mxu0 0.0
        %684 = vmatpush1.msra.mxu0 0.0
        %685 = vmatprep.subr.mxu0 0.0
        %686 = vmatpush1.msra.mxu0 0.0
        %687 = vmatprep.subr.mxu0 0.0
        %688 = vmatpush1.msra.mxu0 0.0
        %689 = vmatprep.subr.mxu0 0.0
        %690 = vmatpush1.msra.mxu0 0.0
        %691 = vmatprep.subr.mxu0 0.0
        %692 = vmatpush1.msra.mxu0 0.0
        %693 = vmatprep.subr.mxu0 0.0
        %694 = vmatpush1.msra.mxu0 0.0
        %695 = vmatprep.subr.mxu0 0.0
        %696 = vmatpush1.msra.mxu0 0.0
        %697 = vmatprep.subr.mxu0 0.0
        %698 = vmatpush1.msra.mxu0 0.0
        %699 = vmatprep.subr.mxu0 0.0
        %700 = vmatpush1.msra.mxu0 0.0
        %701 = vmatprep.subr.mxu0 0.0
        %702 = vmatpush1.msra.mxu0 0.0
        %703 = vmatprep.subr.mxu0 0.0
        %704 = vmatpush1.msra.mxu0 0.0
        %705 = vmatprep.subr.mxu0 0.0
        %706 = vmatpush1.msra.mxu0 0.0
        %707 = vmatprep.subr.mxu0 0.0
        %708 = vmatpush1.msra.mxu0 0.0
        %709 = vmatprep.subr.mxu0 0.0
        %710 = vmatpush1.msra.mxu0 0.0
        %711 = vmatprep.subr.mxu0 0.0
        %712 = vmatpush1.msra.mxu0 0.0
        %713 = vmatprep.subr.mxu0 0.0
        %714 = vmatpush1.msra.mxu0 0.0
        %715 = vmatprep.subr.mxu0 0.0
        %716 = vmatpush1.msra.mxu0 0.0
        %717 = vmatprep.subr.mxu0 0.0
        %718 = vmatpush1.msra.mxu0 0.0
        %719 = vmatprep.subr.mxu0 0.0
        %720 = vmatpush1.msra.mxu0 0.0
        %721 = vmatprep.subr.mxu0 0.0
        %722 = vmatpush1.msra.mxu0 0.0
        %723 = vmatprep.subr.mxu0 0.0
        %724 = vmatpush1.msra.mxu0 0.0
        %725 = vmatprep.subr.mxu0 0.0
        %726 = vmatpush1.msra.mxu0 0.0
        %727 = vmatprep.subr.mxu0 0.0
        %728 = vmatpush1.msra.mxu0 0.0
        %729 = vmatprep.subr.mxu0 0.0
        %730 = vmatpush1.msra.mxu0 0.0
        %731 = vmatprep.subr.mxu0 0.0
        %732 = vmatpush1.msra.mxu0 0.0
        %733 = vmatprep.mubr.f32.mxu0 0.0
        %v734 = vand.u32 %v194, 4294901760
        %v735 = vsub.f32 %v194, %v734
        %v736 = vand.u32 %v735, 4294901760
        %v737 = vsub.f32 %v735, %v736
        %v738 = vand.u32 %v737, 4294901760
        %739 = vmatmul.mubr.f32.gmra.mrb[0].mxu0 %v738
        %v740 = vpop.f32.mrb[0].mxu0
        %v741 = vadd.f32 0.0, %v740
        %v742 = vpop.f32.mrb[0].mxu0
        %743 = vdwg.mxu0
        %744 = vmatprep.subr.mxu0 0.0
        %v745 = vand.u32 %v201, 4294901760
        %v746 = vsub.f32 %v201, %v745
        %v747 = vand.u32 %v746, 4294901760
        %v748 = vsub.f32 %v746, %v747
        %v749 = vand.u32 %v748, 4294901760
        %750 = vmatpush1.msra.mxu0 %v749
        %751 = vmatprep.subr.mxu0 0.0
        %752 = vmatpush1.msra.mxu0 0.0
        %753 = vmatprep.subr.mxu0 0.0
        %754 = vmatpush1.msra.mxu0 0.0
        %755 = vmatprep.subr.mxu0 0.0
        %756 = vmatpush1.msra.mxu0 0.0
        %757 = vmatprep.subr.mxu0 0.0
        %758 = vmatpush1.msra.mxu0 0.0
        %759 = vmatprep.subr.mxu0 0.0
        %760 = vmatpush1.msra.mxu0 0.0
        %761 = vmatprep.subr.mxu0 0.0
        %762 = vmatpush1.msra.mxu0 0.0
        %763 = vmatprep.subr.mxu0 0.0
        %764 = vmatpush1.msra.mxu0 0.0
        %765 = vmatprep.subr.mxu0 0.0
        %766 = vmatpush1.msra.mxu0 0.0
        %767 = vmatprep.subr.mxu0 0.0
        %768 = vmatpush1.msra.mxu0 0.0
        %769 = vmatprep.subr.mxu0 0.0
        %770 = vmatpush1.msra.mxu0 0.0
        %771 = vmatprep.subr.mxu0 0.0
        %772 = vmatpush1.msra.mxu0 0.0
        %773 = vmatprep.subr.mxu0 0.0
        %774 = vmatpush1.msra.mxu0 0.0
        %775 = vmatprep.subr.mxu0 0.0
        %776 = vmatpush1.msra.mxu0 0.0
        %777 = vmatprep.subr.mxu0 0.0
        %778 = vmatpush1.msra.mxu0 0.0
        %779 = vmatprep.subr.mxu0 0.0
        %780 = vmatpush1.msra.mxu0 0.0
        %781 = vmatprep.subr.mxu0 0.0
        %782 = vmatpush1.msra.mxu0 0.0
        %783 = vmatprep.subr.mxu0 0.0
        %784 = vmatpush1.msra.mxu0 0.0
        %785 = vmatprep.subr.mxu0 0.0
        %786 = vmatpush1.msra.mxu0 0.0
        %787 = vmatprep.subr.mxu0 0.0
        %788 = vmatpush1.msra.mxu0 0.0
        %789 = vmatprep.subr.mxu0 0.0
        %790 = vmatpush1.msra.mxu0 0.0
        %791 = vmatprep.subr.mxu0 0.0
        %792 = vmatpush1.msra.mxu0 0.0
        %793 = vmatprep.subr.mxu0 0.0
        %794 = vmatpush1.msra.mxu0 0.0
        %795 = vmatprep.subr.mxu0 0.0
        %796 = vmatpush1.msra.mxu0 0.0
        %797 = vmatprep.subr.mxu0 0.0
        %798 = vmatpush1.msra.mxu0 0.0
        %799 = vmatprep.subr.mxu0 0.0
        %800 = vmatpush1.msra.mxu0 0.0
        %801 = vmatprep.subr.mxu0 0.0
        %802 = vmatpush1.msra.mxu0 0.0
        %803 = vmatprep.subr.mxu0 0.0
        %804 = vmatpush1.msra.mxu0 0.0
        %805 = vmatprep.subr.mxu0 0.0
        %806 = vmatpush1.msra.mxu0 0.0
        %807 = vmatprep.subr.mxu0 0.0
        %808 = vmatpush1.msra.mxu0 0.0
        %809 = vmatprep.subr.mxu0 0.0
        %810 = vmatpush1.msra.mxu0 0.0
        %811 = vmatprep.subr.mxu0 0.0
        %812 = vmatpush1.msra.mxu0 0.0
        %813 = vmatprep.mubr.f32.mxu0 0.0
        %v814 = vand.u32 %v194, 4294901760
        %815 = vmatmul.mubr.f32.gmra.mrb[0].mxu0 %v814
        %v816 = vpop.f32.mrb[0].mxu0
        %v817 = vadd.f32 %v741, %v816
        %v818 = vpop.f32.mrb[0].mxu0
        %819 = vdwg.mxu0
        %820 = vmatprep.subr.mxu0 0.0
        %v821 = vand.u32 %v201, 4294901760
        %v822 = vsub.f32 %v201, %v821
        %823 = vmatpush1.msra.mxu0 %v822
        %824 = vmatprep.subr.mxu0 0.0
        %825 = vmatpush1.msra.mxu0 0.0
        %826 = vmatprep.subr.mxu0 0.0
        %827 = vmatpush1.msra.mxu0 0.0
        %828 = vmatprep.subr.mxu0 0.0
        %829 = vmatpush1.msra.mxu0 0.0
        %830 = vmatprep.subr.mxu0 0.0
        %831 = vmatpush1.msra.mxu0 0.0
        %832 = vmatprep.subr.mxu0 0.0
        %833 = vmatpush1.msra.mxu0 0.0
        %834 = vmatprep.subr.mxu0 0.0
        %835 = vmatpush1.msra.mxu0 0.0
        %836 = vmatprep.subr.mxu0 0.0
        %837 = vmatpush1.msra.mxu0 0.0
        %838 = vmatprep.subr.mxu0 0.0
        %839 = vmatpush1.msra.mxu0 0.0
        %840 = vmatprep.subr.mxu0 0.0
        %841 = vmatpush1.msra.mxu0 0.0
        %842 = vmatprep.subr.mxu0 0.0
        %843 = vmatpush1.msra.mxu0 0.0
        %844 = vmatprep.subr.mxu0 0.0
        %845 = vmatpush1.msra.mxu0 0.0
        %846 = vmatprep.subr.mxu0 0.0
        %847 = vmatpush1.msra.mxu0 0.0
        %848 = vmatprep.subr.mxu0 0.0
        %849 = vmatpush1.msra.mxu0 0.0
        %850 = vmatprep.subr.mxu0 0.0
        %851 = vmatpush1.msra.mxu0 0.0
        %852 = vmatprep.subr.mxu0 0.0
        %853 = vmatpush1.msra.mxu0 0.0
        %854 = vmatprep.subr.mxu0 0.0
        %855 = vmatpush1.msra.mxu0 0.0
        %856 = vmatprep.subr.mxu0 0.0
        %857 = vmatpush1.msra.mxu0 0.0
        %858 = vmatprep.subr.mxu0 0.0
        %859 = vmatpush1.msra.mxu0 0.0
        %860 = vmatprep.subr.mxu0 0.0
        %861 = vmatpush1.msra.mxu0 0.0
        %862 = vmatprep.subr.mxu0 0.0
        %863 = vmatpush1.msra.mxu0 0.0
        %864 = vmatprep.subr.mxu0 0.0
        %865 = vmatpush1.msra.mxu0 0.0
        %866 = vmatprep.subr.mxu0 0.0
        %867 = vmatpush1.msra.mxu0 0.0
        %868 = vmatprep.subr.mxu0 0.0
        %869 = vmatpush1.msra.mxu0 0.0
        %870 = vmatprep.subr.mxu0 0.0
        %871 = vmatpush1.msra.mxu0 0.0
        %872 = vmatprep.subr.mxu0 0.0
        %873 = vmatpush1.msra.mxu0 0.0
        %874 = vmatprep.subr.mxu0 0.0
        %875 = vmatpush1.msra.mxu0 0.0
        %876 = vmatprep.subr.mxu0 0.0
        %877 = vmatpush1.msra.mxu0 0.0
        %878 = vmatprep.subr.mxu0 0.0
        %879 = vmatpush1.msra.mxu0 0.0
        %880 = vmatprep.subr.mxu0 0.0
        %881 = vmatpush1.msra.mxu0 0.0
        %882 = vmatprep.subr.mxu0 0.0
        %883 = vmatpush1.msra.mxu0 0.0
        %884 = vmatprep.subr.mxu0 0.0
        %885 = vmatpush1.msra.mxu0 0.0
        %886 = vmatprep.mubr.f32.mxu0 0.0
        %v887 = vand.u32 %v194, 4294901760
        %v888 = vsub.f32 %v194, %v887
        %889 = vmatmul.mubr.f32.gmra.mrb[0].mxu0 %v888
        %v890 = vpop.f32.mrb[0].mxu0
        %v891 = vadd.f32 %v817, %v890
        %v892 = vpop.f32.mrb[0].mxu0
        %893 = vdwg.mxu0
        %894 = vmatprep.subr.mxu0 0.0
        %v895 = vand.u32 %v201, 4294901760
        %896 = vmatpush1.msra.mxu0 %v895
        %897 = vmatprep.subr.mxu0 0.0
        %898 = vmatpush1.msra.mxu0 0.0
        %899 = vmatprep.subr.mxu0 0.0
        %900 = vmatpush1.msra.mxu0 0.0
        %901 = vmatprep.subr.mxu0 0.0
        %902 = vmatpush1.msra.mxu0 0.0
        %903 = vmatprep.subr.mxu0 0.0
        %904 = vmatpush1.msra.mxu0 0.0
        %905 = vmatprep.subr.mxu0 0.0
        %906 = vmatpush1.msra.mxu0 0.0
        %907 = vmatprep.subr.mxu0 0.0
        %908 = vmatpush1.msra.mxu0 0.0
        %909 = vmatprep.subr.mxu0 0.0
        %910 = vmatpush1.msra.mxu0 0.0
        %911 = vmatprep.subr.mxu0 0.0
        %912 = vmatpush1.msra.mxu0 0.0
        %913 = vmatprep.subr.mxu0 0.0
        %914 = vmatpush1.msra.mxu0 0.0
        %915 = vmatprep.subr.mxu0 0.0
        %916 = vmatpush1.msra.mxu0 0.0
        %917 = vmatprep.subr.mxu0 0.0
        %918 = vmatpush1.msra.mxu0 0.0
        %919 = vmatprep.subr.mxu0 0.0
        %920 = vmatpush1.msra.mxu0 0.0
        %921 = vmatprep.subr.mxu0 0.0
        %922 = vmatpush1.msra.mxu0 0.0
        %923 = vmatprep.subr.mxu0 0.0
        %924 = vmatpush1.msra.mxu0 0.0
        %925 = vmatprep.subr.mxu0 0.0
        %926 = vmatpush1.msra.mxu0 0.0
        %927 = vmatprep.subr.mxu0 0.0
        %928 = vmatpush1.msra.mxu0 0.0
        %929 = vmatprep.subr.mxu0 0.0
        %930 = vmatpush1.msra.mxu0 0.0
        %931 = vmatprep.subr.mxu0 0.0
        %932 = vmatpush1.msra.mxu0 0.0
        %933 = vmatprep.subr.mxu0 0.0
        %934 = vmatpush1.msra.mxu0 0.0
        %935 = vmatprep.subr.mxu0 0.0
        %936 = vmatpush1.msra.mxu0 0.0
        %937 = vmatprep.subr.mxu0 0.0
        %938 = vmatpush1.msra.mxu0 0.0
        %939 = vmatprep.subr.mxu0 0.0
        %940 = vmatpush1.msra.mxu0 0.0
        %941 = vmatprep.subr.mxu0 0.0
        %942 = vmatpush1.msra.mxu0 0.0
        %943 = vmatprep.subr.mxu0 0.0
        %944 = vmatpush1.msra.mxu0 0.0
        %945 = vmatprep.subr.mxu0 0.0
        %946 = vmatpush1.msra.mxu0 0.0
        %947 = vmatprep.subr.mxu0 0.0
        %948 = vmatpush1.msra.mxu0 0.0
        %949 = vmatprep.subr.mxu0 0.0
        %950 = vmatpush1.msra.mxu0 0.0
        %951 = vmatprep.subr.mxu0 0.0
        %952 = vmatpush1.msra.mxu0 0.0
        %953 = vmatprep.subr.mxu0 0.0
        %954 = vmatpush1.msra.mxu0 0.0
        %955 = vmatprep.subr.mxu0 0.0
        %956 = vmatpush1.msra.mxu0 0.0
        %957 = vmatprep.subr.mxu0 0.0
        %958 = vmatpush1.msra.mxu0 0.0
        %959 = vmatprep.mubr.f32.mxu0 0.0
        %v960 = vand.u32 %v194, 4294901760
        %v961 = vsub.f32 %v194, %v960
        %v962 = vand.u32 %v961, 4294901760
        %963 = vmatmul.mubr.f32.gmra.mrb[0].mxu0 %v962
        %v964 = vpop.f32.mrb[0].mxu0
        %v965 = vadd.f32 %v891, %v964
        %v966 = vpop.f32.mrb[0].mxu0
        %967 = vdwg.mxu0
        %968 = vmatprep.subr.mxu0 0.0
        %v969 = vand.u32 %v201, 4294901760
        %v970 = vsub.f32 %v201, %v969
        %v971 = vand.u32 %v970, 4294901760
        %972 = vmatpush1.msra.mxu0 %v971
        %973 = vmatprep.subr.mxu0 0.0
        %974 = vmatpush1.msra.mxu0 0.0
        %975 = vmatprep.subr.mxu0 0.0
        %976 = vmatpush1.msra.mxu0 0.0
        %977 = vmatprep.subr.mxu0 0.0
        %978 = vmatpush1.msra.mxu0 0.0
        %979 = vmatprep.subr.mxu0 0.0
        %980 = vmatpush1.msra.mxu0 0.0
        %981 = vmatprep.subr.mxu0 0.0
        %982 = vmatpush1.msra.mxu0 0.0
        %983 = vmatprep.subr.mxu0 0.0
        %984 = vmatpush1.msra.mxu0 0.0
        %985 = vmatprep.subr.mxu0 0.0
        %986 = vmatpush1.msra.mxu0 0.0
        %987 = vmatprep.subr.mxu0 0.0
        %988 = vmatpush1.msra.mxu0 0.0
        %989 = vmatprep.subr.mxu0 0.0
        %990 = vmatpush1.msra.mxu0 0.0
        %991 = vmatprep.subr.mxu0 0.0
        %992 = vmatpush1.msra.mxu0 0.0
        %993 = vmatprep.subr.mxu0 0.0
        %994 = vmatpush1.msra.mxu0 0.0
        %995 = vmatprep.subr.mxu0 0.0
        %996 = vmatpush1.msra.mxu0 0.0
        %997 = vmatprep.subr.mxu0 0.0
        %998 = vmatpush1.msra.mxu0 0.0
        %999 = vmatprep.subr.mxu0 0.0
        %1000 = vmatpush1.msra.mxu0 0.0
        %1001 = vmatprep.subr.mxu0 0.0
        %1002 = vmatpush1.msra.mxu0 0.0
        %1003 = vmatprep.subr.mxu0 0.0
        %1004 = vmatpush1.msra.mxu0 0.0
        %1005 = vmatprep.subr.mxu0 0.0
        %1006 = vmatpush1.msra.mxu0 0.0
        %1007 = vmatprep.subr.mxu0 0.0
        %1008 = vmatpush1.msra.mxu0 0.0
        %1009 = vmatprep.subr.mxu0 0.0
        %1010 = vmatpush1.msra.mxu0 0.0
        %1011 = vmatprep.subr.mxu0 0.0
        %1012 = vmatpush1.msra.mxu0 0.0
        %1013 = vmatprep.subr.mxu0 0.0
        %1014 = vmatpush1.msra.mxu0 0.0
        %1015 = vmatprep.subr.mxu0 0.0
        %1016 = vmatpush1.msra.mxu0 0.0
        %1017 = vmatprep.subr.mxu0 0.0
        %1018 = vmatpush1.msra.mxu0 0.0
        %1019 = vmatprep.subr.mxu0 0.0
        %1020 = vmatpush1.msra.mxu0 0.0
        %1021 = vmatprep.subr.mxu0 0.0
        %1022 = vmatpush1.msra.mxu0 0.0
        %1023 = vmatprep.subr.mxu0 0.0
        %1024 = vmatpush1.msra.mxu0 0.0
        %1025 = vmatprep.subr.mxu0 0.0
        %1026 = vmatpush1.msra.mxu0 0.0
        %1027 = vmatprep.subr.mxu0 0.0
        %1028 = vmatpush1.msra.mxu0 0.0
        %1029 = vmatprep.subr.mxu0 0.0
        %1030 = vmatpush1.msra.mxu0 0.0
        %1031 = vmatprep.subr.mxu0 0.0
        %1032 = vmatpush1.msra.mxu0 0.0
        %1033 = vmatprep.subr.mxu0 0.0
        %1034 = vmatpush1.msra.mxu0 0.0
        %1035 = vmatprep.mubr.f32.mxu0 0.0
        %v1036 = vand.u32 %v194, 4294901760
        %1037 = vmatmul.mubr.f32.gmra.mrb[0].mxu0 %v1036
        %v1038 = vpop.f32.mrb[0].mxu0
        %v1039 = vadd.f32 %v965, %v1038
        %v1040 = vpop.f32.mrb[0].mxu0
        %1041 = vdwg.mxu0
        %1042 = vmatprep.subr.mxu0 0.0
        %v1043 = vand.u32 %v201, 4294901760
        %1044 = vmatpush1.msra.mxu0 %v1043
        %1045 = vmatprep.subr.mxu0 0.0
        %1046 = vmatpush1.msra.mxu0 0.0
        %1047 = vmatprep.subr.mxu0 0.0
        %1048 = vmatpush1.msra.mxu0 0.0
        %1049 = vmatprep.subr.mxu0 0.0
        %1050 = vmatpush1.msra.mxu0 0.0
        %1051 = vmatprep.subr.mxu0 0.0
        %1052 = vmatpush1.msra.mxu0 0.0
        %1053 = vmatprep.subr.mxu0 0.0
        %1054 = vmatpush1.msra.mxu0 0.0
        %1055 = vmatprep.subr.mxu0 0.0
        %1056 = vmatpush1.msra.mxu0 0.0
        %1057 = vmatprep.subr.mxu0 0.0
        %1058 = vmatpush1.msra.mxu0 0.0
        %1059 = vmatprep.subr.mxu0 0.0
        %1060 = vmatpush1.msra.mxu0 0.0
        %1061 = vmatprep.subr.mxu0 0.0
        %1062 = vmatpush1.msra.mxu0 0.0
        %1063 = vmatprep.subr.mxu0 0.0
        %1064 = vmatpush1.msra.mxu0 0.0
        %1065 = vmatprep.subr.mxu0 0.0
        %1066 = vmatpush1.msra.mxu0 0.0
        %1067 = vmatprep.subr.mxu0 0.0
        %1068 = vmatpush1.msra.mxu0 0.0
        %1069 = vmatprep.subr.mxu0 0.0
        %1070 = vmatpush1.msra.mxu0 0.0
        %1071 = vmatprep.subr.mxu0 0.0
        %1072 = vmatpush1.msra.mxu0 0.0
        %1073 = vmatprep.subr.mxu0 0.0
        %1074 = vmatpush1.msra.mxu0 0.0
        %1075 = vmatprep.subr.mxu0 0.0
        %1076 = vmatpush1.msra.mxu0 0.0
        %1077 = vmatprep.subr.mxu0 0.0
        %1078 = vmatpush1.msra.mxu0 0.0
        %1079 = vmatprep.subr.mxu0 0.0
        %1080 = vmatpush1.msra.mxu0 0.0
        %1081 = vmatprep.subr.mxu0 0.0
        %1082 = vmatpush1.msra.mxu0 0.0
        %1083 = vmatprep.subr.mxu0 0.0
        %1084 = vmatpush1.msra.mxu0 0.0
        %1085 = vmatprep.subr.mxu0 0.0
        %1086 = vmatpush1.msra.mxu0 0.0
        %1087 = vmatprep.subr.mxu0 0.0
        %1088 = vmatpush1.msra.mxu0 0.0
        %1089 = vmatprep.subr.mxu0 0.0
        %1090 = vmatpush1.msra.mxu0 0.0
        %1091 = vmatprep.subr.mxu0 0.0
        %1092 = vmatpush1.msra.mxu0 0.0
        %1093 = vmatprep.subr.mxu0 0.0
        %1094 = vmatpush1.msra.mxu0 0.0
        %1095 = vmatprep.subr.mxu0 0.0
        %1096 = vmatpush1.msra.mxu0 0.0
        %1097 = vmatprep.subr.mxu0 0.0
        %1098 = vmatpush1.msra.mxu0 0.0
        %1099 = vmatprep.subr.mxu0 0.0
        %1100 = vmatpush1.msra.mxu0 0.0
        %1101 = vmatprep.subr.mxu0 0.0
        %1102 = vmatpush1.msra.mxu0 0.0
        %1103 = vmatprep.subr.mxu0 0.0
        %1104 = vmatpush1.msra.mxu0 0.0
        %1105 = vmatprep.subr.mxu0 0.0
        %1106 = vmatpush1.msra.mxu0 0.0
        %1107 = vmatprep.mubr.f32.mxu0 0.0
        %v1108 = vand.u32 %v194, 4294901760
        %1109 = vmatmul.mubr.f32.gmra.mrb[0].mxu0 %v1108
        %v1110 = vpop.f32.mrb[0].mxu0
        %v1111 = vadd.f32 %v1039, %v1110
        %v1112 = vpop.f32.mrb[0].mxu0
        %1113 = vdwg.mxu0
        %v1116 = vcombine.high %v169, %v169
        %v1118 = vsel %vm192, %v171, 0
        %v1120 = vsel %vm196, %v169, 0
        %v1122 = vsel %vm196, %v1116, 0
        %v1124 = vsel %vm196, %v170, 0
        %v1126 = vand.u32 %v1122, 4294901760
        %1127 = vmatprep.subr.mxu0 %v1126
        %v1128 = vand.u32 %v1120, 4294901760
        %1129 = vmatpush1.msra.mxu0 %v1128
        %1130 = vmatprep.subr.mxu0 0.0
        %1131 = vmatpush1.msra.mxu0 0.0
        %1132 = vmatprep.subr.mxu0 0.0
        %1133 = vmatpush1.msra.mxu0 0.0
        %1134 = vmatprep.subr.mxu0 0.0
        %1135 = vmatpush1.msra.mxu0 0.0
        %1136 = vmatprep.subr.mxu0 0.0
        %1137 = vmatpush1.msra.mxu0 0.0
        %1138 = vmatprep.subr.mxu0 0.0
        %1139 = vmatpush1.msra.mxu0 0.0
        %1140 = vmatprep.subr.mxu0 0.0
        %1141 = vmatpush1.msra.mxu0 0.0
        %1142 = vmatprep.subr.mxu0 0.0
        %1143 = vmatpush1.msra.mxu0 0.0
        %1144 = vmatprep.subr.mxu0 0.0
        %1145 = vmatpush1.msra.mxu0 0.0
        %1146 = vmatprep.subr.mxu0 0.0
        %1147 = vmatpush1.msra.mxu0 0.0
        %1148 = vmatprep.subr.mxu0 0.0
        %1149 = vmatpush1.msra.mxu0 0.0
        %1150 = vmatprep.subr.mxu0 0.0
        %1151 = vmatpush1.msra.mxu0 0.0
        %1152 = vmatprep.subr.mxu0 0.0
        %1153 = vmatpush1.msra.mxu0 0.0
        %1154 = vmatprep.subr.mxu0 0.0
        %1155 = vmatpush1.msra.mxu0 0.0
        %1156 = vmatprep.subr.mxu0 0.0
        %1157 = vmatpush1.msra.mxu0 0.0
        %1158 = vmatprep.subr.mxu0 0.0
        %1159 = vmatpush1.msra.mxu0 0.0
        %1160 = vmatprep.subr.mxu0 0.0
        %1161 = vmatpush1.msra.mxu0 0.0
        %1162 = vmatprep.subr.mxu0 0.0
        %1163 = vmatpush1.msra.mxu0 0.0
        %1164 = vmatprep.subr.mxu0 0.0
        %1165 = vmatpush1.msra.mxu0 0.0
        %1166 = vmatprep.subr.mxu0 0.0
        %1167 = vmatpush1.msra.mxu0 0.0
        %1168 = vmatprep.subr.mxu0 0.0
        %1169 = vmatpush1.msra.mxu0 0.0
        %1170 = vmatprep.subr.mxu0 0.0
        %1171 = vmatpush1.msra.mxu0 0.0
        %1172 = vmatprep.subr.mxu0 0.0
        %1173 = vmatpush1.msra.mxu0 0.0
        %1174 = vmatprep.subr.mxu0 0.0
        %1175 = vmatpush1.msra.mxu0 0.0
        %1176 = vmatprep.subr.mxu0 0.0
        %1177 = vmatpush1.msra.mxu0 0.0
        %1178 = vmatprep.subr.mxu0 0.0
        %1179 = vmatpush1.msra.mxu0 0.0
        %1180 = vmatprep.subr.mxu0 0.0
        %1181 = vmatpush1.msra.mxu0 0.0
        %1182 = vmatprep.subr.mxu0 0.0
        %1183 = vmatpush1.msra.mxu0 0.0
        %1184 = vmatprep.subr.mxu0 0.0
        %1185 = vmatpush1.msra.mxu0 0.0
        %1186 = vmatprep.subr.mxu0 0.0
        %1187 = vmatpush1.msra.mxu0 0.0
        %1188 = vmatprep.subr.mxu0 0.0
        %1189 = vmatpush1.msra.mxu0 0.0
        %1190 = vmatprep.subr.mxu0 0.0
        %1191 = vmatpush1.msra.mxu0 0.0
        %1192 = vmatprep.mubr.f32.mxu0 0.0
        %v1193 = vand.u32 %v1118, 4294901760
        %v1194 = vsub.f32 %v1118, %v1193
        %v1195 = vand.u32 %v1194, 4294901760
        %v1196 = vsub.f32 %v1194, %v1195
        %v1197 = vand.u32 %v1196, 4294901760
        %1198 = vmatmul.mubr.f32.gmra.mrb[0].mxu0 %v1197
        %v1199 = vpop.f32.mrb[0].mxu0
        %v1200 = vadd.f32 %v664, %v1199
        %v1201 = vpop.f32.mrb[0].mxu0
        %v1202 = vadd.f32 %v666, %v1201
        %1203 = vdwg.mxu0
        %v1204 = vand.u32 %v1122, 4294901760
        %v1205 = vsub.f32 %v1122, %v1204
        %v1206 = vand.u32 %v1205, 4294901760
        %v1207 = vsub.f32 %v1205, %v1206
        %v1208 = vand.u32 %v1207, 4294901760
        %1209 = vmatprep.subr.mxu0 %v1208
        %v1210 = vand.u32 %v1120, 4294901760
        %v1211 = vsub.f32 %v1120, %v1210
        %v1212 = vand.u32 %v1211, 4294901760
        %v1213 = vsub.f32 %v1211, %v1212
        %v1214 = vand.u32 %v1213, 4294901760
        %1215 = vmatpush1.msra.mxu0 %v1214
        %1216 = vmatprep.subr.mxu0 0.0
        %1217 = vmatpush1.msra.mxu0 0.0
        %1218 = vmatprep.subr.mxu0 0.0
        %1219 = vmatpush1.msra.mxu0 0.0
        %1220 = vmatprep.subr.mxu0 0.0
        %1221 = vmatpush1.msra.mxu0 0.0
        %1222 = vmatprep.subr.mxu0 0.0
        %1223 = vmatpush1.msra.mxu0 0.0
        %1224 = vmatprep.subr.mxu0 0.0
        %1225 = vmatpush1.msra.mxu0 0.0
        %1226 = vmatprep.subr.mxu0 0.0
        %1227 = vmatpush1.msra.mxu0 0.0
        %1228 = vmatprep.subr.mxu0 0.0
        %1229 = vmatpush1.msra.mxu0 0.0
        %1230 = vmatprep.subr.mxu0 0.0
        %1231 = vmatpush1.msra.mxu0 0.0
        %1232 = vmatprep.subr.mxu0 0.0
        %1233 = vmatpush1.msra.mxu0 0.0
        %1234 = vmatprep.subr.mxu0 0.0
        %1235 = vmatpush1.msra.mxu0 0.0
        %1236 = vmatprep.subr.mxu0 0.0
        %1237 = vmatpush1.msra.mxu0 0.0
        %1238 = vmatprep.subr.mxu0 0.0
        %1239 = vmatpush1.msra.mxu0 0.0
        %1240 = vmatprep.subr.mxu0 0.0
        %1241 = vmatpush1.msra.mxu0 0.0
        %1242 = vmatprep.subr.mxu0 0.0
        %1243 = vmatpush1.msra.mxu0 0.0
        %1244 = vmatprep.subr.mxu0 0.0
        %1245 = vmatpush1.msra.mxu0 0.0
        %1246 = vmatprep.subr.mxu0 0.0
        %1247 = vmatpush1.msra.mxu0 0.0
        %1248 = vmatprep.subr.mxu0 0.0
        %1249 = vmatpush1.msra.mxu0 0.0
        %1250 = vmatprep.subr.mxu0 0.0
        %1251 = vmatpush1.msra.mxu0 0.0
        %1252 = vmatprep.subr.mxu0 0.0
        %1253 = vmatpush1.msra.mxu0 0.0
        %1254 = vmatprep.subr.mxu0 0.0
        %1255 = vmatpush1.msra.mxu0 0.0
        %1256 = vmatprep.subr.mxu0 0.0
        %1257 = vmatpush1.msra.mxu0 0.0
        %1258 = vmatprep.subr.mxu0 0.0
        %1259 = vmatpush1.msra.mxu0 0.0
        %1260 = vmatprep.subr.mxu0 0.0
        %1261 = vmatpush1.msra.mxu0 0.0
        %1262 = vmatprep.subr.mxu0 0.0
        %1263 = vmatpush1.msra.mxu0 0.0
        %1264 = vmatprep.subr.mxu0 0.0
        %1265 = vmatpush1.msra.mxu0 0.0
        %1266 = vmatprep.subr.mxu0 0.0
        %1267 = vmatpush1.msra.mxu0 0.0
        %1268 = vmatprep.subr.mxu0 0.0
        %1269 = vmatpush1.msra.mxu0 0.0
        %1270 = vmatprep.subr.mxu0 0.0
        %1271 = vmatpush1.msra.mxu0 0.0
        %1272 = vmatprep.subr.mxu0 0.0
        %1273 = vmatpush1.msra.mxu0 0.0
        %1274 = vmatprep.subr.mxu0 0.0
        %1275 = vmatpush1.msra.mxu0 0.0
        %1276 = vmatprep.subr.mxu0 0.0
        %1277 = vmatpush1.msra.mxu0 0.0
        %1278 = vmatprep.mubr.f32.mxu0 0.0
        %v1279 = vand.u32 %v1118, 4294901760
        %1280 = vmatmul.mubr.f32.gmra.mrb[0].mxu0 %v1279
        %v1281 = vpop.f32.mrb[0].mxu0
        %v1282 = vadd.f32 %v1200, %v1281
        %v1283 = vpop.f32.mrb[0].mxu0
        %v1284 = vadd.f32 %v1202, %v1283
        %1285 = vdwg.mxu0
        %v1286 = vand.u32 %v1122, 4294901760
        %v1287 = vsub.f32 %v1122, %v1286
        %1288 = vmatprep.subr.mxu0 %v1287
        %v1289 = vand.u32 %v1120, 4294901760
        %v1290 = vsub.f32 %v1120, %v1289
        %1291 = vmatpush1.msra.mxu0 %v1290
        %1292 = vmatprep.subr.mxu0 0.0
        %1293 = vmatpush1.msra.mxu0 0.0
        %1294 = vmatprep.subr.mxu0 0.0
        %1295 = vmatpush1.msra.mxu0 0.0
        %1296 = vmatprep.subr.mxu0 0.0
        %1297 = vmatpush1.msra.mxu0 0.0
        %1298 = vmatprep.subr.mxu0 0.0
        %1299 = vmatpush1.msra.mxu0 0.0
        %1300 = vmatprep.subr.mxu0 0.0
        %1301 = vmatpush1.msra.mxu0 0.0
        %1302 = vmatprep.subr.mxu0 0.0
        %1303 = vmatpush1.msra.mxu0 0.0
        %1304 = vmatprep.subr.mxu0 0.0
        %1305 = vmatpush1.msra.mxu0 0.0
        %1306 = vmatprep.subr.mxu0 0.0
        %1307 = vmatpush1.msra.mxu0 0.0
        %1308 = vmatprep.subr.mxu0 0.0
        %1309 = vmatpush1.msra.mxu0 0.0
        %1310 = vmatprep.subr.mxu0 0.0
        %1311 = vmatpush1.msra.mxu0 0.0
        %1312 = vmatprep.subr.mxu0 0.0
        %1313 = vmatpush1.msra.mxu0 0.0
        %1314 = vmatprep.subr.mxu0 0.0
        %1315 = vmatpush1.msra.mxu0 0.0
        %1316 = vmatprep.subr.mxu0 0.0
        %1317 = vmatpush1.msra.mxu0 0.0
        %1318 = vmatprep.subr.mxu0 0.0
        %1319 = vmatpush1.msra.mxu0 0.0
        %1320 = vmatprep.subr.mxu0 0.0
        %1321 = vmatpush1.msra.mxu0 0.0
        %1322 = vmatprep.subr.mxu0 0.0
        %1323 = vmatpush1.msra.mxu0 0.0
        %1324 = vmatprep.subr.mxu0 0.0
        %1325 = vmatpush1.msra.mxu0 0.0
        %1326 = vmatprep.subr.mxu0 0.0
        %1327 = vmatpush1.msra.mxu0 0.0
        %1328 = vmatprep.subr.mxu0 0.0
        %1329 = vmatpush1.msra.mxu0 0.0
        %1330 = vmatprep.subr.mxu0 0.0
        %1331 = vmatpush1.msra.mxu0 0.0
        %1332 = vmatprep.subr.mxu0 0.0
        %1333 = vmatpush1.msra.mxu0 0.0
        %1334 = vmatprep.subr.mxu0 0.0
        %1335 = vmatpush1.msra.mxu0 0.0
        %1336 = vmatprep.subr.mxu0 0.0
        %1337 = vmatpush1.msra.mxu0 0.0
        %1338 = vmatprep.subr.mxu0 0.0
        %1339 = vmatpush1.msra.mxu0 0.0
        %1340 = vmatprep.subr.mxu0 0.0
        %1341 = vmatpush1.msra.mxu0 0.0
        %1342 = vmatprep.subr.mxu0 0.0
        %1343 = vmatpush1.msra.mxu0 0.0
        %1344 = vmatprep.subr.mxu0 0.0
        %1345 = vmatpush1.msra.mxu0 0.0
        %1346 = vmatprep.subr.mxu0 0.0
        %1347 = vmatpush1.msra.mxu0 0.0
        %1348 = vmatprep.subr.mxu0 0.0
        %1349 = vmatpush1.msra.mxu0 0.0
        %1350 = vmatprep.subr.mxu0 0.0
        %1351 = vmatpush1.msra.mxu0 0.0
        %1352 = vmatprep.subr.mxu0 0.0
        %1353 = vmatpush1.msra.mxu0 0.0
        %1354 = vmatprep.mubr.f32.mxu0 0.0
        %v1355 = vand.u32 %v1118, 4294901760
        %v1356 = vsub.f32 %v1118, %v1355
        %1357 = vmatmul.mubr.f32.gmra.mrb[0].mxu0 %v1356
        %v1358 = vpop.f32.mrb[0].mxu0
        %v1359 = vadd.f32 %v1282, %v1358
        %v1360 = vpop.f32.mrb[0].mxu0
        %v1361 = vadd.f32 %v1284, %v1360
        %1362 = vdwg.mxu0
        %v1363 = vand.u32 %v1122, 4294901760
        %1364 = vmatprep.subr.mxu0 %v1363
        %v1365 = vand.u32 %v1120, 4294901760
        %1366 = vmatpush1.msra.mxu0 %v1365
        %1367 = vmatprep.subr.mxu0 0.0
        %1368 = vmatpush1.msra.mxu0 0.0
        %1369 = vmatprep.subr.mxu0 0.0
        %1370 = vmatpush1.msra.mxu0 0.0
        %1371 = vmatprep.subr.mxu0 0.0
        %1372 = vmatpush1.msra.mxu0 0.0
        %1373 = vmatprep.subr.mxu0 0.0
        %1374 = vmatpush1.msra.mxu0 0.0
        %1375 = vmatprep.subr.mxu0 0.0
        %1376 = vmatpush1.msra.mxu0 0.0
        %1377 = vmatprep.subr.mxu0 0.0
        %1378 = vmatpush1.msra.mxu0 0.0
        %1379 = vmatprep.subr.mxu0 0.0
        %1380 = vmatpush1.msra.mxu0 0.0
        %1381 = vmatprep.subr.mxu0 0.0
        %1382 = vmatpush1.msra.mxu0 0.0
        %1383 = vmatprep.subr.mxu0 0.0
        %1384 = vmatpush1.msra.mxu0 0.0
        %1385 = vmatprep.subr.mxu0 0.0
        %1386 = vmatpush1.msra.mxu0 0.0
        %1387 = vmatprep.subr.mxu0 0.0
        %1388 = vmatpush1.msra.mxu0 0.0
        %1389 = vmatprep.subr.mxu0 0.0
        %1390 = vmatpush1.msra.mxu0 0.0
        %1391 = vmatprep.subr.mxu0 0.0
        %1392 = vmatpush1.msra.mxu0 0.0
        %1393 = vmatprep.subr.mxu0 0.0
        %1394 = vmatpush1.msra.mxu0 0.0
        %1395 = vmatprep.subr.mxu0 0.0
        %1396 = vmatpush1.msra.mxu0 0.0
        %1397 = vmatprep.subr.mxu0 0.0
        %1398 = vmatpush1.msra.mxu0 0.0
        %1399 = vmatprep.subr.mxu0 0.0
        %1400 = vmatpush1.msra.mxu0 0.0
        %1401 = vmatprep.subr.mxu0 0.0
        %1402 = vmatpush1.msra.mxu0 0.0
        %1403 = vmatprep.subr.mxu0 0.0
        %1404 = vmatpush1.msra.mxu0 0.0
        %1405 = vmatprep.subr.mxu0 0.0
        %1406 = vmatpush1.msra.mxu0 0.0
        %1407 = vmatprep.subr.mxu0 0.0
        %1408 = vmatpush1.msra.mxu0 0.0
        %1409 = vmatprep.subr.mxu0 0.0
        %1410 = vmatpush1.msra.mxu0 0.0
        %1411 = vmatprep.subr.mxu0 0.0
        %1412 = vmatpush1.msra.mxu0 0.0
        %1413 = vmatprep.subr.mxu0 0.0
        %1414 = vmatpush1.msra.mxu0 0.0
        %1415 = vmatprep.subr.mxu0 0.0
        %1416 = vmatpush1.msra.mxu0 0.0
        %1417 = vmatprep.subr.mxu0 0.0
        %1418 = vmatpush1.msra.mxu0 0.0
        %1419 = vmatprep.subr.mxu0 0.0
        %1420 = vmatpush1.msra.mxu0 0.0
        %1421 = vmatprep.subr.mxu0 0.0
        %1422 = vmatpush1.msra.mxu0 0.0
        %1423 = vmatprep.subr.mxu0 0.0
        %1424 = vmatpush1.msra.mxu0 0.0
        %1425 = vmatprep.subr.mxu0 0.0
        %1426 = vmatpush1.msra.mxu0 0.0
        %1427 = vmatprep.subr.mxu0 0.0
        %1428 = vmatpush1.msra.mxu0 0.0
        %1429 = vmatprep.mubr.f32.mxu0 0.0
        %v1430 = vand.u32 %v1118, 4294901760
        %v1431 = vsub.f32 %v1118, %v1430
        %v1432 = vand.u32 %v1431, 4294901760
        %1433 = vmatmul.mubr.f32.gmra.mrb[0].mxu0 %v1432
        %v1434 = vpop.f32.mrb[0].mxu0
        %v1435 = vadd.f32 %v1359, %v1434
        %v1436 = vpop.f32.mrb[0].mxu0
        %v1437 = vadd.f32 %v1361, %v1436
        %1438 = vdwg.mxu0
        %v1439 = vand.u32 %v1122, 4294901760
        %v1440 = vsub.f32 %v1122, %v1439
        %v1441 = vand.u32 %v1440, 4294901760
        %1442 = vmatprep.subr.mxu0 %v1441
        %v1443 = vand.u32 %v1120, 4294901760
        %v1444 = vsub.f32 %v1120, %v1443
        %v1445 = vand.u32 %v1444, 4294901760
        %1446 = vmatpush1.msra.mxu0 %v1445
        %1447 = vmatprep.subr.mxu0 0.0
        %1448 = vmatpush1.msra.mxu0 0.0
        %1449 = vmatprep.subr.mxu0 0.0
        %1450 = vmatpush1.msra.mxu0 0.0
        %1451 = vmatprep.subr.mxu0 0.0
        %1452 = vmatpush1.msra.mxu0 0.0
        %1453 = vmatprep.subr.mxu0 0.0
        %1454 = vmatpush1.msra.mxu0 0.0
        %1455 = vmatprep.subr.mxu0 0.0
        %1456 = vmatpush1.msra.mxu0 0.0
        %1457 = vmatprep.subr.mxu0 0.0
        %1458 = vmatpush1.msra.mxu0 0.0
        %1459 = vmatprep.subr.mxu0 0.0
        %1460 = vmatpush1.msra.mxu0 0.0
        %1461 = vmatprep.subr.mxu0 0.0
        %1462 = vmatpush1.msra.mxu0 0.0
        %1463 = vmatprep.subr.mxu0 0.0
        %1464 = vmatpush1.msra.mxu0 0.0
        %1465 = vmatprep.subr.mxu0 0.0
        %1466 = vmatpush1.msra.mxu0 0.0
        %1467 = vmatprep.subr.mxu0 0.0
        %1468 = vmatpush1.msra.mxu0 0.0
        %1469 = vmatprep.subr.mxu0 0.0
        %1470 = vmatpush1.msra.mxu0 0.0
        %1471 = vmatprep.subr.mxu0 0.0
        %1472 = vmatpush1.msra.mxu0 0.0
        %1473 = vmatprep.subr.mxu0 0.0
        %1474 = vmatpush1.msra.mxu0 0.0
        %1475 = vmatprep.subr.mxu0 0.0
        %1476 = vmatpush1.msra.mxu0 0.0
        %1477 = vmatprep.subr.mxu0 0.0
        %1478 = vmatpush1.msra.mxu0 0.0
        %1479 = vmatprep.subr.mxu0 0.0
        %1480 = vmatpush1.msra.mxu0 0.0
        %1481 = vmatprep.subr.mxu0 0.0
        %1482 = vmatpush1.msra.mxu0 0.0
        %1483 = vmatprep.subr.mxu0 0.0
        %1484 = vmatpush1.msra.mxu0 0.0
        %1485 = vmatprep.subr.mxu0 0.0
        %1486 = vmatpush1.msra.mxu0 0.0
        %1487 = vmatprep.subr.mxu0 0.0
        %1488 = vmatpush1.msra.mxu0 0.0
        %1489 = vmatprep.subr.mxu0 0.0
        %1490 = vmatpush1.msra.mxu0 0.0
        %1491 = vmatprep.subr.mxu0 0.0
        %1492 = vmatpush1.msra.mxu0 0.0
        %1493 = vmatprep.subr.mxu0 0.0
        %1494 = vmatpush1.msra.mxu0 0.0
        %1495 = vmatprep.subr.mxu0 0.0
        %1496 = vmatpush1.msra.mxu0 0.0
        %1497 = vmatprep.subr.mxu0 0.0
        %1498 = vmatpush1.msra.mxu0 0.0
        %1499 = vmatprep.subr.mxu0 0.0
        %1500 = vmatpush1.msra.mxu0 0.0
        %1501 = vmatprep.subr.mxu0 0.0
        %1502 = vmatpush1.msra.mxu0 0.0
        %1503 = vmatprep.subr.mxu0 0.0
        %1504 = vmatpush1.msra.mxu0 0.0
        %1505 = vmatprep.subr.mxu0 0.0
        %1506 = vmatpush1.msra.mxu0 0.0
        %1507 = vmatprep.subr.mxu0 0.0
        %1508 = vmatpush1.msra.mxu0 0.0
        %1509 = vmatprep.mubr.f32.mxu0 0.0
        %v1510 = vand.u32 %v1118, 4294901760
        %1511 = vmatmul.mubr.f32.gmra.mrb[0].mxu0 %v1510
        %v1512 = vpop.f32.mrb[0].mxu0
        %v1513 = vadd.f32 %v1435, %v1512
        %v1514 = vpop.f32.mrb[0].mxu0
        %v1515 = vadd.f32 %v1437, %v1514
        %1516 = vdwg.mxu0
        %v1517 = vand.u32 %v1122, 4294901760
        %1518 = vmatprep.subr.mxu0 %v1517
        %v1519 = vand.u32 %v1120, 4294901760
        %1520 = vmatpush1.msra.mxu0 %v1519
        %1521 = vmatprep.subr.mxu0 0.0
        %1522 = vmatpush1.msra.mxu0 0.0
        %1523 = vmatprep.subr.mxu0 0.0
        %1524 = vmatpush1.msra.mxu0 0.0
        %1525 = vmatprep.subr.mxu0 0.0
        %1526 = vmatpush1.msra.mxu0 0.0
        %1527 = vmatprep.subr.mxu0 0.0
        %1528 = vmatpush1.msra.mxu0 0.0
        %1529 = vmatprep.subr.mxu0 0.0
        %1530 = vmatpush1.msra.mxu0 0.0
        %1531 = vmatprep.subr.mxu0 0.0
        %1532 = vmatpush1.msra.mxu0 0.0
        %1533 = vmatprep.subr.mxu0 0.0
        %1534 = vmatpush1.msra.mxu0 0.0
        %1535 = vmatprep.subr.mxu0 0.0
        %1536 = vmatpush1.msra.mxu0 0.0
        %1537 = vmatprep.subr.mxu0 0.0
        %1538 = vmatpush1.msra.mxu0 0.0
        %1539 = vmatprep.subr.mxu0 0.0
        %1540 = vmatpush1.msra.mxu0 0.0
        %1541 = vmatprep.subr.mxu0 0.0
        %1542 = vmatpush1.msra.mxu0 0.0
        %1543 = vmatprep.subr.mxu0 0.0
        %1544 = vmatpush1.msra.mxu0 0.0
        %1545 = vmatprep.subr.mxu0 0.0
        %1546 = vmatpush1.msra.mxu0 0.0
        %1547 = vmatprep.subr.mxu0 0.0
        %1548 = vmatpush1.msra.mxu0 0.0
        %1549 = vmatprep.subr.mxu0 0.0
        %1550 = vmatpush1.msra.mxu0 0.0
        %1551 = vmatprep.subr.mxu0 0.0
        %1552 = vmatpush1.msra.mxu0 0.0
        %1553 = vmatprep.subr.mxu0 0.0
        %1554 = vmatpush1.msra.mxu0 0.0
        %1555 = vmatprep.subr.mxu0 0.0
        %1556 = vmatpush1.msra.mxu0 0.0
        %1557 = vmatprep.subr.mxu0 0.0
        %1558 = vmatpush1.msra.mxu0 0.0
        %1559 = vmatprep.subr.mxu0 0.0
        %1560 = vmatpush1.msra.mxu0 0.0
        %1561 = vmatprep.subr.mxu0 0.0
        %1562 = vmatpush1.msra.mxu0 0.0
        %1563 = vmatprep.subr.mxu0 0.0
        %1564 = vmatpush1.msra.mxu0 0.0
        %1565 = vmatprep.subr.mxu0 0.0
        %1566 = vmatpush1.msra.mxu0 0.0
        %1567 = vmatprep.subr.mxu0 0.0
        %1568 = vmatpush1.msra.mxu0 0.0
        %1569 = vmatprep.subr.mxu0 0.0
        %1570 = vmatpush1.msra.mxu0 0.0
        %1571 = vmatprep.subr.mxu0 0.0
        %1572 = vmatpush1.msra.mxu0 0.0
        %1573 = vmatprep.subr.mxu0 0.0
        %1574 = vmatpush1.msra.mxu0 0.0
        %1575 = vmatprep.subr.mxu0 0.0
        %1576 = vmatpush1.msra.mxu0 0.0
        %1577 = vmatprep.subr.mxu0 0.0
        %1578 = vmatpush1.msra.mxu0 0.0
        %1579 = vmatprep.subr.mxu0 0.0
        %1580 = vmatpush1.msra.mxu0 0.0
        %1581 = vmatprep.subr.mxu0 0.0
        %1582 = vmatpush1.msra.mxu0 0.0
        %1583 = vmatprep.mubr.f32.mxu0 0.0
        %v1584 = vand.u32 %v1118, 4294901760
        %1585 = vmatmul.mubr.f32.gmra.mrb[0].mxu0 %v1584
        %v1586 = vpop.f32.mrb[0].mxu0
        %v1587 = vadd.f32 %v1513, %v1586
        %v1588 = vpop.f32.mrb[0].mxu0
        %v1589 = vadd.f32 %v1515, %v1588
        %1590 = vdwg.mxu0
        %1591 = vmatprep.subr.mxu0 0.0
        %v1592 = vand.u32 %v1124, 4294901760
        %1593 = vmatpush1.msra.mxu0 %v1592
        %1594 = vmatprep.subr.mxu0 0.0
        %1595 = vmatpush1.msra.mxu0 0.0
        %1596 = vmatprep.subr.mxu0 0.0
        %1597 = vmatpush1.msra.mxu0 0.0
        %1598 = vmatprep.subr.mxu0 0.0
        %1599 = vmatpush1.msra.mxu0 0.0
        %1600 = vmatprep.subr.mxu0 0.0
        %1601 = vmatpush1.msra.mxu0 0.0
        %1602 = vmatprep.subr.mxu0 0.0
        %1603 = vmatpush1.msra.mxu0 0.0
        %1604 = vmatprep.subr.mxu0 0.0
        %1605 = vmatpush1.msra.mxu0 0.0
        %1606 = vmatprep.subr.mxu0 0.0
        %1607 = vmatpush1.msra.mxu0 0.0
        %1608 = vmatprep.subr.mxu0 0.0
        %1609 = vmatpush1.msra.mxu0 0.0
        %1610 = vmatprep.subr.mxu0 0.0
        %1611 = vmatpush1.msra.mxu0 0.0
        %1612 = vmatprep.subr.mxu0 0.0
        %1613 = vmatpush1.msra.mxu0 0.0
        %1614 = vmatprep.subr.mxu0 0.0
        %1615 = vmatpush1.msra.mxu0 0.0
        %1616 = vmatprep.subr.mxu0 0.0
        %1617 = vmatpush1.msra.mxu0 0.0
        %1618 = vmatprep.subr.mxu0 0.0
        %1619 = vmatpush1.msra.mxu0 0.0
        %1620 = vmatprep.subr.mxu0 0.0
        %1621 = vmatpush1.msra.mxu0 0.0
        %1622 = vmatprep.subr.mxu0 0.0
        %1623 = vmatpush1.msra.mxu0 0.0
        %1624 = vmatprep.subr.mxu0 0.0
        %1625 = vmatpush1.msra.mxu0 0.0
        %1626 = vmatprep.subr.mxu0 0.0
        %1627 = vmatpush1.msra.mxu0 0.0
        %1628 = vmatprep.subr.mxu0 0.0
        %1629 = vmatpush1.msra.mxu0 0.0
        %1630 = vmatprep.subr.mxu0 0.0
        %1631 = vmatpush1.msra.mxu0 0.0
        %1632 = vmatprep.subr.mxu0 0.0
        %1633 = vmatpush1.msra.mxu0 0.0
        %1634 = vmatprep.subr.mxu0 0.0
        %1635 = vmatpush1.msra.mxu0 0.0
        %1636 = vmatprep.subr.mxu0 0.0
        %1637 = vmatpush1.msra.mxu0 0.0
        %1638 = vmatprep.subr.mxu0 0.0
        %1639 = vmatpush1.msra.mxu0 0.0
        %1640 = vmatprep.subr.mxu0 0.0
        %1641 = vmatpush1.msra.mxu0 0.0
        %1642 = vmatprep.subr.mxu0 0.0
        %1643 = vmatpush1.msra.mxu0 0.0
        %1644 = vmatprep.subr.mxu0 0.0
        %1645 = vmatpush1.msra.mxu0 0.0
        %1646 = vmatprep.subr.mxu0 0.0
        %1647 = vmatpush1.msra.mxu0 0.0
        %1648 = vmatprep.subr.mxu0 0.0
        %1649 = vmatpush1.msra.mxu0 0.0
        %1650 = vmatprep.subr.mxu0 0.0
        %1651 = vmatpush1.msra.mxu0 0.0
        %1652 = vmatprep.subr.mxu0 0.0
        %1653 = vmatpush1.msra.mxu0 0.0
        %1654 = vmatprep.subr.mxu0 0.0
        %1655 = vmatpush1.msra.mxu0 0.0
        %1656 = vmatprep.mubr.f32.mxu0 0.0
        %v1657 = vand.u32 %v1118, 4294901760
        %v1658 = vsub.f32 %v1118, %v1657
        %v1659 = vand.u32 %v1658, 4294901760
        %v1660 = vsub.f32 %v1658, %v1659
        %v1661 = vand.u32 %v1660, 4294901760
        %1662 = vmatmul.mubr.f32.gmra.mrb[0].mxu0 %v1661
        %v1663 = vpop.f32.mrb[0].mxu0
        %v1664 = vadd.f32 %v1111, %v1663
        %v1665 = vpop.f32.mrb[0].mxu0
        %1666 = vdwg.mxu0
        %1667 = vmatprep.subr.mxu0 0.0
        %v1668 = vand.u32 %v1124, 4294901760
        %v1669 = vsub.f32 %v1124, %v1668
        %v1670 = vand.u32 %v1669, 4294901760
        %v1671 = vsub.f32 %v1669, %v1670
        %v1672 = vand.u32 %v1671, 4294901760
        %1673 = vmatpush1.msra.mxu0 %v1672
        %1674 = vmatprep.subr.mxu0 0.0
        %1675 = vmatpush1.msra.mxu0 0.0
        %1676 = vmatprep.subr.mxu0 0.0
        %1677 = vmatpush1.msra.mxu0 0.0
        %1678 = vmatprep.subr.mxu0 0.0
        %1679 = vmatpush1.msra.mxu0 0.0
        %1680 = vmatprep.subr.mxu0 0.0
        %1681 = vmatpush1.msra.mxu0 0.0
        %1682 = vmatprep.subr.mxu0 0.0
        %1683 = vmatpush1.msra.mxu0 0.0
        %1684 = vmatprep.subr.mxu0 0.0
        %1685 = vmatpush1.msra.mxu0 0.0
        %1686 = vmatprep.subr.mxu0 0.0
        %1687 = vmatpush1.msra.mxu0 0.0
        %1688 = vmatprep.subr.mxu0 0.0
        %1689 = vmatpush1.msra.mxu0 0.0
        %1690 = vmatprep.subr.mxu0 0.0
        %1691 = vmatpush1.msra.mxu0 0.0
        %1692 = vmatprep.subr.mxu0 0.0
        %1693 = vmatpush1.msra.mxu0 0.0
        %1694 = vmatprep.subr.mxu0 0.0
        %1695 = vmatpush1.msra.mxu0 0.0
        %1696 = vmatprep.subr.mxu0 0.0
        %1697 = vmatpush1.msra.mxu0 0.0
        %1698 = vmatprep.subr.mxu0 0.0
        %1699 = vmatpush1.msra.mxu0 0.0
        %1700 = vmatprep.subr.mxu0 0.0
        %1701 = vmatpush1.msra.mxu0 0.0
        %1702 = vmatprep.subr.mxu0 0.0
        %1703 = vmatpush1.msra.mxu0 0.0
        %1704 = vmatprep.subr.mxu0 0.0
        %1705 = vmatpush1.msra.mxu0 0.0
        %1706 = vmatprep.subr.mxu0 0.0
        %1707 = vmatpush1.msra.mxu0 0.0
        %1708 = vmatprep.subr.mxu0 0.0
        %1709 = vmatpush1.msra.mxu0 0.0
        %1710 = vmatprep.subr.mxu0 0.0
        %1711 = vmatpush1.msra.mxu0 0.0
        %1712 = vmatprep.subr.mxu0 0.0
        %1713 = vmatpush1.msra.mxu0 0.0
        %1714 = vmatprep.subr.mxu0 0.0
        %1715 = vmatpush1.msra.mxu0 0.0
        %1716 = vmatprep.subr.mxu0 0.0
        %1717 = vmatpush1.msra.mxu0 0.0
        %1718 = vmatprep.subr.mxu0 0.0
        %1719 = vmatpush1.msra.mxu0 0.0
        %1720 = vmatprep.subr.mxu0 0.0
        %1721 = vmatpush1.msra.mxu0 0.0
        %1722 = vmatprep.subr.mxu0 0.0
        %1723 = vmatpush1.msra.mxu0 0.0
        %1724 = vmatprep.subr.mxu0 0.0
        %1725 = vmatpush1.msra.mxu0 0.0
        %1726 = vmatprep.subr.mxu0 0.0
        %1727 = vmatpush1.msra.mxu0 0.0
        %1728 = vmatprep.subr.mxu0 0.0
        %1729 = vmatpush1.msra.mxu0 0.0
        %1730 = vmatprep.subr.mxu0 0.0
        %1731 = vmatpush1.msra.mxu0 0.0
        %1732 = vmatprep.subr.mxu0 0.0
        %1733 = vmatpush1.msra.mxu0 0.0
        %1734 = vmatprep.subr.mxu0 0.0
        %1735 = vmatpush1.msra.mxu0 0.0
        %1736 = vmatprep.mubr.f32.mxu0 0.0
        %v1737 = vand.u32 %v1118, 4294901760
        %1738 = vmatmul.mubr.f32.gmra.mrb[0].mxu0 %v1737
        %v1739 = vpop.f32.mrb[0].mxu0
        %v1740 = vadd.f32 %v1664, %v1739
        %v1741 = vpop.f32.mrb[0].mxu0
        %1742 = vdwg.mxu0
        %1743 = vmatprep.subr.mxu0 0.0
        %v1744 = vand.u32 %v1124, 4294901760
        %v1745 = vsub.f32 %v1124, %v1744
        %1746 = vmatpush1.msra.mxu0 %v1745
        %1747 = vmatprep.subr.mxu0 0.0
        %1748 = vmatpush1.msra.mxu0 0.0
        %1749 = vmatprep.subr.mxu0 0.0
        %1750 = vmatpush1.msra.mxu0 0.0
        %1751 = vmatprep.subr.mxu0 0.0
        %1752 = vmatpush1.msra.mxu0 0.0
        %1753 = vmatprep.subr.mxu0 0.0
        %1754 = vmatpush1.msra.mxu0 0.0
        %1755 = vmatprep.subr.mxu0 0.0
        %1756 = vmatpush1.msra.mxu0 0.0
        %1757 = vmatprep.subr.mxu0 0.0
        %1758 = vmatpush1.msra.mxu0 0.0
        %1759 = vmatprep.subr.mxu0 0.0
        %1760 = vmatpush1.msra.mxu0 0.0
        %1761 = vmatprep.subr.mxu0 0.0
        %1762 = vmatpush1.msra.mxu0 0.0
        %1763 = vmatprep.subr.mxu0 0.0
        %1764 = vmatpush1.msra.mxu0 0.0
        %1765 = vmatprep.subr.mxu0 0.0
        %1766 = vmatpush1.msra.mxu0 0.0
        %1767 = vmatprep.subr.mxu0 0.0
        %1768 = vmatpush1.msra.mxu0 0.0
        %1769 = vmatprep.subr.mxu0 0.0
        %1770 = vmatpush1.msra.mxu0 0.0
        %1771 = vmatprep.subr.mxu0 0.0
        %1772 = vmatpush1.msra.mxu0 0.0
        %1773 = vmatprep.subr.mxu0 0.0
        %1774 = vmatpush1.msra.mxu0 0.0
        %1775 = vmatprep.subr.mxu0 0.0
        %1776 = vmatpush1.msra.mxu0 0.0
        %1777 = vmatprep.subr.mxu0 0.0
        %1778 = vmatpush1.msra.mxu0 0.0
        %1779 = vmatprep.subr.mxu0 0.0
        %1780 = vmatpush1.msra.mxu0 0.0
        %1781 = vmatprep.subr.mxu0 0.0
        %1782 = vmatpush1.msra.mxu0 0.0
        %1783 = vmatprep.subr.mxu0 0.0
        %1784 = vmatpush1.msra.mxu0 0.0
        %1785 = vmatprep.subr.mxu0 0.0
        %1786 = vmatpush1.msra.mxu0 0.0
        %1787 = vmatprep.subr.mxu0 0.0
        %1788 = vmatpush1.msra.mxu0 0.0
        %1789 = vmatprep.subr.mxu0 0.0
        %1790 = vmatpush1.msra.mxu0 0.0
        %1791 = vmatprep.subr.mxu0 0.0
        %1792 = vmatpush1.msra.mxu0 0.0
        %1793 = vmatprep.subr.mxu0 0.0
        %1794 = vmatpush1.msra.mxu0 0.0
        %1795 = vmatprep.subr.mxu0 0.0
        %1796 = vmatpush1.msra.mxu0 0.0
        %1797 = vmatprep.subr.mxu0 0.0
        %1798 = vmatpush1.msra.mxu0 0.0
        %1799 = vmatprep.subr.mxu0 0.0
        %1800 = vmatpush1.msra.mxu0 0.0
        %1801 = vmatprep.subr.mxu0 0.0
        %1802 = vmatpush1.msra.mxu0 0.0
        %1803 = vmatprep.subr.mxu0 0.0
        %1804 = vmatpush1.msra.mxu0 0.0
        %1805 = vmatprep.subr.mxu0 0.0
        %1806 = vmatpush1.msra.mxu0 0.0
        %1807 = vmatprep.subr.mxu0 0.0
        %1808 = vmatpush1.msra.mxu0 0.0
        %1809 = vmatprep.mubr.f32.mxu0 0.0
        %v1810 = vand.u32 %v1118, 4294901760
        %v1811 = vsub.f32 %v1118, %v1810
        %1812 = vmatmul.mubr.f32.gmra.mrb[0].mxu0 %v1811
        %v1813 = vpop.f32.mrb[0].mxu0
        %v1814 = vadd.f32 %v1740, %v1813
        %v1815 = vpop.f32.mrb[0].mxu0
        %1816 = vdwg.mxu0
        %1817 = vmatprep.subr.mxu0 0.0
        %v1818 = vand.u32 %v1124, 4294901760
        %1819 = vmatpush1.msra.mxu0 %v1818
        %1820 = vmatprep.subr.mxu0 0.0
        %1821 = vmatpush1.msra.mxu0 0.0
        %1822 = vmatprep.subr.mxu0 0.0
        %1823 = vmatpush1.msra.mxu0 0.0
        %1824 = vmatprep.subr.mxu0 0.0
        %1825 = vmatpush1.msra.mxu0 0.0
        %1826 = vmatprep.subr.mxu0 0.0
        %1827 = vmatpush1.msra.mxu0 0.0
        %1828 = vmatprep.subr.mxu0 0.0
        %1829 = vmatpush1.msra.mxu0 0.0
        %1830 = vmatprep.subr.mxu0 0.0
        %1831 = vmatpush1.msra.mxu0 0.0
        %1832 = vmatprep.subr.mxu0 0.0
        %1833 = vmatpush1.msra.mxu0 0.0
        %1834 = vmatprep.subr.mxu0 0.0
        %1835 = vmatpush1.msra.mxu0 0.0
        %1836 = vmatprep.subr.mxu0 0.0
        %1837 = vmatpush1.msra.mxu0 0.0
        %1838 = vmatprep.subr.mxu0 0.0
        %1839 = vmatpush1.msra.mxu0 0.0
        %1840 = vmatprep.subr.mxu0 0.0
        %1841 = vmatpush1.msra.mxu0 0.0
        %1842 = vmatprep.subr.mxu0 0.0
        %1843 = vmatpush1.msra.mxu0 0.0
        %1844 = vmatprep.subr.mxu0 0.0
        %1845 = vmatpush1.msra.mxu0 0.0
        %1846 = vmatprep.subr.mxu0 0.0
        %1847 = vmatpush1.msra.mxu0 0.0
        %1848 = vmatprep.subr.mxu0 0.0
        %1849 = vmatpush1.msra.mxu0 0.0
        %1850 = vmatprep.subr.mxu0 0.0
        %1851 = vmatpush1.msra.mxu0 0.0
        %1852 = vmatprep.subr.mxu0 0.0
        %1853 = vmatpush1.msra.mxu0 0.0
        %1854 = vmatprep.subr.mxu0 0.0
        %1855 = vmatpush1.msra.mxu0 0.0
        %1856 = vmatprep.subr.mxu0 0.0
        %1857 = vmatpush1.msra.mxu0 0.0
        %1858 = vmatprep.subr.mxu0 0.0
        %1859 = vmatpush1.msra.mxu0 0.0
        %1860 = vmatprep.subr.mxu0 0.0
        %1861 = vmatpush1.msra.mxu0 0.0
        %1862 = vmatprep.subr.mxu0 0.0
        %1863 = vmatpush1.msra.mxu0 0.0
        %1864 = vmatprep.subr.mxu0 0.0
        %1865 = vmatpush1.msra.mxu0 0.0
        %1866 = vmatprep.subr.mxu0 0.0
        %1867 = vmatpush1.msra.mxu0 0.0
        %1868 = vmatprep.subr.mxu0 0.0
        %1869 = vmatpush1.msra.mxu0 0.0
        %1870 = vmatprep.subr.mxu0 0.0
        %1871 = vmatpush1.msra.mxu0 0.0
        %1872 = vmatprep.subr.mxu0 0.0
        %1873 = vmatpush1.msra.mxu0 0.0
        %1874 = vmatprep.subr.mxu0 0.0
        %1875 = vmatpush1.msra.mxu0 0.0
        %1876 = vmatprep.subr.mxu0 0.0
        %1877 = vmatpush1.msra.mxu0 0.0
        %1878 = vmatprep.subr.mxu0 0.0
        %1879 = vmatpush1.msra.mxu0 0.0
        %1880 = vmatprep.subr.mxu0 0.0
        %1881 = vmatpush1.msra.mxu0 0.0
        %1882 = vmatprep.mubr.f32.mxu0 0.0
        %v1883 = vand.u32 %v1118, 4294901760
        %v1884 = vsub.f32 %v1118, %v1883
        %v1885 = vand.u32 %v1884, 4294901760
        %1886 = vmatmul.mubr.f32.gmra.mrb[0].mxu0 %v1885
        %v1887 = vpop.f32.mrb[0].mxu0
        %v1888 = vadd.f32 %v1814, %v1887
        %v1889 = vpop.f32.mrb[0].mxu0
        %1890 = vdwg.mxu0
        %1891 = vmatprep.subr.mxu0 0.0
        %v1892 = vand.u32 %v1124, 4294901760
        %v1893 = vsub.f32 %v1124, %v1892
        %v1894 = vand.u32 %v1893, 4294901760
        %1895 = vmatpush1.msra.mxu0 %v1894
        %1896 = vmatprep.subr.mxu0 0.0
        %1897 = vmatpush1.msra.mxu0 0.0
        %1898 = vmatprep.subr.mxu0 0.0
        %1899 = vmatpush1.msra.mxu0 0.0
        %1900 = vmatprep.subr.mxu0 0.0
        %1901 = vmatpush1.msra.mxu0 0.0
        %1902 = vmatprep.subr.mxu0 0.0
        %1903 = vmatpush1.msra.mxu0 0.0
        %1904 = vmatprep.subr.mxu0 0.0
        %1905 = vmatpush1.msra.mxu0 0.0
        %1906 = vmatprep.subr.mxu0 0.0
        %1907 = vmatpush1.msra.mxu0 0.0
        %1908 = vmatprep.subr.mxu0 0.0
        %1909 = vmatpush1.msra.mxu0 0.0
        %1910 = vmatprep.subr.mxu0 0.0
        %1911 = vmatpush1.msra.mxu0 0.0
        %1912 = vmatprep.subr.mxu0 0.0
        %1913 = vmatpush1.msra.mxu0 0.0
        %1914 = vmatprep.subr.mxu0 0.0
        %1915 = vmatpush1.msra.mxu0 0.0
        %1916 = vmatprep.subr.mxu0 0.0
        %1917 = vmatpush1.msra.mxu0 0.0
        %1918 = vmatprep.subr.mxu0 0.0
        %1919 = vmatpush1.msra.mxu0 0.0
        %1920 = vmatprep.subr.mxu0 0.0
        %1921 = vmatpush1.msra.mxu0 0.0
        %1922 = vmatprep.subr.mxu0 0.0
        %1923 = vmatpush1.msra.mxu0 0.0
        %1924 = vmatprep.subr.mxu0 0.0
        %1925 = vmatpush1.msra.mxu0 0.0
        %1926 = vmatprep.subr.mxu0 0.0
        %1927 = vmatpush1.msra.mxu0 0.0
        %1928 = vmatprep.subr.mxu0 0.0
        %1929 = vmatpush1.msra.mxu0 0.0
        %1930 = vmatprep.subr.mxu0 0.0
        %1931 = vmatpush1.msra.mxu0 0.0
        %1932 = vmatprep.subr.mxu0 0.0
        %1933 = vmatpush1.msra.mxu0 0.0
        %1934 = vmatprep.subr.mxu0 0.0
        %1935 = vmatpush1.msra.mxu0 0.0
        %1936 = vmatprep.subr.mxu0 0.0
        %1937 = vmatpush1.msra.mxu0 0.0
        %1938 = vmatprep.subr.mxu0 0.0
        %1939 = vmatpush1.msra.mxu0 0.0
        %1940 = vmatprep.subr.mxu0 0.0
        %1941 = vmatpush1.msra.mxu0 0.0
        %1942 = vmatprep.subr.mxu0 0.0
        %1943 = vmatpush1.msra.mxu0 0.0
        %1944 = vmatprep.subr.mxu0 0.0
        %1945 = vmatpush1.msra.mxu0 0.0
        %1946 = vmatprep.subr.mxu0 0.0
        %1947 = vmatpush1.msra.mxu0 0.0
        %1948 = vmatprep.subr.mxu0 0.0
        %1949 = vmatpush1.msra.mxu0 0.0
        %1950 = vmatprep.subr.mxu0 0.0
        %1951 = vmatpush1.msra.mxu0 0.0
        %1952 = vmatprep.subr.mxu0 0.0
        %1953 = vmatpush1.msra.mxu0 0.0
        %1954 = vmatprep.subr.mxu0 0.0
        %1955 = vmatpush1.msra.mxu0 0.0
        %1956 = vmatprep.subr.mxu0 0.0
        %1957 = vmatpush1.msra.mxu0 0.0
        %1958 = vmatprep.mubr.f32.mxu0 0.0
        %v1959 = vand.u32 %v1118, 4294901760
        %1960 = vmatmul.mubr.f32.gmra.mrb[0].mxu0 %v1959
        %v1961 = vpop.f32.mrb[0].mxu0
        %v1962 = vadd.f32 %v1888, %v1961
        %v1963 = vpop.f32.mrb[0].mxu0
        %1964 = vdwg.mxu0
        %1965 = vmatprep.subr.mxu0 0.0
        %v1966 = vand.u32 %v1124, 4294901760
        %1967 = vmatpush1.msra.mxu0 %v1966
        %1968 = vmatprep.subr.mxu0 0.0
        %1969 = vmatpush1.msra.mxu0 0.0
        %1970 = vmatprep.subr.mxu0 0.0
        %1971 = vmatpush1.msra.mxu0 0.0
        %1972 = vmatprep.subr.mxu0 0.0
        %1973 = vmatpush1.msra.mxu0 0.0
        %1974 = vmatprep.subr.mxu0 0.0
        %1975 = vmatpush1.msra.mxu0 0.0
        %1976 = vmatprep.subr.mxu0 0.0
        %1977 = vmatpush1.msra.mxu0 0.0
        %1978 = vmatprep.subr.mxu0 0.0
        %1979 = vmatpush1.msra.mxu0 0.0
        %1980 = vmatprep.subr.mxu0 0.0
        %1981 = vmatpush1.msra.mxu0 0.0
        %1982 = vmatprep.subr.mxu0 0.0
        %1983 = vmatpush1.msra.mxu0 0.0
        %1984 = vmatprep.subr.mxu0 0.0
        %1985 = vmatpush1.msra.mxu0 0.0
        %1986 = vmatprep.subr.mxu0 0.0
        %1987 = vmatpush1.msra.mxu0 0.0
        %1988 = vmatprep.subr.mxu0 0.0
        %1989 = vmatpush1.msra.mxu0 0.0
        %1990 = vmatprep.subr.mxu0 0.0
        %1991 = vmatpush1.msra.mxu0 0.0
        %1992 = vmatprep.subr.mxu0 0.0
        %1993 = vmatpush1.msra.mxu0 0.0
        %1994 = vmatprep.subr.mxu0 0.0
        %1995 = vmatpush1.msra.mxu0 0.0
        %1996 = vmatprep.subr.mxu0 0.0
        %1997 = vmatpush1.msra.mxu0 0.0
        %1998 = vmatprep.subr.mxu0 0.0
        %1999 = vmatpush1.msra.mxu0 0.0
        %2000 = vmatprep.subr.mxu0 0.0
        %2001 = vmatpush1.msra.mxu0 0.0
        %2002 = vmatprep.subr.mxu0 0.0
        %2003 = vmatpush1.msra.mxu0 0.0
        %2004 = vmatprep.subr.mxu0 0.0
        %2005 = vmatpush1.msra.mxu0 0.0
        %2006 = vmatprep.subr.mxu0 0.0
        %2007 = vmatpush1.msra.mxu0 0.0
        %2008 = vmatprep.subr.mxu0 0.0
        %2009 = vmatpush1.msra.mxu0 0.0
        %2010 = vmatprep.subr.mxu0 0.0
        %2011 = vmatpush1.msra.mxu0 0.0
        %2012 = vmatprep.subr.mxu0 0.0
        %2013 = vmatpush1.msra.mxu0 0.0
        %2014 = vmatprep.subr.mxu0 0.0
        %2015 = vmatpush1.msra.mxu0 0.0
        %2016 = vmatprep.subr.mxu0 0.0
        %2017 = vmatpush1.msra.mxu0 0.0
        %2018 = vmatprep.subr.mxu0 0.0
        %2019 = vmatpush1.msra.mxu0 0.0
        %2020 = vmatprep.subr.mxu0 0.0
        %2021 = vmatpush1.msra.mxu0 0.0
        %2022 = vmatprep.subr.mxu0 0.0
        %2023 = vmatpush1.msra.mxu0 0.0
        %2024 = vmatprep.subr.mxu0 0.0
        %2025 = vmatpush1.msra.mxu0 0.0
        %2026 = vmatprep.subr.mxu0 0.0
        %2027 = vmatpush1.msra.mxu0 0.0
        %2028 = vmatprep.subr.mxu0 0.0
        %2029 = vmatpush1.msra.mxu0 0.0
        %2030 = vmatprep.mubr.f32.mxu0 0.0
        %v2031 = vand.u32 %v1118, 4294901760
        %2032 = vmatmul.mubr.f32.gmra.mrb[0].mxu0 %v2031
        %v2033 = vpop.f32.mrb[0].mxu0
        %v2034 = vadd.f32 %v1962, %v2033
        %v2035 = vpop.f32.mrb[0].mxu0
        %2036 = vdwg.mxu0
        %v2037 = vld [vmem:[%s168] sm:$0xff]
        %v2038 = vld [vmem:[%s168 + $0x8] sm:$0xff]
        %s2039 = scalar_lea.vmem %s1, 16
        %v2040 = vld [vmem:[%s2039] sm:$0xff]
        %v2043 = vcombine.high %v2037, %v2037
        %v2044 = vcombine.high %v2038, %v2038
        %2045 = vrot.lane.b32.xlu0 %v2037, 126
        %v2046 = vpop.permute.xlu0 %2045
        %2047 = vrot.lane.b32.xlu0 %v2043, 126
        %v2048 = vpop.permute.xlu0 %2047
        %2049 = vrot.lane.b32.xlu0 %v2038, 126
        %v2050 = vpop.permute.xlu0 %2049
        %2051 = vrot.lane.b32.xlu0 %v2044, 126
        %v2052 = vpop.permute.xlu0 %2051
        %vm2053 = vcmask 1031168
        %v2054 = vsel %vm2053, %v2046, %v2048
        %v2055 = vsel %vm2053, %v2048, %v2050
        %v2056 = vsel %vm2053, %v2050, %v2052
        %v2058 = vsel %vm192, %v2040, 0
        %v2060 = vsel %vm196, %v2054, 0
        %v2062 = vsel %vm196, %v2055, 0
        %v2064 = vsel %vm196, %v2056, 0
        %v2066 = vand.u32 %v2062, 4294901760
        %2067 = vmatprep.subr.mxu0 %v2066
        %v2068 = vand.u32 %v2060, 4294901760
        %2069 = vmatpush1.msra.mxu0 %v2068
        %2070 = vmatprep.subr.mxu0 0.0
        %2071 = vmatpush1.msra.mxu0 0.0
        %2072 = vmatprep.subr.mxu0 0.0
        %2073 = vmatpush1.msra.mxu0 0.0
        %2074 = vmatprep.subr.mxu0 0.0
        %2075 = vmatpush1.msra.mxu0 0.0
        %2076 = vmatprep.subr.mxu0 0.0
        %2077 = vmatpush1.msra.mxu0 0.0
        %2078 = vmatprep.subr.mxu0 0.0
        %2079 = vmatpush1.msra.mxu0 0.0
        %2080 = vmatprep.subr.mxu0 0.0
        %2081 = vmatpush1.msra.mxu0 0.0
        %2082 = vmatprep.subr.mxu0 0.0
        %2083 = vmatpush1.msra.mxu0 0.0
        %2084 = vmatprep.subr.mxu0 0.0
        %2085 = vmatpush1.msra.mxu0 0.0
        %2086 = vmatprep.subr.mxu0 0.0
        %2087 = vmatpush1.msra.mxu0 0.0
        %2088 = vmatprep.subr.mxu0 0.0
        %2089 = vmatpush1.msra.mxu0 0.0
        %2090 = vmatprep.subr.mxu0 0.0
        %2091 = vmatpush1.msra.mxu0 0.0
        %2092 = vmatprep.subr.mxu0 0.0
        %2093 = vmatpush1.msra.mxu0 0.0
        %2094 = vmatprep.subr.mxu0 0.0
        %2095 = vmatpush1.msra.mxu0 0.0
        %2096 = vmatprep.subr.mxu0 0.0
        %2097 = vmatpush1.msra.mxu0 0.0
        %2098 = vmatprep.subr.mxu0 0.0
        %2099 = vmatpush1.msra.mxu0 0.0
        %2100 = vmatprep.subr.mxu0 0.0
        %2101 = vmatpush1.msra.mxu0 0.0
        %2102 = vmatprep.subr.mxu0 0.0
        %2103 = vmatpush1.msra.mxu0 0.0
        %2104 = vmatprep.subr.mxu0 0.0
        %2105 = vmatpush1.msra.mxu0 0.0
        %2106 = vmatprep.subr.mxu0 0.0
        %2107 = vmatpush1.msra.mxu0 0.0
        %2108 = vmatprep.subr.mxu0 0.0
        %2109 = vmatpush1.msra.mxu0 0.0
        %2110 = vmatprep.subr.mxu0 0.0
        %2111 = vmatpush1.msra.mxu0 0.0
        %2112 = vmatprep.subr.mxu0 0.0
        %2113 = vmatpush1.msra.mxu0 0.0
        %2114 = vmatprep.subr.mxu0 0.0
        %2115 = vmatpush1.msra.mxu0 0.0
        %2116 = vmatprep.subr.mxu0 0.0
        %2117 = vmatpush1.msra.mxu0 0.0
        %2118 = vmatprep.subr.mxu0 0.0
        %2119 = vmatpush1.msra.mxu0 0.0
        %2120 = vmatprep.subr.mxu0 0.0
        %2121 = vmatpush1.msra.mxu0 0.0
        %2122 = vmatprep.subr.mxu0 0.0
        %2123 = vmatpush1.msra.mxu0 0.0
        %2124 = vmatprep.subr.mxu0 0.0
        %2125 = vmatpush1.msra.mxu0 0.0
        %2126 = vmatprep.subr.mxu0 0.0
        %2127 = vmatpush1.msra.mxu0 0.0
        %2128 = vmatprep.subr.mxu0 0.0
        %2129 = vmatpush1.msra.mxu0 0.0
        %2130 = vmatprep.subr.mxu0 0.0
        %2131 = vmatpush1.msra.mxu0 0.0
        %2132 = vmatprep.mubr.f32.mxu0 0.0
        %v2133 = vand.u32 %v2058, 4294901760
        %v2134 = vsub.f32 %v2058, %v2133
        %v2135 = vand.u32 %v2134, 4294901760
        %v2136 = vsub.f32 %v2134, %v2135
        %v2137 = vand.u32 %v2136, 4294901760
        %2138 = vmatmul.mubr.f32.gmra.mrb[0].mxu0 %v2137
        %v2139 = vpop.f32.mrb[0].mxu0
        %v2140 = vadd.f32 0.0, %v2139
        %v2141 = vpop.f32.mrb[0].mxu0
        %v2142 = vadd.f32 0.0, %v2141
        %2143 = vdwg.mxu0
        %v2144 = vand.u32 %v2062, 4294901760
        %v2145 = vsub.f32 %v2062, %v2144
        %v2146 = vand.u32 %v2145, 4294901760
        %v2147 = vsub.f32 %v2145, %v2146
        %v2148 = vand.u32 %v2147, 4294901760
        %2149 = vmatprep.subr.mxu0 %v2148
        %v2150 = vand.u32 %v2060, 4294901760
        %v2151 = vsub.f32 %v2060, %v2150
        %v2152 = vand.u32 %v2151, 4294901760
        %v2153 = vsub.f32 %v2151, %v2152
        %v2154 = vand.u32 %v2153, 4294901760
        %2155 = vmatpush1.msra.mxu0 %v2154
        %2156 = vmatprep.subr.mxu0 0.0
        %2157 = vmatpush1.msra.mxu0 0.0
        %2158 = vmatprep.subr.mxu0 0.0
        %2159 = vmatpush1.msra.mxu0 0.0
        %2160 = vmatprep.subr.mxu0 0.0
        %2161 = vmatpush1.msra.mxu0 0.0
        %2162 = vmatprep.subr.mxu0 0.0
        %2163 = vmatpush1.msra.mxu0 0.0
        %2164 = vmatprep.subr.mxu0 0.0
        %2165 = vmatpush1.msra.mxu0 0.0
        %2166 = vmatprep.subr.mxu0 0.0
        %2167 = vmatpush1.msra.mxu0 0.0
        %2168 = vmatprep.subr.mxu0 0.0
        %2169 = vmatpush1.msra.mxu0 0.0
        %2170 = vmatprep.subr.mxu0 0.0
        %2171 = vmatpush1.msra.mxu0 0.0
        %2172 = vmatprep.subr.mxu0 0.0
        %2173 = vmatpush1.msra.mxu0 0.0
        %2174 = vmatprep.subr.mxu0 0.0
        %2175 = vmatpush1.msra.mxu0 0.0
        %2176 = vmatprep.subr.mxu0 0.0
        %2177 = vmatpush1.msra.mxu0 0.0
        %2178 = vmatprep.subr.mxu0 0.0
        %2179 = vmatpush1.msra.mxu0 0.0
        %2180 = vmatprep.subr.mxu0 0.0
        %2181 = vmatpush1.msra.mxu0 0.0
        %2182 = vmatprep.subr.mxu0 0.0
        %2183 = vmatpush1.msra.mxu0 0.0
        %2184 = vmatprep.subr.mxu0 0.0
        %2185 = vmatpush1.msra.mxu0 0.0
        %2186 = vmatprep.subr.mxu0 0.0
        %2187 = vmatpush1.msra.mxu0 0.0
        %2188 = vmatprep.subr.mxu0 0.0
        %2189 = vmatpush1.msra.mxu0 0.0
        %2190 = vmatprep.subr.mxu0 0.0
        %2191 = vmatpush1.msra.mxu0 0.0
        %2192 = vmatprep.subr.mxu0 0.0
        %2193 = vmatpush1.msra.mxu0 0.0
        %2194 = vmatprep.subr.mxu0 0.0
        %2195 = vmatpush1.msra.mxu0 0.0
        %2196 = vmatprep.subr.mxu0 0.0
        %2197 = vmatpush1.msra.mxu0 0.0
        %2198 = vmatprep.subr.mxu0 0.0
        %2199 = vmatpush1.msra.mxu0 0.0
        %2200 = vmatprep.subr.mxu0 0.0
        %2201 = vmatpush1.msra.mxu0 0.0
        %2202 = vmatprep.subr.mxu0 0.0
        %2203 = vmatpush1.msra.mxu0 0.0
        %2204 = vmatprep.subr.mxu0 0.0
        %2205 = vmatpush1.msra.mxu0 0.0
        %2206 = vmatprep.subr.mxu0 0.0
        %2207 = vmatpush1.msra.mxu0 0.0
        %2208 = vmatprep.subr.mxu0 0.0
        %2209 = vmatpush1.msra.mxu0 0.0
        %2210 = vmatprep.subr.mxu0 0.0
        %2211 = vmatpush1.msra.mxu0 0.0
        %2212 = vmatprep.subr.mxu0 0.0
        %2213 = vmatpush1.msra.mxu0 0.0
        %2214 = vmatprep.subr.mxu0 0.0
        %2215 = vmatpush1.msra.mxu0 0.0
        %2216 = vmatprep.subr.mxu0 0.0
        %2217 = vmatpush1.msra.mxu0 0.0
        %2218 = vmatprep.mubr.f32.mxu0 0.0
        %v2219 = vand.u32 %v2058, 4294901760
        %2220 = vmatmul.mubr.f32.gmra.mrb[0].mxu0 %v2219
        %v2221 = vpop.f32.mrb[0].mxu0
        %v2222 = vadd.f32 %v2140, %v2221
        %v2223 = vpop.f32.mrb[0].mxu0
        %v2224 = vadd.f32 %v2142, %v2223
        %2225 = vdwg.mxu0
        %v2226 = vand.u32 %v2062, 4294901760
        %v2227 = vsub.f32 %v2062, %v2226
        %2228 = vmatprep.subr.mxu0 %v2227
        %v2229 = vand.u32 %v2060, 4294901760
        %v2230 = vsub.f32 %v2060, %v2229
        %2231 = vmatpush1.msra.mxu0 %v2230
        %2232 = vmatprep.subr.mxu0 0.0
        %2233 = vmatpush1.msra.mxu0 0.0
        %2234 = vmatprep.subr.mxu0 0.0
        %2235 = vmatpush1.msra.mxu0 0.0
        %2236 = vmatprep.subr.mxu0 0.0
        %2237 = vmatpush1.msra.mxu0 0.0
        %2238 = vmatprep.subr.mxu0 0.0
        %2239 = vmatpush1.msra.mxu0 0.0
        %2240 = vmatprep.subr.mxu0 0.0
        %2241 = vmatpush1.msra.mxu0 0.0
        %2242 = vmatprep.subr.mxu0 0.0
        %2243 = vmatpush1.msra.mxu0 0.0
        %2244 = vmatprep.subr.mxu0 0.0
        %2245 = vmatpush1.msra.mxu0 0.0
        %2246 = vmatprep.subr.mxu0 0.0
        %2247 = vmatpush1.msra.mxu0 0.0
        %2248 = vmatprep.subr.mxu0 0.0
        %2249 = vmatpush1.msra.mxu0 0.0
        %2250 = vmatprep.subr.mxu0 0.0
        %2251 = vmatpush1.msra.mxu0 0.0
        %2252 = vmatprep.subr.mxu0 0.0
        %2253 = vmatpush1.msra.mxu0 0.0
        %2254 = vmatprep.subr.mxu0 0.0
        %2255 = vmatpush1.msra.mxu0 0.0
        %2256 = vmatprep.subr.mxu0 0.0
        %2257 = vmatpush1.msra.mxu0 0.0
        %2258 = vmatprep.subr.mxu0 0.0
        %2259 = vmatpush1.msra.mxu0 0.0
        %2260 = vmatprep.subr.mxu0 0.0
        %2261 = vmatpush1.msra.mxu0 0.0
        %2262 = vmatprep.subr.mxu0 0.0
        %2263 = vmatpush1.msra.mxu0 0.0
        %2264 = vmatprep.subr.mxu0 0.0
        %2265 = vmatpush1.msra.mxu0 0.0
        %2266 = vmatprep.subr.mxu0 0.0
        %2267 = vmatpush1.msra.mxu0 0.0
        %2268 = vmatprep.subr.mxu0 0.0
        %2269 = vmatpush1.msra.mxu0 0.0
        %2270 = vmatprep.subr.mxu0 0.0
        %2271 = vmatpush1.msra.mxu0 0.0
        %2272 = vmatprep.subr.mxu0 0.0
        %2273 = vmatpush1.msra.mxu0 0.0
        %2274 = vmatprep.subr.mxu0 0.0
        %2275 = vmatpush1.msra.mxu0 0.0
        %2276 = vmatprep.subr.mxu0 0.0
        %2277 = vmatpush1.msra.mxu0 0.0
        %2278 = vmatprep.subr.mxu0 0.0
        %2279 = vmatpush1.msra.mxu0 0.0
        %2280 = vmatprep.subr.mxu0 0.0
        %2281 = vmatpush1.msra.mxu0 0.0
        %2282 = vmatprep.subr.mxu0 0.0
        %2283 = vmatpush1.msra.mxu0 0.0
        %2284 = vmatprep.subr.mxu0 0.0
        %2285 = vmatpush1.msra.mxu0 0.0
        %2286 = vmatprep.subr.mxu0 0.0
        %2287 = vmatpush1.msra.mxu0 0.0
        %2288 = vmatprep.subr.mxu0 0.0
        %2289 = vmatpush1.msra.mxu0 0.0
        %2290 = vmatprep.subr.mxu0 0.0
        %2291 = vmatpush1.msra.mxu0 0.0
        %2292 = vmatprep.subr.mxu0 0.0
        %2293 = vmatpush1.msra.mxu0 0.0
        %2294 = vmatprep.mubr.f32.mxu0 0.0
        %v2295 = vand.u32 %v2058, 4294901760
        %v2296 = vsub.f32 %v2058, %v2295
        %2297 = vmatmul.mubr.f32.gmra.mrb[0].mxu0 %v2296
        %v2298 = vpop.f32.mrb[0].mxu0
        %v2299 = vadd.f32 %v2222, %v2298
        %v2300 = vpop.f32.mrb[0].mxu0
        %v2301 = vadd.f32 %v2224, %v2300
        %2302 = vdwg.mxu0
        %v2303 = vand.u32 %v2062, 4294901760
        %2304 = vmatprep.subr.mxu0 %v2303
        %v2305 = vand.u32 %v2060, 4294901760
        %2306 = vmatpush1.msra.mxu0 %v2305
        %2307 = vmatprep.subr.mxu0 0.0
        %2308 = vmatpush1.msra.mxu0 0.0
        %2309 = vmatprep.subr.mxu0 0.0
        %2310 = vmatpush1.msra.mxu0 0.0
        %2311 = vmatprep.subr.mxu0 0.0
        %2312 = vmatpush1.msra.mxu0 0.0
        %2313 = vmatprep.subr.mxu0 0.0
        %2314 = vmatpush1.msra.mxu0 0.0
        %2315 = vmatprep.subr.mxu0 0.0
        %2316 = vmatpush1.msra.mxu0 0.0
        %2317 = vmatprep.subr.mxu0 0.0
        %2318 = vmatpush1.msra.mxu0 0.0
        %2319 = vmatprep.subr.mxu0 0.0
        %2320 = vmatpush1.msra.mxu0 0.0
        %2321 = vmatprep.subr.mxu0 0.0
        %2322 = vmatpush1.msra.mxu0 0.0
        %2323 = vmatprep.subr.mxu0 0.0
        %2324 = vmatpush1.msra.mxu0 0.0
        %2325 = vmatprep.subr.mxu0 0.0
        %2326 = vmatpush1.msra.mxu0 0.0
        %2327 = vmatprep.subr.mxu0 0.0
        %2328 = vmatpush1.msra.mxu0 0.0
        %2329 = vmatprep.subr.mxu0 0.0
        %2330 = vmatpush1.msra.mxu0 0.0
        %2331 = vmatprep.subr.mxu0 0.0
        %2332 = vmatpush1.msra.mxu0 0.0
        %2333 = vmatprep.subr.mxu0 0.0
        %2334 = vmatpush1.msra.mxu0 0.0
        %2335 = vmatprep.subr.mxu0 0.0
        %2336 = vmatpush1.msra.mxu0 0.0
        %2337 = vmatprep.subr.mxu0 0.0
        %2338 = vmatpush1.msra.mxu0 0.0
        %2339 = vmatprep.subr.mxu0 0.0
        %2340 = vmatpush1.msra.mxu0 0.0
        %2341 = vmatprep.subr.mxu0 0.0
        %2342 = vmatpush1.msra.mxu0 0.0
        %2343 = vmatprep.subr.mxu0 0.0
        %2344 = vmatpush1.msra.mxu0 0.0
        %2345 = vmatprep.subr.mxu0 0.0
        %2346 = vmatpush1.msra.mxu0 0.0
        %2347 = vmatprep.subr.mxu0 0.0
        %2348 = vmatpush1.msra.mxu0 0.0
        %2349 = vmatprep.subr.mxu0 0.0
        %2350 = vmatpush1.msra.mxu0 0.0
        %2351 = vmatprep.subr.mxu0 0.0
        %2352 = vmatpush1.msra.mxu0 0.0
        %2353 = vmatprep.subr.mxu0 0.0
        %2354 = vmatpush1.msra.mxu0 0.0
        %2355 = vmatprep.subr.mxu0 0.0
        %2356 = vmatpush1.msra.mxu0 0.0
        %2357 = vmatprep.subr.mxu0 0.0
        %2358 = vmatpush1.msra.mxu0 0.0
        %2359 = vmatprep.subr.mxu0 0.0
        %2360 = vmatpush1.msra.mxu0 0.0
        %2361 = vmatprep.subr.mxu0 0.0
        %2362 = vmatpush1.msra.mxu0 0.0
        %2363 = vmatprep.subr.mxu0 0.0
        %2364 = vmatpush1.msra.mxu0 0.0
        %2365 = vmatprep.subr.mxu0 0.0
        %2366 = vmatpush1.msra.mxu0 0.0
        %2367 = vmatprep.subr.mxu0 0.0
        %2368 = vmatpush1.msra.mxu0 0.0
        %2369 = vmatprep.mubr.f32.mxu0 0.0
        %v2370 = vand.u32 %v2058, 4294901760
        %v2371 = vsub.f32 %v2058, %v2370
        %v2372 = vand.u32 %v2371, 4294901760
        %2373 = vmatmul.mubr.f32.gmra.mrb[0].mxu0 %v2372
        %v2374 = vpop.f32.mrb[0].mxu0
        %v2375 = vadd.f32 %v2299, %v2374
        %v2376 = vpop.f32.mrb[0].mxu0
        %v2377 = vadd.f32 %v2301, %v2376
        %2378 = vdwg.mxu0
        %v2379 = vand.u32 %v2062, 4294901760
        %v2380 = vsub.f32 %v2062, %v2379
        %v2381 = vand.u32 %v2380, 4294901760
        %2382 = vmatprep.subr.mxu0 %v2381
        %v2383 = vand.u32 %v2060, 4294901760
        %v2384 = vsub.f32 %v2060, %v2383
        %v2385 = vand.u32 %v2384, 4294901760
        %2386 = vmatpush1.msra.mxu0 %v2385
        %2387 = vmatprep.subr.mxu0 0.0
        %2388 = vmatpush1.msra.mxu0 0.0
        %2389 = vmatprep.subr.mxu0 0.0
        %2390 = vmatpush1.msra.mxu0 0.0
        %2391 = vmatprep.subr.mxu0 0.0
        %2392 = vmatpush1.msra.mxu0 0.0
        %2393 = vmatprep.subr.mxu0 0.0
        %2394 = vmatpush1.msra.mxu0 0.0
        %2395 = vmatprep.subr.mxu0 0.0
        %2396 = vmatpush1.msra.mxu0 0.0
        %2397 = vmatprep.subr.mxu0 0.0
        %2398 = vmatpush1.msra.mxu0 0.0
        %2399 = vmatprep.subr.mxu0 0.0
        %2400 = vmatpush1.msra.mxu0 0.0
        %2401 = vmatprep.subr.mxu0 0.0
        %2402 = vmatpush1.msra.mxu0 0.0
        %2403 = vmatprep.subr.mxu0 0.0
        %2404 = vmatpush1.msra.mxu0 0.0
        %2405 = vmatprep.subr.mxu0 0.0
        %2406 = vmatpush1.msra.mxu0 0.0
        %2407 = vmatprep.subr.mxu0 0.0
        %2408 = vmatpush1.msra.mxu0 0.0
        %2409 = vmatprep.subr.mxu0 0.0
        %2410 = vmatpush1.msra.mxu0 0.0
        %2411 = vmatprep.subr.mxu0 0.0
        %2412 = vmatpush1.msra.mxu0 0.0
        %2413 = vmatprep.subr.mxu0 0.0
        %2414 = vmatpush1.msra.mxu0 0.0
        %2415 = vmatprep.subr.mxu0 0.0
        %2416 = vmatpush1.msra.mxu0 0.0
        %2417 = vmatprep.subr.mxu0 0.0
        %2418 = vmatpush1.msra.mxu0 0.0
        %2419 = vmatprep.subr.mxu0 0.0
        %2420 = vmatpush1.msra.mxu0 0.0
        %2421 = vmatprep.subr.mxu0 0.0
        %2422 = vmatpush1.msra.mxu0 0.0
        %2423 = vmatprep.subr.mxu0 0.0
        %2424 = vmatpush1.msra.mxu0 0.0
        %2425 = vmatprep.subr.mxu0 0.0
        %2426 = vmatpush1.msra.mxu0 0.0
        %2427 = vmatprep.subr.mxu0 0.0
        %2428 = vmatpush1.msra.mxu0 0.0
        %2429 = vmatprep.subr.mxu0 0.0
        %2430 = vmatpush1.msra.mxu0 0.0
        %2431 = vmatprep.subr.mxu0 0.0
        %2432 = vmatpush1.msra.mxu0 0.0
        %2433 = vmatprep.subr.mxu0 0.0
        %2434 = vmatpush1.msra.mxu0 0.0
        %2435 = vmatprep.subr.mxu0 0.0
        %2436 = vmatpush1.msra.mxu0 0.0
        %2437 = vmatprep.subr.mxu0 0.0
        %2438 = vmatpush1.msra.mxu0 0.0
        %2439 = vmatprep.subr.mxu0 0.0
        %2440 = vmatpush1.msra.mxu0 0.0
        %2441 = vmatprep.subr.mxu0 0.0
        %2442 = vmatpush1.msra.mxu0 0.0
        %2443 = vmatprep.subr.mxu0 0.0
        %2444 = vmatpush1.msra.mxu0 0.0
        %2445 = vmatprep.subr.mxu0 0.0
        %2446 = vmatpush1.msra.mxu0 0.0
        %2447 = vmatprep.subr.mxu0 0.0
        %2448 = vmatpush1.msra.mxu0 0.0
        %2449 = vmatprep.mubr.f32.mxu0 0.0
        %v2450 = vand.u32 %v2058, 4294901760
        %2451 = vmatmul.mubr.f32.gmra.mrb[0].mxu0 %v2450
        %v2452 = vpop.f32.mrb[0].mxu0
        %v2453 = vadd.f32 %v2375, %v2452
        %v2454 = vpop.f32.mrb[0].mxu0
        %v2455 = vadd.f32 %v2377, %v2454
        %2456 = vdwg.mxu0
        %v2457 = vand.u32 %v2062, 4294901760
        %2458 = vmatprep.subr.mxu0 %v2457
        %v2459 = vand.u32 %v2060, 4294901760
        %2460 = vmatpush1.msra.mxu0 %v2459
        %2461 = vmatprep.subr.mxu0 0.0
        %2462 = vmatpush1.msra.mxu0 0.0
        %2463 = vmatprep.subr.mxu0 0.0
        %2464 = vmatpush1.msra.mxu0 0.0
        %2465 = vmatprep.subr.mxu0 0.0
        %2466 = vmatpush1.msra.mxu0 0.0
        %2467 = vmatprep.subr.mxu0 0.0
        %2468 = vmatpush1.msra.mxu0 0.0
        %2469 = vmatprep.subr.mxu0 0.0
        %2470 = vmatpush1.msra.mxu0 0.0
        %2471 = vmatprep.subr.mxu0 0.0
        %2472 = vmatpush1.msra.mxu0 0.0
        %2473 = vmatprep.subr.mxu0 0.0
        %2474 = vmatpush1.msra.mxu0 0.0
        %2475 = vmatprep.subr.mxu0 0.0
        %2476 = vmatpush1.msra.mxu0 0.0
        %2477 = vmatprep.subr.mxu0 0.0
        %2478 = vmatpush1.msra.mxu0 0.0
        %2479 = vmatprep.subr.mxu0 0.0
        %2480 = vmatpush1.msra.mxu0 0.0
        %2481 = vmatprep.subr.mxu0 0.0
        %2482 = vmatpush1.msra.mxu0 0.0
        %2483 = vmatprep.subr.mxu0 0.0
        %2484 = vmatpush1.msra.mxu0 0.0
        %2485 = vmatprep.subr.mxu0 0.0
        %2486 = vmatpush1.msra.mxu0 0.0
        %2487 = vmatprep.subr.mxu0 0.0
        %2488 = vmatpush1.msra.mxu0 0.0
        %2489 = vmatprep.subr.mxu0 0.0
        %2490 = vmatpush1.msra.mxu0 0.0
        %2491 = vmatprep.subr.mxu0 0.0
        %2492 = vmatpush1.msra.mxu0 0.0
        %2493 = vmatprep.subr.mxu0 0.0
        %2494 = vmatpush1.msra.mxu0 0.0
        %2495 = vmatprep.subr.mxu0 0.0
        %2496 = vmatpush1.msra.mxu0 0.0
        %2497 = vmatprep.subr.mxu0 0.0
        %2498 = vmatpush1.msra.mxu0 0.0
        %2499 = vmatprep.subr.mxu0 0.0
        %2500 = vmatpush1.msra.mxu0 0.0
        %2501 = vmatprep.subr.mxu0 0.0
        %2502 = vmatpush1.msra.mxu0 0.0
        %2503 = vmatprep.subr.mxu0 0.0
        %2504 = vmatpush1.msra.mxu0 0.0
        %2505 = vmatprep.subr.mxu0 0.0
        %2506 = vmatpush1.msra.mxu0 0.0
        %2507 = vmatprep.subr.mxu0 0.0
        %2508 = vmatpush1.msra.mxu0 0.0
        %2509 = vmatprep.subr.mxu0 0.0
        %2510 = vmatpush1.msra.mxu0 0.0
        %2511 = vmatprep.subr.mxu0 0.0
        %2512 = vmatpush1.msra.mxu0 0.0
        %2513 = vmatprep.subr.mxu0 0.0
        %2514 = vmatpush1.msra.mxu0 0.0
        %2515 = vmatprep.subr.mxu0 0.0
        %2516 = vmatpush1.msra.mxu0 0.0
        %2517 = vmatprep.subr.mxu0 0.0
        %2518 = vmatpush1.msra.mxu0 0.0
        %2519 = vmatprep.subr.mxu0 0.0
        %2520 = vmatpush1.msra.mxu0 0.0
        %2521 = vmatprep.subr.mxu0 0.0
        %2522 = vmatpush1.msra.mxu0 0.0
        %2523 = vmatprep.mubr.f32.mxu0 0.0
        %v2524 = vand.u32 %v2058, 4294901760
        %2525 = vmatmul.mubr.f32.gmra.mrb[0].mxu0 %v2524
        %v2526 = vpop.f32.mrb[0].mxu0
        %v2527 = vadd.f32 %v2453, %v2526
        %v2528 = vpop.f32.mrb[0].mxu0
        %v2529 = vadd.f32 %v2455, %v2528
        %2530 = vdwg.mxu0
        %2531 = vmatprep.subr.mxu0 0.0
        %v2532 = vand.u32 %v2064, 4294901760
        %2533 = vmatpush1.msra.mxu0 %v2532
        %2534 = vmatprep.subr.mxu0 0.0
        %2535 = vmatpush1.msra.mxu0 0.0
        %2536 = vmatprep.subr.mxu0 0.0
        %2537 = vmatpush1.msra.mxu0 0.0
        %2538 = vmatprep.subr.mxu0 0.0
        %2539 = vmatpush1.msra.mxu0 0.0
        %2540 = vmatprep.subr.mxu0 0.0
        %2541 = vmatpush1.msra.mxu0 0.0
        %2542 = vmatprep.subr.mxu0 0.0
        %2543 = vmatpush1.msra.mxu0 0.0
        %2544 = vmatprep.subr.mxu0 0.0
        %2545 = vmatpush1.msra.mxu0 0.0
        %2546 = vmatprep.subr.mxu0 0.0
        %2547 = vmatpush1.msra.mxu0 0.0
        %2548 = vmatprep.subr.mxu0 0.0
        %2549 = vmatpush1.msra.mxu0 0.0
        %2550 = vmatprep.subr.mxu0 0.0
        %2551 = vmatpush1.msra.mxu0 0.0
        %2552 = vmatprep.subr.mxu0 0.0
        %2553 = vmatpush1.msra.mxu0 0.0
        %2554 = vmatprep.subr.mxu0 0.0
        %2555 = vmatpush1.msra.mxu0 0.0
        %2556 = vmatprep.subr.mxu0 0.0
        %2557 = vmatpush1.msra.mxu0 0.0
        %2558 = vmatprep.subr.mxu0 0.0
        %2559 = vmatpush1.msra.mxu0 0.0
        %2560 = vmatprep.subr.mxu0 0.0
        %2561 = vmatpush1.msra.mxu0 0.0
        %2562 = vmatprep.subr.mxu0 0.0
        %2563 = vmatpush1.msra.mxu0 0.0
        %2564 = vmatprep.subr.mxu0 0.0
        %2565 = vmatpush1.msra.mxu0 0.0
        %2566 = vmatprep.subr.mxu0 0.0
        %2567 = vmatpush1.msra.mxu0 0.0
        %2568 = vmatprep.subr.mxu0 0.0
        %2569 = vmatpush1.msra.mxu0 0.0
        %2570 = vmatprep.subr.mxu0 0.0
        %2571 = vmatpush1.msra.mxu0 0.0
        %2572 = vmatprep.subr.mxu0 0.0
        %2573 = vmatpush1.msra.mxu0 0.0
        %2574 = vmatprep.subr.mxu0 0.0
        %2575 = vmatpush1.msra.mxu0 0.0
        %2576 = vmatprep.subr.mxu0 0.0
        %2577 = vmatpush1.msra.mxu0 0.0
        %2578 = vmatprep.subr.mxu0 0.0
        %2579 = vmatpush1.msra.mxu0 0.0
        %2580 = vmatprep.subr.mxu0 0.0
        %2581 = vmatpush1.msra.mxu0 0.0
        %2582 = vmatprep.subr.mxu0 0.0
        %2583 = vmatpush1.msra.mxu0 0.0
        %2584 = vmatprep.subr.mxu0 0.0
        %2585 = vmatpush1.msra.mxu0 0.0
        %2586 = vmatprep.subr.mxu0 0.0
        %2587 = vmatpush1.msra.mxu0 0.0
        %2588 = vmatprep.subr.mxu0 0.0
        %2589 = vmatpush1.msra.mxu0 0.0
        %2590 = vmatprep.subr.mxu0 0.0
        %2591 = vmatpush1.msra.mxu0 0.0
        %2592 = vmatprep.subr.mxu0 0.0
        %2593 = vmatpush1.msra.mxu0 0.0
        %2594 = vmatprep.subr.mxu0 0.0
        %2595 = vmatpush1.msra.mxu0 0.0
        %2596 = vmatprep.mubr.f32.mxu0 0.0
        %v2597 = vand.u32 %v2058, 4294901760
        %v2598 = vsub.f32 %v2058, %v2597
        %v2599 = vand.u32 %v2598, 4294901760
        %v2600 = vsub.f32 %v2598, %v2599
        %v2601 = vand.u32 %v2600, 4294901760
        %2602 = vmatmul.mubr.f32.gmra.mrb[0].mxu0 %v2601
        %v2603 = vpop.f32.mrb[0].mxu0
        %v2604 = vadd.f32 0.0, %v2603
        %v2605 = vpop.f32.mrb[0].mxu0
        %2606 = vdwg.mxu0
        %2607 = vmatprep.subr.mxu0 0.0
        %v2608 = vand.u32 %v2064, 4294901760
        %v2609 = vsub.f32 %v2064, %v2608
        %v2610 = vand.u32 %v2609, 4294901760
        %v2611 = vsub.f32 %v2609, %v2610
        %v2612 = vand.u32 %v2611, 4294901760
        %2613 = vmatpush1.msra.mxu0 %v2612
        %2614 = vmatprep.subr.mxu0 0.0
        %2615 = vmatpush1.msra.mxu0 0.0
        %2616 = vmatprep.subr.mxu0 0.0
        %2617 = vmatpush1.msra.mxu0 0.0
        %2618 = vmatprep.subr.mxu0 0.0
        %2619 = vmatpush1.msra.mxu0 0.0
        %2620 = vmatprep.subr.mxu0 0.0
        %2621 = vmatpush1.msra.mxu0 0.0
        %2622 = vmatprep.subr.mxu0 0.0
        %2623 = vmatpush1.msra.mxu0 0.0
        %2624 = vmatprep.subr.mxu0 0.0
        %2625 = vmatpush1.msra.mxu0 0.0
        %2626 = vmatprep.subr.mxu0 0.0
        %2627 = vmatpush1.msra.mxu0 0.0
        %2628 = vmatprep.subr.mxu0 0.0
        %2629 = vmatpush1.msra.mxu0 0.0
        %2630 = vmatprep.subr.mxu0 0.0
        %2631 = vmatpush1.msra.mxu0 0.0
        %2632 = vmatprep.subr.mxu0 0.0
        %2633 = vmatpush1.msra.mxu0 0.0
        %2634 = vmatprep.subr.mxu0 0.0
        %2635 = vmatpush1.msra.mxu0 0.0
        %2636 = vmatprep.subr.mxu0 0.0
        %2637 = vmatpush1.msra.mxu0 0.0
        %2638 = vmatprep.subr.mxu0 0.0
        %2639 = vmatpush1.msra.mxu0 0.0
        %2640 = vmatprep.subr.mxu0 0.0
        %2641 = vmatpush1.msra.mxu0 0.0
        %2642 = vmatprep.subr.mxu0 0.0
        %2643 = vmatpush1.msra.mxu0 0.0
        %2644 = vmatprep.subr.mxu0 0.0
        %2645 = vmatpush1.msra.mxu0 0.0
        %2646 = vmatprep.subr.mxu0 0.0
        %2647 = vmatpush1.msra.mxu0 0.0
        %2648 = vmatprep.subr.mxu0 0.0
        %2649 = vmatpush1.msra.mxu0 0.0
        %2650 = vmatprep.subr.mxu0 0.0
        %2651 = vmatpush1.msra.mxu0 0.0
        %2652 = vmatprep.subr.mxu0 0.0
        %2653 = vmatpush1.msra.mxu0 0.0
        %2654 = vmatprep.subr.mxu0 0.0
        %2655 = vmatpush1.msra.mxu0 0.0
        %2656 = vmatprep.subr.mxu0 0.0
        %2657 = vmatpush1.msra.mxu0 0.0
        %2658 = vmatprep.subr.mxu0 0.0
        %2659 = vmatpush1.msra.mxu0 0.0
        %2660 = vmatprep.subr.mxu0 0.0
        %2661 = vmatpush1.msra.mxu0 0.0
        %2662 = vmatprep.subr.mxu0 0.0
        %2663 = vmatpush1.msra.mxu0 0.0
        %2664 = vmatprep.subr.mxu0 0.0
        %2665 = vmatpush1.msra.mxu0 0.0
        %2666 = vmatprep.subr.mxu0 0.0
        %2667 = vmatpush1.msra.mxu0 0.0
        %2668 = vmatprep.subr.mxu0 0.0
        %2669 = vmatpush1.msra.mxu0 0.0
        %2670 = vmatprep.subr.mxu0 0.0
        %2671 = vmatpush1.msra.mxu0 0.0
        %2672 = vmatprep.subr.mxu0 0.0
        %2673 = vmatpush1.msra.mxu0 0.0
        %2674 = vmatprep.subr.mxu0 0.0
        %2675 = vmatpush1.msra.mxu0 0.0
        %2676 = vmatprep.mubr.f32.mxu0 0.0
        %v2677 = vand.u32 %v2058, 4294901760
        %2678 = vmatmul.mubr.f32.gmra.mrb[0].mxu0 %v2677
        %v2679 = vpop.f32.mrb[0].mxu0
        %v2680 = vadd.f32 %v2604, %v2679
        %v2681 = vpop.f32.mrb[0].mxu0
        %2682 = vdwg.mxu0
        %2683 = vmatprep.subr.mxu0 0.0
        %v2684 = vand.u32 %v2064, 4294901760
        %v2685 = vsub.f32 %v2064, %v2684
        %2686 = vmatpush1.msra.mxu0 %v2685
        %2687 = vmatprep.subr.mxu0 0.0
        %2688 = vmatpush1.msra.mxu0 0.0
        %2689 = vmatprep.subr.mxu0 0.0
        %2690 = vmatpush1.msra.mxu0 0.0
        %2691 = vmatprep.subr.mxu0 0.0
        %2692 = vmatpush1.msra.mxu0 0.0
        %2693 = vmatprep.subr.mxu0 0.0
        %2694 = vmatpush1.msra.mxu0 0.0
        %2695 = vmatprep.subr.mxu0 0.0
        %2696 = vmatpush1.msra.mxu0 0.0
        %2697 = vmatprep.subr.mxu0 0.0
        %2698 = vmatpush1.msra.mxu0 0.0
        %2699 = vmatprep.subr.mxu0 0.0
        %2700 = vmatpush1.msra.mxu0 0.0
        %2701 = vmatprep.subr.mxu0 0.0
        %2702 = vmatpush1.msra.mxu0 0.0
        %2703 = vmatprep.subr.mxu0 0.0
        %2704 = vmatpush1.msra.mxu0 0.0
        %2705 = vmatprep.subr.mxu0 0.0
        %2706 = vmatpush1.msra.mxu0 0.0
        %2707 = vmatprep.subr.mxu0 0.0
        %2708 = vmatpush1.msra.mxu0 0.0
        %2709 = vmatprep.subr.mxu0 0.0
        %2710 = vmatpush1.msra.mxu0 0.0
        %2711 = vmatprep.subr.mxu0 0.0
        %2712 = vmatpush1.msra.mxu0 0.0
        %2713 = vmatprep.subr.mxu0 0.0
        %2714 = vmatpush1.msra.mxu0 0.0
        %2715 = vmatprep.subr.mxu0 0.0
        %2716 = vmatpush1.msra.mxu0 0.0
        %2717 = vmatprep.subr.mxu0 0.0
        %2718 = vmatpush1.msra.mxu0 0.0
        %2719 = vmatprep.subr.mxu0 0.0
        %2720 = vmatpush1.msra.mxu0 0.0
        %2721 = vmatprep.subr.mxu0 0.0
        %2722 = vmatpush1.msra.mxu0 0.0
        %2723 = vmatprep.subr.mxu0 0.0
        %2724 = vmatpush1.msra.mxu0 0.0
        %2725 = vmatprep.subr.mxu0 0.0
        %2726 = vmatpush1.msra.mxu0 0.0
        %2727 = vmatprep.subr.mxu0 0.0
        %2728 = vmatpush1.msra.mxu0 0.0
        %2729 = vmatprep.subr.mxu0 0.0
        %2730 = vmatpush1.msra.mxu0 0.0
        %2731 = vmatprep.subr.mxu0 0.0
        %2732 = vmatpush1.msra.mxu0 0.0
        %2733 = vmatprep.subr.mxu0 0.0
        %2734 = vmatpush1.msra.mxu0 0.0
        %2735 = vmatprep.subr.mxu0 0.0
        %2736 = vmatpush1.msra.mxu0 0.0
        %2737 = vmatprep.subr.mxu0 0.0
        %2738 = vmatpush1.msra.mxu0 0.0
        %2739 = vmatprep.subr.mxu0 0.0
        %2740 = vmatpush1.msra.mxu0 0.0
        %2741 = vmatprep.subr.mxu0 0.0
        %2742 = vmatpush1.msra.mxu0 0.0
        %2743 = vmatprep.subr.mxu0 0.0
        %2744 = vmatpush1.msra.mxu0 0.0
        %2745 = vmatprep.subr.mxu0 0.0
        %2746 = vmatpush1.msra.mxu0 0.0
        %2747 = vmatprep.subr.mxu0 0.0
        %2748 = vmatpush1.msra.mxu0 0.0
        %2749 = vmatprep.mubr.f32.mxu0 0.0
        %v2750 = vand.u32 %v2058, 4294901760
        %v2751 = vsub.f32 %v2058, %v2750
        %2752 = vmatmul.mubr.f32.gmra.mrb[0].mxu0 %v2751
        %v2753 = vpop.f32.mrb[0].mxu0
        %v2754 = vadd.f32 %v2680, %v2753
        %v2755 = vpop.f32.mrb[0].mxu0
        %2756 = vdwg.mxu0
        %2757 = vmatprep.subr.mxu0 0.0
        %v2758 = vand.u32 %v2064, 4294901760
        %2759 = vmatpush1.msra.mxu0 %v2758
        %2760 = vmatprep.subr.mxu0 0.0
        %2761 = vmatpush1.msra.mxu0 0.0
        %2762 = vmatprep.subr.mxu0 0.0
        %2763 = vmatpush1.msra.mxu0 0.0
        %2764 = vmatprep.subr.mxu0 0.0
        %2765 = vmatpush1.msra.mxu0 0.0
        %2766 = vmatprep.subr.mxu0 0.0
        %2767 = vmatpush1.msra.mxu0 0.0
        %2768 = vmatprep.subr.mxu0 0.0
        %2769 = vmatpush1.msra.mxu0 0.0
        %2770 = vmatprep.subr.mxu0 0.0
        %2771 = vmatpush1.msra.mxu0 0.0
        %2772 = vmatprep.subr.mxu0 0.0
        %2773 = vmatpush1.msra.mxu0 0.0
        %2774 = vmatprep.subr.mxu0 0.0
        %2775 = vmatpush1.msra.mxu0 0.0
        %2776 = vmatprep.subr.mxu0 0.0
        %2777 = vmatpush1.msra.mxu0 0.0
        %2778 = vmatprep.subr.mxu0 0.0
        %2779 = vmatpush1.msra.mxu0 0.0
        %2780 = vmatprep.subr.mxu0 0.0
        %2781 = vmatpush1.msra.mxu0 0.0
        %2782 = vmatprep.subr.mxu0 0.0
        %2783 = vmatpush1.msra.mxu0 0.0
        %2784 = vmatprep.subr.mxu0 0.0
        %2785 = vmatpush1.msra.mxu0 0.0
        %2786 = vmatprep.subr.mxu0 0.0
        %2787 = vmatpush1.msra.mxu0 0.0
        %2788 = vmatprep.subr.mxu0 0.0
        %2789 = vmatpush1.msra.mxu0 0.0
        %2790 = vmatprep.subr.mxu0 0.0
        %2791 = vmatpush1.msra.mxu0 0.0
        %2792 = vmatprep.subr.mxu0 0.0
        %2793 = vmatpush1.msra.mxu0 0.0
        %2794 = vmatprep.subr.mxu0 0.0
        %2795 = vmatpush1.msra.mxu0 0.0
        %2796 = vmatprep.subr.mxu0 0.0
        %2797 = vmatpush1.msra.mxu0 0.0
        %2798 = vmatprep.subr.mxu0 0.0
        %2799 = vmatpush1.msra.mxu0 0.0
        %2800 = vmatprep.subr.mxu0 0.0
        %2801 = vmatpush1.msra.mxu0 0.0
        %2802 = vmatprep.subr.mxu0 0.0
        %2803 = vmatpush1.msra.mxu0 0.0
        %2804 = vmatprep.subr.mxu0 0.0
        %2805 = vmatpush1.msra.mxu0 0.0
        %2806 = vmatprep.subr.mxu0 0.0
        %2807 = vmatpush1.msra.mxu0 0.0
        %2808 = vmatprep.subr.mxu0 0.0
        %2809 = vmatpush1.msra.mxu0 0.0
        %2810 = vmatprep.subr.mxu0 0.0
        %2811 = vmatpush1.msra.mxu0 0.0
        %2812 = vmatprep.subr.mxu0 0.0
        %2813 = vmatpush1.msra.mxu0 0.0
        %2814 = vmatprep.subr.mxu0 0.0
        %2815 = vmatpush1.msra.mxu0 0.0
        %2816 = vmatprep.subr.mxu0 0.0
        %2817 = vmatpush1.msra.mxu0 0.0
        %2818 = vmatprep.subr.mxu0 0.0
        %2819 = vmatpush1.msra.mxu0 0.0
        %2820 = vmatprep.subr.mxu0 0.0
        %2821 = vmatpush1.msra.mxu0 0.0
        %2822 = vmatprep.mubr.f32.mxu0 0.0
        %v2823 = vand.u32 %v2058, 4294901760
        %v2824 = vsub.f32 %v2058, %v2823
        %v2825 = vand.u32 %v2824, 4294901760
        %2826 = vmatmul.mubr.f32.gmra.mrb[0].mxu0 %v2825
        %v2827 = vpop.f32.mrb[0].mxu0
        %v2828 = vadd.f32 %v2754, %v2827
        %v2829 = vpop.f32.mrb[0].mxu0
        %2830 = vdwg.mxu0
        %2831 = vmatprep.subr.mxu0 0.0
        %v2832 = vand.u32 %v2064, 4294901760
        %v2833 = vsub.f32 %v2064, %v2832
        %v2834 = vand.u32 %v2833, 4294901760
        %2835 = vmatpush1.msra.mxu0 %v2834
        %2836 = vmatprep.subr.mxu0 0.0
        %2837 = vmatpush1.msra.mxu0 0.0
        %2838 = vmatprep.subr.mxu0 0.0
        %2839 = vmatpush1.msra.mxu0 0.0
        %2840 = vmatprep.subr.mxu0 0.0
        %2841 = vmatpush1.msra.mxu0 0.0
        %2842 = vmatprep.subr.mxu0 0.0
        %2843 = vmatpush1.msra.mxu0 0.0
        %2844 = vmatprep.subr.mxu0 0.0
        %2845 = vmatpush1.msra.mxu0 0.0
        %2846 = vmatprep.subr.mxu0 0.0
        %2847 = vmatpush1.msra.mxu0 0.0
        %2848 = vmatprep.subr.mxu0 0.0
        %2849 = vmatpush1.msra.mxu0 0.0
        %2850 = vmatprep.subr.mxu0 0.0
        %2851 = vmatpush1.msra.mxu0 0.0
        %2852 = vmatprep.subr.mxu0 0.0
        %2853 = vmatpush1.msra.mxu0 0.0
        %2854 = vmatprep.subr.mxu0 0.0
        %2855 = vmatpush1.msra.mxu0 0.0
        %2856 = vmatprep.subr.mxu0 0.0
        %2857 = vmatpush1.msra.mxu0 0.0
        %2858 = vmatprep.subr.mxu0 0.0
        %2859 = vmatpush1.msra.mxu0 0.0
        %2860 = vmatprep.subr.mxu0 0.0
        %2861 = vmatpush1.msra.mxu0 0.0
        %2862 = vmatprep.subr.mxu0 0.0
        %2863 = vmatpush1.msra.mxu0 0.0
        %2864 = vmatprep.subr.mxu0 0.0
        %2865 = vmatpush1.msra.mxu0 0.0
        %2866 = vmatprep.subr.mxu0 0.0
        %2867 = vmatpush1.msra.mxu0 0.0
        %2868 = vmatprep.subr.mxu0 0.0
        %2869 = vmatpush1.msra.mxu0 0.0
        %2870 = vmatprep.subr.mxu0 0.0
        %2871 = vmatpush1.msra.mxu0 0.0
        %2872 = vmatprep.subr.mxu0 0.0
        %2873 = vmatpush1.msra.mxu0 0.0
        %2874 = vmatprep.subr.mxu0 0.0
        %2875 = vmatpush1.msra.mxu0 0.0
        %2876 = vmatprep.subr.mxu0 0.0
        %2877 = vmatpush1.msra.mxu0 0.0
        %2878 = vmatprep.subr.mxu0 0.0
        %2879 = vmatpush1.msra.mxu0 0.0
        %2880 = vmatprep.subr.mxu0 0.0
        %2881 = vmatpush1.msra.mxu0 0.0
        %2882 = vmatprep.subr.mxu0 0.0
        %2883 = vmatpush1.msra.mxu0 0.0
        %2884 = vmatprep.subr.mxu0 0.0
        %2885 = vmatpush1.msra.mxu0 0.0
        %2886 = vmatprep.subr.mxu0 0.0
        %2887 = vmatpush1.msra.mxu0 0.0
        %2888 = vmatprep.subr.mxu0 0.0
        %2889 = vmatpush1.msra.mxu0 0.0
        %2890 = vmatprep.subr.mxu0 0.0
        %2891 = vmatpush1.msra.mxu0 0.0
        %2892 = vmatprep.subr.mxu0 0.0
        %2893 = vmatpush1.msra.mxu0 0.0
        %2894 = vmatprep.subr.mxu0 0.0
        %2895 = vmatpush1.msra.mxu0 0.0
        %2896 = vmatprep.subr.mxu0 0.0
        %2897 = vmatpush1.msra.mxu0 0.0
        %2898 = vmatprep.mubr.f32.mxu0 0.0
        %v2899 = vand.u32 %v2058, 4294901760
        %2900 = vmatmul.mubr.f32.gmra.mrb[0].mxu0 %v2899
        %v2901 = vpop.f32.mrb[0].mxu0
        %v2902 = vadd.f32 %v2828, %v2901
        %v2903 = vpop.f32.mrb[0].mxu0
        %2904 = vdwg.mxu0
        %2905 = vmatprep.subr.mxu0 0.0
        %v2906 = vand.u32 %v2064, 4294901760
        %2907 = vmatpush1.msra.mxu0 %v2906
        %2908 = vmatprep.subr.mxu0 0.0
        %2909 = vmatpush1.msra.mxu0 0.0
        %2910 = vmatprep.subr.mxu0 0.0
        %2911 = vmatpush1.msra.mxu0 0.0
        %2912 = vmatprep.subr.mxu0 0.0
        %2913 = vmatpush1.msra.mxu0 0.0
        %2914 = vmatprep.subr.mxu0 0.0
        %2915 = vmatpush1.msra.mxu0 0.0
        %2916 = vmatprep.subr.mxu0 0.0
        %2917 = vmatpush1.msra.mxu0 0.0
        %2918 = vmatprep.subr.mxu0 0.0
        %2919 = vmatpush1.msra.mxu0 0.0
        %2920 = vmatprep.subr.mxu0 0.0
        %2921 = vmatpush1.msra.mxu0 0.0
        %2922 = vmatprep.subr.mxu0 0.0
        %2923 = vmatpush1.msra.mxu0 0.0
        %2924 = vmatprep.subr.mxu0 0.0
        %2925 = vmatpush1.msra.mxu0 0.0
        %2926 = vmatprep.subr.mxu0 0.0
        %2927 = vmatpush1.msra.mxu0 0.0
        %2928 = vmatprep.subr.mxu0 0.0
        %2929 = vmatpush1.msra.mxu0 0.0
        %2930 = vmatprep.subr.mxu0 0.0
        %2931 = vmatpush1.msra.mxu0 0.0
        %2932 = vmatprep.subr.mxu0 0.0
        %2933 = vmatpush1.msra.mxu0 0.0
        %2934 = vmatprep.subr.mxu0 0.0
        %2935 = vmatpush1.msra.mxu0 0.0
        %2936 = vmatprep.subr.mxu0 0.0
        %2937 = vmatpush1.msra.mxu0 0.0
        %2938 = vmatprep.subr.mxu0 0.0
        %2939 = vmatpush1.msra.mxu0 0.0
        %2940 = vmatprep.subr.mxu0 0.0
        %2941 = vmatpush1.msra.mxu0 0.0
        %2942 = vmatprep.subr.mxu0 0.0
        %2943 = vmatpush1.msra.mxu0 0.0
        %2944 = vmatprep.subr.mxu0 0.0
        %2945 = vmatpush1.msra.mxu0 0.0
        %2946 = vmatprep.subr.mxu0 0.0
        %2947 = vmatpush1.msra.mxu0 0.0
        %2948 = vmatprep.subr.mxu0 0.0
        %2949 = vmatpush1.msra.mxu0 0.0
        %2950 = vmatprep.subr.mxu0 0.0
        %2951 = vmatpush1.msra.mxu0 0.0
        %2952 = vmatprep.subr.mxu0 0.0
        %2953 = vmatpush1.msra.mxu0 0.0
        %2954 = vmatprep.subr.mxu0 0.0
        %2955 = vmatpush1.msra.mxu0 0.0
        %2956 = vmatprep.subr.mxu0 0.0
        %2957 = vmatpush1.msra.mxu0 0.0
        %2958 = vmatprep.subr.mxu0 0.0
        %2959 = vmatpush1.msra.mxu0 0.0
        %2960 = vmatprep.subr.mxu0 0.0
        %2961 = vmatpush1.msra.mxu0 0.0
        %2962 = vmatprep.subr.mxu0 0.0
        %2963 = vmatpush1.msra.mxu0 0.0
        %2964 = vmatprep.subr.mxu0 0.0
        %2965 = vmatpush1.msra.mxu0 0.0
        %2966 = vmatprep.subr.mxu0 0.0
        %2967 = vmatpush1.msra.mxu0 0.0
        %2968 = vmatprep.subr.mxu0 0.0
        %2969 = vmatpush1.msra.mxu0 0.0
        %2970 = vmatprep.mubr.f32.mxu0 0.0
        %v2971 = vand.u32 %v2058, 4294901760
        %2972 = vmatmul.mubr.f32.gmra.mrb[0].mxu0 %v2971
        %v2973 = vpop.f32.mrb[0].mxu0
        %v2974 = vadd.f32 %v2902, %v2973
        %v2975 = vpop.f32.mrb[0].mxu0
        %2976 = vdwg.mxu0
        %v2977 = vadd.f32 %v1587, %v2527
        %v2978 = vadd.f32 %v1589, %v2529
        %v2979 = vadd.f32 %v2034, %v2974
        %v2980 = vld [vmem:[%s168] sm:$0xff]
        %v2981 = vld [vmem:[%s168 + $0x8] sm:$0xff]
        %s2982 = scalar_lea.vmem %s1, 24
        %v2983 = vld [vmem:[%s2982] sm:$0xff]
        %v2986 = vcombine.high %v2980, %v2980
        %v2987 = vcombine.high %v2981, %v2981
        %2988 = vrot.lane.b32.xlu0 %v2980, 110
        %v2989 = vpop.permute.xlu0 %2988
        %2990 = vrot.lane.b32.xlu0 %v2986, 110
        %v2991 = vpop.permute.xlu0 %2990
        %2992 = vrot.lane.b32.xlu0 %v2981, 110
        %v2993 = vpop.permute.xlu0 %2992
        %2994 = vrot.lane.b32.xlu0 %v2987, 110
        %v2995 = vpop.permute.xlu0 %2994
        %vm2996 = vcmask 900096
        %v2997 = vsel %vm2996, %v2989, %v2991
        %v2998 = vsel %vm2996, %v2991, %v2993
        %v2999 = vsel %vm2996, %v2993, %v2995
        %v3001 = vsel %vm192, %v2983, 0
        %v3003 = vsel %vm196, %v2997, 0
        %v3005 = vsel %vm196, %v2998, 0
        %v3007 = vsel %vm196, %v2999, 0
        %v3009 = vand.u32 %v3005, 4294901760
        %3010 = vmatprep.subr.mxu0 %v3009
        %v3011 = vand.u32 %v3003, 4294901760
        %3012 = vmatpush1.msra.mxu0 %v3011
        %3013 = vmatprep.subr.mxu0 0.0
        %3014 = vmatpush1.msra.mxu0 0.0
        %3015 = vmatprep.subr.mxu0 0.0
        %3016 = vmatpush1.msra.mxu0 0.0
        %3017 = vmatprep.subr.mxu0 0.0
        %3018 = vmatpush1.msra.mxu0 0.0
        %3019 = vmatprep.subr.mxu0 0.0
        %3020 = vmatpush1.msra.mxu0 0.0
        %3021 = vmatprep.subr.mxu0 0.0
        %3022 = vmatpush1.msra.mxu0 0.0
        %3023 = vmatprep.subr.mxu0 0.0
        %3024 = vmatpush1.msra.mxu0 0.0
        %3025 = vmatprep.subr.mxu0 0.0
        %3026 = vmatpush1.msra.mxu0 0.0
        %3027 = vmatprep.subr.mxu0 0.0
        %3028 = vmatpush1.msra.mxu0 0.0
        %3029 = vmatprep.subr.mxu0 0.0
        %3030 = vmatpush1.msra.mxu0 0.0
        %3031 = vmatprep.subr.mxu0 0.0
        %3032 = vmatpush1.msra.mxu0 0.0
        %3033 = vmatprep.subr.mxu0 0.0
        %3034 = vmatpush1.msra.mxu0 0.0
        %3035 = vmatprep.subr.mxu0 0.0
        %3036 = vmatpush1.msra.mxu0 0.0
        %3037 = vmatprep.subr.mxu0 0.0
        %3038 = vmatpush1.msra.mxu0 0.0
        %3039 = vmatprep.subr.mxu0 0.0
        %3040 = vmatpush1.msra.mxu0 0.0
        %3041 = vmatprep.subr.mxu0 0.0
        %3042 = vmatpush1.msra.mxu0 0.0
        %3043 = vmatprep.subr.mxu0 0.0
        %3044 = vmatpush1.msra.mxu0 0.0
        %3045 = vmatprep.subr.mxu0 0.0
        %3046 = vmatpush1.msra.mxu0 0.0
        %3047 = vmatprep.subr.mxu0 0.0
        %3048 = vmatpush1.msra.mxu0 0.0
        %3049 = vmatprep.subr.mxu0 0.0
        %3050 = vmatpush1.msra.mxu0 0.0
        %3051 = vmatprep.subr.mxu0 0.0
        %3052 = vmatpush1.msra.mxu0 0.0
        %3053 = vmatprep.subr.mxu0 0.0
        %3054 = vmatpush1.msra.mxu0 0.0
        %3055 = vmatprep.subr.mxu0 0.0
        %3056 = vmatpush1.msra.mxu0 0.0
        %3057 = vmatprep.subr.mxu0 0.0
        %3058 = vmatpush1.msra.mxu0 0.0
        %3059 = vmatprep.subr.mxu0 0.0
        %3060 = vmatpush1.msra.mxu0 0.0
        %3061 = vmatprep.subr.mxu0 0.0
        %3062 = vmatpush1.msra.mxu0 0.0
        %3063 = vmatprep.subr.mxu0 0.0
        %3064 = vmatpush1.msra.mxu0 0.0
        %3065 = vmatprep.subr.mxu0 0.0
        %3066 = vmatpush1.msra.mxu0 0.0
        %3067 = vmatprep.subr.mxu0 0.0
        %3068 = vmatpush1.msra.mxu0 0.0
        %3069 = vmatprep.subr.mxu0 0.0
        %3070 = vmatpush1.msra.mxu0 0.0
        %3071 = vmatprep.subr.mxu0 0.0
        %3072 = vmatpush1.msra.mxu0 0.0
        %3073 = vmatprep.subr.mxu0 0.0
        %3074 = vmatpush1.msra.mxu0 0.0
        %3075 = vmatprep.mubr.f32.mxu0 0.0
        %v3076 = vand.u32 %v3001, 4294901760
        %v3077 = vsub.f32 %v3001, %v3076
        %v3078 = vand.u32 %v3077, 4294901760
        %v3079 = vsub.f32 %v3077, %v3078
        %v3080 = vand.u32 %v3079, 4294901760
        %3081 = vmatmul.mubr.f32.gmra.mrb[0].mxu0 %v3080
        %v3082 = vpop.f32.mrb[0].mxu0
        %v3083 = vadd.f32 0.0, %v3082
        %v3084 = vpop.f32.mrb[0].mxu0
        %v3085 = vadd.f32 0.0, %v3084
        %3086 = vdwg.mxu0
        %v3087 = vand.u32 %v3005, 4294901760
        %v3088 = vsub.f32 %v3005, %v3087
        %v3089 = vand.u32 %v3088, 4294901760
        %v3090 = vsub.f32 %v3088, %v3089
        %v3091 = vand.u32 %v3090, 4294901760
        %3092 = vmatprep.subr.mxu0 %v3091
        %v3093 = vand.u32 %v3003, 4294901760
        %v3094 = vsub.f32 %v3003, %v3093
        %v3095 = vand.u32 %v3094, 4294901760
        %v3096 = vsub.f32 %v3094, %v3095
        %v3097 = vand.u32 %v3096, 4294901760
        %3098 = vmatpush1.msra.mxu0 %v3097
        %3099 = vmatprep.subr.mxu0 0.0
        %3100 = vmatpush1.msra.mxu0 0.0
        %3101 = vmatprep.subr.mxu0 0.0
        %3102 = vmatpush1.msra.mxu0 0.0
        %3103 = vmatprep.subr.mxu0 0.0
        %3104 = vmatpush1.msra.mxu0 0.0
        %3105 = vmatprep.subr.mxu0 0.0
        %3106 = vmatpush1.msra.mxu0 0.0
        %3107 = vmatprep.subr.mxu0 0.0
        %3108 = vmatpush1.msra.mxu0 0.0
        %3109 = vmatprep.subr.mxu0 0.0
        %3110 = vmatpush1.msra.mxu0 0.0
        %3111 = vmatprep.subr.mxu0 0.0
        %3112 = vmatpush1.msra.mxu0 0.0
        %3113 = vmatprep.subr.mxu0 0.0
        %3114 = vmatpush1.msra.mxu0 0.0
        %3115 = vmatprep.subr.mxu0 0.0
        %3116 = vmatpush1.msra.mxu0 0.0
        %3117 = vmatprep.subr.mxu0 0.0
        %3118 = vmatpush1.msra.mxu0 0.0
        %3119 = vmatprep.subr.mxu0 0.0
        %3120 = vmatpush1.msra.mxu0 0.0
        %3121 = vmatprep.subr.mxu0 0.0
        %3122 = vmatpush1.msra.mxu0 0.0
        %3123 = vmatprep.subr.mxu0 0.0
        %3124 = vmatpush1.msra.mxu0 0.0
        %3125 = vmatprep.subr.mxu0 0.0
        %3126 = vmatpush1.msra.mxu0 0.0
        %3127 = vmatprep.subr.mxu0 0.0
        %3128 = vmatpush1.msra.mxu0 0.0
        %3129 = vmatprep.subr.mxu0 0.0
        %3130 = vmatpush1.msra.mxu0 0.0
        %3131 = vmatprep.subr.mxu0 0.0
        %3132 = vmatpush1.msra.mxu0 0.0
        %3133 = vmatprep.subr.mxu0 0.0
        %3134 = vmatpush1.msra.mxu0 0.0
        %3135 = vmatprep.subr.mxu0 0.0
        %3136 = vmatpush1.msra.mxu0 0.0
        %3137 = vmatprep.subr.mxu0 0.0
        %3138 = vmatpush1.msra.mxu0 0.0
        %3139 = vmatprep.subr.mxu0 0.0
        %3140 = vmatpush1.msra.mxu0 0.0
        %3141 = vmatprep.subr.mxu0 0.0
        %3142 = vmatpush1.msra.mxu0 0.0
        %3143 = vmatprep.subr.mxu0 0.0
        %3144 = vmatpush1.msra.mxu0 0.0
        %3145 = vmatprep.subr.mxu0 0.0
        %3146 = vmatpush1.msra.mxu0 0.0
        %3147 = vmatprep.subr.mxu0 0.0
        %3148 = vmatpush1.msra.mxu0 0.0
        %3149 = vmatprep.subr.mxu0 0.0
        %3150 = vmatpush1.msra.mxu0 0.0
        %3151 = vmatprep.subr.mxu0 0.0
        %3152 = vmatpush1.msra.mxu0 0.0
        %3153 = vmatprep.subr.mxu0 0.0
        %3154 = vmatpush1.msra.mxu0 0.0
        %3155 = vmatprep.subr.mxu0 0.0
        %3156 = vmatpush1.msra.mxu0 0.0
        %3157 = vmatprep.subr.mxu0 0.0
        %3158 = vmatpush1.msra.mxu0 0.0
        %3159 = vmatprep.subr.mxu0 0.0
        %3160 = vmatpush1.msra.mxu0 0.0
        %3161 = vmatprep.mubr.f32.mxu0 0.0
        %v3162 = vand.u32 %v3001, 4294901760
        %3163 = vmatmul.mubr.f32.gmra.mrb[0].mxu0 %v3162
        %v3164 = vpop.f32.mrb[0].mxu0
        %v3165 = vadd.f32 %v3083, %v3164
        %v3166 = vpop.f32.mrb[0].mxu0
        %v3167 = vadd.f32 %v3085, %v3166
        %3168 = vdwg.mxu0
        %v3169 = vand.u32 %v3005, 4294901760
        %v3170 = vsub.f32 %v3005, %v3169
        %3171 = vmatprep.subr.mxu0 %v3170
        %v3172 = vand.u32 %v3003, 4294901760
        %v3173 = vsub.f32 %v3003, %v3172
        %3174 = vmatpush1.msra.mxu0 %v3173
        %3175 = vmatprep.subr.mxu0 0.0
        %3176 = vmatpush1.msra.mxu0 0.0
        %3177 = vmatprep.subr.mxu0 0.0
        %3178 = vmatpush1.msra.mxu0 0.0
        %3179 = vmatprep.subr.mxu0 0.0
        %3180 = vmatpush1.msra.mxu0 0.0
        %3181 = vmatprep.subr.mxu0 0.0
        %3182 = vmatpush1.msra.mxu0 0.0
        %3183 = vmatprep.subr.mxu0 0.0
        %3184 = vmatpush1.msra.mxu0 0.0
        %3185 = vmatprep.subr.mxu0 0.0
        %3186 = vmatpush1.msra.mxu0 0.0
        %3187 = vmatprep.subr.mxu0 0.0
        %3188 = vmatpush1.msra.mxu0 0.0
        %3189 = vmatprep.subr.mxu0 0.0
        %3190 = vmatpush1.msra.mxu0 0.0
        %3191 = vmatprep.subr.mxu0 0.0
        %3192 = vmatpush1.msra.mxu0 0.0
        %3193 = vmatprep.subr.mxu0 0.0
        %3194 = vmatpush1.msra.mxu0 0.0
        %3195 = vmatprep.subr.mxu0 0.0
        %3196 = vmatpush1.msra.mxu0 0.0
        %3197 = vmatprep.subr.mxu0 0.0
        %3198 = vmatpush1.msra.mxu0 0.0
        %3199 = vmatprep.subr.mxu0 0.0
        %3200 = vmatpush1.msra.mxu0 0.0
        %3201 = vmatprep.subr.mxu0 0.0
        %3202 = vmatpush1.msra.mxu0 0.0
        %3203 = vmatprep.subr.mxu0 0.0
        %3204 = vmatpush1.msra.mxu0 0.0
        %3205 = vmatprep.subr.mxu0 0.0
        %3206 = vmatpush1.msra.mxu0 0.0
        %3207 = vmatprep.subr.mxu0 0.0
        %3208 = vmatpush1.msra.mxu0 0.0
        %3209 = vmatprep.subr.mxu0 0.0
        %3210 = vmatpush1.msra.mxu0 0.0
        %3211 = vmatprep.subr.mxu0 0.0
        %3212 = vmatpush1.msra.mxu0 0.0
        %3213 = vmatprep.subr.mxu0 0.0
        %3214 = vmatpush1.msra.mxu0 0.0
        %3215 = vmatprep.subr.mxu0 0.0
        %3216 = vmatpush1.msra.mxu0 0.0
        %3217 = vmatprep.subr.mxu0 0.0
        %3218 = vmatpush1.msra.mxu0 0.0
        %3219 = vmatprep.subr.mxu0 0.0
        %3220 = vmatpush1.msra.mxu0 0.0
        %3221 = vmatprep.subr.mxu0 0.0
        %3222 = vmatpush1.msra.mxu0 0.0
        %3223 = vmatprep.subr.mxu0 0.0
        %3224 = vmatpush1.msra.mxu0 0.0
        %3225 = vmatprep.subr.mxu0 0.0
        %3226 = vmatpush1.msra.mxu0 0.0
        %3227 = vmatprep.subr.mxu0 0.0
        %3228 = vmatpush1.msra.mxu0 0.0
        %3229 = vmatprep.subr.mxu0 0.0
        %3230 = vmatpush1.msra.mxu0 0.0
        %3231 = vmatprep.subr.mxu0 0.0
        %3232 = vmatpush1.msra.mxu0 0.0
        %3233 = vmatprep.subr.mxu0 0.0
        %3234 = vmatpush1.msra.mxu0 0.0
        %3235 = vmatprep.subr.mxu0 0.0
        %3236 = vmatpush1.msra.mxu0 0.0
        %3237 = vmatprep.mubr.f32.mxu0 0.0
        %v3238 = vand.u32 %v3001, 4294901760
        %v3239 = vsub.f32 %v3001, %v3238
        %3240 = vmatmul.mubr.f32.gmra.mrb[0].mxu0 %v3239
        %v3241 = vpop.f32.mrb[0].mxu0
        %v3242 = vadd.f32 %v3165, %v3241
        %v3243 = vpop.f32.mrb[0].mxu0
        %v3244 = vadd.f32 %v3167, %v3243
        %3245 = vdwg.mxu0
        %v3246 = vand.u32 %v3005, 4294901760
        %3247 = vmatprep.subr.mxu0 %v3246
        %v3248 = vand.u32 %v3003, 4294901760
        %3249 = vmatpush1.msra.mxu0 %v3248
        %3250 = vmatprep.subr.mxu0 0.0
        %3251 = vmatpush1.msra.mxu0 0.0
        %3252 = vmatprep.subr.mxu0 0.0
        %3253 = vmatpush1.msra.mxu0 0.0
        %3254 = vmatprep.subr.mxu0 0.0
        %3255 = vmatpush1.msra.mxu0 0.0
        %3256 = vmatprep.subr.mxu0 0.0
        %3257 = vmatpush1.msra.mxu0 0.0
        %3258 = vmatprep.subr.mxu0 0.0
        %3259 = vmatpush1.msra.mxu0 0.0
        %3260 = vmatprep.subr.mxu0 0.0
        %3261 = vmatpush1.msra.mxu0 0.0
        %3262 = vmatprep.subr.mxu0 0.0
        %3263 = vmatpush1.msra.mxu0 0.0
        %3264 = vmatprep.subr.mxu0 0.0
        %3265 = vmatpush1.msra.mxu0 0.0
        %3266 = vmatprep.subr.mxu0 0.0
        %3267 = vmatpush1.msra.mxu0 0.0
        %3268 = vmatprep.subr.mxu0 0.0
        %3269 = vmatpush1.msra.mxu0 0.0
        %3270 = vmatprep.subr.mxu0 0.0
        %3271 = vmatpush1.msra.mxu0 0.0
        %3272 = vmatprep.subr.mxu0 0.0
        %3273 = vmatpush1.msra.mxu0 0.0
        %3274 = vmatprep.subr.mxu0 0.0
        %3275 = vmatpush1.msra.mxu0 0.0
        %3276 = vmatprep.subr.mxu0 0.0
        %3277 = vmatpush1.msra.mxu0 0.0
        %3278 = vmatprep.subr.mxu0 0.0
        %3279 = vmatpush1.msra.mxu0 0.0
        %3280 = vmatprep.subr.mxu0 0.0
        %3281 = vmatpush1.msra.mxu0 0.0
        %3282 = vmatprep.subr.mxu0 0.0
        %3283 = vmatpush1.msra.mxu0 0.0
        %3284 = vmatprep.subr.mxu0 0.0
        %3285 = vmatpush1.msra.mxu0 0.0
        %3286 = vmatprep.subr.mxu0 0.0
        %3287 = vmatpush1.msra.mxu0 0.0
        %3288 = vmatprep.subr.mxu0 0.0
        %3289 = vmatpush1.msra.mxu0 0.0
        %3290 = vmatprep.subr.mxu0 0.0
        %3291 = vmatpush1.msra.mxu0 0.0
        %3292 = vmatprep.subr.mxu0 0.0
        %3293 = vmatpush1.msra.mxu0 0.0
        %3294 = vmatprep.subr.mxu0 0.0
        %3295 = vmatpush1.msra.mxu0 0.0
        %3296 = vmatprep.subr.mxu0 0.0
        %3297 = vmatpush1.msra.mxu0 0.0
        %3298 = vmatprep.subr.mxu0 0.0
        %3299 = vmatpush1.msra.mxu0 0.0
        %3300 = vmatprep.subr.mxu0 0.0
        %3301 = vmatpush1.msra.mxu0 0.0
        %3302 = vmatprep.subr.mxu0 0.0
        %3303 = vmatpush1.msra.mxu0 0.0
        %3304 = vmatprep.subr.mxu0 0.0
        %3305 = vmatpush1.msra.mxu0 0.0
        %3306 = vmatprep.subr.mxu0 0.0
        %3307 = vmatpush1.msra.mxu0 0.0
        %3308 = vmatprep.subr.mxu0 0.0
        %3309 = vmatpush1.msra.mxu0 0.0
        %3310 = vmatprep.subr.mxu0 0.0
        %3311 = vmatpush1.msra.mxu0 0.0
        %3312 = vmatprep.mubr.f32.mxu0 0.0
        %v3313 = vand.u32 %v3001, 4294901760
        %v3314 = vsub.f32 %v3001, %v3313
        %v3315 = vand.u32 %v3314, 4294901760
        %3316 = vmatmul.mubr.f32.gmra.mrb[0].mxu0 %v3315
        %v3317 = vpop.f32.mrb[0].mxu0
        %v3318 = vadd.f32 %v3242, %v3317
        %v3319 = vpop.f32.mrb[0].mxu0
        %v3320 = vadd.f32 %v3244, %v3319
        %3321 = vdwg.mxu0
        %v3322 = vand.u32 %v3005, 4294901760
        %v3323 = vsub.f32 %v3005, %v3322
        %v3324 = vand.u32 %v3323, 4294901760
        %3325 = vmatprep.subr.mxu0 %v3324
        %v3326 = vand.u32 %v3003, 4294901760
        %v3327 = vsub.f32 %v3003, %v3326
        %v3328 = vand.u32 %v3327, 4294901760
        %3329 = vmatpush1.msra.mxu0 %v3328
        %3330 = vmatprep.subr.mxu0 0.0
        %3331 = vmatpush1.msra.mxu0 0.0
        %3332 = vmatprep.subr.mxu0 0.0
        %3333 = vmatpush1.msra.mxu0 0.0
        %3334 = vmatprep.subr.mxu0 0.0
        %3335 = vmatpush1.msra.mxu0 0.0
        %3336 = vmatprep.subr.mxu0 0.0
        %3337 = vmatpush1.msra.mxu0 0.0
        %3338 = vmatprep.subr.mxu0 0.0
        %3339 = vmatpush1.msra.mxu0 0.0
        %3340 = vmatprep.subr.mxu0 0.0
        %3341 = vmatpush1.msra.mxu0 0.0
        %3342 = vmatprep.subr.mxu0 0.0
        %3343 = vmatpush1.msra.mxu0 0.0
        %3344 = vmatprep.subr.mxu0 0.0
        %3345 = vmatpush1.msra.mxu0 0.0
        %3346 = vmatprep.subr.mxu0 0.0
        %3347 = vmatpush1.msra.mxu0 0.0
        %3348 = vmatprep.subr.mxu0 0.0
        %3349 = vmatpush1.msra.mxu0 0.0
        %3350 = vmatprep.subr.mxu0 0.0
        %3351 = vmatpush1.msra.mxu0 0.0
        %3352 = vmatprep.subr.mxu0 0.0
        %3353 = vmatpush1.msra.mxu0 0.0
        %3354 = vmatprep.subr.mxu0 0.0
        %3355 = vmatpush1.msra.mxu0 0.0
        %3356 = vmatprep.subr.mxu0 0.0
        %3357 = vmatpush1.msra.mxu0 0.0
        %3358 = vmatprep.subr.mxu0 0.0
        %3359 = vmatpush1.msra.mxu0 0.0
        %3360 = vmatprep.subr.mxu0 0.0
        %3361 = vmatpush1.msra.mxu0 0.0
        %3362 = vmatprep.subr.mxu0 0.0
        %3363 = vmatpush1.msra.mxu0 0.0
        %3364 = vmatprep.subr.mxu0 0.0
        %3365 = vmatpush1.msra.mxu0 0.0
        %3366 = vmatprep.subr.mxu0 0.0
        %3367 = vmatpush1.msra.mxu0 0.0
        %3368 = vmatprep.subr.mxu0 0.0
        %3369 = vmatpush1.msra.mxu0 0.0
        %3370 = vmatprep.subr.mxu0 0.0
        %3371 = vmatpush1.msra.mxu0 0.0
        %3372 = vmatprep.subr.mxu0 0.0
        %3373 = vmatpush1.msra.mxu0 0.0
        %3374 = vmatprep.subr.mxu0 0.0
        %3375 = vmatpush1.msra.mxu0 0.0
        %3376 = vmatprep.subr.mxu0 0.0
        %3377 = vmatpush1.msra.mxu0 0.0
        %3378 = vmatprep.subr.mxu0 0.0
        %3379 = vmatpush1.msra.mxu0 0.0
        %3380 = vmatprep.subr.mxu0 0.0
        %3381 = vmatpush1.msra.mxu0 0.0
        %3382 = vmatprep.subr.mxu0 0.0
        %3383 = vmatpush1.msra.mxu0 0.0
        %3384 = vmatprep.subr.mxu0 0.0
        %3385 = vmatpush1.msra.mxu0 0.0
        %3386 = vmatprep.subr.mxu0 0.0
        %3387 = vmatpush1.msra.mxu0 0.0
        %3388 = vmatprep.subr.mxu0 0.0
        %3389 = vmatpush1.msra.mxu0 0.0
        %3390 = vmatprep.subr.mxu0 0.0
        %3391 = vmatpush1.msra.mxu0 0.0
        %3392 = vmatprep.mubr.f32.mxu0 0.0
        %v3393 = vand.u32 %v3001, 4294901760
        %3394 = vmatmul.mubr.f32.gmra.mrb[0].mxu0 %v3393
        %v3395 = vpop.f32.mrb[0].mxu0
        %v3396 = vadd.f32 %v3318, %v3395
        %v3397 = vpop.f32.mrb[0].mxu0
        %v3398 = vadd.f32 %v3320, %v3397
        %3399 = vdwg.mxu0
        %v3400 = vand.u32 %v3005, 4294901760
        %3401 = vmatprep.subr.mxu0 %v3400
        %v3402 = vand.u32 %v3003, 4294901760
        %3403 = vmatpush1.msra.mxu0 %v3402
        %3404 = vmatprep.subr.mxu0 0.0
        %3405 = vmatpush1.msra.mxu0 0.0
        %3406 = vmatprep.subr.mxu0 0.0
        %3407 = vmatpush1.msra.mxu0 0.0
        %3408 = vmatprep.subr.mxu0 0.0
        %3409 = vmatpush1.msra.mxu0 0.0
        %3410 = vmatprep.subr.mxu0 0.0
        %3411 = vmatpush1.msra.mxu0 0.0
        %3412 = vmatprep.subr.mxu0 0.0
        %3413 = vmatpush1.msra.mxu0 0.0
        %3414 = vmatprep.subr.mxu0 0.0
        %3415 = vmatpush1.msra.mxu0 0.0
        %3416 = vmatprep.subr.mxu0 0.0
        %3417 = vmatpush1.msra.mxu0 0.0
        %3418 = vmatprep.subr.mxu0 0.0
        %3419 = vmatpush1.msra.mxu0 0.0
        %3420 = vmatprep.subr.mxu0 0.0
        %3421 = vmatpush1.msra.mxu0 0.0
        %3422 = vmatprep.subr.mxu0 0.0
        %3423 = vmatpush1.msra.mxu0 0.0
        %3424 = vmatprep.subr.mxu0 0.0
        %3425 = vmatpush1.msra.mxu0 0.0
        %3426 = vmatprep.subr.mxu0 0.0
        %3427 = vmatpush1.msra.mxu0 0.0
        %3428 = vmatprep.subr.mxu0 0.0
        %3429 = vmatpush1.msra.mxu0 0.0
        %3430 = vmatprep.subr.mxu0 0.0
        %3431 = vmatpush1.msra.mxu0 0.0
        %3432 = vmatprep.subr.mxu0 0.0
        %3433 = vmatpush1.msra.mxu0 0.0
        %3434 = vmatprep.subr.mxu0 0.0
        %3435 = vmatpush1.msra.mxu0 0.0
        %3436 = vmatprep.subr.mxu0 0.0
        %3437 = vmatpush1.msra.mxu0 0.0
        %3438 = vmatprep.subr.mxu0 0.0
        %3439 = vmatpush1.msra.mxu0 0.0
        %3440 = vmatprep.subr.mxu0 0.0
        %3441 = vmatpush1.msra.mxu0 0.0
        %3442 = vmatprep.subr.mxu0 0.0
        %3443 = vmatpush1.msra.mxu0 0.0
        %3444 = vmatprep.subr.mxu0 0.0
        %3445 = vmatpush1.msra.mxu0 0.0
        %3446 = vmatprep.subr.mxu0 0.0
        %3447 = vmatpush1.msra.mxu0 0.0
        %3448 = vmatprep.subr.mxu0 0.0
        %3449 = vmatpush1.msra.mxu0 0.0
        %3450 = vmatprep.subr.mxu0 0.0
        %3451 = vmatpush1.msra.mxu0 0.0
        %3452 = vmatprep.subr.mxu0 0.0
        %3453 = vmatpush1.msra.mxu0 0.0
        %3454 = vmatprep.subr.mxu0 0.0
        %3455 = vmatpush1.msra.mxu0 0.0
        %3456 = vmatprep.subr.mxu0 0.0
        %3457 = vmatpush1.msra.mxu0 0.0
        %3458 = vmatprep.subr.mxu0 0.0
        %3459 = vmatpush1.msra.mxu0 0.0
        %3460 = vmatprep.subr.mxu0 0.0
        %3461 = vmatpush1.msra.mxu0 0.0
        %3462 = vmatprep.subr.mxu0 0.0
        %3463 = vmatpush1.msra.mxu0 0.0
        %3464 = vmatprep.subr.mxu0 0.0
        %3465 = vmatpush1.msra.mxu0 0.0
        %3466 = vmatprep.mubr.f32.mxu0 0.0
        %v3467 = vand.u32 %v3001, 4294901760
        %3468 = vmatmul.mubr.f32.gmra.mrb[0].mxu0 %v3467
        %v3469 = vpop.f32.mrb[0].mxu0
        %v3470 = vadd.f32 %v3396, %v3469
        %v3471 = vpop.f32.mrb[0].mxu0
        %v3472 = vadd.f32 %v3398, %v3471
        %3473 = vdwg.mxu0
        %3474 = vmatprep.subr.mxu0 0.0
        %v3475 = vand.u32 %v3007, 4294901760
        %3476 = vmatpush1.msra.mxu0 %v3475
        %3477 = vmatprep.subr.mxu0 0.0
        %3478 = vmatpush1.msra.mxu0 0.0
        %3479 = vmatprep.subr.mxu0 0.0
        %3480 = vmatpush1.msra.mxu0 0.0
        %3481 = vmatprep.subr.mxu0 0.0
        %3482 = vmatpush1.msra.mxu0 0.0
        %3483 = vmatprep.subr.mxu0 0.0
        %3484 = vmatpush1.msra.mxu0 0.0
        %3485 = vmatprep.subr.mxu0 0.0
        %3486 = vmatpush1.msra.mxu0 0.0
        %3487 = vmatprep.subr.mxu0 0.0
        %3488 = vmatpush1.msra.mxu0 0.0
        %3489 = vmatprep.subr.mxu0 0.0
        %3490 = vmatpush1.msra.mxu0 0.0
        %3491 = vmatprep.subr.mxu0 0.0
        %3492 = vmatpush1.msra.mxu0 0.0
        %3493 = vmatprep.subr.mxu0 0.0
        %3494 = vmatpush1.msra.mxu0 0.0
        %3495 = vmatprep.subr.mxu0 0.0
        %3496 = vmatpush1.msra.mxu0 0.0
        %3497 = vmatprep.subr.mxu0 0.0
        %3498 = vmatpush1.msra.mxu0 0.0
        %3499 = vmatprep.subr.mxu0 0.0
        %3500 = vmatpush1.msra.mxu0 0.0
        %3501 = vmatprep.subr.mxu0 0.0
        %3502 = vmatpush1.msra.mxu0 0.0
        %3503 = vmatprep.subr.mxu0 0.0
        %3504 = vmatpush1.msra.mxu0 0.0
        %3505 = vmatprep.subr.mxu0 0.0
        %3506 = vmatpush1.msra.mxu0 0.0
        %3507 = vmatprep.subr.mxu0 0.0
        %3508 = vmatpush1.msra.mxu0 0.0
        %3509 = vmatprep.subr.mxu0 0.0
        %3510 = vmatpush1.msra.mxu0 0.0
        %3511 = vmatprep.subr.mxu0 0.0
        %3512 = vmatpush1.msra.mxu0 0.0
        %3513 = vmatprep.subr.mxu0 0.0
        %3514 = vmatpush1.msra.mxu0 0.0
        %3515 = vmatprep.subr.mxu0 0.0
        %3516 = vmatpush1.msra.mxu0 0.0
        %3517 = vmatprep.subr.mxu0 0.0
        %3518 = vmatpush1.msra.mxu0 0.0
        %3519 = vmatprep.subr.mxu0 0.0
        %3520 = vmatpush1.msra.mxu0 0.0
        %3521 = vmatprep.subr.mxu0 0.0
        %3522 = vmatpush1.msra.mxu0 0.0
        %3523 = vmatprep.subr.mxu0 0.0
        %3524 = vmatpush1.msra.mxu0 0.0
        %3525 = vmatprep.subr.mxu0 0.0
        %3526 = vmatpush1.msra.mxu0 0.0
        %3527 = vmatprep.subr.mxu0 0.0
        %3528 = vmatpush1.msra.mxu0 0.0
        %3529 = vmatprep.subr.mxu0 0.0
        %3530 = vmatpush1.msra.mxu0 0.0
        %3531 = vmatprep.subr.mxu0 0.0
        %3532 = vmatpush1.msra.mxu0 0.0
        %3533 = vmatprep.subr.mxu0 0.0
        %3534 = vmatpush1.msra.mxu0 0.0
        %3535 = vmatprep.subr.mxu0 0.0
        %3536 = vmatpush1.msra.mxu0 0.0
        %3537 = vmatprep.subr.mxu0 0.0
        %3538 = vmatpush1.msra.mxu0 0.0
        %3539 = vmatprep.mubr.f32.mxu0 0.0
        %v3540 = vand.u32 %v3001, 4294901760
        %v3541 = vsub.f32 %v3001, %v3540
        %v3542 = vand.u32 %v3541, 4294901760
        %v3543 = vsub.f32 %v3541, %v3542
        %v3544 = vand.u32 %v3543, 4294901760
        %3545 = vmatmul.mubr.f32.gmra.mrb[0].mxu0 %v3544
        %v3546 = vpop.f32.mrb[0].mxu0
        %v3547 = vadd.f32 0.0, %v3546
        %v3548 = vpop.f32.mrb[0].mxu0
        %3549 = vdwg.mxu0
        %3550 = vmatprep.subr.mxu0 0.0
        %v3551 = vand.u32 %v3007, 4294901760
        %v3552 = vsub.f32 %v3007, %v3551
        %v3553 = vand.u32 %v3552, 4294901760
        %v3554 = vsub.f32 %v3552, %v3553
        %v3555 = vand.u32 %v3554, 4294901760
        %3556 = vmatpush1.msra.mxu0 %v3555
        %3557 = vmatprep.subr.mxu0 0.0
        %3558 = vmatpush1.msra.mxu0 0.0
        %3559 = vmatprep.subr.mxu0 0.0
        %3560 = vmatpush1.msra.mxu0 0.0
        %3561 = vmatprep.subr.mxu0 0.0
        %3562 = vmatpush1.msra.mxu0 0.0
        %3563 = vmatprep.subr.mxu0 0.0
        %3564 = vmatpush1.msra.mxu0 0.0
        %3565 = vmatprep.subr.mxu0 0.0
        %3566 = vmatpush1.msra.mxu0 0.0
        %3567 = vmatprep.subr.mxu0 0.0
        %3568 = vmatpush1.msra.mxu0 0.0
        %3569 = vmatprep.subr.mxu0 0.0
        %3570 = vmatpush1.msra.mxu0 0.0
        %3571 = vmatprep.subr.mxu0 0.0
        %3572 = vmatpush1.msra.mxu0 0.0
        %3573 = vmatprep.subr.mxu0 0.0
        %3574 = vmatpush1.msra.mxu0 0.0
        %3575 = vmatprep.subr.mxu0 0.0
        %3576 = vmatpush1.msra.mxu0 0.0
        %3577 = vmatprep.subr.mxu0 0.0
        %3578 = vmatpush1.msra.mxu0 0.0
        %3579 = vmatprep.subr.mxu0 0.0
        %3580 = vmatpush1.msra.mxu0 0.0
        %3581 = vmatprep.subr.mxu0 0.0
        %3582 = vmatpush1.msra.mxu0 0.0
        %3583 = vmatprep.subr.mxu0 0.0
        %3584 = vmatpush1.msra.mxu0 0.0
        %3585 = vmatprep.subr.mxu0 0.0
        %3586 = vmatpush1.msra.mxu0 0.0
        %3587 = vmatprep.subr.mxu0 0.0
        %3588 = vmatpush1.msra.mxu0 0.0
        %3589 = vmatprep.subr.mxu0 0.0
        %3590 = vmatpush1.msra.mxu0 0.0
        %3591 = vmatprep.subr.mxu0 0.0
        %3592 = vmatpush1.msra.mxu0 0.0
        %3593 = vmatprep.subr.mxu0 0.0
        %3594 = vmatpush1.msra.mxu0 0.0
        %3595 = vmatprep.subr.mxu0 0.0
        %3596 = vmatpush1.msra.mxu0 0.0
        %3597 = vmatprep.subr.mxu0 0.0
        %3598 = vmatpush1.msra.mxu0 0.0
        %3599 = vmatprep.subr.mxu0 0.0
        %3600 = vmatpush1.msra.mxu0 0.0
        %3601 = vmatprep.subr.mxu0 0.0
        %3602 = vmatpush1.msra.mxu0 0.0
        %3603 = vmatprep.subr.mxu0 0.0
        %3604 = vmatpush1.msra.mxu0 0.0
        %3605 = vmatprep.subr.mxu0 0.0
        %3606 = vmatpush1.msra.mxu0 0.0
        %3607 = vmatprep.subr.mxu0 0.0
        %3608 = vmatpush1.msra.mxu0 0.0
        %3609 = vmatprep.subr.mxu0 0.0
        %3610 = vmatpush1.msra.mxu0 0.0
        %3611 = vmatprep.subr.mxu0 0.0
        %3612 = vmatpush1.msra.mxu0 0.0
        %3613 = vmatprep.subr.mxu0 0.0
        %3614 = vmatpush1.msra.mxu0 0.0
        %3615 = vmatprep.subr.mxu0 0.0
        %3616 = vmatpush1.msra.mxu0 0.0
        %3617 = vmatprep.subr.mxu0 0.0
        %3618 = vmatpush1.msra.mxu0 0.0
        %3619 = vmatprep.mubr.f32.mxu0 0.0
        %v3620 = vand.u32 %v3001, 4294901760
        %3621 = vmatmul.mubr.f32.gmra.mrb[0].mxu0 %v3620
        %v3622 = vpop.f32.mrb[0].mxu0
        %v3623 = vadd.f32 %v3547, %v3622
        %v3624 = vpop.f32.mrb[0].mxu0
        %3625 = vdwg.mxu0
        %3626 = vmatprep.subr.mxu0 0.0
        %v3627 = vand.u32 %v3007, 4294901760
        %v3628 = vsub.f32 %v3007, %v3627
        %3629 = vmatpush1.msra.mxu0 %v3628
        %3630 = vmatprep.subr.mxu0 0.0
        %3631 = vmatpush1.msra.mxu0 0.0
        %3632 = vmatprep.subr.mxu0 0.0
        %3633 = vmatpush1.msra.mxu0 0.0
        %3634 = vmatprep.subr.mxu0 0.0
        %3635 = vmatpush1.msra.mxu0 0.0
        %3636 = vmatprep.subr.mxu0 0.0
        %3637 = vmatpush1.msra.mxu0 0.0
        %3638 = vmatprep.subr.mxu0 0.0
        %3639 = vmatpush1.msra.mxu0 0.0
        %3640 = vmatprep.subr.mxu0 0.0
        %3641 = vmatpush1.msra.mxu0 0.0
        %3642 = vmatprep.subr.mxu0 0.0
        %3643 = vmatpush1.msra.mxu0 0.0
        %3644 = vmatprep.subr.mxu0 0.0
        %3645 = vmatpush1.msra.mxu0 0.0
        %3646 = vmatprep.subr.mxu0 0.0
        %3647 = vmatpush1.msra.mxu0 0.0
        %3648 = vmatprep.subr.mxu0 0.0
        %3649 = vmatpush1.msra.mxu0 0.0
        %3650 = vmatprep.subr.mxu0 0.0
        %3651 = vmatpush1.msra.mxu0 0.0
        %3652 = vmatprep.subr.mxu0 0.0
        %3653 = vmatpush1.msra.mxu0 0.0
        %3654 = vmatprep.subr.mxu0 0.0
        %3655 = vmatpush1.msra.mxu0 0.0
        %3656 = vmatprep.subr.mxu0 0.0
        %3657 = vmatpush1.msra.mxu0 0.0
        %3658 = vmatprep.subr.mxu0 0.0
        %3659 = vmatpush1.msra.mxu0 0.0
        %3660 = vmatprep.subr.mxu0 0.0
        %3661 = vmatpush1.msra.mxu0 0.0
        %3662 = vmatprep.subr.mxu0 0.0
        %3663 = vmatpush1.msra.mxu0 0.0
        %3664 = vmatprep.subr.mxu0 0.0
        %3665 = vmatpush1.msra.mxu0 0.0
        %3666 = vmatprep.subr.mxu0 0.0
        %3667 = vmatpush1.msra.mxu0 0.0
        %3668 = vmatprep.subr.mxu0 0.0
        %3669 = vmatpush1.msra.mxu0 0.0
        %3670 = vmatprep.subr.mxu0 0.0
        %3671 = vmatpush1.msra.mxu0 0.0
        %3672 = vmatprep.subr.mxu0 0.0
        %3673 = vmatpush1.msra.mxu0 0.0
        %3674 = vmatprep.subr.mxu0 0.0
        %3675 = vmatpush1.msra.mxu0 0.0
        %3676 = vmatprep.subr.mxu0 0.0
        %3677 = vmatpush1.msra.mxu0 0.0
        %3678 = vmatprep.subr.mxu0 0.0
        %3679 = vmatpush1.msra.mxu0 0.0
        %3680 = vmatprep.subr.mxu0 0.0
        %3681 = vmatpush1.msra.mxu0 0.0
        %3682 = vmatprep.subr.mxu0 0.0
        %3683 = vmatpush1.msra.mxu0 0.0
        %3684 = vmatprep.subr.mxu0 0.0
        %3685 = vmatpush1.msra.mxu0 0.0
        %3686 = vmatprep.subr.mxu0 0.0
        %3687 = vmatpush1.msra.mxu0 0.0
        %3688 = vmatprep.subr.mxu0 0.0
        %3689 = vmatpush1.msra.mxu0 0.0
        %3690 = vmatprep.subr.mxu0 0.0
        %3691 = vmatpush1.msra.mxu0 0.0
        %3692 = vmatprep.mubr.f32.mxu0 0.0
        %v3693 = vand.u32 %v3001, 4294901760
        %v3694 = vsub.f32 %v3001, %v3693
        %3695 = vmatmul.mubr.f32.gmra.mrb[0].mxu0 %v3694
        %v3696 = vpop.f32.mrb[0].mxu0
        %v3697 = vadd.f32 %v3623, %v3696
        %v3698 = vpop.f32.mrb[0].mxu0
        %3699 = vdwg.mxu0
        %3700 = vmatprep.subr.mxu0 0.0
        %v3701 = vand.u32 %v3007, 4294901760
        %3702 = vmatpush1.msra.mxu0 %v3701
        %3703 = vmatprep.subr.mxu0 0.0
        %3704 = vmatpush1.msra.mxu0 0.0
        %3705 = vmatprep.subr.mxu0 0.0
        %3706 = vmatpush1.msra.mxu0 0.0
        %3707 = vmatprep.subr.mxu0 0.0
        %3708 = vmatpush1.msra.mxu0 0.0
        %3709 = vmatprep.subr.mxu0 0.0
        %3710 = vmatpush1.msra.mxu0 0.0
        %3711 = vmatprep.subr.mxu0 0.0
        %3712 = vmatpush1.msra.mxu0 0.0
        %3713 = vmatprep.subr.mxu0 0.0
        %3714 = vmatpush1.msra.mxu0 0.0
        %3715 = vmatprep.subr.mxu0 0.0
        %3716 = vmatpush1.msra.mxu0 0.0
        %3717 = vmatprep.subr.mxu0 0.0
        %3718 = vmatpush1.msra.mxu0 0.0
        %3719 = vmatprep.subr.mxu0 0.0
        %3720 = vmatpush1.msra.mxu0 0.0
        %3721 = vmatprep.subr.mxu0 0.0
        %3722 = vmatpush1.msra.mxu0 0.0
        %3723 = vmatprep.subr.mxu0 0.0
        %3724 = vmatpush1.msra.mxu0 0.0
        %3725 = vmatprep.subr.mxu0 0.0
        %3726 = vmatpush1.msra.mxu0 0.0
        %3727 = vmatprep.subr.mxu0 0.0
        %3728 = vmatpush1.msra.mxu0 0.0
        %3729 = vmatprep.subr.mxu0 0.0
        %3730 = vmatpush1.msra.mxu0 0.0
        %3731 = vmatprep.subr.mxu0 0.0
        %3732 = vmatpush1.msra.mxu0 0.0
        %3733 = vmatprep.subr.mxu0 0.0
        %3734 = vmatpush1.msra.mxu0 0.0
        %3735 = vmatprep.subr.mxu0 0.0
        %3736 = vmatpush1.msra.mxu0 0.0
        %3737 = vmatprep.subr.mxu0 0.0
        %3738 = vmatpush1.msra.mxu0 0.0
        %3739 = vmatprep.subr.mxu0 0.0
        %3740 = vmatpush1.msra.mxu0 0.0
        %3741 = vmatprep.subr.mxu0 0.0
        %3742 = vmatpush1.msra.mxu0 0.0
        %3743 = vmatprep.subr.mxu0 0.0
        %3744 = vmatpush1.msra.mxu0 0.0
        %3745 = vmatprep.subr.mxu0 0.0
        %3746 = vmatpush1.msra.mxu0 0.0
        %3747 = vmatprep.subr.mxu0 0.0
        %3748 = vmatpush1.msra.mxu0 0.0
        %3749 = vmatprep.subr.mxu0 0.0
        %3750 = vmatpush1.msra.mxu0 0.0
        %3751 = vmatprep.subr.mxu0 0.0
        %3752 = vmatpush1.msra.mxu0 0.0
        %3753 = vmatprep.subr.mxu0 0.0
        %3754 = vmatpush1.msra.mxu0 0.0
        %3755 = vmatprep.subr.mxu0 0.0
        %3756 = vmatpush1.msra.mxu0 0.0
        %3757 = vmatprep.subr.mxu0 0.0
        %3758 = vmatpush1.msra.mxu0 0.0
        %3759 = vmatprep.subr.mxu0 0.0
        %3760 = vmatpush1.msra.mxu0 0.0
        %3761 = vmatprep.subr.mxu0 0.0
        %3762 = vmatpush1.msra.mxu0 0.0
        %3763 = vmatprep.subr.mxu0 0.0
        %3764 = vmatpush1.msra.mxu0 0.0
        %3765 = vmatprep.mubr.f32.mxu0 0.0
        %v3766 = vand.u32 %v3001, 4294901760
        %v3767 = vsub.f32 %v3001, %v3766
        %v3768 = vand.u32 %v3767, 4294901760
        %3769 = vmatmul.mubr.f32.gmra.mrb[0].mxu0 %v3768
        %v3770 = vpop.f32.mrb[0].mxu0
        %v3771 = vadd.f32 %v3697, %v3770
        %v3772 = vpop.f32.mrb[0].mxu0
        %3773 = vdwg.mxu0
        %3774 = vmatprep.subr.mxu0 0.0
        %v3775 = vand.u32 %v3007, 4294901760
        %v3776 = vsub.f32 %v3007, %v3775
        %v3777 = vand.u32 %v3776, 4294901760
        %3778 = vmatpush1.msra.mxu0 %v3777
        %3779 = vmatprep.subr.mxu0 0.0
        %3780 = vmatpush1.msra.mxu0 0.0
        %3781 = vmatprep.subr.mxu0 0.0
        %3782 = vmatpush1.msra.mxu0 0.0
        %3783 = vmatprep.subr.mxu0 0.0
        %3784 = vmatpush1.msra.mxu0 0.0
        %3785 = vmatprep.subr.mxu0 0.0
        %3786 = vmatpush1.msra.mxu0 0.0
        %3787 = vmatprep.subr.mxu0 0.0
        %3788 = vmatpush1.msra.mxu0 0.0
        %3789 = vmatprep.subr.mxu0 0.0
        %3790 = vmatpush1.msra.mxu0 0.0
        %3791 = vmatprep.subr.mxu0 0.0
        %3792 = vmatpush1.msra.mxu0 0.0
        %3793 = vmatprep.subr.mxu0 0.0
        %3794 = vmatpush1.msra.mxu0 0.0
        %3795 = vmatprep.subr.mxu0 0.0
        %3796 = vmatpush1.msra.mxu0 0.0
        %3797 = vmatprep.subr.mxu0 0.0
        %3798 = vmatpush1.msra.mxu0 0.0
        %3799 = vmatprep.subr.mxu0 0.0
        %3800 = vmatpush1.msra.mxu0 0.0
        %3801 = vmatprep.subr.mxu0 0.0
        %3802 = vmatpush1.msra.mxu0 0.0
        %3803 = vmatprep.subr.mxu0 0.0
        %3804 = vmatpush1.msra.mxu0 0.0
        %3805 = vmatprep.subr.mxu0 0.0
        %3806 = vmatpush1.msra.mxu0 0.0
        %3807 = vmatprep.subr.mxu0 0.0
        %3808 = vmatpush1.msra.mxu0 0.0
        %3809 = vmatprep.subr.mxu0 0.0
        %3810 = vmatpush1.msra.mxu0 0.0
        %3811 = vmatprep.subr.mxu0 0.0
        %3812 = vmatpush1.msra.mxu0 0.0
        %3813 = vmatprep.subr.mxu0 0.0
        %3814 = vmatpush1.msra.mxu0 0.0
        %3815 = vmatprep.subr.mxu0 0.0
        %3816 = vmatpush1.msra.mxu0 0.0
        %3817 = vmatprep.subr.mxu0 0.0
        %3818 = vmatpush1.msra.mxu0 0.0
        %3819 = vmatprep.subr.mxu0 0.0
        %3820 = vmatpush1.msra.mxu0 0.0
        %3821 = vmatprep.subr.mxu0 0.0
        %3822 = vmatpush1.msra.mxu0 0.0
        %3823 = vmatprep.subr.mxu0 0.0
        %3824 = vmatpush1.msra.mxu0 0.0
        %3825 = vmatprep.subr.mxu0 0.0
        %3826 = vmatpush1.msra.mxu0 0.0
        %3827 = vmatprep.subr.mxu0 0.0
        %3828 = vmatpush1.msra.mxu0 0.0
        %3829 = vmatprep.subr.mxu0 0.0
        %3830 = vmatpush1.msra.mxu0 0.0
        %3831 = vmatprep.subr.mxu0 0.0
        %3832 = vmatpush1.msra.mxu0 0.0
        %3833 = vmatprep.subr.mxu0 0.0
        %3834 = vmatpush1.msra.mxu0 0.0
        %3835 = vmatprep.subr.mxu0 0.0
        %3836 = vmatpush1.msra.mxu0 0.0
        %3837 = vmatprep.subr.mxu0 0.0
        %3838 = vmatpush1.msra.mxu0 0.0
        %3839 = vmatprep.subr.mxu0 0.0
        %3840 = vmatpush1.msra.mxu0 0.0
        %3841 = vmatprep.mubr.f32.mxu0 0.0
        %v3842 = vand.u32 %v3001, 4294901760
        %3843 = vmatmul.mubr.f32.gmra.mrb[0].mxu0 %v3842
        %v3844 = vpop.f32.mrb[0].mxu0
        %v3845 = vadd.f32 %v3771, %v3844
        %v3846 = vpop.f32.mrb[0].mxu0
        %3847 = vdwg.mxu0
        %3848 = vmatprep.subr.mxu0 0.0
        %v3849 = vand.u32 %v3007, 4294901760
        %3850 = vmatpush1.msra.mxu0 %v3849
        %3851 = vmatprep.subr.mxu0 0.0
        %3852 = vmatpush1.msra.mxu0 0.0
        %3853 = vmatprep.subr.mxu0 0.0
        %3854 = vmatpush1.msra.mxu0 0.0
        %3855 = vmatprep.subr.mxu0 0.0
        %3856 = vmatpush1.msra.mxu0 0.0
        %3857 = vmatprep.subr.mxu0 0.0
        %3858 = vmatpush1.msra.mxu0 0.0
        %3859 = vmatprep.subr.mxu0 0.0
        %3860 = vmatpush1.msra.mxu0 0.0
        %3861 = vmatprep.subr.mxu0 0.0
        %3862 = vmatpush1.msra.mxu0 0.0
        %3863 = vmatprep.subr.mxu0 0.0
        %3864 = vmatpush1.msra.mxu0 0.0
        %3865 = vmatprep.subr.mxu0 0.0
        %3866 = vmatpush1.msra.mxu0 0.0
        %3867 = vmatprep.subr.mxu0 0.0
        %3868 = vmatpush1.msra.mxu0 0.0
        %3869 = vmatprep.subr.mxu0 0.0
        %3870 = vmatpush1.msra.mxu0 0.0
        %3871 = vmatprep.subr.mxu0 0.0
        %3872 = vmatpush1.msra.mxu0 0.0
        %3873 = vmatprep.subr.mxu0 0.0
        %3874 = vmatpush1.msra.mxu0 0.0
        %3875 = vmatprep.subr.mxu0 0.0
        %3876 = vmatpush1.msra.mxu0 0.0
        %3877 = vmatprep.subr.mxu0 0.0
        %3878 = vmatpush1.msra.mxu0 0.0
        %3879 = vmatprep.subr.mxu0 0.0
        %3880 = vmatpush1.msra.mxu0 0.0
        %3881 = vmatprep.subr.mxu0 0.0
        %3882 = vmatpush1.msra.mxu0 0.0
        %3883 = vmatprep.subr.mxu0 0.0
        %3884 = vmatpush1.msra.mxu0 0.0
        %3885 = vmatprep.subr.mxu0 0.0
        %3886 = vmatpush1.msra.mxu0 0.0
        %3887 = vmatprep.subr.mxu0 0.0
        %3888 = vmatpush1.msra.mxu0 0.0
        %3889 = vmatprep.subr.mxu0 0.0
        %3890 = vmatpush1.msra.mxu0 0.0
        %3891 = vmatprep.subr.mxu0 0.0
        %3892 = vmatpush1.msra.mxu0 0.0
        %3893 = vmatprep.subr.mxu0 0.0
        %3894 = vmatpush1.msra.mxu0 0.0
        %3895 = vmatprep.subr.mxu0 0.0
        %3896 = vmatpush1.msra.mxu0 0.0
        %3897 = vmatprep.subr.mxu0 0.0
        %3898 = vmatpush1.msra.mxu0 0.0
        %3899 = vmatprep.subr.mxu0 0.0
        %3900 = vmatpush1.msra.mxu0 0.0
        %3901 = vmatprep.subr.mxu0 0.0
        %3902 = vmatpush1.msra.mxu0 0.0
        %3903 = vmatprep.subr.mxu0 0.0
        %3904 = vmatpush1.msra.mxu0 0.0
        %3905 = vmatprep.subr.mxu0 0.0
        %3906 = vmatpush1.msra.mxu0 0.0
        %3907 = vmatprep.subr.mxu0 0.0
        %3908 = vmatpush1.msra.mxu0 0.0
        %3909 = vmatprep.subr.mxu0 0.0
        %3910 = vmatpush1.msra.mxu0 0.0
        %3911 = vmatprep.subr.mxu0 0.0
        %3912 = vmatpush1.msra.mxu0 0.0
        %3913 = vmatprep.mubr.f32.mxu0 0.0
        %v3914 = vand.u32 %v3001, 4294901760
        %3915 = vmatmul.mubr.f32.gmra.mrb[0].mxu0 %v3914
        %v3916 = vpop.f32.mrb[0].mxu0
        %v3917 = vadd.f32 %v3845, %v3916
        %v3918 = vpop.f32.mrb[0].mxu0
        %3919 = vdwg.mxu0
        %v3920 = vadd.f32 %v2977, %v3470
        %v3921 = vadd.f32 %v2978, %v3472
        %v3922 = vadd.f32 %v2979, %v3917
        %v3923 = vld [vmem:[%s168] sm:$0xff]
        %v3924 = vld [vmem:[%s168 + $0x8] sm:$0xff]
        %s3925 = scalar_lea.vmem %s1, 32
        %v3926 = vld [vmem:[%s3925] sm:$0xff]
        %v3929 = vcombine.high %v3923, %v3923
        %v3930 = vcombine.high %v3924, %v3924
        %3931 = vrot.lane.b32.xlu0 %v3923, 109
        %v3932 = vpop.permute.xlu0 %3931
        %3933 = vrot.lane.b32.xlu0 %v3929, 109
        %v3934 = vpop.permute.xlu0 %3933
        %3935 = vrot.lane.b32.xlu0 %v3924, 109
        %v3936 = vpop.permute.xlu0 %3935
        %3937 = vrot.lane.b32.xlu0 %v3930, 109
        %v3938 = vpop.permute.xlu0 %3937
        %vm3939 = vcmask 891904
        %v3940 = vsel %vm3939, %v3932, %v3934
        %v3941 = vsel %vm3939, %v3934, %v3936
        %v3942 = vsel %vm3939, %v3936, %v3938
        %v3944 = vsel %vm192, %v3926, 0
        %v3946 = vsel %vm196, %v3940, 0
        %v3948 = vsel %vm196, %v3941, 0
        %v3950 = vsel %vm196, %v3942, 0
        %v3952 = vand.u32 %v3948, 4294901760
        %3953 = vmatprep.subr.mxu0 %v3952
        %v3954 = vand.u32 %v3946, 4294901760
        %3955 = vmatpush1.msra.mxu0 %v3954
        %3956 = vmatprep.subr.mxu0 0.0
        %3957 = vmatpush1.msra.mxu0 0.0
        %3958 = vmatprep.subr.mxu0 0.0
        %3959 = vmatpush1.msra.mxu0 0.0
        %3960 = vmatprep.subr.mxu0 0.0
        %3961 = vmatpush1.msra.mxu0 0.0
        %3962 = vmatprep.subr.mxu0 0.0
        %3963 = vmatpush1.msra.mxu0 0.0
        %3964 = vmatprep.subr.mxu0 0.0
        %3965 = vmatpush1.msra.mxu0 0.0
        %3966 = vmatprep.subr.mxu0 0.0
        %3967 = vmatpush1.msra.mxu0 0.0
        %3968 = vmatprep.subr.mxu0 0.0
        %3969 = vmatpush1.msra.mxu0 0.0
        %3970 = vmatprep.subr.mxu0 0.0
        %3971 = vmatpush1.msra.mxu0 0.0
        %3972 = vmatprep.subr.mxu0 0.0
        %3973 = vmatpush1.msra.mxu0 0.0
        %3974 = vmatprep.subr.mxu0 0.0
        %3975 = vmatpush1.msra.mxu0 0.0
        %3976 = vmatprep.subr.mxu0 0.0
        %3977 = vmatpush1.msra.mxu0 0.0
        %3978 = vmatprep.subr.mxu0 0.0
        %3979 = vmatpush1.msra.mxu0 0.0
        %3980 = vmatprep.subr.mxu0 0.0
        %3981 = vmatpush1.msra.mxu0 0.0
        %3982 = vmatprep.subr.mxu0 0.0
        %3983 = vmatpush1.msra.mxu0 0.0
        %3984 = vmatprep.subr.mxu0 0.0
        %3985 = vmatpush1.msra.mxu0 0.0
        %3986 = vmatprep.subr.mxu0 0.0
        %3987 = vmatpush1.msra.mxu0 0.0
        %3988 = vmatprep.subr.mxu0 0.0
        %3989 = vmatpush1.msra.mxu0 0.0
        %3990 = vmatprep.subr.mxu0 0.0
        %3991 = vmatpush1.msra.mxu0 0.0
        %3992 = vmatprep.subr.mxu0 0.0
        %3993 = vmatpush1.msra.mxu0 0.0
        %3994 = vmatprep.subr.mxu0 0.0
        %3995 = vmatpush1.msra.mxu0 0.0
        %3996 = vmatprep.subr.mxu0 0.0
        %3997 = vmatpush1.msra.mxu0 0.0
        %3998 = vmatprep.subr.mxu0 0.0
        %3999 = vmatpush1.msra.mxu0 0.0
        %4000 = vmatprep.subr.mxu0 0.0
        %4001 = vmatpush1.msra.mxu0 0.0
        %4002 = vmatprep.subr.mxu0 0.0
        %4003 = vmatpush1.msra.mxu0 0.0
        %4004 = vmatprep.subr.mxu0 0.0
        %4005 = vmatpush1.msra.mxu0 0.0
        %4006 = vmatprep.subr.mxu0 0.0
        %4007 = vmatpush1.msra.mxu0 0.0
        %4008 = vmatprep.subr.mxu0 0.0
        %4009 = vmatpush1.msra.mxu0 0.0
        %4010 = vmatprep.subr.mxu0 0.0
        %4011 = vmatpush1.msra.mxu0 0.0
        %4012 = vmatprep.subr.mxu0 0.0
        %4013 = vmatpush1.msra.mxu0 0.0
        %4014 = vmatprep.subr.mxu0 0.0
        %4015 = vmatpush1.msra.mxu0 0.0
        %4016 = vmatprep.subr.mxu0 0.0
        %4017 = vmatpush1.msra.mxu0 0.0
        %4018 = vmatprep.mubr.f32.mxu0 0.0
        %v4019 = vand.u32 %v3944, 4294901760
        %v4020 = vsub.f32 %v3944, %v4019
        %v4021 = vand.u32 %v4020, 4294901760
        %v4022 = vsub.f32 %v4020, %v4021
        %v4023 = vand.u32 %v4022, 4294901760
        %4024 = vmatmul.mubr.f32.gmra.mrb[0].mxu0 %v4023
        %v4025 = vpop.f32.mrb[0].mxu0
        %v4026 = vadd.f32 0.0, %v4025
        %v4027 = vpop.f32.mrb[0].mxu0
        %v4028 = vadd.f32 0.0, %v4027
        %4029 = vdwg.mxu0
        %v4030 = vand.u32 %v3948, 4294901760
        %v4031 = vsub.f32 %v3948, %v4030
        %v4032 = vand.u32 %v4031, 4294901760
        %v4033 = vsub.f32 %v4031, %v4032
        %v4034 = vand.u32 %v4033, 4294901760
        %4035 = vmatprep.subr.mxu0 %v4034
        %v4036 = vand.u32 %v3946, 4294901760
        %v4037 = vsub.f32 %v3946, %v4036
        %v4038 = vand.u32 %v4037, 4294901760
        %v4039 = vsub.f32 %v4037, %v4038
        %v4040 = vand.u32 %v4039, 4294901760
        %4041 = vmatpush1.msra.mxu0 %v4040
        %4042 = vmatprep.subr.mxu0 0.0
        %4043 = vmatpush1.msra.mxu0 0.0
        %4044 = vmatprep.subr.mxu0 0.0
        %4045 = vmatpush1.msra.mxu0 0.0
        %4046 = vmatprep.subr.mxu0 0.0
        %4047 = vmatpush1.msra.mxu0 0.0
        %4048 = vmatprep.subr.mxu0 0.0
        %4049 = vmatpush1.msra.mxu0 0.0
        %4050 = vmatprep.subr.mxu0 0.0
        %4051 = vmatpush1.msra.mxu0 0.0
        %4052 = vmatprep.subr.mxu0 0.0
        %4053 = vmatpush1.msra.mxu0 0.0
        %4054 = vmatprep.subr.mxu0 0.0
        %4055 = vmatpush1.msra.mxu0 0.0
        %4056 = vmatprep.subr.mxu0 0.0
        %4057 = vmatpush1.msra.mxu0 0.0
        %4058 = vmatprep.subr.mxu0 0.0
        %4059 = vmatpush1.msra.mxu0 0.0
        %4060 = vmatprep.subr.mxu0 0.0
        %4061 = vmatpush1.msra.mxu0 0.0
        %4062 = vmatprep.subr.mxu0 0.0
        %4063 = vmatpush1.msra.mxu0 0.0
        %4064 = vmatprep.subr.mxu0 0.0
        %4065 = vmatpush1.msra.mxu0 0.0
        %4066 = vmatprep.subr.mxu0 0.0
        %4067 = vmatpush1.msra.mxu0 0.0
        %4068 = vmatprep.subr.mxu0 0.0
        %4069 = vmatpush1.msra.mxu0 0.0
        %4070 = vmatprep.subr.mxu0 0.0
        %4071 = vmatpush1.msra.mxu0 0.0
        %4072 = vmatprep.subr.mxu0 0.0
        %4073 = vmatpush1.msra.mxu0 0.0
        %4074 = vmatprep.subr.mxu0 0.0
        %4075 = vmatpush1.msra.mxu0 0.0
        %4076 = vmatprep.subr.mxu0 0.0
        %4077 = vmatpush1.msra.mxu0 0.0
        %4078 = vmatprep.subr.mxu0 0.0
        %4079 = vmatpush1.msra.mxu0 0.0
        %4080 = vmatprep.subr.mxu0 0.0
        %4081 = vmatpush1.msra.mxu0 0.0
        %4082 = vmatprep.subr.mxu0 0.0
        %4083 = vmatpush1.msra.mxu0 0.0
        %4084 = vmatprep.subr.mxu0 0.0
        %4085 = vmatpush1.msra.mxu0 0.0
        %4086 = vmatprep.subr.mxu0 0.0
        %4087 = vmatpush1.msra.mxu0 0.0
        %4088 = vmatprep.subr.mxu0 0.0
        %4089 = vmatpush1.msra.mxu0 0.0
        %4090 = vmatprep.subr.mxu0 0.0
        %4091 = vmatpush1.msra.mxu0 0.0
        %4092 = vmatprep.subr.mxu0 0.0
        %4093 = vmatpush1.msra.mxu0 0.0
        %4094 = vmatprep.subr.mxu0 0.0
        %4095 = vmatpush1.msra.mxu0 0.0
        %4096 = vmatprep.subr.mxu0 0.0
        %4097 = vmatpush1.msra.mxu0 0.0
        %4098 = vmatprep.subr.mxu0 0.0
        %4099 = vmatpush1.msra.mxu0 0.0
        %4100 = vmatprep.subr.mxu0 0.0
        %4101 = vmatpush1.msra.mxu0 0.0
        %4102 = vmatprep.subr.mxu0 0.0
        %4103 = vmatpush1.msra.mxu0 0.0
        %4104 = vmatprep.mubr.f32.mxu0 0.0
        %v4105 = vand.u32 %v3944, 4294901760
        %4106 = vmatmul.mubr.f32.gmra.mrb[0].mxu0 %v4105
        %v4107 = vpop.f32.mrb[0].mxu0
        %v4108 = vadd.f32 %v4026, %v4107
        %v4109 = vpop.f32.mrb[0].mxu0
        %v4110 = vadd.f32 %v4028, %v4109
        %4111 = vdwg.mxu0
        %v4112 = vand.u32 %v3948, 4294901760
        %v4113 = vsub.f32 %v3948, %v4112
        %4114 = vmatprep.subr.mxu0 %v4113
        %v4115 = vand.u32 %v3946, 4294901760
        %v4116 = vsub.f32 %v3946, %v4115
        %4117 = vmatpush1.msra.mxu0 %v4116
        %4118 = vmatprep.subr.mxu0 0.0
        %4119 = vmatpush1.msra.mxu0 0.0
        %4120 = vmatprep.subr.mxu0 0.0
        %4121 = vmatpush1.msra.mxu0 0.0
        %4122 = vmatprep.subr.mxu0 0.0
        %4123 = vmatpush1.msra.mxu0 0.0
        %4124 = vmatprep.subr.mxu0 0.0
        %4125 = vmatpush1.msra.mxu0 0.0
        %4126 = vmatprep.subr.mxu0 0.0
        %4127 = vmatpush1.msra.mxu0 0.0
        %4128 = vmatprep.subr.mxu0 0.0
        %4129 = vmatpush1.msra.mxu0 0.0
        %4130 = vmatprep.subr.mxu0 0.0
        %4131 = vmatpush1.msra.mxu0 0.0
        %4132 = vmatprep.subr.mxu0 0.0
        %4133 = vmatpush1.msra.mxu0 0.0
        %4134 = vmatprep.subr.mxu0 0.0
        %4135 = vmatpush1.msra.mxu0 0.0
        %4136 = vmatprep.subr.mxu0 0.0
        %4137 = vmatpush1.msra.mxu0 0.0
        %4138 = vmatprep.subr.mxu0 0.0
        %4139 = vmatpush1.msra.mxu0 0.0
        %4140 = vmatprep.subr.mxu0 0.0
        %4141 = vmatpush1.msra.mxu0 0.0
        %4142 = vmatprep.subr.mxu0 0.0
        %4143 = vmatpush1.msra.mxu0 0.0
        %4144 = vmatprep.subr.mxu0 0.0
        %4145 = vmatpush1.msra.mxu0 0.0
        %4146 = vmatprep.subr.mxu0 0.0
        %4147 = vmatpush1.msra.mxu0 0.0
        %4148 = vmatprep.subr.mxu0 0.0
        %4149 = vmatpush1.msra.mxu0 0.0
        %4150 = vmatprep.subr.mxu0 0.0
        %4151 = vmatpush1.msra.mxu0 0.0
        %4152 = vmatprep.subr.mxu0 0.0
        %4153 = vmatpush1.msra.mxu0 0.0
        %4154 = vmatprep.subr.mxu0 0.0
        %4155 = vmatpush1.msra.mxu0 0.0
        %4156 = vmatprep.subr.mxu0 0.0
        %4157 = vmatpush1.msra.mxu0 0.0
        %4158 = vmatprep.subr.mxu0 0.0
        %4159 = vmatpush1.msra.mxu0 0.0
        %4160 = vmatprep.subr.mxu0 0.0
        %4161 = vmatpush1.msra.mxu0 0.0
        %4162 = vmatprep.subr.mxu0 0.0
        %4163 = vmatpush1.msra.mxu0 0.0
        %4164 = vmatprep.subr.mxu0 0.0
        %4165 = vmatpush1.msra.mxu0 0.0
        %4166 = vmatprep.subr.mxu0 0.0
        %4167 = vmatpush1.msra.mxu0 0.0
        %4168 = vmatprep.subr.mxu0 0.0
        %4169 = vmatpush1.msra.mxu0 0.0
        %4170 = vmatprep.subr.mxu0 0.0
        %4171 = vmatpush1.msra.mxu0 0.0
        %4172 = vmatprep.subr.mxu0 0.0
        %4173 = vmatpush1.msra.mxu0 0.0
        %4174 = vmatprep.subr.mxu0 0.0
        %4175 = vmatpush1.msra.mxu0 0.0
        %4176 = vmatprep.subr.mxu0 0.0
        %4177 = vmatpush1.msra.mxu0 0.0
        %4178 = vmatprep.subr.mxu0 0.0
        %4179 = vmatpush1.msra.mxu0 0.0
        %4180 = vmatprep.mubr.f32.mxu0 0.0
        %v4181 = vand.u32 %v3944, 4294901760
        %v4182 = vsub.f32 %v3944, %v4181
        %4183 = vmatmul.mubr.f32.gmra.mrb[0].mxu0 %v4182
        %v4184 = vpop.f32.mrb[0].mxu0
        %v4185 = vadd.f32 %v4108, %v4184
        %v4186 = vpop.f32.mrb[0].mxu0
        %v4187 = vadd.f32 %v4110, %v4186
        %4188 = vdwg.mxu0
        %v4189 = vand.u32 %v3948, 4294901760
        %4190 = vmatprep.subr.mxu0 %v4189
        %v4191 = vand.u32 %v3946, 4294901760
        %4192 = vmatpush1.msra.mxu0 %v4191
        %4193 = vmatprep.subr.mxu0 0.0
        %4194 = vmatpush1.msra.mxu0 0.0
        %4195 = vmatprep.subr.mxu0 0.0
        %4196 = vmatpush1.msra.mxu0 0.0
        %4197 = vmatprep.subr.mxu0 0.0
        %4198 = vmatpush1.msra.mxu0 0.0
        %4199 = vmatprep.subr.mxu0 0.0
        %4200 = vmatpush1.msra.mxu0 0.0
        %4201 = vmatprep.subr.mxu0 0.0
        %4202 = vmatpush1.msra.mxu0 0.0
        %4203 = vmatprep.subr.mxu0 0.0
        %4204 = vmatpush1.msra.mxu0 0.0
        %4205 = vmatprep.subr.mxu0 0.0
        %4206 = vmatpush1.msra.mxu0 0.0
        %4207 = vmatprep.subr.mxu0 0.0
        %4208 = vmatpush1.msra.mxu0 0.0
        %4209 = vmatprep.subr.mxu0 0.0
        %4210 = vmatpush1.msra.mxu0 0.0
        %4211 = vmatprep.subr.mxu0 0.0
        %4212 = vmatpush1.msra.mxu0 0.0
        %4213 = vmatprep.subr.mxu0 0.0
        %4214 = vmatpush1.msra.mxu0 0.0
        %4215 = vmatprep.subr.mxu0 0.0
        %4216 = vmatpush1.msra.mxu0 0.0
        %4217 = vmatprep.subr.mxu0 0.0
        %4218 = vmatpush1.msra.mxu0 0.0
        %4219 = vmatprep.subr.mxu0 0.0
        %4220 = vmatpush1.msra.mxu0 0.0
        %4221 = vmatprep.subr.mxu0 0.0
        %4222 = vmatpush1.msra.mxu0 0.0
        %4223 = vmatprep.subr.mxu0 0.0
        %4224 = vmatpush1.msra.mxu0 0.0
        %4225 = vmatprep.subr.mxu0 0.0
        %4226 = vmatpush1.msra.mxu0 0.0
        %4227 = vmatprep.subr.mxu0 0.0
        %4228 = vmatpush1.msra.mxu0 0.0
        %4229 = vmatprep.subr.mxu0 0.0
        %4230 = vmatpush1.msra.mxu0 0.0
        %4231 = vmatprep.subr.mxu0 0.0
        %4232 = vmatpush1.msra.mxu0 0.0
        %4233 = vmatprep.subr.mxu0 0.0
        %4234 = vmatpush1.msra.mxu0 0.0
        %4235 = vmatprep.subr.mxu0 0.0
        %4236 = vmatpush1.msra.mxu0 0.0
        %4237 = vmatprep.subr.mxu0 0.0
        %4238 = vmatpush1.msra.mxu0 0.0
        %4239 = vmatprep.subr.mxu0 0.0
        %4240 = vmatpush1.msra.mxu0 0.0
        %4241 = vmatprep.subr.mxu0 0.0
        %4242 = vmatpush1.msra.mxu0 0.0
        %4243 = vmatprep.subr.mxu0 0.0
        %4244 = vmatpush1.msra.mxu0 0.0
        %4245 = vmatprep.subr.mxu0 0.0
        %4246 = vmatpush1.msra.mxu0 0.0
        %4247 = vmatprep.subr.mxu0 0.0
        %4248 = vmatpush1.msra.mxu0 0.0
        %4249 = vmatprep.subr.mxu0 0.0
        %4250 = vmatpush1.msra.mxu0 0.0
        %4251 = vmatprep.subr.mxu0 0.0
        %4252 = vmatpush1.msra.mxu0 0.0
        %4253 = vmatprep.subr.mxu0 0.0
        %4254 = vmatpush1.msra.mxu0 0.0
        %4255 = vmatprep.mubr.f32.mxu0 0.0
        %v4256 = vand.u32 %v3944, 4294901760
        %v4257 = vsub.f32 %v3944, %v4256
        %v4258 = vand.u32 %v4257, 4294901760
        %4259 = vmatmul.mubr.f32.gmra.mrb[0].mxu0 %v4258
        %v4260 = vpop.f32.mrb[0].mxu0
        %v4261 = vadd.f32 %v4185, %v4260
        %v4262 = vpop.f32.mrb[0].mxu0
        %v4263 = vadd.f32 %v4187, %v4262
        %4264 = vdwg.mxu0
        %v4265 = vand.u32 %v3948, 4294901760
        %v4266 = vsub.f32 %v3948, %v4265
        %v4267 = vand.u32 %v4266, 4294901760
        %4268 = vmatprep.subr.mxu0 %v4267
        %v4269 = vand.u32 %v3946, 4294901760
        %v4270 = vsub.f32 %v3946, %v4269
        %v4271 = vand.u32 %v4270, 4294901760
        %4272 = vmatpush1.msra.mxu0 %v4271
        %4273 = vmatprep.subr.mxu0 0.0
        %4274 = vmatpush1.msra.mxu0 0.0
        %4275 = vmatprep.subr.mxu0 0.0
        %4276 = vmatpush1.msra.mxu0 0.0
        %4277 = vmatprep.subr.mxu0 0.0
        %4278 = vmatpush1.msra.mxu0 0.0
        %4279 = vmatprep.subr.mxu0 0.0
        %4280 = vmatpush1.msra.mxu0 0.0
        %4281 = vmatprep.subr.mxu0 0.0
        %4282 = vmatpush1.msra.mxu0 0.0
        %4283 = vmatprep.subr.mxu0 0.0
        %4284 = vmatpush1.msra.mxu0 0.0
        %4285 = vmatprep.subr.mxu0 0.0
        %4286 = vmatpush1.msra.mxu0 0.0
        %4287 = vmatprep.subr.mxu0 0.0
        %4288 = vmatpush1.msra.mxu0 0.0
        %4289 = vmatprep.subr.mxu0 0.0
        %4290 = vmatpush1.msra.mxu0 0.0
        %4291 = vmatprep.subr.mxu0 0.0
        %4292 = vmatpush1.msra.mxu0 0.0
        %4293 = vmatprep.subr.mxu0 0.0
        %4294 = vmatpush1.msra.mxu0 0.0
        %4295 = vmatprep.subr.mxu0 0.0
        %4296 = vmatpush1.msra.mxu0 0.0
        %4297 = vmatprep.subr.mxu0 0.0
        %4298 = vmatpush1.msra.mxu0 0.0
        %4299 = vmatprep.subr.mxu0 0.0
        %4300 = vmatpush1.msra.mxu0 0.0
        %4301 = vmatprep.subr.mxu0 0.0
        %4302 = vmatpush1.msra.mxu0 0.0
        %4303 = vmatprep.subr.mxu0 0.0
        %4304 = vmatpush1.msra.mxu0 0.0
        %4305 = vmatprep.subr.mxu0 0.0
        %4306 = vmatpush1.msra.mxu0 0.0
        %4307 = vmatprep.subr.mxu0 0.0
        %4308 = vmatpush1.msra.mxu0 0.0
        %4309 = vmatprep.subr.mxu0 0.0
        %4310 = vmatpush1.msra.mxu0 0.0
        %4311 = vmatprep.subr.mxu0 0.0
        %4312 = vmatpush1.msra.mxu0 0.0
        %4313 = vmatprep.subr.mxu0 0.0
        %4314 = vmatpush1.msra.mxu0 0.0
        %4315 = vmatprep.subr.mxu0 0.0
        %4316 = vmatpush1.msra.mxu0 0.0
        %4317 = vmatprep.subr.mxu0 0.0
        %4318 = vmatpush1.msra.mxu0 0.0
        %4319 = vmatprep.subr.mxu0 0.0
        %4320 = vmatpush1.msra.mxu0 0.0
        %4321 = vmatprep.subr.mxu0 0.0
        %4322 = vmatpush1.msra.mxu0 0.0
        %4323 = vmatprep.subr.mxu0 0.0
        %4324 = vmatpush1.msra.mxu0 0.0
        %4325 = vmatprep.subr.mxu0 0.0
        %4326 = vmatpush1.msra.mxu0 0.0
        %4327 = vmatprep.subr.mxu0 0.0
        %4328 = vmatpush1.msra.mxu0 0.0
        %4329 = vmatprep.subr.mxu0 0.0
        %4330 = vmatpush1.msra.mxu0 0.0
        %4331 = vmatprep.subr.mxu0 0.0
        %4332 = vmatpush1.msra.mxu0 0.0
        %4333 = vmatprep.subr.mxu0 0.0
        %4334 = vmatpush1.msra.mxu0 0.0
        %4335 = vmatprep.mubr.f32.mxu0 0.0
        %v4336 = vand.u32 %v3944, 4294901760
        %4337 = vmatmul.mubr.f32.gmra.mrb[0].mxu0 %v4336
        %v4338 = vpop.f32.mrb[0].mxu0
        %v4339 = vadd.f32 %v4261, %v4338
        %v4340 = vpop.f32.mrb[0].mxu0
        %v4341 = vadd.f32 %v4263, %v4340
        %4342 = vdwg.mxu0
        %v4343 = vand.u32 %v3948, 4294901760
        %4344 = vmatprep.subr.mxu0 %v4343
        %v4345 = vand.u32 %v3946, 4294901760
        %4346 = vmatpush1.msra.mxu0 %v4345
        %4347 = vmatprep.subr.mxu0 0.0
        %4348 = vmatpush1.msra.mxu0 0.0
        %4349 = vmatprep.subr.mxu0 0.0
        %4350 = vmatpush1.msra.mxu0 0.0
        %4351 = vmatprep.subr.mxu0 0.0
        %4352 = vmatpush1.msra.mxu0 0.0
        %4353 = vmatprep.subr.mxu0 0.0
        %4354 = vmatpush1.msra.mxu0 0.0
        %4355 = vmatprep.subr.mxu0 0.0
        %4356 = vmatpush1.msra.mxu0 0.0
        %4357 = vmatprep.subr.mxu0 0.0
        %4358 = vmatpush1.msra.mxu0 0.0
        %4359 = vmatprep.subr.mxu0 0.0
        %4360 = vmatpush1.msra.mxu0 0.0
        %4361 = vmatprep.subr.mxu0 0.0
        %4362 = vmatpush1.msra.mxu0 0.0
        %4363 = vmatprep.subr.mxu0 0.0
        %4364 = vmatpush1.msra.mxu0 0.0
        %4365 = vmatprep.subr.mxu0 0.0
        %4366 = vmatpush1.msra.mxu0 0.0
        %4367 = vmatprep.subr.mxu0 0.0
        %4368 = vmatpush1.msra.mxu0 0.0
        %4369 = vmatprep.subr.mxu0 0.0
        %4370 = vmatpush1.msra.mxu0 0.0
        %4371 = vmatprep.subr.mxu0 0.0
        %4372 = vmatpush1.msra.mxu0 0.0
        %4373 = vmatprep.subr.mxu0 0.0
        %4374 = vmatpush1.msra.mxu0 0.0
        %4375 = vmatprep.subr.mxu0 0.0
        %4376 = vmatpush1.msra.mxu0 0.0
        %4377 = vmatprep.subr.mxu0 0.0
        %4378 = vmatpush1.msra.mxu0 0.0
        %4379 = vmatprep.subr.mxu0 0.0
        %4380 = vmatpush1.msra.mxu0 0.0
        %4381 = vmatprep.subr.mxu0 0.0
        %4382 = vmatpush1.msra.mxu0 0.0
        %4383 = vmatprep.subr.mxu0 0.0
        %4384 = vmatpush1.msra.mxu0 0.0
        %4385 = vmatprep.subr.mxu0 0.0
        %4386 = vmatpush1.msra.mxu0 0.0
        %4387 = vmatprep.subr.mxu0 0.0
        %4388 = vmatpush1.msra.mxu0 0.0
        %4389 = vmatprep.subr.mxu0 0.0
        %4390 = vmatpush1.msra.mxu0 0.0
        %4391 = vmatprep.subr.mxu0 0.0
        %4392 = vmatpush1.msra.mxu0 0.0
        %4393 = vmatprep.subr.mxu0 0.0
        %4394 = vmatpush1.msra.mxu0 0.0
        %4395 = vmatprep.subr.mxu0 0.0
        %4396 = vmatpush1.msra.mxu0 0.0
        %4397 = vmatprep.subr.mxu0 0.0
        %4398 = vmatpush1.msra.mxu0 0.0
        %4399 = vmatprep.subr.mxu0 0.0
        %4400 = vmatpush1.msra.mxu0 0.0
        %4401 = vmatprep.subr.mxu0 0.0
        %4402 = vmatpush1.msra.mxu0 0.0
        %4403 = vmatprep.subr.mxu0 0.0
        %4404 = vmatpush1.msra.mxu0 0.0
        %4405 = vmatprep.subr.mxu0 0.0
        %4406 = vmatpush1.msra.mxu0 0.0
        %4407 = vmatprep.subr.mxu0 0.0
        %4408 = vmatpush1.msra.mxu0 0.0
        %4409 = vmatprep.mubr.f32.mxu0 0.0
        %v4410 = vand.u32 %v3944, 4294901760
        %4411 = vmatmul.mubr.f32.gmra.mrb[0].mxu0 %v4410
        %v4412 = vpop.f32.mrb[0].mxu0
        %v4413 = vadd.f32 %v4339, %v4412
        %v4414 = vpop.f32.mrb[0].mxu0
        %v4415 = vadd.f32 %v4341, %v4414
        %4416 = vdwg.mxu0
        %4417 = vmatprep.subr.mxu0 0.0
        %v4418 = vand.u32 %v3950, 4294901760
        %4419 = vmatpush1.msra.mxu0 %v4418
        %4420 = vmatprep.subr.mxu0 0.0
        %4421 = vmatpush1.msra.mxu0 0.0
        %4422 = vmatprep.subr.mxu0 0.0
        %4423 = vmatpush1.msra.mxu0 0.0
        %4424 = vmatprep.subr.mxu0 0.0
        %4425 = vmatpush1.msra.mxu0 0.0
        %4426 = vmatprep.subr.mxu0 0.0
        %4427 = vmatpush1.msra.mxu0 0.0
        %4428 = vmatprep.subr.mxu0 0.0
        %4429 = vmatpush1.msra.mxu0 0.0
        %4430 = vmatprep.subr.mxu0 0.0
        %4431 = vmatpush1.msra.mxu0 0.0
        %4432 = vmatprep.subr.mxu0 0.0
        %4433 = vmatpush1.msra.mxu0 0.0
        %4434 = vmatprep.subr.mxu0 0.0
        %4435 = vmatpush1.msra.mxu0 0.0
        %4436 = vmatprep.subr.mxu0 0.0
        %4437 = vmatpush1.msra.mxu0 0.0
        %4438 = vmatprep.subr.mxu0 0.0
        %4439 = vmatpush1.msra.mxu0 0.0
        %4440 = vmatprep.subr.mxu0 0.0
        %4441 = vmatpush1.msra.mxu0 0.0
        %4442 = vmatprep.subr.mxu0 0.0
        %4443 = vmatpush1.msra.mxu0 0.0
        %4444 = vmatprep.subr.mxu0 0.0
        %4445 = vmatpush1.msra.mxu0 0.0
        %4446 = vmatprep.subr.mxu0 0.0
        %4447 = vmatpush1.msra.mxu0 0.0
        %4448 = vmatprep.subr.mxu0 0.0
        %4449 = vmatpush1.msra.mxu0 0.0
        %4450 = vmatprep.subr.mxu0 0.0
        %4451 = vmatpush1.msra.mxu0 0.0
        %4452 = vmatprep.subr.mxu0 0.0
        %4453 = vmatpush1.msra.mxu0 0.0
        %4454 = vmatprep.subr.mxu0 0.0
        %4455 = vmatpush1.msra.mxu0 0.0
        %4456 = vmatprep.subr.mxu0 0.0
        %4457 = vmatpush1.msra.mxu0 0.0
        %4458 = vmatprep.subr.mxu0 0.0
        %4459 = vmatpush1.msra.mxu0 0.0
        %4460 = vmatprep.subr.mxu0 0.0
        %4461 = vmatpush1.msra.mxu0 0.0
        %4462 = vmatprep.subr.mxu0 0.0
        %4463 = vmatpush1.msra.mxu0 0.0
        %4464 = vmatprep.subr.mxu0 0.0
        %4465 = vmatpush1.msra.mxu0 0.0
        %4466 = vmatprep.subr.mxu0 0.0
        %4467 = vmatpush1.msra.mxu0 0.0
        %4468 = vmatprep.subr.mxu0 0.0
        %4469 = vmatpush1.msra.mxu0 0.0
        %4470 = vmatprep.subr.mxu0 0.0
        %4471 = vmatpush1.msra.mxu0 0.0
        %4472 = vmatprep.subr.mxu0 0.0
        %4473 = vmatpush1.msra.mxu0 0.0
        %4474 = vmatprep.subr.mxu0 0.0
        %4475 = vmatpush1.msra.mxu0 0.0
        %4476 = vmatprep.subr.mxu0 0.0
        %4477 = vmatpush1.msra.mxu0 0.0
        %4478 = vmatprep.subr.mxu0 0.0
        %4479 = vmatpush1.msra.mxu0 0.0
        %4480 = vmatprep.subr.mxu0 0.0
        %4481 = vmatpush1.msra.mxu0 0.0
        %4482 = vmatprep.mubr.f32.mxu0 0.0
        %v4483 = vand.u32 %v3944, 4294901760
        %v4484 = vsub.f32 %v3944, %v4483
        %v4485 = vand.u32 %v4484, 4294901760
        %v4486 = vsub.f32 %v4484, %v4485
        %v4487 = vand.u32 %v4486, 4294901760
        %4488 = vmatmul.mubr.f32.gmra.mrb[0].mxu0 %v4487
        %v4489 = vpop.f32.mrb[0].mxu0
        %v4490 = vadd.f32 0.0, %v4489
        %v4491 = vpop.f32.mrb[0].mxu0
        %4492 = vdwg.mxu0
        %4493 = vmatprep.subr.mxu0 0.0
        %v4494 = vand.u32 %v3950, 4294901760
        %v4495 = vsub.f32 %v3950, %v4494
        %v4496 = vand.u32 %v4495, 4294901760
        %v4497 = vsub.f32 %v4495, %v4496
        %v4498 = vand.u32 %v4497, 4294901760
        %4499 = vmatpush1.msra.mxu0 %v4498
        %4500 = vmatprep.subr.mxu0 0.0
        %4501 = vmatpush1.msra.mxu0 0.0
        %4502 = vmatprep.subr.mxu0 0.0
        %4503 = vmatpush1.msra.mxu0 0.0
        %4504 = vmatprep.subr.mxu0 0.0
        %4505 = vmatpush1.msra.mxu0 0.0
        %4506 = vmatprep.subr.mxu0 0.0
        %4507 = vmatpush1.msra.mxu0 0.0
        %4508 = vmatprep.subr.mxu0 0.0
        %4509 = vmatpush1.msra.mxu0 0.0
        %4510 = vmatprep.subr.mxu0 0.0
        %4511 = vmatpush1.msra.mxu0 0.0
        %4512 = vmatprep.subr.mxu0 0.0
        %4513 = vmatpush1.msra.mxu0 0.0
        %4514 = vmatprep.subr.mxu0 0.0
        %4515 = vmatpush1.msra.mxu0 0.0
        %4516 = vmatprep.subr.mxu0 0.0
        %4517 = vmatpush1.msra.mxu0 0.0
        %4518 = vmatprep.subr.mxu0 0.0
        %4519 = vmatpush1.msra.mxu0 0.0
        %4520 = vmatprep.subr.mxu0 0.0
        %4521 = vmatpush1.msra.mxu0 0.0
        %4522 = vmatprep.subr.mxu0 0.0
        %4523 = vmatpush1.msra.mxu0 0.0
        %4524 = vmatprep.subr.mxu0 0.0
        %4525 = vmatpush1.msra.mxu0 0.0
        %4526 = vmatprep.subr.mxu0 0.0
        %4527 = vmatpush1.msra.mxu0 0.0
        %4528 = vmatprep.subr.mxu0 0.0
        %4529 = vmatpush1.msra.mxu0 0.0
        %4530 = vmatprep.subr.mxu0 0.0
        %4531 = vmatpush1.msra.mxu0 0.0
        %4532 = vmatprep.subr.mxu0 0.0
        %4533 = vmatpush1.msra.mxu0 0.0
        %4534 = vmatprep.subr.mxu0 0.0
        %4535 = vmatpush1.msra.mxu0 0.0
        %4536 = vmatprep.subr.mxu0 0.0
        %4537 = vmatpush1.msra.mxu0 0.0
        %4538 = vmatprep.subr.mxu0 0.0
        %4539 = vmatpush1.msra.mxu0 0.0
        %4540 = vmatprep.subr.mxu0 0.0
        %4541 = vmatpush1.msra.mxu0 0.0
        %4542 = vmatprep.subr.mxu0 0.0
        %4543 = vmatpush1.msra.mxu0 0.0
        %4544 = vmatprep.subr.mxu0 0.0
        %4545 = vmatpush1.msra.mxu0 0.0
        %4546 = vmatprep.subr.mxu0 0.0
        %4547 = vmatpush1.msra.mxu0 0.0
        %4548 = vmatprep.subr.mxu0 0.0
        %4549 = vmatpush1.msra.mxu0 0.0
        %4550 = vmatprep.subr.mxu0 0.0
        %4551 = vmatpush1.msra.mxu0 0.0
        %4552 = vmatprep.subr.mxu0 0.0
        %4553 = vmatpush1.msra.mxu0 0.0
        %4554 = vmatprep.subr.mxu0 0.0
        %4555 = vmatpush1.msra.mxu0 0.0
        %4556 = vmatprep.subr.mxu0 0.0
        %4557 = vmatpush1.msra.mxu0 0.0
        %4558 = vmatprep.subr.mxu0 0.0
        %4559 = vmatpush1.msra.mxu0 0.0
        %4560 = vmatprep.subr.mxu0 0.0
        %4561 = vmatpush1.msra.mxu0 0.0
        %4562 = vmatprep.mubr.f32.mxu0 0.0
        %v4563 = vand.u32 %v3944, 4294901760
        %4564 = vmatmul.mubr.f32.gmra.mrb[0].mxu0 %v4563
        %v4565 = vpop.f32.mrb[0].mxu0
        %v4566 = vadd.f32 %v4490, %v4565
        %v4567 = vpop.f32.mrb[0].mxu0
        %4568 = vdwg.mxu0
        %4569 = vmatprep.subr.mxu0 0.0
        %v4570 = vand.u32 %v3950, 4294901760
        %v4571 = vsub.f32 %v3950, %v4570
        %4572 = vmatpush1.msra.mxu0 %v4571
        %4573 = vmatprep.subr.mxu0 0.0
        %4574 = vmatpush1.msra.mxu0 0.0
        %4575 = vmatprep.subr.mxu0 0.0
        %4576 = vmatpush1.msra.mxu0 0.0
        %4577 = vmatprep.subr.mxu0 0.0
        %4578 = vmatpush1.msra.mxu0 0.0
        %4579 = vmatprep.subr.mxu0 0.0
        %4580 = vmatpush1.msra.mxu0 0.0
        %4581 = vmatprep.subr.mxu0 0.0
        %4582 = vmatpush1.msra.mxu0 0.0
        %4583 = vmatprep.subr.mxu0 0.0
        %4584 = vmatpush1.msra.mxu0 0.0
        %4585 = vmatprep.subr.mxu0 0.0
        %4586 = vmatpush1.msra.mxu0 0.0
        %4587 = vmatprep.subr.mxu0 0.0
        %4588 = vmatpush1.msra.mxu0 0.0
        %4589 = vmatprep.subr.mxu0 0.0
        %4590 = vmatpush1.msra.mxu0 0.0
        %4591 = vmatprep.subr.mxu0 0.0
        %4592 = vmatpush1.msra.mxu0 0.0
        %4593 = vmatprep.subr.mxu0 0.0
        %4594 = vmatpush1.msra.mxu0 0.0
        %4595 = vmatprep.subr.mxu0 0.0
        %4596 = vmatpush1.msra.mxu0 0.0
        %4597 = vmatprep.subr.mxu0 0.0
        %4598 = vmatpush1.msra.mxu0 0.0
        %4599 = vmatprep.subr.mxu0 0.0
        %4600 = vmatpush1.msra.mxu0 0.0
        %4601 = vmatprep.subr.mxu0 0.0
        %4602 = vmatpush1.msra.mxu0 0.0
        %4603 = vmatprep.subr.mxu0 0.0
        %4604 = vmatpush1.msra.mxu0 0.0
        %4605 = vmatprep.subr.mxu0 0.0
        %4606 = vmatpush1.msra.mxu0 0.0
        %4607 = vmatprep.subr.mxu0 0.0
        %4608 = vmatpush1.msra.mxu0 0.0
        %4609 = vmatprep.subr.mxu0 0.0
        %4610 = vmatpush1.msra.mxu0 0.0
        %4611 = vmatprep.subr.mxu0 0.0
        %4612 = vmatpush1.msra.mxu0 0.0
        %4613 = vmatprep.subr.mxu0 0.0
        %4614 = vmatpush1.msra.mxu0 0.0
        %4615 = vmatprep.subr.mxu0 0.0
        %4616 = vmatpush1.msra.mxu0 0.0
        %4617 = vmatprep.subr.mxu0 0.0
        %4618 = vmatpush1.msra.mxu0 0.0
        %4619 = vmatprep.subr.mxu0 0.0
        %4620 = vmatpush1.msra.mxu0 0.0
        %4621 = vmatprep.subr.mxu0 0.0
        %4622 = vmatpush1.msra.mxu0 0.0
        %4623 = vmatprep.subr.mxu0 0.0
        %4624 = vmatpush1.msra.mxu0 0.0
        %4625 = vmatprep.subr.mxu0 0.0
        %4626 = vmatpush1.msra.mxu0 0.0
        %4627 = vmatprep.subr.mxu0 0.0
        %4628 = vmatpush1.msra.mxu0 0.0
        %4629 = vmatprep.subr.mxu0 0.0
        %4630 = vmatpush1.msra.mxu0 0.0
        %4631 = vmatprep.subr.mxu0 0.0
        %4632 = vmatpush1.msra.mxu0 0.0
        %4633 = vmatprep.subr.mxu0 0.0
        %4634 = vmatpush1.msra.mxu0 0.0
        %4635 = vmatprep.mubr.f32.mxu0 0.0
        %v4636 = vand.u32 %v3944, 4294901760
        %v4637 = vsub.f32 %v3944, %v4636
        %4638 = vmatmul.mubr.f32.gmra.mrb[0].mxu0 %v4637
        %v4639 = vpop.f32.mrb[0].mxu0
        %v4640 = vadd.f32 %v4566, %v4639
        %v4641 = vpop.f32.mrb[0].mxu0
        %4642 = vdwg.mxu0
        %4643 = vmatprep.subr.mxu0 0.0
        %v4644 = vand.u32 %v3950, 4294901760
        %4645 = vmatpush1.msra.mxu0 %v4644
        %4646 = vmatprep.subr.mxu0 0.0
        %4647 = vmatpush1.msra.mxu0 0.0
        %4648 = vmatprep.subr.mxu0 0.0
        %4649 = vmatpush1.msra.mxu0 0.0
        %4650 = vmatprep.subr.mxu0 0.0
        %4651 = vmatpush1.msra.mxu0 0.0
        %4652 = vmatprep.subr.mxu0 0.0
        %4653 = vmatpush1.msra.mxu0 0.0
        %4654 = vmatprep.subr.mxu0 0.0
        %4655 = vmatpush1.msra.mxu0 0.0
        %4656 = vmatprep.subr.mxu0 0.0
        %4657 = vmatpush1.msra.mxu0 0.0
        %4658 = vmatprep.subr.mxu0 0.0
        %4659 = vmatpush1.msra.mxu0 0.0
        %4660 = vmatprep.subr.mxu0 0.0
        %4661 = vmatpush1.msra.mxu0 0.0
        %4662 = vmatprep.subr.mxu0 0.0
        %4663 = vmatpush1.msra.mxu0 0.0
        %4664 = vmatprep.subr.mxu0 0.0
        %4665 = vmatpush1.msra.mxu0 0.0
        %4666 = vmatprep.subr.mxu0 0.0
        %4667 = vmatpush1.msra.mxu0 0.0
        %4668 = vmatprep.subr.mxu0 0.0
        %4669 = vmatpush1.msra.mxu0 0.0
        %4670 = vmatprep.subr.mxu0 0.0
        %4671 = vmatpush1.msra.mxu0 0.0
        %4672 = vmatprep.subr.mxu0 0.0
        %4673 = vmatpush1.msra.mxu0 0.0
        %4674 = vmatprep.subr.mxu0 0.0
        %4675 = vmatpush1.msra.mxu0 0.0
        %4676 = vmatprep.subr.mxu0 0.0
        %4677 = vmatpush1.msra.mxu0 0.0
        %4678 = vmatprep.subr.mxu0 0.0
        %4679 = vmatpush1.msra.mxu0 0.0
        %4680 = vmatprep.subr.mxu0 0.0
        %4681 = vmatpush1.msra.mxu0 0.0
        %4682 = vmatprep.subr.mxu0 0.0
        %4683 = vmatpush1.msra.mxu0 0.0
        %4684 = vmatprep.subr.mxu0 0.0
        %4685 = vmatpush1.msra.mxu0 0.0
        %4686 = vmatprep.subr.mxu0 0.0
        %4687 = vmatpush1.msra.mxu0 0.0
        %4688 = vmatprep.subr.mxu0 0.0
        %4689 = vmatpush1.msra.mxu0 0.0
        %4690 = vmatprep.subr.mxu0 0.0
        %4691 = vmatpush1.msra.mxu0 0.0
        %4692 = vmatprep.subr.mxu0 0.0
        %4693 = vmatpush1.msra.mxu0 0.0
        %4694 = vmatprep.subr.mxu0 0.0
        %4695 = vmatpush1.msra.mxu0 0.0
        %4696 = vmatprep.subr.mxu0 0.0
        %4697 = vmatpush1.msra.mxu0 0.0
        %4698 = vmatprep.subr.mxu0 0.0
        %4699 = vmatpush1.msra.mxu0 0.0
        %4700 = vmatprep.subr.mxu0 0.0
        %4701 = vmatpush1.msra.mxu0 0.0
        %4702 = vmatprep.subr.mxu0 0.0
        %4703 = vmatpush1.msra.mxu0 0.0
        %4704 = vmatprep.subr.mxu0 0.0
        %4705 = vmatpush1.msra.mxu0 0.0
        %4706 = vmatprep.subr.mxu0 0.0
        %4707 = vmatpush1.msra.mxu0 0.0
        %4708 = vmatprep.mubr.f32.mxu0 0.0
        %v4709 = vand.u32 %v3944, 4294901760
        %v4710 = vsub.f32 %v3944, %v4709
        %v4711 = vand.u32 %v4710, 4294901760
        %4712 = vmatmul.mubr.f32.gmra.mrb[0].mxu0 %v4711
        %v4713 = vpop.f32.mrb[0].mxu0
        %v4714 = vadd.f32 %v4640, %v4713
        %v4715 = vpop.f32.mrb[0].mxu0
        %4716 = vdwg.mxu0
        %4717 = vmatprep.subr.mxu0 0.0
        %v4718 = vand.u32 %v3950, 4294901760
        %v4719 = vsub.f32 %v3950, %v4718
        %v4720 = vand.u32 %v4719, 4294901760
        %4721 = vmatpush1.msra.mxu0 %v4720
        %4722 = vmatprep.subr.mxu0 0.0
        %4723 = vmatpush1.msra.mxu0 0.0
        %4724 = vmatprep.subr.mxu0 0.0
        %4725 = vmatpush1.msra.mxu0 0.0
        %4726 = vmatprep.subr.mxu0 0.0
        %4727 = vmatpush1.msra.mxu0 0.0
        %4728 = vmatprep.subr.mxu0 0.0
        %4729 = vmatpush1.msra.mxu0 0.0
        %4730 = vmatprep.subr.mxu0 0.0
        %4731 = vmatpush1.msra.mxu0 0.0
        %4732 = vmatprep.subr.mxu0 0.0
        %4733 = vmatpush1.msra.mxu0 0.0
        %4734 = vmatprep.subr.mxu0 0.0
        %4735 = vmatpush1.msra.mxu0 0.0
        %4736 = vmatprep.subr.mxu0 0.0
        %4737 = vmatpush1.msra.mxu0 0.0
        %4738 = vmatprep.subr.mxu0 0.0
        %4739 = vmatpush1.msra.mxu0 0.0
        %4740 = vmatprep.subr.mxu0 0.0
        %4741 = vmatpush1.msra.mxu0 0.0
        %4742 = vmatprep.subr.mxu0 0.0
        %4743 = vmatpush1.msra.mxu0 0.0
        %4744 = vmatprep.subr.mxu0 0.0
        %4745 = vmatpush1.msra.mxu0 0.0
        %4746 = vmatprep.subr.mxu0 0.0
        %4747 = vmatpush1.msra.mxu0 0.0
        %4748 = vmatprep.subr.mxu0 0.0
        %4749 = vmatpush1.msra.mxu0 0.0
        %4750 = vmatprep.subr.mxu0 0.0
        %4751 = vmatpush1.msra.mxu0 0.0
        %4752 = vmatprep.subr.mxu0 0.0
        %4753 = vmatpush1.msra.mxu0 0.0
        %4754 = vmatprep.subr.mxu0 0.0
        %4755 = vmatpush1.msra.mxu0 0.0
        %4756 = vmatprep.subr.mxu0 0.0
        %4757 = vmatpush1.msra.mxu0 0.0
        %4758 = vmatprep.subr.mxu0 0.0
        %4759 = vmatpush1.msra.mxu0 0.0
        %4760 = vmatprep.subr.mxu0 0.0
        %4761 = vmatpush1.msra.mxu0 0.0
        %4762 = vmatprep.subr.mxu0 0.0
        %4763 = vmatpush1.msra.mxu0 0.0
        %4764 = vmatprep.subr.mxu0 0.0
        %4765 = vmatpush1.msra.mxu0 0.0
        %4766 = vmatprep.subr.mxu0 0.0
        %4767 = vmatpush1.msra.mxu0 0.0
        %4768 = vmatprep.subr.mxu0 0.0
        %4769 = vmatpush1.msra.mxu0 0.0
        %4770 = vmatprep.subr.mxu0 0.0
        %4771 = vmatpush1.msra.mxu0 0.0
        %4772 = vmatprep.subr.mxu0 0.0
        %4773 = vmatpush1.msra.mxu0 0.0
        %4774 = vmatprep.subr.mxu0 0.0
        %4775 = vmatpush1.msra.mxu0 0.0
        %4776 = vmatprep.subr.mxu0 0.0
        %4777 = vmatpush1.msra.mxu0 0.0
        %4778 = vmatprep.subr.mxu0 0.0
        %4779 = vmatpush1.msra.mxu0 0.0
        %4780 = vmatprep.subr.mxu0 0.0
        %4781 = vmatpush1.msra.mxu0 0.0
        %4782 = vmatprep.subr.mxu0 0.0
        %4783 = vmatpush1.msra.mxu0 0.0
        %4784 = vmatprep.mubr.f32.mxu0 0.0
        %v4785 = vand.u32 %v3944, 4294901760
        %4786 = vmatmul.mubr.f32.gmra.mrb[0].mxu0 %v4785
        %v4787 = vpop.f32.mrb[0].mxu0
        %v4788 = vadd.f32 %v4714, %v4787
        %v4789 = vpop.f32.mrb[0].mxu0
        %4790 = vdwg.mxu0
        %4791 = vmatprep.subr.mxu0 0.0
        %v4792 = vand.u32 %v3950, 4294901760
        %4793 = vmatpush1.msra.mxu0 %v4792
        %4794 = vmatprep.subr.mxu0 0.0
        %4795 = vmatpush1.msra.mxu0 0.0
        %4796 = vmatprep.subr.mxu0 0.0
        %4797 = vmatpush1.msra.mxu0 0.0
        %4798 = vmatprep.subr.mxu0 0.0
        %4799 = vmatpush1.msra.mxu0 0.0
        %4800 = vmatprep.subr.mxu0 0.0
        %4801 = vmatpush1.msra.mxu0 0.0
        %4802 = vmatprep.subr.mxu0 0.0
        %4803 = vmatpush1.msra.mxu0 0.0
        %4804 = vmatprep.subr.mxu0 0.0
        %4805 = vmatpush1.msra.mxu0 0.0
        %4806 = vmatprep.subr.mxu0 0.0
        %4807 = vmatpush1.msra.mxu0 0.0
        %4808 = vmatprep.subr.mxu0 0.0
        %4809 = vmatpush1.msra.mxu0 0.0
        %4810 = vmatprep.subr.mxu0 0.0
        %4811 = vmatpush1.msra.mxu0 0.0
        %4812 = vmatprep.subr.mxu0 0.0
        %4813 = vmatpush1.msra.mxu0 0.0
        %4814 = vmatprep.subr.mxu0 0.0
        %4815 = vmatpush1.msra.mxu0 0.0
        %4816 = vmatprep.subr.mxu0 0.0
        %4817 = vmatpush1.msra.mxu0 0.0
        %4818 = vmatprep.subr.mxu0 0.0
        %4819 = vmatpush1.msra.mxu0 0.0
        %4820 = vmatprep.subr.mxu0 0.0
        %4821 = vmatpush1.msra.mxu0 0.0
        %4822 = vmatprep.subr.mxu0 0.0
        %4823 = vmatpush1.msra.mxu0 0.0
        %4824 = vmatprep.subr.mxu0 0.0
        %4825 = vmatpush1.msra.mxu0 0.0
        %4826 = vmatprep.subr.mxu0 0.0
        %4827 = vmatpush1.msra.mxu0 0.0
        %4828 = vmatprep.subr.mxu0 0.0
        %4829 = vmatpush1.msra.mxu0 0.0
        %4830 = vmatprep.subr.mxu0 0.0
        %4831 = vmatpush1.msra.mxu0 0.0
        %4832 = vmatprep.subr.mxu0 0.0
        %4833 = vmatpush1.msra.mxu0 0.0
        %4834 = vmatprep.subr.mxu0 0.0
        %4835 = vmatpush1.msra.mxu0 0.0
        %4836 = vmatprep.subr.mxu0 0.0
        %4837 = vmatpush1.msra.mxu0 0.0
        %4838 = vmatprep.subr.mxu0 0.0
        %4839 = vmatpush1.msra.mxu0 0.0
        %4840 = vmatprep.subr.mxu0 0.0
        %4841 = vmatpush1.msra.mxu0 0.0
        %4842 = vmatprep.subr.mxu0 0.0
        %4843 = vmatpush1.msra.mxu0 0.0
        %4844 = vmatprep.subr.mxu0 0.0
        %4845 = vmatpush1.msra.mxu0 0.0
        %4846 = vmatprep.subr.mxu0 0.0
        %4847 = vmatpush1.msra.mxu0 0.0
        %4848 = vmatprep.subr.mxu0 0.0
        %4849 = vmatpush1.msra.mxu0 0.0
        %4850 = vmatprep.subr.mxu0 0.0
        %4851 = vmatpush1.msra.mxu0 0.0
        %4852 = vmatprep.subr.mxu0 0.0
        %4853 = vmatpush1.msra.mxu0 0.0
        %4854 = vmatprep.subr.mxu0 0.0
        %4855 = vmatpush1.msra.mxu0 0.0
        %4856 = vmatprep.mubr.f32.mxu0 0.0
        %v4857 = vand.u32 %v3944, 4294901760
        %4858 = vmatmul.mubr.f32.gmra.mrb[0].mxu0 %v4857
        %v4859 = vpop.f32.mrb[0].mxu0
        %v4860 = vadd.f32 %v4788, %v4859
        %v4861 = vpop.f32.mrb[0].mxu0
        %4862 = vdwg.mxu0
        %v4863 = vadd.f32 %v3920, %v4413
        %v4864 = vadd.f32 %v3921, %v4415
        %v4865 = vadd.f32 %v3922, %v4860
        %v4866 = vld [vmem:[%s168] sm:$0xff]
        %v4867 = vld [vmem:[%s168 + $0x8] sm:$0xff]
        %s4868 = scalar_lea.vmem %s1, 40
        %v4869 = vld [vmem:[%s4868] sm:$0xff]
        %v4872 = vcombine.high %v4866, %v4866
        %v4873 = vcombine.high %v4867, %v4867
        %4874 = vrot.lane.b32.xlu0 %v4866, 108
        %v4875 = vpop.permute.xlu0 %4874
        %4876 = vrot.lane.b32.xlu0 %v4872, 108
        %v4877 = vpop.permute.xlu0 %4876
        %4878 = vrot.lane.b32.xlu0 %v4867, 108
        %v4879 = vpop.permute.xlu0 %4878
        %4880 = vrot.lane.b32.xlu0 %v4873, 108
        %v4881 = vpop.permute.xlu0 %4880
        %vm4882 = vcmask 883712
        %v4883 = vsel %vm4882, %v4875, %v4877
        %v4884 = vsel %vm4882, %v4877, %v4879
        %v4885 = vsel %vm4882, %v4879, %v4881
        %v4887 = vsel %vm192, %v4869, 0
        %v4889 = vsel %vm196, %v4883, 0
        %v4891 = vsel %vm196, %v4884, 0
        %v4893 = vsel %vm196, %v4885, 0
        %v4895 = vand.u32 %v4891, 4294901760
        %4896 = vmatprep.subr.mxu0 %v4895
        %v4897 = vand.u32 %v4889, 4294901760
        %4898 = vmatpush1.msra.mxu0 %v4897
        %4899 = vmatprep.subr.mxu0 0.0
        %4900 = vmatpush1.msra.mxu0 0.0
        %4901 = vmatprep.subr.mxu0 0.0
        %4902 = vmatpush1.msra.mxu0 0.0
        %4903 = vmatprep.subr.mxu0 0.0
        %4904 = vmatpush1.msra.mxu0 0.0
        %4905 = vmatprep.subr.mxu0 0.0
        %4906 = vmatpush1.msra.mxu0 0.0
        %4907 = vmatprep.subr.mxu0 0.0
        %4908 = vmatpush1.msra.mxu0 0.0
        %4909 = vmatprep.subr.mxu0 0.0
        %4910 = vmatpush1.msra.mxu0 0.0
        %4911 = vmatprep.subr.mxu0 0.0
        %4912 = vmatpush1.msra.mxu0 0.0
        %4913 = vmatprep.subr.mxu0 0.0
        %4914 = vmatpush1.msra.mxu0 0.0
        %4915 = vmatprep.subr.mxu0 0.0
        %4916 = vmatpush1.msra.mxu0 0.0
        %4917 = vmatprep.subr.mxu0 0.0
        %4918 = vmatpush1.msra.mxu0 0.0
        %4919 = vmatprep.subr.mxu0 0.0
        %4920 = vmatpush1.msra.mxu0 0.0
        %4921 = vmatprep.subr.mxu0 0.0
        %4922 = vmatpush1.msra.mxu0 0.0
        %4923 = vmatprep.subr.mxu0 0.0
        %4924 = vmatpush1.msra.mxu0 0.0
        %4925 = vmatprep.subr.mxu0 0.0
        %4926 = vmatpush1.msra.mxu0 0.0
        %4927 = vmatprep.subr.mxu0 0.0
        %4928 = vmatpush1.msra.mxu0 0.0
        %4929 = vmatprep.subr.mxu0 0.0
        %4930 = vmatpush1.msra.mxu0 0.0
        %4931 = vmatprep.subr.mxu0 0.0
        %4932 = vmatpush1.msra.mxu0 0.0
        %4933 = vmatprep.subr.mxu0 0.0
        %4934 = vmatpush1.msra.mxu0 0.0
        %4935 = vmatprep.subr.mxu0 0.0
        %4936 = vmatpush1.msra.mxu0 0.0
        %4937 = vmatprep.subr.mxu0 0.0
        %4938 = vmatpush1.msra.mxu0 0.0
        %4939 = vmatprep.subr.mxu0 0.0
        %4940 = vmatpush1.msra.mxu0 0.0
        %4941 = vmatprep.subr.mxu0 0.0
        %4942 = vmatpush1.msra.mxu0 0.0
        %4943 = vmatprep.subr.mxu0 0.0
        %4944 = vmatpush1.msra.mxu0 0.0
        %4945 = vmatprep.subr.mxu0 0.0
        %4946 = vmatpush1.msra.mxu0 0.0
        %4947 = vmatprep.subr.mxu0 0.0
        %4948 = vmatpush1.msra.mxu0 0.0
        %4949 = vmatprep.subr.mxu0 0.0
        %4950 = vmatpush1.msra.mxu0 0.0
        %4951 = vmatprep.subr.mxu0 0.0
        %4952 = vmatpush1.msra.mxu0 0.0
        %4953 = vmatprep.subr.mxu0 0.0
        %4954 = vmatpush1.msra.mxu0 0.0
        %4955 = vmatprep.subr.mxu0 0.0
        %4956 = vmatpush1.msra.mxu0 0.0
        %4957 = vmatprep.subr.mxu0 0.0
        %4958 = vmatpush1.msra.mxu0 0.0
        %4959 = vmatprep.subr.mxu0 0.0
        %4960 = vmatpush1.msra.mxu0 0.0
        %4961 = vmatprep.mubr.f32.mxu0 0.0
        %v4962 = vand.u32 %v4887, 4294901760
        %v4963 = vsub.f32 %v4887, %v4962
        %v4964 = vand.u32 %v4963, 4294901760
        %v4965 = vsub.f32 %v4963, %v4964
        %v4966 = vand.u32 %v4965, 4294901760
        %4967 = vmatmul.mubr.f32.gmra.mrb[0].mxu0 %v4966
        %v4968 = vpop.f32.mrb[0].mxu0
        %v4969 = vadd.f32 0.0, %v4968
        %v4970 = vpop.f32.mrb[0].mxu0
        %v4971 = vadd.f32 0.0, %v4970
        %4972 = vdwg.mxu0
        %v4973 = vand.u32 %v4891, 4294901760
        %v4974 = vsub.f32 %v4891, %v4973
        %v4975 = vand.u32 %v4974, 4294901760
        %v4976 = vsub.f32 %v4974, %v4975
        %v4977 = vand.u32 %v4976, 4294901760
        %4978 = vmatprep.subr.mxu0 %v4977
        %v4979 = vand.u32 %v4889, 4294901760
        %v4980 = vsub.f32 %v4889, %v4979
        %v4981 = vand.u32 %v4980, 4294901760
        %v4982 = vsub.f32 %v4980, %v4981
        %v4983 = vand.u32 %v4982, 4294901760
        %4984 = vmatpush1.msra.mxu0 %v4983
        %4985 = vmatprep.subr.mxu0 0.0
        %4986 = vmatpush1.msra.mxu0 0.0
        %4987 = vmatprep.subr.mxu0 0.0
        %4988 = vmatpush1.msra.mxu0 0.0
        %4989 = vmatprep.subr.mxu0 0.0
        %4990 = vmatpush1.msra.mxu0 0.0
        %4991 = vmatprep.subr.mxu0 0.0
        %4992 = vmatpush1.msra.mxu0 0.0
        %4993 = vmatprep.subr.mxu0 0.0
        %4994 = vmatpush1.msra.mxu0 0.0
        %4995 = vmatprep.subr.mxu0 0.0
        %4996 = vmatpush1.msra.mxu0 0.0
        %4997 = vmatprep.subr.mxu0 0.0
        %4998 = vmatpush1.msra.mxu0 0.0
        %4999 = vmatprep.subr.mxu0 0.0
        %5000 = vmatpush1.msra.mxu0 0.0
        %5001 = vmatprep.subr.mxu0 0.0
        %5002 = vmatpush1.msra.mxu0 0.0
        %5003 = vmatprep.subr.mxu0 0.0
        %5004 = vmatpush1.msra.mxu0 0.0
        %5005 = vmatprep.subr.mxu0 0.0
        %5006 = vmatpush1.msra.mxu0 0.0
        %5007 = vmatprep.subr.mxu0 0.0
        %5008 = vmatpush1.msra.mxu0 0.0
        %5009 = vmatprep.subr.mxu0 0.0
        %5010 = vmatpush1.msra.mxu0 0.0
        %5011 = vmatprep.subr.mxu0 0.0
        %5012 = vmatpush1.msra.mxu0 0.0
        %5013 = vmatprep.subr.mxu0 0.0
        %5014 = vmatpush1.msra.mxu0 0.0
        %5015 = vmatprep.subr.mxu0 0.0
        %5016 = vmatpush1.msra.mxu0 0.0
        %5017 = vmatprep.subr.mxu0 0.0
        %5018 = vmatpush1.msra.mxu0 0.0
        %5019 = vmatprep.subr.mxu0 0.0
        %5020 = vmatpush1.msra.mxu0 0.0
        %5021 = vmatprep.subr.mxu0 0.0
        %5022 = vmatpush1.msra.mxu0 0.0
        %5023 = vmatprep.subr.mxu0 0.0
        %5024 = vmatpush1.msra.mxu0 0.0
        %5025 = vmatprep.subr.mxu0 0.0
        %5026 = vmatpush1.msra.mxu0 0.0
        %5027 = vmatprep.subr.mxu0 0.0
        %5028 = vmatpush1.msra.mxu0 0.0
        %5029 = vmatprep.subr.mxu0 0.0
        %5030 = vmatpush1.msra.mxu0 0.0
        %5031 = vmatprep.subr.mxu0 0.0
        %5032 = vmatpush1.msra.mxu0 0.0
        %5033 = vmatprep.subr.mxu0 0.0
        %5034 = vmatpush1.msra.mxu0 0.0
        %5035 = vmatprep.subr.mxu0 0.0
        %5036 = vmatpush1.msra.mxu0 0.0
        %5037 = vmatprep.subr.mxu0 0.0
        %5038 = vmatpush1.msra.mxu0 0.0
        %5039 = vmatprep.subr.mxu0 0.0
        %5040 = vmatpush1.msra.mxu0 0.0
        %5041 = vmatprep.subr.mxu0 0.0
        %5042 = vmatpush1.msra.mxu0 0.0
        %5043 = vmatprep.subr.mxu0 0.0
        %5044 = vmatpush1.msra.mxu0 0.0
        %5045 = vmatprep.subr.mxu0 0.0
        %5046 = vmatpush1.msra.mxu0 0.0
        %5047 = vmatprep.mubr.f32.mxu0 0.0
        %v5048 = vand.u32 %v4887, 4294901760
        %5049 = vmatmul.mubr.f32.gmra.mrb[0].mxu0 %v5048
        %v5050 = vpop.f32.mrb[0].mxu0
        %v5051 = vadd.f32 %v4969, %v5050
        %v5052 = vpop.f32.mrb[0].mxu0
        %v5053 = vadd.f32 %v4971, %v5052
        %5054 = vdwg.mxu0
        %v5055 = vand.u32 %v4891, 4294901760
        %v5056 = vsub.f32 %v4891, %v5055
        %5057 = vmatprep.subr.mxu0 %v5056
        %v5058 = vand.u32 %v4889, 4294901760
        %v5059 = vsub.f32 %v4889, %v5058
        %5060 = vmatpush1.msra.mxu0 %v5059
        %5061 = vmatprep.subr.mxu0 0.0
        %5062 = vmatpush1.msra.mxu0 0.0
        %5063 = vmatprep.subr.mxu0 0.0
        %5064 = vmatpush1.msra.mxu0 0.0
        %5065 = vmatprep.subr.mxu0 0.0
        %5066 = vmatpush1.msra.mxu0 0.0
        %5067 = vmatprep.subr.mxu0 0.0
        %5068 = vmatpush1.msra.mxu0 0.0
        %5069 = vmatprep.subr.mxu0 0.0
        %5070 = vmatpush1.msra.mxu0 0.0
        %5071 = vmatprep.subr.mxu0 0.0
        %5072 = vmatpush1.msra.mxu0 0.0
        %5073 = vmatprep.subr.mxu0 0.0
        %5074 = vmatpush1.msra.mxu0 0.0
        %5075 = vmatprep.subr.mxu0 0.0
        %5076 = vmatpush1.msra.mxu0 0.0
        %5077 = vmatprep.subr.mxu0 0.0
        %5078 = vmatpush1.msra.mxu0 0.0
        %5079 = vmatprep.subr.mxu0 0.0
        %5080 = vmatpush1.msra.mxu0 0.0
        %5081 = vmatprep.subr.mxu0 0.0
        %5082 = vmatpush1.msra.mxu0 0.0
        %5083 = vmatprep.subr.mxu0 0.0
        %5084 = vmatpush1.msra.mxu0 0.0
        %5085 = vmatprep.subr.mxu0 0.0
        %5086 = vmatpush1.msra.mxu0 0.0
        %5087 = vmatprep.subr.mxu0 0.0
        %5088 = vmatpush1.msra.mxu0 0.0
        %5089 = vmatprep.subr.mxu0 0.0
        %5090 = vmatpush1.msra.mxu0 0.0
        %5091 = vmatprep.subr.mxu0 0.0
        %5092 = vmatpush1.msra.mxu0 0.0
        %5093 = vmatprep.subr.mxu0 0.0
        %5094 = vmatpush1.msra.mxu0 0.0
        %5095 = vmatprep.subr.mxu0 0.0
        %5096 = vmatpush1.msra.mxu0 0.0
        %5097 = vmatprep.subr.mxu0 0.0
        %5098 = vmatpush1.msra.mxu0 0.0
        %5099 = vmatprep.subr.mxu0 0.0
        %5100 = vmatpush1.msra.mxu0 0.0
        %5101 = vmatprep.subr.mxu0 0.0
        %5102 = vmatpush1.msra.mxu0 0.0
        %5103 = vmatprep.subr.mxu0 0.0
        %5104 = vmatpush1.msra.mxu0 0.0
        %5105 = vmatprep.subr.mxu0 0.0
        %5106 = vmatpush1.msra.mxu0 0.0
        %5107 = vmatprep.subr.mxu0 0.0
        %5108 = vmatpush1.msra.mxu0 0.0
        %5109 = vmatprep.subr.mxu0 0.0
        %5110 = vmatpush1.msra.mxu0 0.0
        %5111 = vmatprep.subr.mxu0 0.0
        %5112 = vmatpush1.msra.mxu0 0.0
        %5113 = vmatprep.subr.mxu0 0.0
        %5114 = vmatpush1.msra.mxu0 0.0
        %5115 = vmatprep.subr.mxu0 0.0
        %5116 = vmatpush1.msra.mxu0 0.0
        %5117 = vmatprep.subr.mxu0 0.0
        %5118 = vmatpush1.msra.mxu0 0.0
        %5119 = vmatprep.subr.mxu0 0.0
        %5120 = vmatpush1.msra.mxu0 0.0
        %5121 = vmatprep.subr.mxu0 0.0
        %5122 = vmatpush1.msra.mxu0 0.0
        %5123 = vmatprep.mubr.f32.mxu0 0.0
        %v5124 = vand.u32 %v4887, 4294901760
        %v5125 = vsub.f32 %v4887, %v5124
        %5126 = vmatmul.mubr.f32.gmra.mrb[0].mxu0 %v5125
        %v5127 = vpop.f32.mrb[0].mxu0
        %v5128 = vadd.f32 %v5051, %v5127
        %v5129 = vpop.f32.mrb[0].mxu0
        %v5130 = vadd.f32 %v5053, %v5129
        %5131 = vdwg.mxu0
        %v5132 = vand.u32 %v4891, 4294901760
        %5133 = vmatprep.subr.mxu0 %v5132
        %v5134 = vand.u32 %v4889, 4294901760
        %5135 = vmatpush1.msra.mxu0 %v5134
        %5136 = vmatprep.subr.mxu0 0.0
        %5137 = vmatpush1.msra.mxu0 0.0
        %5138 = vmatprep.subr.mxu0 0.0
        %5139 = vmatpush1.msra.mxu0 0.0
        %5140 = vmatprep.subr.mxu0 0.0
        %5141 = vmatpush1.msra.mxu0 0.0
        %5142 = vmatprep.subr.mxu0 0.0
        %5143 = vmatpush1.msra.mxu0 0.0
        %5144 = vmatprep.subr.mxu0 0.0
        %5145 = vmatpush1.msra.mxu0 0.0
        %5146 = vmatprep.subr.mxu0 0.0
        %5147 = vmatpush1.msra.mxu0 0.0
        %5148 = vmatprep.subr.mxu0 0.0
        %5149 = vmatpush1.msra.mxu0 0.0
        %5150 = vmatprep.subr.mxu0 0.0
        %5151 = vmatpush1.msra.mxu0 0.0
        %5152 = vmatprep.subr.mxu0 0.0
        %5153 = vmatpush1.msra.mxu0 0.0
        %5154 = vmatprep.subr.mxu0 0.0
        %5155 = vmatpush1.msra.mxu0 0.0
        %5156 = vmatprep.subr.mxu0 0.0
        %5157 = vmatpush1.msra.mxu0 0.0
        %5158 = vmatprep.subr.mxu0 0.0
        %5159 = vmatpush1.msra.mxu0 0.0
        %5160 = vmatprep.subr.mxu0 0.0
        %5161 = vmatpush1.msra.mxu0 0.0
        %5162 = vmatprep.subr.mxu0 0.0
        %5163 = vmatpush1.msra.mxu0 0.0
        %5164 = vmatprep.subr.mxu0 0.0
        %5165 = vmatpush1.msra.mxu0 0.0
        %5166 = vmatprep.subr.mxu0 0.0
        %5167 = vmatpush1.msra.mxu0 0.0
        %5168 = vmatprep.subr.mxu0 0.0
        %5169 = vmatpush1.msra.mxu0 0.0
        %5170 = vmatprep.subr.mxu0 0.0
        %5171 = vmatpush1.msra.mxu0 0.0
        %5172 = vmatprep.subr.mxu0 0.0
        %5173 = vmatpush1.msra.mxu0 0.0
        %5174 = vmatprep.subr.mxu0 0.0
        %5175 = vmatpush1.msra.mxu0 0.0
        %5176 = vmatprep.subr.mxu0 0.0
        %5177 = vmatpush1.msra.mxu0 0.0
        %5178 = vmatprep.subr.mxu0 0.0
        %5179 = vmatpush1.msra.mxu0 0.0
        %5180 = vmatprep.subr.mxu0 0.0
        %5181 = vmatpush1.msra.mxu0 0.0
        %5182 = vmatprep.subr.mxu0 0.0
        %5183 = vmatpush1.msra.mxu0 0.0
        %5184 = vmatprep.subr.mxu0 0.0
        %5185 = vmatpush1.msra.mxu0 0.0
        %5186 = vmatprep.subr.mxu0 0.0
        %5187 = vmatpush1.msra.mxu0 0.0
        %5188 = vmatprep.subr.mxu0 0.0
        %5189 = vmatpush1.msra.mxu0 0.0
        %5190 = vmatprep.subr.mxu0 0.0
        %5191 = vmatpush1.msra.mxu0 0.0
        %5192 = vmatprep.subr.mxu0 0.0
        %5193 = vmatpush1.msra.mxu0 0.0
        %5194 = vmatprep.subr.mxu0 0.0
        %5195 = vmatpush1.msra.mxu0 0.0
        %5196 = vmatprep.subr.mxu0 0.0
        %5197 = vmatpush1.msra.mxu0 0.0
        %5198 = vmatprep.mubr.f32.mxu0 0.0
        %v5199 = vand.u32 %v4887, 4294901760
        %v5200 = vsub.f32 %v4887, %v5199
        %v5201 = vand.u32 %v5200, 4294901760
        %5202 = vmatmul.mubr.f32.gmra.mrb[0].mxu0 %v5201
        %v5203 = vpop.f32.mrb[0].mxu0
        %v5204 = vadd.f32 %v5128, %v5203
        %v5205 = vpop.f32.mrb[0].mxu0
        %v5206 = vadd.f32 %v5130, %v5205
        %5207 = vdwg.mxu0
        %v5208 = vand.u32 %v4891, 4294901760
        %v5209 = vsub.f32 %v4891, %v5208
        %v5210 = vand.u32 %v5209, 4294901760
        %5211 = vmatprep.subr.mxu0 %v5210
        %v5212 = vand.u32 %v4889, 4294901760
        %v5213 = vsub.f32 %v4889, %v5212
        %v5214 = vand.u32 %v5213, 4294901760
        %5215 = vmatpush1.msra.mxu0 %v5214
        %5216 = vmatprep.subr.mxu0 0.0
        %5217 = vmatpush1.msra.mxu0 0.0
        %5218 = vmatprep.subr.mxu0 0.0
        %5219 = vmatpush1.msra.mxu0 0.0
        %5220 = vmatprep.subr.mxu0 0.0
        %5221 = vmatpush1.msra.mxu0 0.0
        %5222 = vmatprep.subr.mxu0 0.0
        %5223 = vmatpush1.msra.mxu0 0.0
        %5224 = vmatprep.subr.mxu0 0.0
        %5225 = vmatpush1.msra.mxu0 0.0
        %5226 = vmatprep.subr.mxu0 0.0
        %5227 = vmatpush1.msra.mxu0 0.0
        %5228 = vmatprep.subr.mxu0 0.0
        %5229 = vmatpush1.msra.mxu0 0.0
        %5230 = vmatprep.subr.mxu0 0.0
        %5231 = vmatpush1.msra.mxu0 0.0
        %5232 = vmatprep.subr.mxu0 0.0
        %5233 = vmatpush1.msra.mxu0 0.0
        %5234 = vmatprep.subr.mxu0 0.0
        %5235 = vmatpush1.msra.mxu0 0.0
        %5236 = vmatprep.subr.mxu0 0.0
        %5237 = vmatpush1.msra.mxu0 0.0
        %5238 = vmatprep.subr.mxu0 0.0
        %5239 = vmatpush1.msra.mxu0 0.0
        %5240 = vmatprep.subr.mxu0 0.0
        %5241 = vmatpush1.msra.mxu0 0.0
        %5242 = vmatprep.subr.mxu0 0.0
        %5243 = vmatpush1.msra.mxu0 0.0
        %5244 = vmatprep.subr.mxu0 0.0
        %5245 = vmatpush1.msra.mxu0 0.0
        %5246 = vmatprep.subr.mxu0 0.0
        %5247 = vmatpush1.msra.mxu0 0.0
        %5248 = vmatprep.subr.mxu0 0.0
        %5249 = vmatpush1.msra.mxu0 0.0
        %5250 = vmatprep.subr.mxu0 0.0
        %5251 = vmatpush1.msra.mxu0 0.0
        %5252 = vmatprep.subr.mxu0 0.0
        %5253 = vmatpush1.msra.mxu0 0.0
        %5254 = vmatprep.subr.mxu0 0.0
        %5255 = vmatpush1.msra.mxu0 0.0
        %5256 = vmatprep.subr.mxu0 0.0
        %5257 = vmatpush1.msra.mxu0 0.0
        %5258 = vmatprep.subr.mxu0 0.0
        %5259 = vmatpush1.msra.mxu0 0.0
        %5260 = vmatprep.subr.mxu0 0.0
        %5261 = vmatpush1.msra.mxu0 0.0
        %5262 = vmatprep.subr.mxu0 0.0
        %5263 = vmatpush1.msra.mxu0 0.0
        %5264 = vmatprep.subr.mxu0 0.0
        %5265 = vmatpush1.msra.mxu0 0.0
        %5266 = vmatprep.subr.mxu0 0.0
        %5267 = vmatpush1.msra.mxu0 0.0
        %5268 = vmatprep.subr.mxu0 0.0
        %5269 = vmatpush1.msra.mxu0 0.0
        %5270 = vmatprep.subr.mxu0 0.0
        %5271 = vmatpush1.msra.mxu0 0.0
        %5272 = vmatprep.subr.mxu0 0.0
        %5273 = vmatpush1.msra.mxu0 0.0
        %5274 = vmatprep.subr.mxu0 0.0
        %5275 = vmatpush1.msra.mxu0 0.0
        %5276 = vmatprep.subr.mxu0 0.0
        %5277 = vmatpush1.msra.mxu0 0.0
        %5278 = vmatprep.mubr.f32.mxu0 0.0
        %v5279 = vand.u32 %v4887, 4294901760
        %5280 = vmatmul.mubr.f32.gmra.mrb[0].mxu0 %v5279
        %v5281 = vpop.f32.mrb[0].mxu0
        %v5282 = vadd.f32 %v5204, %v5281
        %v5283 = vpop.f32.mrb[0].mxu0
        %v5284 = vadd.f32 %v5206, %v5283
        %5285 = vdwg.mxu0
        %v5286 = vand.u32 %v4891, 4294901760
        %5287 = vmatprep.subr.mxu0 %v5286
        %v5288 = vand.u32 %v4889, 4294901760
        %5289 = vmatpush1.msra.mxu0 %v5288
        %5290 = vmatprep.subr.mxu0 0.0
        %5291 = vmatpush1.msra.mxu0 0.0
        %5292 = vmatprep.subr.mxu0 0.0
        %5293 = vmatpush1.msra.mxu0 0.0
        %5294 = vmatprep.subr.mxu0 0.0
        %5295 = vmatpush1.msra.mxu0 0.0
        %5296 = vmatprep.subr.mxu0 0.0
        %5297 = vmatpush1.msra.mxu0 0.0
        %5298 = vmatprep.subr.mxu0 0.0
        %5299 = vmatpush1.msra.mxu0 0.0
        %5300 = vmatprep.subr.mxu0 0.0
        %5301 = vmatpush1.msra.mxu0 0.0
        %5302 = vmatprep.subr.mxu0 0.0
        %5303 = vmatpush1.msra.mxu0 0.0
        %5304 = vmatprep.subr.mxu0 0.0
        %5305 = vmatpush1.msra.mxu0 0.0
        %5306 = vmatprep.subr.mxu0 0.0
        %5307 = vmatpush1.msra.mxu0 0.0
        %5308 = vmatprep.subr.mxu0 0.0
        %5309 = vmatpush1.msra.mxu0 0.0
        %5310 = vmatprep.subr.mxu0 0.0
        %5311 = vmatpush1.msra.mxu0 0.0
        %5312 = vmatprep.subr.mxu0 0.0
        %5313 = vmatpush1.msra.mxu0 0.0
        %5314 = vmatprep.subr.mxu0 0.0
        %5315 = vmatpush1.msra.mxu0 0.0
        %5316 = vmatprep.subr.mxu0 0.0
        %5317 = vmatpush1.msra.mxu0 0.0
        %5318 = vmatprep.subr.mxu0 0.0
        %5319 = vmatpush1.msra.mxu0 0.0
        %5320 = vmatprep.subr.mxu0 0.0
        %5321 = vmatpush1.msra.mxu0 0.0
        %5322 = vmatprep.subr.mxu0 0.0
        %5323 = vmatpush1.msra.mxu0 0.0
        %5324 = vmatprep.subr.mxu0 0.0
        %5325 = vmatpush1.msra.mxu0 0.0
        %5326 = vmatprep.subr.mxu0 0.0
        %5327 = vmatpush1.msra.mxu0 0.0
        %5328 = vmatprep.subr.mxu0 0.0
        %5329 = vmatpush1.msra.mxu0 0.0
        %5330 = vmatprep.subr.mxu0 0.0
        %5331 = vmatpush1.msra.mxu0 0.0
        %5332 = vmatprep.subr.mxu0 0.0
        %5333 = vmatpush1.msra.mxu0 0.0
        %5334 = vmatprep.subr.mxu0 0.0
        %5335 = vmatpush1.msra.mxu0 0.0
        %5336 = vmatprep.subr.mxu0 0.0
        %5337 = vmatpush1.msra.mxu0 0.0
        %5338 = vmatprep.subr.mxu0 0.0
        %5339 = vmatpush1.msra.mxu0 0.0
        %5340 = vmatprep.subr.mxu0 0.0
        %5341 = vmatpush1.msra.mxu0 0.0
        %5342 = vmatprep.subr.mxu0 0.0
        %5343 = vmatpush1.msra.mxu0 0.0
        %5344 = vmatprep.subr.mxu0 0.0
        %5345 = vmatpush1.msra.mxu0 0.0
        %5346 = vmatprep.subr.mxu0 0.0
        %5347 = vmatpush1.msra.mxu0 0.0
        %5348 = vmatprep.subr.mxu0 0.0
        %5349 = vmatpush1.msra.mxu0 0.0
        %5350 = vmatprep.subr.mxu0 0.0
        %5351 = vmatpush1.msra.mxu0 0.0
        %5352 = vmatprep.mubr.f32.mxu0 0.0
        %v5353 = vand.u32 %v4887, 4294901760
        %5354 = vmatmul.mubr.f32.gmra.mrb[0].mxu0 %v5353
        %v5355 = vpop.f32.mrb[0].mxu0
        %v5356 = vadd.f32 %v5282, %v5355
        %v5357 = vpop.f32.mrb[0].mxu0
        %v5358 = vadd.f32 %v5284, %v5357
        %5359 = vdwg.mxu0
        %5360 = vmatprep.subr.mxu0 0.0
        %v5361 = vand.u32 %v4893, 4294901760
        %5362 = vmatpush1.msra.mxu0 %v5361
        %5363 = vmatprep.subr.mxu0 0.0
        %5364 = vmatpush1.msra.mxu0 0.0
        %5365 = vmatprep.subr.mxu0 0.0
        %5366 = vmatpush1.msra.mxu0 0.0
        %5367 = vmatprep.subr.mxu0 0.0
        %5368 = vmatpush1.msra.mxu0 0.0
        %5369 = vmatprep.subr.mxu0 0.0
        %5370 = vmatpush1.msra.mxu0 0.0
        %5371 = vmatprep.subr.mxu0 0.0
        %5372 = vmatpush1.msra.mxu0 0.0
        %5373 = vmatprep.subr.mxu0 0.0
        %5374 = vmatpush1.msra.mxu0 0.0
        %5375 = vmatprep.subr.mxu0 0.0
        %5376 = vmatpush1.msra.mxu0 0.0
        %5377 = vmatprep.subr.mxu0 0.0
        %5378 = vmatpush1.msra.mxu0 0.0
        %5379 = vmatprep.subr.mxu0 0.0
        %5380 = vmatpush1.msra.mxu0 0.0
        %5381 = vmatprep.subr.mxu0 0.0
        %5382 = vmatpush1.msra.mxu0 0.0
        %5383 = vmatprep.subr.mxu0 0.0
        %5384 = vmatpush1.msra.mxu0 0.0
        %5385 = vmatprep.subr.mxu0 0.0
        %5386 = vmatpush1.msra.mxu0 0.0
        %5387 = vmatprep.subr.mxu0 0.0
        %5388 = vmatpush1.msra.mxu0 0.0
        %5389 = vmatprep.subr.mxu0 0.0
        %5390 = vmatpush1.msra.mxu0 0.0
        %5391 = vmatprep.subr.mxu0 0.0
        %5392 = vmatpush1.msra.mxu0 0.0
        %5393 = vmatprep.subr.mxu0 0.0
        %5394 = vmatpush1.msra.mxu0 0.0
        %5395 = vmatprep.subr.mxu0 0.0
        %5396 = vmatpush1.msra.mxu0 0.0
        %5397 = vmatprep.subr.mxu0 0.0
        %5398 = vmatpush1.msra.mxu0 0.0
        %5399 = vmatprep.subr.mxu0 0.0
        %5400 = vmatpush1.msra.mxu0 0.0
        %5401 = vmatprep.subr.mxu0 0.0
        %5402 = vmatpush1.msra.mxu0 0.0
        %5403 = vmatprep.subr.mxu0 0.0
        %5404 = vmatpush1.msra.mxu0 0.0
        %5405 = vmatprep.subr.mxu0 0.0
        %5406 = vmatpush1.msra.mxu0 0.0
        %5407 = vmatprep.subr.mxu0 0.0
        %5408 = vmatpush1.msra.mxu0 0.0
        %5409 = vmatprep.subr.mxu0 0.0
        %5410 = vmatpush1.msra.mxu0 0.0
        %5411 = vmatprep.subr.mxu0 0.0
        %5412 = vmatpush1.msra.mxu0 0.0
        %5413 = vmatprep.subr.mxu0 0.0
        %5414 = vmatpush1.msra.mxu0 0.0
        %5415 = vmatprep.subr.mxu0 0.0
        %5416 = vmatpush1.msra.mxu0 0.0
        %5417 = vmatprep.subr.mxu0 0.0
        %5418 = vmatpush1.msra.mxu0 0.0
        %5419 = vmatprep.subr.mxu0 0.0
        %5420 = vmatpush1.msra.mxu0 0.0
        %5421 = vmatprep.subr.mxu0 0.0
        %5422 = vmatpush1.msra.mxu0 0.0
        %5423 = vmatprep.subr.mxu0 0.0
        %5424 = vmatpush1.msra.mxu0 0.0
        %5425 = vmatprep.mubr.f32.mxu0 0.0
        %v5426 = vand.u32 %v4887, 4294901760
        %v5427 = vsub.f32 %v4887, %v5426
        %v5428 = vand.u32 %v5427, 4294901760
        %v5429 = vsub.f32 %v5427, %v5428
        %v5430 = vand.u32 %v5429, 4294901760
        %5431 = vmatmul.mubr.f32.gmra.mrb[0].mxu0 %v5430
        %v5432 = vpop.f32.mrb[0].mxu0
        %v5433 = vadd.f32 0.0, %v5432
        %v5434 = vpop.f32.mrb[0].mxu0
        %5435 = vdwg.mxu0
        %5436 = vmatprep.subr.mxu0 0.0
        %v5437 = vand.u32 %v4893, 4294901760
        %v5438 = vsub.f32 %v4893, %v5437
        %v5439 = vand.u32 %v5438, 4294901760
        %v5440 = vsub.f32 %v5438, %v5439
        %v5441 = vand.u32 %v5440, 4294901760
        %5442 = vmatpush1.msra.mxu0 %v5441
        %5443 = vmatprep.subr.mxu0 0.0
        %5444 = vmatpush1.msra.mxu0 0.0
        %5445 = vmatprep.subr.mxu0 0.0
        %5446 = vmatpush1.msra.mxu0 0.0
        %5447 = vmatprep.subr.mxu0 0.0
        %5448 = vmatpush1.msra.mxu0 0.0
        %5449 = vmatprep.subr.mxu0 0.0
        %5450 = vmatpush1.msra.mxu0 0.0
        %5451 = vmatprep.subr.mxu0 0.0
        %5452 = vmatpush1.msra.mxu0 0.0
        %5453 = vmatprep.subr.mxu0 0.0
        %5454 = vmatpush1.msra.mxu0 0.0
        %5455 = vmatprep.subr.mxu0 0.0
        %5456 = vmatpush1.msra.mxu0 0.0
        %5457 = vmatprep.subr.mxu0 0.0
        %5458 = vmatpush1.msra.mxu0 0.0
        %5459 = vmatprep.subr.mxu0 0.0
        %5460 = vmatpush1.msra.mxu0 0.0
        %5461 = vmatprep.subr.mxu0 0.0
        %5462 = vmatpush1.msra.mxu0 0.0
        %5463 = vmatprep.subr.mxu0 0.0
        %5464 = vmatpush1.msra.mxu0 0.0
        %5465 = vmatprep.subr.mxu0 0.0
        %5466 = vmatpush1.msra.mxu0 0.0
        %5467 = vmatprep.subr.mxu0 0.0
        %5468 = vmatpush1.msra.mxu0 0.0
        %5469 = vmatprep.subr.mxu0 0.0
        %5470 = vmatpush1.msra.mxu0 0.0
        %5471 = vmatprep.subr.mxu0 0.0
        %5472 = vmatpush1.msra.mxu0 0.0
        %5473 = vmatprep.subr.mxu0 0.0
        %5474 = vmatpush1.msra.mxu0 0.0
        %5475 = vmatprep.subr.mxu0 0.0
        %5476 = vmatpush1.msra.mxu0 0.0
        %5477 = vmatprep.subr.mxu0 0.0
        %5478 = vmatpush1.msra.mxu0 0.0
        %5479 = vmatprep.subr.mxu0 0.0
        %5480 = vmatpush1.msra.mxu0 0.0
        %5481 = vmatprep.subr.mxu0 0.0
        %5482 = vmatpush1.msra.mxu0 0.0
        %5483 = vmatprep.subr.mxu0 0.0
        %5484 = vmatpush1.msra.mxu0 0.0
        %5485 = vmatprep.subr.mxu0 0.0
        %5486 = vmatpush1.msra.mxu0 0.0
        %5487 = vmatprep.subr.mxu0 0.0
        %5488 = vmatpush1.msra.mxu0 0.0
        %5489 = vmatprep.subr.mxu0 0.0
        %5490 = vmatpush1.msra.mxu0 0.0
        %5491 = vmatprep.subr.mxu0 0.0
        %5492 = vmatpush1.msra.mxu0 0.0
        %5493 = vmatprep.subr.mxu0 0.0
        %5494 = vmatpush1.msra.mxu0 0.0
        %5495 = vmatprep.subr.mxu0 0.0
        %5496 = vmatpush1.msra.mxu0 0.0
        %5497 = vmatprep.subr.mxu0 0.0
        %5498 = vmatpush1.msra.mxu0 0.0
        %5499 = vmatprep.subr.mxu0 0.0
        %5500 = vmatpush1.msra.mxu0 0.0
        %5501 = vmatprep.subr.mxu0 0.0
        %5502 = vmatpush1.msra.mxu0 0.0
        %5503 = vmatprep.subr.mxu0 0.0
        %5504 = vmatpush1.msra.mxu0 0.0
        %5505 = vmatprep.mubr.f32.mxu0 0.0
        %v5506 = vand.u32 %v4887, 4294901760
        %5507 = vmatmul.mubr.f32.gmra.mrb[0].mxu0 %v5506
        %v5508 = vpop.f32.mrb[0].mxu0
        %v5509 = vadd.f32 %v5433, %v5508
        %v5510 = vpop.f32.mrb[0].mxu0
        %5511 = vdwg.mxu0
        %5512 = vmatprep.subr.mxu0 0.0
        %v5513 = vand.u32 %v4893, 4294901760
        %v5514 = vsub.f32 %v4893, %v5513
        %5515 = vmatpush1.msra.mxu0 %v5514
        %5516 = vmatprep.subr.mxu0 0.0
        %5517 = vmatpush1.msra.mxu0 0.0
        %5518 = vmatprep.subr.mxu0 0.0
        %5519 = vmatpush1.msra.mxu0 0.0
        %5520 = vmatprep.subr.mxu0 0.0
        %5521 = vmatpush1.msra.mxu0 0.0
        %5522 = vmatprep.subr.mxu0 0.0
        %5523 = vmatpush1.msra.mxu0 0.0
        %5524 = vmatprep.subr.mxu0 0.0
        %5525 = vmatpush1.msra.mxu0 0.0
        %5526 = vmatprep.subr.mxu0 0.0
        %5527 = vmatpush1.msra.mxu0 0.0
        %5528 = vmatprep.subr.mxu0 0.0
        %5529 = vmatpush1.msra.mxu0 0.0
        %5530 = vmatprep.subr.mxu0 0.0
        %5531 = vmatpush1.msra.mxu0 0.0
        %5532 = vmatprep.subr.mxu0 0.0
        %5533 = vmatpush1.msra.mxu0 0.0
        %5534 = vmatprep.subr.mxu0 0.0
        %5535 = vmatpush1.msra.mxu0 0.0
        %5536 = vmatprep.subr.mxu0 0.0
        %5537 = vmatpush1.msra.mxu0 0.0
        %5538 = vmatprep.subr.mxu0 0.0
        %5539 = vmatpush1.msra.mxu0 0.0
        %5540 = vmatprep.subr.mxu0 0.0
        %5541 = vmatpush1.msra.mxu0 0.0
        %5542 = vmatprep.subr.mxu0 0.0
        %5543 = vmatpush1.msra.mxu0 0.0
        %5544 = vmatprep.subr.mxu0 0.0
        %5545 = vmatpush1.msra.mxu0 0.0
        %5546 = vmatprep.subr.mxu0 0.0
        %5547 = vmatpush1.msra.mxu0 0.0
        %5548 = vmatprep.subr.mxu0 0.0
        %5549 = vmatpush1.msra.mxu0 0.0
        %5550 = vmatprep.subr.mxu0 0.0
        %5551 = vmatpush1.msra.mxu0 0.0
        %5552 = vmatprep.subr.mxu0 0.0
        %5553 = vmatpush1.msra.mxu0 0.0
        %5554 = vmatprep.subr.mxu0 0.0
        %5555 = vmatpush1.msra.mxu0 0.0
        %5556 = vmatprep.subr.mxu0 0.0
        %5557 = vmatpush1.msra.mxu0 0.0
        %5558 = vmatprep.subr.mxu0 0.0
        %5559 = vmatpush1.msra.mxu0 0.0
        %5560 = vmatprep.subr.mxu0 0.0
        %5561 = vmatpush1.msra.mxu0 0.0
        %5562 = vmatprep.subr.mxu0 0.0
        %5563 = vmatpush1.msra.mxu0 0.0
        %5564 = vmatprep.subr.mxu0 0.0
        %5565 = vmatpush1.msra.mxu0 0.0
        %5566 = vmatprep.subr.mxu0 0.0
        %5567 = vmatpush1.msra.mxu0 0.0
        %5568 = vmatprep.subr.mxu0 0.0
        %5569 = vmatpush1.msra.mxu0 0.0
        %5570 = vmatprep.subr.mxu0 0.0
        %5571 = vmatpush1.msra.mxu0 0.0
        %5572 = vmatprep.subr.mxu0 0.0
        %5573 = vmatpush1.msra.mxu0 0.0
        %5574 = vmatprep.subr.mxu0 0.0
        %5575 = vmatpush1.msra.mxu0 0.0
        %5576 = vmatprep.subr.mxu0 0.0
        %5577 = vmatpush1.msra.mxu0 0.0
        %5578 = vmatprep.mubr.f32.mxu0 0.0
        %v5579 = vand.u32 %v4887, 4294901760
        %v5580 = vsub.f32 %v4887, %v5579
        %5581 = vmatmul.mubr.f32.gmra.mrb[0].mxu0 %v5580
        %v5582 = vpop.f32.mrb[0].mxu0
        %v5583 = vadd.f32 %v5509, %v5582
        %v5584 = vpop.f32.mrb[0].mxu0
        %5585 = vdwg.mxu0
        %5586 = vmatprep.subr.mxu0 0.0
        %v5587 = vand.u32 %v4893, 4294901760
        %5588 = vmatpush1.msra.mxu0 %v5587
        %5589 = vmatprep.subr.mxu0 0.0
        %5590 = vmatpush1.msra.mxu0 0.0
        %5591 = vmatprep.subr.mxu0 0.0
        %5592 = vmatpush1.msra.mxu0 0.0
        %5593 = vmatprep.subr.mxu0 0.0
        %5594 = vmatpush1.msra.mxu0 0.0
        %5595 = vmatprep.subr.mxu0 0.0
        %5596 = vmatpush1.msra.mxu0 0.0
        %5597 = vmatprep.subr.mxu0 0.0
        %5598 = vmatpush1.msra.mxu0 0.0
        %5599 = vmatprep.subr.mxu0 0.0
        %5600 = vmatpush1.msra.mxu0 0.0
        %5601 = vmatprep.subr.mxu0 0.0
        %5602 = vmatpush1.msra.mxu0 0.0
        %5603 = vmatprep.subr.mxu0 0.0
        %5604 = vmatpush1.msra.mxu0 0.0
        %5605 = vmatprep.subr.mxu0 0.0
        %5606 = vmatpush1.msra.mxu0 0.0
        %5607 = vmatprep.subr.mxu0 0.0
        %5608 = vmatpush1.msra.mxu0 0.0
        %5609 = vmatprep.subr.mxu0 0.0
        %5610 = vmatpush1.msra.mxu0 0.0
        %5611 = vmatprep.subr.mxu0 0.0
        %5612 = vmatpush1.msra.mxu0 0.0
        %5613 = vmatprep.subr.mxu0 0.0
        %5614 = vmatpush1.msra.mxu0 0.0
        %5615 = vmatprep.subr.mxu0 0.0
        %5616 = vmatpush1.msra.mxu0 0.0
        %5617 = vmatprep.subr.mxu0 0.0
        %5618 = vmatpush1.msra.mxu0 0.0
        %5619 = vmatprep.subr.mxu0 0.0
        %5620 = vmatpush1.msra.mxu0 0.0
        %5621 = vmatprep.subr.mxu0 0.0
        %5622 = vmatpush1.msra.mxu0 0.0
        %5623 = vmatprep.subr.mxu0 0.0
        %5624 = vmatpush1.msra.mxu0 0.0
        %5625 = vmatprep.subr.mxu0 0.0
        %5626 = vmatpush1.msra.mxu0 0.0
        %5627 = vmatprep.subr.mxu0 0.0
        %5628 = vmatpush1.msra.mxu0 0.0
        %5629 = vmatprep.subr.mxu0 0.0
        %5630 = vmatpush1.msra.mxu0 0.0
        %5631 = vmatprep.subr.mxu0 0.0
        %5632 = vmatpush1.msra.mxu0 0.0
        %5633 = vmatprep.subr.mxu0 0.0
        %5634 = vmatpush1.msra.mxu0 0.0
        %5635 = vmatprep.subr.mxu0 0.0
        %5636 = vmatpush1.msra.mxu0 0.0
        %5637 = vmatprep.subr.mxu0 0.0
        %5638 = vmatpush1.msra.mxu0 0.0
        %5639 = vmatprep.subr.mxu0 0.0
        %5640 = vmatpush1.msra.mxu0 0.0
        %5641 = vmatprep.subr.mxu0 0.0
        %5642 = vmatpush1.msra.mxu0 0.0
        %5643 = vmatprep.subr.mxu0 0.0
        %5644 = vmatpush1.msra.mxu0 0.0
        %5645 = vmatprep.subr.mxu0 0.0
        %5646 = vmatpush1.msra.mxu0 0.0
        %5647 = vmatprep.subr.mxu0 0.0
        %5648 = vmatpush1.msra.mxu0 0.0
        %5649 = vmatprep.subr.mxu0 0.0
        %5650 = vmatpush1.msra.mxu0 0.0
        %5651 = vmatprep.mubr.f32.mxu0 0.0
        %v5652 = vand.u32 %v4887, 4294901760
        %v5653 = vsub.f32 %v4887, %v5652
        %v5654 = vand.u32 %v5653, 4294901760
        %5655 = vmatmul.mubr.f32.gmra.mrb[0].mxu0 %v5654
        %v5656 = vpop.f32.mrb[0].mxu0
        %v5657 = vadd.f32 %v5583, %v5656
        %v5658 = vpop.f32.mrb[0].mxu0
        %5659 = vdwg.mxu0
        %5660 = vmatprep.subr.mxu0 0.0
        %v5661 = vand.u32 %v4893, 4294901760
        %v5662 = vsub.f32 %v4893, %v5661
        %v5663 = vand.u32 %v5662, 4294901760
        %5664 = vmatpush1.msra.mxu0 %v5663
        %5665 = vmatprep.subr.mxu0 0.0
        %5666 = vmatpush1.msra.mxu0 0.0
        %5667 = vmatprep.subr.mxu0 0.0
        %5668 = vmatpush1.msra.mxu0 0.0
        %5669 = vmatprep.subr.mxu0 0.0
        %5670 = vmatpush1.msra.mxu0 0.0
        %5671 = vmatprep.subr.mxu0 0.0
        %5672 = vmatpush1.msra.mxu0 0.0
        %5673 = vmatprep.subr.mxu0 0.0
        %5674 = vmatpush1.msra.mxu0 0.0
        %5675 = vmatprep.subr.mxu0 0.0
        %5676 = vmatpush1.msra.mxu0 0.0
        %5677 = vmatprep.subr.mxu0 0.0
        %5678 = vmatpush1.msra.mxu0 0.0
        %5679 = vmatprep.subr.mxu0 0.0
        %5680 = vmatpush1.msra.mxu0 0.0
        %5681 = vmatprep.subr.mxu0 0.0
        %5682 = vmatpush1.msra.mxu0 0.0
        %5683 = vmatprep.subr.mxu0 0.0
        %5684 = vmatpush1.msra.mxu0 0.0
        %5685 = vmatprep.subr.mxu0 0.0
        %5686 = vmatpush1.msra.mxu0 0.0
        %5687 = vmatprep.subr.mxu0 0.0
        %5688 = vmatpush1.msra.mxu0 0.0
        %5689 = vmatprep.subr.mxu0 0.0
        %5690 = vmatpush1.msra.mxu0 0.0
        %5691 = vmatprep.subr.mxu0 0.0
        %5692 = vmatpush1.msra.mxu0 0.0
        %5693 = vmatprep.subr.mxu0 0.0
        %5694 = vmatpush1.msra.mxu0 0.0
        %5695 = vmatprep.subr.mxu0 0.0
        %5696 = vmatpush1.msra.mxu0 0.0
        %5697 = vmatprep.subr.mxu0 0.0
        %5698 = vmatpush1.msra.mxu0 0.0
        %5699 = vmatprep.subr.mxu0 0.0
        %5700 = vmatpush1.msra.mxu0 0.0
        %5701 = vmatprep.subr.mxu0 0.0
        %5702 = vmatpush1.msra.mxu0 0.0
        %5703 = vmatprep.subr.mxu0 0.0
        %5704 = vmatpush1.msra.mxu0 0.0
        %5705 = vmatprep.subr.mxu0 0.0
        %5706 = vmatpush1.msra.mxu0 0.0
        %5707 = vmatprep.subr.mxu0 0.0
        %5708 = vmatpush1.msra.mxu0 0.0
        %5709 = vmatprep.subr.mxu0 0.0
        %5710 = vmatpush1.msra.mxu0 0.0
        %5711 = vmatprep.subr.mxu0 0.0
        %5712 = vmatpush1.msra.mxu0 0.0
        %5713 = vmatprep.subr.mxu0 0.0
        %5714 = vmatpush1.msra.mxu0 0.0
        %5715 = vmatprep.subr.mxu0 0.0
        %5716 = vmatpush1.msra.mxu0 0.0
        %5717 = vmatprep.subr.mxu0 0.0
        %5718 = vmatpush1.msra.mxu0 0.0
        %5719 = vmatprep.subr.mxu0 0.0
        %5720 = vmatpush1.msra.mxu0 0.0
        %5721 = vmatprep.subr.mxu0 0.0
        %5722 = vmatpush1.msra.mxu0 0.0
        %5723 = vmatprep.subr.mxu0 0.0
        %5724 = vmatpush1.msra.mxu0 0.0
        %5725 = vmatprep.subr.mxu0 0.0
        %5726 = vmatpush1.msra.mxu0 0.0
        %5727 = vmatprep.mubr.f32.mxu0 0.0
        %v5728 = vand.u32 %v4887, 4294901760
        %5729 = vmatmul.mubr.f32.gmra.mrb[0].mxu0 %v5728
        %v5730 = vpop.f32.mrb[0].mxu0
        %v5731 = vadd.f32 %v5657, %v5730
        %v5732 = vpop.f32.mrb[0].mxu0
        %5733 = vdwg.mxu0
        %5734 = vmatprep.subr.mxu0 0.0
        %v5735 = vand.u32 %v4893, 4294901760
        %5736 = vmatpush1.msra.mxu0 %v5735
        %5737 = vmatprep.subr.mxu0 0.0
        %5738 = vmatpush1.msra.mxu0 0.0
        %5739 = vmatprep.subr.mxu0 0.0
        %5740 = vmatpush1.msra.mxu0 0.0
        %5741 = vmatprep.subr.mxu0 0.0
        %5742 = vmatpush1.msra.mxu0 0.0
        %5743 = vmatprep.subr.mxu0 0.0
        %5744 = vmatpush1.msra.mxu0 0.0
        %5745 = vmatprep.subr.mxu0 0.0
        %5746 = vmatpush1.msra.mxu0 0.0
        %5747 = vmatprep.subr.mxu0 0.0
        %5748 = vmatpush1.msra.mxu0 0.0
        %5749 = vmatprep.subr.mxu0 0.0
        %5750 = vmatpush1.msra.mxu0 0.0
        %5751 = vmatprep.subr.mxu0 0.0
        %5752 = vmatpush1.msra.mxu0 0.0
        %5753 = vmatprep.subr.mxu0 0.0
        %5754 = vmatpush1.msra.mxu0 0.0
        %5755 = vmatprep.subr.mxu0 0.0
        %5756 = vmatpush1.msra.mxu0 0.0
        %5757 = vmatprep.subr.mxu0 0.0
        %5758 = vmatpush1.msra.mxu0 0.0
        %5759 = vmatprep.subr.mxu0 0.0
        %5760 = vmatpush1.msra.mxu0 0.0
        %5761 = vmatprep.subr.mxu0 0.0
        %5762 = vmatpush1.msra.mxu0 0.0
        %5763 = vmatprep.subr.mxu0 0.0
        %5764 = vmatpush1.msra.mxu0 0.0
        %5765 = vmatprep.subr.mxu0 0.0
        %5766 = vmatpush1.msra.mxu0 0.0
        %5767 = vmatprep.subr.mxu0 0.0
        %5768 = vmatpush1.msra.mxu0 0.0
        %5769 = vmatprep.subr.mxu0 0.0
        %5770 = vmatpush1.msra.mxu0 0.0
        %5771 = vmatprep.subr.mxu0 0.0
        %5772 = vmatpush1.msra.mxu0 0.0
        %5773 = vmatprep.subr.mxu0 0.0
        %5774 = vmatpush1.msra.mxu0 0.0
        %5775 = vmatprep.subr.mxu0 0.0
        %5776 = vmatpush1.msra.mxu0 0.0
        %5777 = vmatprep.subr.mxu0 0.0
        %5778 = vmatpush1.msra.mxu0 0.0
        %5779 = vmatprep.subr.mxu0 0.0
        %5780 = vmatpush1.msra.mxu0 0.0
        %5781 = vmatprep.subr.mxu0 0.0
        %5782 = vmatpush1.msra.mxu0 0.0
        %5783 = vmatprep.subr.mxu0 0.0
        %5784 = vmatpush1.msra.mxu0 0.0
        %5785 = vmatprep.subr.mxu0 0.0
        %5786 = vmatpush1.msra.mxu0 0.0
        %5787 = vmatprep.subr.mxu0 0.0
        %5788 = vmatpush1.msra.mxu0 0.0
        %5789 = vmatprep.subr.mxu0 0.0
        %5790 = vmatpush1.msra.mxu0 0.0
        %5791 = vmatprep.subr.mxu0 0.0
        %5792 = vmatpush1.msra.mxu0 0.0
        %5793 = vmatprep.subr.mxu0 0.0
        %5794 = vmatpush1.msra.mxu0 0.0
        %5795 = vmatprep.subr.mxu0 0.0
        %5796 = vmatpush1.msra.mxu0 0.0
        %5797 = vmatprep.subr.mxu0 0.0
        %5798 = vmatpush1.msra.mxu0 0.0
        %5799 = vmatprep.mubr.f32.mxu0 0.0
        %v5800 = vand.u32 %v4887, 4294901760
        %5801 = vmatmul.mubr.f32.gmra.mrb[0].mxu0 %v5800
        %v5802 = vpop.f32.mrb[0].mxu0
        %v5803 = vadd.f32 %v5731, %v5802
        %v5804 = vpop.f32.mrb[0].mxu0
        %5805 = vdwg.mxu0
        %v5806 = vadd.f32 %v4863, %v5356
        %v5807 = vadd.f32 %v4864, %v5358
        %v5808 = vadd.f32 %v4865, %v5803
        %v5809 = vld [vmem:[%s168] sm:$0xff]
        %v5810 = vld [vmem:[%s168 + $0x8] sm:$0xff]
        %s5811 = scalar_lea.vmem %s1, 48
        %v5812 = vld [vmem:[%s5811] sm:$0xff]
        %v5815 = vcombine.high %v5809, %v5809
        %v5816 = vcombine.high %v5810, %v5810
        %5817 = vrot.lane.b32.xlu0 %v5809, 92
        %v5818 = vpop.permute.xlu0 %5817
        %5819 = vrot.lane.b32.xlu0 %v5815, 92
        %v5820 = vpop.permute.xlu0 %5819
        %5821 = vrot.lane.b32.xlu0 %v5810, 92
        %v5822 = vpop.permute.xlu0 %5821
        %5823 = vrot.lane.b32.xlu0 %v5816, 92
        %v5824 = vpop.permute.xlu0 %5823
        %vm5825 = vcmask 752640
        %v5826 = vsel %vm5825, %v5818, %v5820
        %v5827 = vsel %vm5825, %v5820, %v5822
        %v5828 = vsel %vm5825, %v5822, %v5824
        %v5830 = vsel %vm192, %v5812, 0
        %v5832 = vsel %vm196, %v5826, 0
        %v5834 = vsel %vm196, %v5827, 0
        %v5836 = vsel %vm196, %v5828, 0
        %v5838 = vand.u32 %v5834, 4294901760
        %5839 = vmatprep.subr.mxu0 %v5838
        %v5840 = vand.u32 %v5832, 4294901760
        %5841 = vmatpush1.msra.mxu0 %v5840
        %5842 = vmatprep.subr.mxu0 0.0
        %5843 = vmatpush1.msra.mxu0 0.0
        %5844 = vmatprep.subr.mxu0 0.0
        %5845 = vmatpush1.msra.mxu0 0.0
        %5846 = vmatprep.subr.mxu0 0.0
        %5847 = vmatpush1.msra.mxu0 0.0
        %5848 = vmatprep.subr.mxu0 0.0
        %5849 = vmatpush1.msra.mxu0 0.0
        %5850 = vmatprep.subr.mxu0 0.0
        %5851 = vmatpush1.msra.mxu0 0.0
        %5852 = vmatprep.subr.mxu0 0.0
        %5853 = vmatpush1.msra.mxu0 0.0
        %5854 = vmatprep.subr.mxu0 0.0
        %5855 = vmatpush1.msra.mxu0 0.0
        %5856 = vmatprep.subr.mxu0 0.0
        %5857 = vmatpush1.msra.mxu0 0.0
        %5858 = vmatprep.subr.mxu0 0.0
        %5859 = vmatpush1.msra.mxu0 0.0
        %5860 = vmatprep.subr.mxu0 0.0
        %5861 = vmatpush1.msra.mxu0 0.0
        %5862 = vmatprep.subr.mxu0 0.0
        %5863 = vmatpush1.msra.mxu0 0.0
        %5864 = vmatprep.subr.mxu0 0.0
        %5865 = vmatpush1.msra.mxu0 0.0
        %5866 = vmatprep.subr.mxu0 0.0
        %5867 = vmatpush1.msra.mxu0 0.0
        %5868 = vmatprep.subr.mxu0 0.0
        %5869 = vmatpush1.msra.mxu0 0.0
        %5870 = vmatprep.subr.mxu0 0.0
        %5871 = vmatpush1.msra.mxu0 0.0
        %5872 = vmatprep.subr.mxu0 0.0
        %5873 = vmatpush1.msra.mxu0 0.0
        %5874 = vmatprep.subr.mxu0 0.0
        %5875 = vmatpush1.msra.mxu0 0.0
        %5876 = vmatprep.subr.mxu0 0.0
        %5877 = vmatpush1.msra.mxu0 0.0
        %5878 = vmatprep.subr.mxu0 0.0
        %5879 = vmatpush1.msra.mxu0 0.0
        %5880 = vmatprep.subr.mxu0 0.0
        %5881 = vmatpush1.msra.mxu0 0.0
        %5882 = vmatprep.subr.mxu0 0.0
        %5883 = vmatpush1.msra.mxu0 0.0
        %5884 = vmatprep.subr.mxu0 0.0
        %5885 = vmatpush1.msra.mxu0 0.0
        %5886 = vmatprep.subr.mxu0 0.0
        %5887 = vmatpush1.msra.mxu0 0.0
        %5888 = vmatprep.subr.mxu0 0.0
        %5889 = vmatpush1.msra.mxu0 0.0
        %5890 = vmatprep.subr.mxu0 0.0
        %5891 = vmatpush1.msra.mxu0 0.0
        %5892 = vmatprep.subr.mxu0 0.0
        %5893 = vmatpush1.msra.mxu0 0.0
        %5894 = vmatprep.subr.mxu0 0.0
        %5895 = vmatpush1.msra.mxu0 0.0
        %5896 = vmatprep.subr.mxu0 0.0
        %5897 = vmatpush1.msra.mxu0 0.0
        %5898 = vmatprep.subr.mxu0 0.0
        %5899 = vmatpush1.msra.mxu0 0.0
        %5900 = vmatprep.subr.mxu0 0.0
        %5901 = vmatpush1.msra.mxu0 0.0
        %5902 = vmatprep.subr.mxu0 0.0
        %5903 = vmatpush1.msra.mxu0 0.0
        %5904 = vmatprep.mubr.f32.mxu0 0.0
        %v5905 = vand.u32 %v5830, 4294901760
        %v5906 = vsub.f32 %v5830, %v5905
        %v5907 = vand.u32 %v5906, 4294901760
        %v5908 = vsub.f32 %v5906, %v5907
        %v5909 = vand.u32 %v5908, 4294901760
        %5910 = vmatmul.mubr.f32.gmra.mrb[0].mxu0 %v5909
        %v5911 = vpop.f32.mrb[0].mxu0
        %v5912 = vadd.f32 0.0, %v5911
        %v5913 = vpop.f32.mrb[0].mxu0
        %v5914 = vadd.f32 0.0, %v5913
        %5915 = vdwg.mxu0
        %v5916 = vand.u32 %v5834, 4294901760
        %v5917 = vsub.f32 %v5834, %v5916
        %v5918 = vand.u32 %v5917, 4294901760
        %v5919 = vsub.f32 %v5917, %v5918
        %v5920 = vand.u32 %v5919, 4294901760
        %5921 = vmatprep.subr.mxu0 %v5920
        %v5922 = vand.u32 %v5832, 4294901760
        %v5923 = vsub.f32 %v5832, %v5922
        %v5924 = vand.u32 %v5923, 4294901760
        %v5925 = vsub.f32 %v5923, %v5924
        %v5926 = vand.u32 %v5925, 4294901760
        %5927 = vmatpush1.msra.mxu0 %v5926
        %5928 = vmatprep.subr.mxu0 0.0
        %5929 = vmatpush1.msra.mxu0 0.0
        %5930 = vmatprep.subr.mxu0 0.0
        %5931 = vmatpush1.msra.mxu0 0.0
        %5932 = vmatprep.subr.mxu0 0.0
        %5933 = vmatpush1.msra.mxu0 0.0
        %5934 = vmatprep.subr.mxu0 0.0
        %5935 = vmatpush1.msra.mxu0 0.0
        %5936 = vmatprep.subr.mxu0 0.0
        %5937 = vmatpush1.msra.mxu0 0.0
        %5938 = vmatprep.subr.mxu0 0.0
        %5939 = vmatpush1.msra.mxu0 0.0
        %5940 = vmatprep.subr.mxu0 0.0
        %5941 = vmatpush1.msra.mxu0 0.0
        %5942 = vmatprep.subr.mxu0 0.0
        %5943 = vmatpush1.msra.mxu0 0.0
        %5944 = vmatprep.subr.mxu0 0.0
        %5945 = vmatpush1.msra.mxu0 0.0
        %5946 = vmatprep.subr.mxu0 0.0
        %5947 = vmatpush1.msra.mxu0 0.0
        %5948 = vmatprep.subr.mxu0 0.0
        %5949 = vmatpush1.msra.mxu0 0.0
        %5950 = vmatprep.subr.mxu0 0.0
        %5951 = vmatpush1.msra.mxu0 0.0
        %5952 = vmatprep.subr.mxu0 0.0
        %5953 = vmatpush1.msra.mxu0 0.0
        %5954 = vmatprep.subr.mxu0 0.0
        %5955 = vmatpush1.msra.mxu0 0.0
        %5956 = vmatprep.subr.mxu0 0.0
        %5957 = vmatpush1.msra.mxu0 0.0
        %5958 = vmatprep.subr.mxu0 0.0
        %5959 = vmatpush1.msra.mxu0 0.0
        %5960 = vmatprep.subr.mxu0 0.0
        %5961 = vmatpush1.msra.mxu0 0.0
        %5962 = vmatprep.subr.mxu0 0.0
        %5963 = vmatpush1.msra.mxu0 0.0
        %5964 = vmatprep.subr.mxu0 0.0
        %5965 = vmatpush1.msra.mxu0 0.0
        %5966 = vmatprep.subr.mxu0 0.0
        %5967 = vmatpush1.msra.mxu0 0.0
        %5968 = vmatprep.subr.mxu0 0.0
        %5969 = vmatpush1.msra.mxu0 0.0
        %5970 = vmatprep.subr.mxu0 0.0
        %5971 = vmatpush1.msra.mxu0 0.0
        %5972 = vmatprep.subr.mxu0 0.0
        %5973 = vmatpush1.msra.mxu0 0.0
        %5974 = vmatprep.subr.mxu0 0.0
        %5975 = vmatpush1.msra.mxu0 0.0
        %5976 = vmatprep.subr.mxu0 0.0
        %5977 = vmatpush1.msra.mxu0 0.0
        %5978 = vmatprep.subr.mxu0 0.0
        %5979 = vmatpush1.msra.mxu0 0.0
        %5980 = vmatprep.subr.mxu0 0.0
        %5981 = vmatpush1.msra.mxu0 0.0
        %5982 = vmatprep.subr.mxu0 0.0
        %5983 = vmatpush1.msra.mxu0 0.0
        %5984 = vmatprep.subr.mxu0 0.0
        %5985 = vmatpush1.msra.mxu0 0.0
        %5986 = vmatprep.subr.mxu0 0.0
        %5987 = vmatpush1.msra.mxu0 0.0
        %5988 = vmatprep.subr.mxu0 0.0
        %5989 = vmatpush1.msra.mxu0 0.0
        %5990 = vmatprep.mubr.f32.mxu0 0.0
        %v5991 = vand.u32 %v5830, 4294901760
        %5992 = vmatmul.mubr.f32.gmra.mrb[0].mxu0 %v5991
        %v5993 = vpop.f32.mrb[0].mxu0
        %v5994 = vadd.f32 %v5912, %v5993
        %v5995 = vpop.f32.mrb[0].mxu0
        %v5996 = vadd.f32 %v5914, %v5995
        %5997 = vdwg.mxu0
        %v5998 = vand.u32 %v5834, 4294901760
        %v5999 = vsub.f32 %v5834, %v5998
        %6000 = vmatprep.subr.mxu0 %v5999
        %v6001 = vand.u32 %v5832, 4294901760
        %v6002 = vsub.f32 %v5832, %v6001
        %6003 = vmatpush1.msra.mxu0 %v6002
        %6004 = vmatprep.subr.mxu0 0.0
        %6005 = vmatpush1.msra.mxu0 0.0
        %6006 = vmatprep.subr.mxu0 0.0
        %6007 = vmatpush1.msra.mxu0 0.0
        %6008 = vmatprep.subr.mxu0 0.0
        %6009 = vmatpush1.msra.mxu0 0.0
        %6010 = vmatprep.subr.mxu0 0.0
        %6011 = vmatpush1.msra.mxu0 0.0
        %6012 = vmatprep.subr.mxu0 0.0
        %6013 = vmatpush1.msra.mxu0 0.0
        %6014 = vmatprep.subr.mxu0 0.0
        %6015 = vmatpush1.msra.mxu0 0.0
        %6016 = vmatprep.subr.mxu0 0.0
        %6017 = vmatpush1.msra.mxu0 0.0
        %6018 = vmatprep.subr.mxu0 0.0
        %6019 = vmatpush1.msra.mxu0 0.0
        %6020 = vmatprep.subr.mxu0 0.0
        %6021 = vmatpush1.msra.mxu0 0.0
        %6022 = vmatprep.subr.mxu0 0.0
        %6023 = vmatpush1.msra.mxu0 0.0
        %6024 = vmatprep.subr.mxu0 0.0
        %6025 = vmatpush1.msra.mxu0 0.0
        %6026 = vmatprep.subr.mxu0 0.0
        %6027 = vmatpush1.msra.mxu0 0.0
        %6028 = vmatprep.subr.mxu0 0.0
        %6029 = vmatpush1.msra.mxu0 0.0
        %6030 = vmatprep.subr.mxu0 0.0
        %6031 = vmatpush1.msra.mxu0 0.0
        %6032 = vmatprep.subr.mxu0 0.0
        %6033 = vmatpush1.msra.mxu0 0.0
        %6034 = vmatprep.subr.mxu0 0.0
        %6035 = vmatpush1.msra.mxu0 0.0
        %6036 = vmatprep.subr.mxu0 0.0
        %6037 = vmatpush1.msra.mxu0 0.0
        %6038 = vmatprep.subr.mxu0 0.0
        %6039 = vmatpush1.msra.mxu0 0.0
        %6040 = vmatprep.subr.mxu0 0.0
        %6041 = vmatpush1.msra.mxu0 0.0
        %6042 = vmatprep.subr.mxu0 0.0
        %6043 = vmatpush1.msra.mxu0 0.0
        %6044 = vmatprep.subr.mxu0 0.0
        %6045 = vmatpush1.msra.mxu0 0.0
        %6046 = vmatprep.subr.mxu0 0.0
        %6047 = vmatpush1.msra.mxu0 0.0
        %6048 = vmatprep.subr.mxu0 0.0
        %6049 = vmatpush1.msra.mxu0 0.0
        %6050 = vmatprep.subr.mxu0 0.0
        %6051 = vmatpush1.msra.mxu0 0.0
        %6052 = vmatprep.subr.mxu0 0.0
        %6053 = vmatpush1.msra.mxu0 0.0
        %6054 = vmatprep.subr.mxu0 0.0
        %6055 = vmatpush1.msra.mxu0 0.0
        %6056 = vmatprep.subr.mxu0 0.0
        %6057 = vmatpush1.msra.mxu0 0.0
        %6058 = vmatprep.subr.mxu0 0.0
        %6059 = vmatpush1.msra.mxu0 0.0
        %6060 = vmatprep.subr.mxu0 0.0
        %6061 = vmatpush1.msra.mxu0 0.0
        %6062 = vmatprep.subr.mxu0 0.0
        %6063 = vmatpush1.msra.mxu0 0.0
        %6064 = vmatprep.subr.mxu0 0.0
        %6065 = vmatpush1.msra.mxu0 0.0
        %6066 = vmatprep.mubr.f32.mxu0 0.0
        %v6067 = vand.u32 %v5830, 4294901760
        %v6068 = vsub.f32 %v5830, %v6067
        %6069 = vmatmul.mubr.f32.gmra.mrb[0].mxu0 %v6068
        %v6070 = vpop.f32.mrb[0].mxu0
        %v6071 = vadd.f32 %v5994, %v6070
        %v6072 = vpop.f32.mrb[0].mxu0
        %v6073 = vadd.f32 %v5996, %v6072
        %6074 = vdwg.mxu0
        %v6075 = vand.u32 %v5834, 4294901760
        %6076 = vmatprep.subr.mxu0 %v6075
        %v6077 = vand.u32 %v5832, 4294901760
        %6078 = vmatpush1.msra.mxu0 %v6077
        %6079 = vmatprep.subr.mxu0 0.0
        %6080 = vmatpush1.msra.mxu0 0.0
        %6081 = vmatprep.subr.mxu0 0.0
        %6082 = vmatpush1.msra.mxu0 0.0
        %6083 = vmatprep.subr.mxu0 0.0
        %6084 = vmatpush1.msra.mxu0 0.0
        %6085 = vmatprep.subr.mxu0 0.0
        %6086 = vmatpush1.msra.mxu0 0.0
        %6087 = vmatprep.subr.mxu0 0.0
        %6088 = vmatpush1.msra.mxu0 0.0
        %6089 = vmatprep.subr.mxu0 0.0
        %6090 = vmatpush1.msra.mxu0 0.0
        %6091 = vmatprep.subr.mxu0 0.0
        %6092 = vmatpush1.msra.mxu0 0.0
        %6093 = vmatprep.subr.mxu0 0.0
        %6094 = vmatpush1.msra.mxu0 0.0
        %6095 = vmatprep.subr.mxu0 0.0
        %6096 = vmatpush1.msra.mxu0 0.0
        %6097 = vmatprep.subr.mxu0 0.0
        %6098 = vmatpush1.msra.mxu0 0.0
        %6099 = vmatprep.subr.mxu0 0.0
        %6100 = vmatpush1.msra.mxu0 0.0
        %6101 = vmatprep.subr.mxu0 0.0
        %6102 = vmatpush1.msra.mxu0 0.0
        %6103 = vmatprep.subr.mxu0 0.0
        %6104 = vmatpush1.msra.mxu0 0.0
        %6105 = vmatprep.subr.mxu0 0.0
        %6106 = vmatpush1.msra.mxu0 0.0
        %6107 = vmatprep.subr.mxu0 0.0
        %6108 = vmatpush1.msra.mxu0 0.0
        %6109 = vmatprep.subr.mxu0 0.0
        %6110 = vmatpush1.msra.mxu0 0.0
        %6111 = vmatprep.subr.mxu0 0.0
        %6112 = vmatpush1.msra.mxu0 0.0
        %6113 = vmatprep.subr.mxu0 0.0
        %6114 = vmatpush1.msra.mxu0 0.0
        %6115 = vmatprep.subr.mxu0 0.0
        %6116 = vmatpush1.msra.mxu0 0.0
        %6117 = vmatprep.subr.mxu0 0.0
        %6118 = vmatpush1.msra.mxu0 0.0
        %6119 = vmatprep.subr.mxu0 0.0
        %6120 = vmatpush1.msra.mxu0 0.0
        %6121 = vmatprep.subr.mxu0 0.0
        %6122 = vmatpush1.msra.mxu0 0.0
        %6123 = vmatprep.subr.mxu0 0.0
        %6124 = vmatpush1.msra.mxu0 0.0
        %6125 = vmatprep.subr.mxu0 0.0
        %6126 = vmatpush1.msra.mxu0 0.0
        %6127 = vmatprep.subr.mxu0 0.0
        %6128 = vmatpush1.msra.mxu0 0.0
        %6129 = vmatprep.subr.mxu0 0.0
        %6130 = vmatpush1.msra.mxu0 0.0
        %6131 = vmatprep.subr.mxu0 0.0
        %6132 = vmatpush1.msra.mxu0 0.0
        %6133 = vmatprep.subr.mxu0 0.0
        %6134 = vmatpush1.msra.mxu0 0.0
        %6135 = vmatprep.subr.mxu0 0.0
        %6136 = vmatpush1.msra.mxu0 0.0
        %6137 = vmatprep.subr.mxu0 0.0
        %6138 = vmatpush1.msra.mxu0 0.0
        %6139 = vmatprep.subr.mxu0 0.0
        %6140 = vmatpush1.msra.mxu0 0.0
        %6141 = vmatprep.mubr.f32.mxu0 0.0
        %v6142 = vand.u32 %v5830, 4294901760
        %v6143 = vsub.f32 %v5830, %v6142
        %v6144 = vand.u32 %v6143, 4294901760
        %6145 = vmatmul.mubr.f32.gmra.mrb[0].mxu0 %v6144
        %v6146 = vpop.f32.mrb[0].mxu0
        %v6147 = vadd.f32 %v6071, %v6146
        %v6148 = vpop.f32.mrb[0].mxu0
        %v6149 = vadd.f32 %v6073, %v6148
        %6150 = vdwg.mxu0
        %v6151 = vand.u32 %v5834, 4294901760
        %v6152 = vsub.f32 %v5834, %v6151
        %v6153 = vand.u32 %v6152, 4294901760
        %6154 = vmatprep.subr.mxu0 %v6153
        %v6155 = vand.u32 %v5832, 4294901760
        %v6156 = vsub.f32 %v5832, %v6155
        %v6157 = vand.u32 %v6156, 4294901760
        %6158 = vmatpush1.msra.mxu0 %v6157
        %6159 = vmatprep.subr.mxu0 0.0
        %6160 = vmatpush1.msra.mxu0 0.0
        %6161 = vmatprep.subr.mxu0 0.0
        %6162 = vmatpush1.msra.mxu0 0.0
        %6163 = vmatprep.subr.mxu0 0.0
        %6164 = vmatpush1.msra.mxu0 0.0
        %6165 = vmatprep.subr.mxu0 0.0
        %6166 = vmatpush1.msra.mxu0 0.0
        %6167 = vmatprep.subr.mxu0 0.0
        %6168 = vmatpush1.msra.mxu0 0.0
        %6169 = vmatprep.subr.mxu0 0.0
        %6170 = vmatpush1.msra.mxu0 0.0
        %6171 = vmatprep.subr.mxu0 0.0
        %6172 = vmatpush1.msra.mxu0 0.0
        %6173 = vmatprep.subr.mxu0 0.0
        %6174 = vmatpush1.msra.mxu0 0.0
        %6175 = vmatprep.subr.mxu0 0.0
        %6176 = vmatpush1.msra.mxu0 0.0
        %6177 = vmatprep.subr.mxu0 0.0
        %6178 = vmatpush1.msra.mxu0 0.0
        %6179 = vmatprep.subr.mxu0 0.0
        %6180 = vmatpush1.msra.mxu0 0.0
        %6181 = vmatprep.subr.mxu0 0.0
        %6182 = vmatpush1.msra.mxu0 0.0
        %6183 = vmatprep.subr.mxu0 0.0
        %6184 = vmatpush1.msra.mxu0 0.0
        %6185 = vmatprep.subr.mxu0 0.0
        %6186 = vmatpush1.msra.mxu0 0.0
        %6187 = vmatprep.subr.mxu0 0.0
        %6188 = vmatpush1.msra.mxu0 0.0
        %6189 = vmatprep.subr.mxu0 0.0
        %6190 = vmatpush1.msra.mxu0 0.0
        %6191 = vmatprep.subr.mxu0 0.0
        %6192 = vmatpush1.msra.mxu0 0.0
        %6193 = vmatprep.subr.mxu0 0.0
        %6194 = vmatpush1.msra.mxu0 0.0
        %6195 = vmatprep.subr.mxu0 0.0
        %6196 = vmatpush1.msra.mxu0 0.0
        %6197 = vmatprep.subr.mxu0 0.0
        %6198 = vmatpush1.msra.mxu0 0.0
        %6199 = vmatprep.subr.mxu0 0.0
        %6200 = vmatpush1.msra.mxu0 0.0
        %6201 = vmatprep.subr.mxu0 0.0
        %6202 = vmatpush1.msra.mxu0 0.0
        %6203 = vmatprep.subr.mxu0 0.0
        %6204 = vmatpush1.msra.mxu0 0.0
        %6205 = vmatprep.subr.mxu0 0.0
        %6206 = vmatpush1.msra.mxu0 0.0
        %6207 = vmatprep.subr.mxu0 0.0
        %6208 = vmatpush1.msra.mxu0 0.0
        %6209 = vmatprep.subr.mxu0 0.0
        %6210 = vmatpush1.msra.mxu0 0.0
        %6211 = vmatprep.subr.mxu0 0.0
        %6212 = vmatpush1.msra.mxu0 0.0
        %6213 = vmatprep.subr.mxu0 0.0
        %6214 = vmatpush1.msra.mxu0 0.0
        %6215 = vmatprep.subr.mxu0 0.0
        %6216 = vmatpush1.msra.mxu0 0.0
        %6217 = vmatprep.subr.mxu0 0.0
        %6218 = vmatpush1.msra.mxu0 0.0
        %6219 = vmatprep.subr.mxu0 0.0
        %6220 = vmatpush1.msra.mxu0 0.0
        %6221 = vmatprep.mubr.f32.mxu0 0.0
        %v6222 = vand.u32 %v5830, 4294901760
        %6223 = vmatmul.mubr.f32.gmra.mrb[0].mxu0 %v6222
        %v6224 = vpop.f32.mrb[0].mxu0
        %v6225 = vadd.f32 %v6147, %v6224
        %v6226 = vpop.f32.mrb[0].mxu0
        %v6227 = vadd.f32 %v6149, %v6226
        %6228 = vdwg.mxu0
        %v6229 = vand.u32 %v5834, 4294901760
        %6230 = vmatprep.subr.mxu0 %v6229
        %v6231 = vand.u32 %v5832, 4294901760
        %6232 = vmatpush1.msra.mxu0 %v6231
        %6233 = vmatprep.subr.mxu0 0.0
        %6234 = vmatpush1.msra.mxu0 0.0
        %6235 = vmatprep.subr.mxu0 0.0
        %6236 = vmatpush1.msra.mxu0 0.0
        %6237 = vmatprep.subr.mxu0 0.0
        %6238 = vmatpush1.msra.mxu0 0.0
        %6239 = vmatprep.subr.mxu0 0.0
        %6240 = vmatpush1.msra.mxu0 0.0
        %6241 = vmatprep.subr.mxu0 0.0
        %6242 = vmatpush1.msra.mxu0 0.0
        %6243 = vmatprep.subr.mxu0 0.0
        %6244 = vmatpush1.msra.mxu0 0.0
        %6245 = vmatprep.subr.mxu0 0.0
        %6246 = vmatpush1.msra.mxu0 0.0
        %6247 = vmatprep.subr.mxu0 0.0
        %6248 = vmatpush1.msra.mxu0 0.0
        %6249 = vmatprep.subr.mxu0 0.0
        %6250 = vmatpush1.msra.mxu0 0.0
        %6251 = vmatprep.subr.mxu0 0.0
        %6252 = vmatpush1.msra.mxu0 0.0
        %6253 = vmatprep.subr.mxu0 0.0
        %6254 = vmatpush1.msra.mxu0 0.0
        %6255 = vmatprep.subr.mxu0 0.0
        %6256 = vmatpush1.msra.mxu0 0.0
        %6257 = vmatprep.subr.mxu0 0.0
        %6258 = vmatpush1.msra.mxu0 0.0
        %6259 = vmatprep.subr.mxu0 0.0
        %6260 = vmatpush1.msra.mxu0 0.0
        %6261 = vmatprep.subr.mxu0 0.0
        %6262 = vmatpush1.msra.mxu0 0.0
        %6263 = vmatprep.subr.mxu0 0.0
        %6264 = vmatpush1.msra.mxu0 0.0
        %6265 = vmatprep.subr.mxu0 0.0
        %6266 = vmatpush1.msra.mxu0 0.0
        %6267 = vmatprep.subr.mxu0 0.0
        %6268 = vmatpush1.msra.mxu0 0.0
        %6269 = vmatprep.subr.mxu0 0.0
        %6270 = vmatpush1.msra.mxu0 0.0
        %6271 = vmatprep.subr.mxu0 0.0
        %6272 = vmatpush1.msra.mxu0 0.0
        %6273 = vmatprep.subr.mxu0 0.0
        %6274 = vmatpush1.msra.mxu0 0.0
        %6275 = vmatprep.subr.mxu0 0.0
        %6276 = vmatpush1.msra.mxu0 0.0
        %6277 = vmatprep.subr.mxu0 0.0
        %6278 = vmatpush1.msra.mxu0 0.0
        %6279 = vmatprep.subr.mxu0 0.0
        %6280 = vmatpush1.msra.mxu0 0.0
        %6281 = vmatprep.subr.mxu0 0.0
        %6282 = vmatpush1.msra.mxu0 0.0
        %6283 = vmatprep.subr.mxu0 0.0
        %6284 = vmatpush1.msra.mxu0 0.0
        %6285 = vmatprep.subr.mxu0 0.0
        %6286 = vmatpush1.msra.mxu0 0.0
        %6287 = vmatprep.subr.mxu0 0.0
        %6288 = vmatpush1.msra.mxu0 0.0
        %6289 = vmatprep.subr.mxu0 0.0
        %6290 = vmatpush1.msra.mxu0 0.0
        %6291 = vmatprep.subr.mxu0 0.0
        %6292 = vmatpush1.msra.mxu0 0.0
        %6293 = vmatprep.subr.mxu0 0.0
        %6294 = vmatpush1.msra.mxu0 0.0
        %6295 = vmatprep.mubr.f32.mxu0 0.0
        %v6296 = vand.u32 %v5830, 4294901760
        %6297 = vmatmul.mubr.f32.gmra.mrb[0].mxu0 %v6296
        %v6298 = vpop.f32.mrb[0].mxu0
        %v6299 = vadd.f32 %v6225, %v6298
        %v6300 = vpop.f32.mrb[0].mxu0
        %v6301 = vadd.f32 %v6227, %v6300
        %6302 = vdwg.mxu0
        %6303 = vmatprep.subr.mxu0 0.0
        %v6304 = vand.u32 %v5836, 4294901760
        %6305 = vmatpush1.msra.mxu0 %v6304
        %6306 = vmatprep.subr.mxu0 0.0
        %6307 = vmatpush1.msra.mxu0 0.0
        %6308 = vmatprep.subr.mxu0 0.0
        %6309 = vmatpush1.msra.mxu0 0.0
        %6310 = vmatprep.subr.mxu0 0.0
        %6311 = vmatpush1.msra.mxu0 0.0
        %6312 = vmatprep.subr.mxu0 0.0
        %6313 = vmatpush1.msra.mxu0 0.0
        %6314 = vmatprep.subr.mxu0 0.0
        %6315 = vmatpush1.msra.mxu0 0.0
        %6316 = vmatprep.subr.mxu0 0.0
        %6317 = vmatpush1.msra.mxu0 0.0
        %6318 = vmatprep.subr.mxu0 0.0
        %6319 = vmatpush1.msra.mxu0 0.0
        %6320 = vmatprep.subr.mxu0 0.0
        %6321 = vmatpush1.msra.mxu0 0.0
        %6322 = vmatprep.subr.mxu0 0.0
        %6323 = vmatpush1.msra.mxu0 0.0
        %6324 = vmatprep.subr.mxu0 0.0
        %6325 = vmatpush1.msra.mxu0 0.0
        %6326 = vmatprep.subr.mxu0 0.0
        %6327 = vmatpush1.msra.mxu0 0.0
        %6328 = vmatprep.subr.mxu0 0.0
        %6329 = vmatpush1.msra.mxu0 0.0
        %6330 = vmatprep.subr.mxu0 0.0
        %6331 = vmatpush1.msra.mxu0 0.0
        %6332 = vmatprep.subr.mxu0 0.0
        %6333 = vmatpush1.msra.mxu0 0.0
        %6334 = vmatprep.subr.mxu0 0.0
        %6335 = vmatpush1.msra.mxu0 0.0
        %6336 = vmatprep.subr.mxu0 0.0
        %6337 = vmatpush1.msra.mxu0 0.0
        %6338 = vmatprep.subr.mxu0 0.0
        %6339 = vmatpush1.msra.mxu0 0.0
        %6340 = vmatprep.subr.mxu0 0.0
        %6341 = vmatpush1.msra.mxu0 0.0
        %6342 = vmatprep.subr.mxu0 0.0
        %6343 = vmatpush1.msra.mxu0 0.0
        %6344 = vmatprep.subr.mxu0 0.0
        %6345 = vmatpush1.msra.mxu0 0.0
        %6346 = vmatprep.subr.mxu0 0.0
        %6347 = vmatpush1.msra.mxu0 0.0
        %6348 = vmatprep.subr.mxu0 0.0
        %6349 = vmatpush1.msra.mxu0 0.0
        %6350 = vmatprep.subr.mxu0 0.0
        %6351 = vmatpush1.msra.mxu0 0.0
        %6352 = vmatprep.subr.mxu0 0.0
        %6353 = vmatpush1.msra.mxu0 0.0
        %6354 = vmatprep.subr.mxu0 0.0
        %6355 = vmatpush1.msra.mxu0 0.0
        %6356 = vmatprep.subr.mxu0 0.0
        %6357 = vmatpush1.msra.mxu0 0.0
        %6358 = vmatprep.subr.mxu0 0.0
        %6359 = vmatpush1.msra.mxu0 0.0
        %6360 = vmatprep.subr.mxu0 0.0
        %6361 = vmatpush1.msra.mxu0 0.0
        %6362 = vmatprep.subr.mxu0 0.0
        %6363 = vmatpush1.msra.mxu0 0.0
        %6364 = vmatprep.subr.mxu0 0.0
        %6365 = vmatpush1.msra.mxu0 0.0
        %6366 = vmatprep.subr.mxu0 0.0
        %6367 = vmatpush1.msra.mxu0 0.0
        %6368 = vmatprep.mubr.f32.mxu0 0.0
        %v6369 = vand.u32 %v5830, 4294901760
        %v6370 = vsub.f32 %v5830, %v6369
        %v6371 = vand.u32 %v6370, 4294901760
        %v6372 = vsub.f32 %v6370, %v6371
        %v6373 = vand.u32 %v6372, 4294901760
        %6374 = vmatmul.mubr.f32.gmra.mrb[0].mxu0 %v6373
        %v6375 = vpop.f32.mrb[0].mxu0
        %v6376 = vadd.f32 0.0, %v6375
        %v6377 = vpop.f32.mrb[0].mxu0
        %6378 = vdwg.mxu0
        %6379 = vmatprep.subr.mxu0 0.0
        %v6380 = vand.u32 %v5836, 4294901760
        %v6381 = vsub.f32 %v5836, %v6380
        %v6382 = vand.u32 %v6381, 4294901760
        %v6383 = vsub.f32 %v6381, %v6382
        %v6384 = vand.u32 %v6383, 4294901760
        %6385 = vmatpush1.msra.mxu0 %v6384
        %6386 = vmatprep.subr.mxu0 0.0
        %6387 = vmatpush1.msra.mxu0 0.0
        %6388 = vmatprep.subr.mxu0 0.0
        %6389 = vmatpush1.msra.mxu0 0.0
        %6390 = vmatprep.subr.mxu0 0.0
        %6391 = vmatpush1.msra.mxu0 0.0
        %6392 = vmatprep.subr.mxu0 0.0
        %6393 = vmatpush1.msra.mxu0 0.0
        %6394 = vmatprep.subr.mxu0 0.0
        %6395 = vmatpush1.msra.mxu0 0.0
        %6396 = vmatprep.subr.mxu0 0.0
        %6397 = vmatpush1.msra.mxu0 0.0
        %6398 = vmatprep.subr.mxu0 0.0
        %6399 = vmatpush1.msra.mxu0 0.0
        %6400 = vmatprep.subr.mxu0 0.0
        %6401 = vmatpush1.msra.mxu0 0.0
        %6402 = vmatprep.subr.mxu0 0.0
        %6403 = vmatpush1.msra.mxu0 0.0
        %6404 = vmatprep.subr.mxu0 0.0
        %6405 = vmatpush1.msra.mxu0 0.0
        %6406 = vmatprep.subr.mxu0 0.0
        %6407 = vmatpush1.msra.mxu0 0.0
        %6408 = vmatprep.subr.mxu0 0.0
        %6409 = vmatpush1.msra.mxu0 0.0
        %6410 = vmatprep.subr.mxu0 0.0
        %6411 = vmatpush1.msra.mxu0 0.0
        %6412 = vmatprep.subr.mxu0 0.0
        %6413 = vmatpush1.msra.mxu0 0.0
        %6414 = vmatprep.subr.mxu0 0.0
        %6415 = vmatpush1.msra.mxu0 0.0
        %6416 = vmatprep.subr.mxu0 0.0
        %6417 = vmatpush1.msra.mxu0 0.0
        %6418 = vmatprep.subr.mxu0 0.0
        %6419 = vmatpush1.msra.mxu0 0.0
        %6420 = vmatprep.subr.mxu0 0.0
        %6421 = vmatpush1.msra.mxu0 0.0
        %6422 = vmatprep.subr.mxu0 0.0
        %6423 = vmatpush1.msra.mxu0 0.0
        %6424 = vmatprep.subr.mxu0 0.0
        %6425 = vmatpush1.msra.mxu0 0.0
        %6426 = vmatprep.subr.mxu0 0.0
        %6427 = vmatpush1.msra.mxu0 0.0
        %6428 = vmatprep.subr.mxu0 0.0
        %6429 = vmatpush1.msra.mxu0 0.0
        %6430 = vmatprep.subr.mxu0 0.0
        %6431 = vmatpush1.msra.mxu0 0.0
        %6432 = vmatprep.subr.mxu0 0.0
        %6433 = vmatpush1.msra.mxu0 0.0
        %6434 = vmatprep.subr.mxu0 0.0
        %6435 = vmatpush1.msra.mxu0 0.0
        %6436 = vmatprep.subr.mxu0 0.0
        %6437 = vmatpush1.msra.mxu0 0.0
        %6438 = vmatprep.subr.mxu0 0.0
        %6439 = vmatpush1.msra.mxu0 0.0
        %6440 = vmatprep.subr.mxu0 0.0
        %6441 = vmatpush1.msra.mxu0 0.0
        %6442 = vmatprep.subr.mxu0 0.0
        %6443 = vmatpush1.msra.mxu0 0.0
        %6444 = vmatprep.subr.mxu0 0.0
        %6445 = vmatpush1.msra.mxu0 0.0
        %6446 = vmatprep.subr.mxu0 0.0
        %6447 = vmatpush1.msra.mxu0 0.0
        %6448 = vmatprep.mubr.f32.mxu0 0.0
        %v6449 = vand.u32 %v5830, 4294901760
        %6450 = vmatmul.mubr.f32.gmra.mrb[0].mxu0 %v6449
        %v6451 = vpop.f32.mrb[0].mxu0
        %v6452 = vadd.f32 %v6376, %v6451
        %v6453 = vpop.f32.mrb[0].mxu0
        %6454 = vdwg.mxu0
        %6455 = vmatprep.subr.mxu0 0.0
        %v6456 = vand.u32 %v5836, 4294901760
        %v6457 = vsub.f32 %v5836, %v6456
        %6458 = vmatpush1.msra.mxu0 %v6457
        %6459 = vmatprep.subr.mxu0 0.0
        %6460 = vmatpush1.msra.mxu0 0.0
        %6461 = vmatprep.subr.mxu0 0.0
        %6462 = vmatpush1.msra.mxu0 0.0
        %6463 = vmatprep.subr.mxu0 0.0
        %6464 = vmatpush1.msra.mxu0 0.0
        %6465 = vmatprep.subr.mxu0 0.0
        %6466 = vmatpush1.msra.mxu0 0.0
        %6467 = vmatprep.subr.mxu0 0.0
        %6468 = vmatpush1.msra.mxu0 0.0
        %6469 = vmatprep.subr.mxu0 0.0
        %6470 = vmatpush1.msra.mxu0 0.0
        %6471 = vmatprep.subr.mxu0 0.0
        %6472 = vmatpush1.msra.mxu0 0.0
        %6473 = vmatprep.subr.mxu0 0.0
        %6474 = vmatpush1.msra.mxu0 0.0
        %6475 = vmatprep.subr.mxu0 0.0
        %6476 = vmatpush1.msra.mxu0 0.0
        %6477 = vmatprep.subr.mxu0 0.0
        %6478 = vmatpush1.msra.mxu0 0.0
        %6479 = vmatprep.subr.mxu0 0.0
        %6480 = vmatpush1.msra.mxu0 0.0
        %6481 = vmatprep.subr.mxu0 0.0
        %6482 = vmatpush1.msra.mxu0 0.0
        %6483 = vmatprep.subr.mxu0 0.0
        %6484 = vmatpush1.msra.mxu0 0.0
        %6485 = vmatprep.subr.mxu0 0.0
        %6486 = vmatpush1.msra.mxu0 0.0
        %6487 = vmatprep.subr.mxu0 0.0
        %6488 = vmatpush1.msra.mxu0 0.0
        %6489 = vmatprep.subr.mxu0 0.0
        %6490 = vmatpush1.msra.mxu0 0.0
        %6491 = vmatprep.subr.mxu0 0.0
        %6492 = vmatpush1.msra.mxu0 0.0
        %6493 = vmatprep.subr.mxu0 0.0
        %6494 = vmatpush1.msra.mxu0 0.0
        %6495 = vmatprep.subr.mxu0 0.0
        %6496 = vmatpush1.msra.mxu0 0.0
        %6497 = vmatprep.subr.mxu0 0.0
        %6498 = vmatpush1.msra.mxu0 0.0
        %6499 = vmatprep.subr.mxu0 0.0
        %6500 = vmatpush1.msra.mxu0 0.0
        %6501 = vmatprep.subr.mxu0 0.0
        %6502 = vmatpush1.msra.mxu0 0.0
        %6503 = vmatprep.subr.mxu0 0.0
        %6504 = vmatpush1.msra.mxu0 0.0
        %6505 = vmatprep.subr.mxu0 0.0
        %6506 = vmatpush1.msra.mxu0 0.0
        %6507 = vmatprep.subr.mxu0 0.0
        %6508 = vmatpush1.msra.mxu0 0.0
        %6509 = vmatprep.subr.mxu0 0.0
        %6510 = vmatpush1.msra.mxu0 0.0
        %6511 = vmatprep.subr.mxu0 0.0
        %6512 = vmatpush1.msra.mxu0 0.0
        %6513 = vmatprep.subr.mxu0 0.0
        %6514 = vmatpush1.msra.mxu0 0.0
        %6515 = vmatprep.subr.mxu0 0.0
        %6516 = vmatpush1.msra.mxu0 0.0
        %6517 = vmatprep.subr.mxu0 0.0
        %6518 = vmatpush1.msra.mxu0 0.0
        %6519 = vmatprep.subr.mxu0 0.0
        %6520 = vmatpush1.msra.mxu0 0.0
        %6521 = vmatprep.mubr.f32.mxu0 0.0
        %v6522 = vand.u32 %v5830, 4294901760
        %v6523 = vsub.f32 %v5830, %v6522
        %6524 = vmatmul.mubr.f32.gmra.mrb[0].mxu0 %v6523
        %v6525 = vpop.f32.mrb[0].mxu0
        %v6526 = vadd.f32 %v6452, %v6525
        %v6527 = vpop.f32.mrb[0].mxu0
        %6528 = vdwg.mxu0
        %6529 = vmatprep.subr.mxu0 0.0
        %v6530 = vand.u32 %v5836, 4294901760
        %6531 = vmatpush1.msra.mxu0 %v6530
        %6532 = vmatprep.subr.mxu0 0.0
        %6533 = vmatpush1.msra.mxu0 0.0
        %6534 = vmatprep.subr.mxu0 0.0
        %6535 = vmatpush1.msra.mxu0 0.0
        %6536 = vmatprep.subr.mxu0 0.0
        %6537 = vmatpush1.msra.mxu0 0.0
        %6538 = vmatprep.subr.mxu0 0.0
        %6539 = vmatpush1.msra.mxu0 0.0
        %6540 = vmatprep.subr.mxu0 0.0
        %6541 = vmatpush1.msra.mxu0 0.0
        %6542 = vmatprep.subr.mxu0 0.0
        %6543 = vmatpush1.msra.mxu0 0.0
        %6544 = vmatprep.subr.mxu0 0.0
        %6545 = vmatpush1.msra.mxu0 0.0
        %6546 = vmatprep.subr.mxu0 0.0
        %6547 = vmatpush1.msra.mxu0 0.0
        %6548 = vmatprep.subr.mxu0 0.0
        %6549 = vmatpush1.msra.mxu0 0.0
        %6550 = vmatprep.subr.mxu0 0.0
        %6551 = vmatpush1.msra.mxu0 0.0
        %6552 = vmatprep.subr.mxu0 0.0
        %6553 = vmatpush1.msra.mxu0 0.0
        %6554 = vmatprep.subr.mxu0 0.0
        %6555 = vmatpush1.msra.mxu0 0.0
        %6556 = vmatprep.subr.mxu0 0.0
        %6557 = vmatpush1.msra.mxu0 0.0
        %6558 = vmatprep.subr.mxu0 0.0
        %6559 = vmatpush1.msra.mxu0 0.0
        %6560 = vmatprep.subr.mxu0 0.0
        %6561 = vmatpush1.msra.mxu0 0.0
        %6562 = vmatprep.subr.mxu0 0.0
        %6563 = vmatpush1.msra.mxu0 0.0
        %6564 = vmatprep.subr.mxu0 0.0
        %6565 = vmatpush1.msra.mxu0 0.0
        %6566 = vmatprep.subr.mxu0 0.0
        %6567 = vmatpush1.msra.mxu0 0.0
        %6568 = vmatprep.subr.mxu0 0.0
        %6569 = vmatpush1.msra.mxu0 0.0
        %6570 = vmatprep.subr.mxu0 0.0
        %6571 = vmatpush1.msra.mxu0 0.0
        %6572 = vmatprep.subr.mxu0 0.0
        %6573 = vmatpush1.msra.mxu0 0.0
        %6574 = vmatprep.subr.mxu0 0.0
        %6575 = vmatpush1.msra.mxu0 0.0
        %6576 = vmatprep.subr.mxu0 0.0
        %6577 = vmatpush1.msra.mxu0 0.0
        %6578 = vmatprep.subr.mxu0 0.0
        %6579 = vmatpush1.msra.mxu0 0.0
        %6580 = vmatprep.subr.mxu0 0.0
        %6581 = vmatpush1.msra.mxu0 0.0
        %6582 = vmatprep.subr.mxu0 0.0
        %6583 = vmatpush1.msra.mxu0 0.0
        %6584 = vmatprep.subr.mxu0 0.0
        %6585 = vmatpush1.msra.mxu0 0.0
        %6586 = vmatprep.subr.mxu0 0.0
        %6587 = vmatpush1.msra.mxu0 0.0
        %6588 = vmatprep.subr.mxu0 0.0
        %6589 = vmatpush1.msra.mxu0 0.0
        %6590 = vmatprep.subr.mxu0 0.0
        %6591 = vmatpush1.msra.mxu0 0.0
        %6592 = vmatprep.subr.mxu0 0.0
        %6593 = vmatpush1.msra.mxu0 0.0
        %6594 = vmatprep.mubr.f32.mxu0 0.0
        %v6595 = vand.u32 %v5830, 4294901760
        %v6596 = vsub.f32 %v5830, %v6595
        %v6597 = vand.u32 %v6596, 4294901760
        %6598 = vmatmul.mubr.f32.gmra.mrb[0].mxu0 %v6597
        %v6599 = vpop.f32.mrb[0].mxu0
        %v6600 = vadd.f32 %v6526, %v6599
        %v6601 = vpop.f32.mrb[0].mxu0
        %6602 = vdwg.mxu0
        %6603 = vmatprep.subr.mxu0 0.0
        %v6604 = vand.u32 %v5836, 4294901760
        %v6605 = vsub.f32 %v5836, %v6604
        %v6606 = vand.u32 %v6605, 4294901760
        %6607 = vmatpush1.msra.mxu0 %v6606
        %6608 = vmatprep.subr.mxu0 0.0
        %6609 = vmatpush1.msra.mxu0 0.0
        %6610 = vmatprep.subr.mxu0 0.0
        %6611 = vmatpush1.msra.mxu0 0.0
        %6612 = vmatprep.subr.mxu0 0.0
        %6613 = vmatpush1.msra.mxu0 0.0
        %6614 = vmatprep.subr.mxu0 0.0
        %6615 = vmatpush1.msra.mxu0 0.0
        %6616 = vmatprep.subr.mxu0 0.0
        %6617 = vmatpush1.msra.mxu0 0.0
        %6618 = vmatprep.subr.mxu0 0.0
        %6619 = vmatpush1.msra.mxu0 0.0
        %6620 = vmatprep.subr.mxu0 0.0
        %6621 = vmatpush1.msra.mxu0 0.0
        %6622 = vmatprep.subr.mxu0 0.0
        %6623 = vmatpush1.msra.mxu0 0.0
        %6624 = vmatprep.subr.mxu0 0.0
        %6625 = vmatpush1.msra.mxu0 0.0
        %6626 = vmatprep.subr.mxu0 0.0
        %6627 = vmatpush1.msra.mxu0 0.0
        %6628 = vmatprep.subr.mxu0 0.0
        %6629 = vmatpush1.msra.mxu0 0.0
        %6630 = vmatprep.subr.mxu0 0.0
        %6631 = vmatpush1.msra.mxu0 0.0
        %6632 = vmatprep.subr.mxu0 0.0
        %6633 = vmatpush1.msra.mxu0 0.0
        %6634 = vmatprep.subr.mxu0 0.0
        %6635 = vmatpush1.msra.mxu0 0.0
        %6636 = vmatprep.subr.mxu0 0.0
        %6637 = vmatpush1.msra.mxu0 0.0
        %6638 = vmatprep.subr.mxu0 0.0
        %6639 = vmatpush1.msra.mxu0 0.0
        %6640 = vmatprep.subr.mxu0 0.0
        %6641 = vmatpush1.msra.mxu0 0.0
        %6642 = vmatprep.subr.mxu0 0.0
        %6643 = vmatpush1.msra.mxu0 0.0
        %6644 = vmatprep.subr.mxu0 0.0
        %6645 = vmatpush1.msra.mxu0 0.0
        %6646 = vmatprep.subr.mxu0 0.0
        %6647 = vmatpush1.msra.mxu0 0.0
        %6648 = vmatprep.subr.mxu0 0.0
        %6649 = vmatpush1.msra.mxu0 0.0
        %6650 = vmatprep.subr.mxu0 0.0
        %6651 = vmatpush1.msra.mxu0 0.0
        %6652 = vmatprep.subr.mxu0 0.0
        %6653 = vmatpush1.msra.mxu0 0.0
        %6654 = vmatprep.subr.mxu0 0.0
        %6655 = vmatpush1.msra.mxu0 0.0
        %6656 = vmatprep.subr.mxu0 0.0
        %6657 = vmatpush1.msra.mxu0 0.0
        %6658 = vmatprep.subr.mxu0 0.0
        %6659 = vmatpush1.msra.mxu0 0.0
        %6660 = vmatprep.subr.mxu0 0.0
        %6661 = vmatpush1.msra.mxu0 0.0
        %6662 = vmatprep.subr.mxu0 0.0
        %6663 = vmatpush1.msra.mxu0 0.0
        %6664 = vmatprep.subr.mxu0 0.0
        %6665 = vmatpush1.msra.mxu0 0.0
        %6666 = vmatprep.subr.mxu0 0.0
        %6667 = vmatpush1.msra.mxu0 0.0
        %6668 = vmatprep.subr.mxu0 0.0
        %6669 = vmatpush1.msra.mxu0 0.0
        %6670 = vmatprep.mubr.f32.mxu0 0.0
        %v6671 = vand.u32 %v5830, 4294901760
        %6672 = vmatmul.mubr.f32.gmra.mrb[0].mxu0 %v6671
        %v6673 = vpop.f32.mrb[0].mxu0
        %v6674 = vadd.f32 %v6600, %v6673
        %v6675 = vpop.f32.mrb[0].mxu0
        %6676 = vdwg.mxu0
        %6677 = vmatprep.subr.mxu0 0.0
        %v6678 = vand.u32 %v5836, 4294901760
        %6679 = vmatpush1.msra.mxu0 %v6678
        %6680 = vmatprep.subr.mxu0 0.0
        %6681 = vmatpush1.msra.mxu0 0.0
        %6682 = vmatprep.subr.mxu0 0.0
        %6683 = vmatpush1.msra.mxu0 0.0
        %6684 = vmatprep.subr.mxu0 0.0
        %6685 = vmatpush1.msra.mxu0 0.0
        %6686 = vmatprep.subr.mxu0 0.0
        %6687 = vmatpush1.msra.mxu0 0.0
        %6688 = vmatprep.subr.mxu0 0.0
        %6689 = vmatpush1.msra.mxu0 0.0
        %6690 = vmatprep.subr.mxu0 0.0
        %6691 = vmatpush1.msra.mxu0 0.0
        %6692 = vmatprep.subr.mxu0 0.0
        %6693 = vmatpush1.msra.mxu0 0.0
        %6694 = vmatprep.subr.mxu0 0.0
        %6695 = vmatpush1.msra.mxu0 0.0
        %6696 = vmatprep.subr.mxu0 0.0
        %6697 = vmatpush1.msra.mxu0 0.0
        %6698 = vmatprep.subr.mxu0 0.0
        %6699 = vmatpush1.msra.mxu0 0.0
        %6700 = vmatprep.subr.mxu0 0.0
        %6701 = vmatpush1.msra.mxu0 0.0
        %6702 = vmatprep.subr.mxu0 0.0
        %6703 = vmatpush1.msra.mxu0 0.0
        %6704 = vmatprep.subr.mxu0 0.0
        %6705 = vmatpush1.msra.mxu0 0.0
        %6706 = vmatprep.subr.mxu0 0.0
        %6707 = vmatpush1.msra.mxu0 0.0
        %6708 = vmatprep.subr.mxu0 0.0
        %6709 = vmatpush1.msra.mxu0 0.0
        %6710 = vmatprep.subr.mxu0 0.0
        %6711 = vmatpush1.msra.mxu0 0.0
        %6712 = vmatprep.subr.mxu0 0.0
        %6713 = vmatpush1.msra.mxu0 0.0
        %6714 = vmatprep.subr.mxu0 0.0
        %6715 = vmatpush1.msra.mxu0 0.0
        %6716 = vmatprep.subr.mxu0 0.0
        %6717 = vmatpush1.msra.mxu0 0.0
        %6718 = vmatprep.subr.mxu0 0.0
        %6719 = vmatpush1.msra.mxu0 0.0
        %6720 = vmatprep.subr.mxu0 0.0
        %6721 = vmatpush1.msra.mxu0 0.0
        %6722 = vmatprep.subr.mxu0 0.0
        %6723 = vmatpush1.msra.mxu0 0.0
        %6724 = vmatprep.subr.mxu0 0.0
        %6725 = vmatpush1.msra.mxu0 0.0
        %6726 = vmatprep.subr.mxu0 0.0
        %6727 = vmatpush1.msra.mxu0 0.0
        %6728 = vmatprep.subr.mxu0 0.0
        %6729 = vmatpush1.msra.mxu0 0.0
        %6730 = vmatprep.subr.mxu0 0.0
        %6731 = vmatpush1.msra.mxu0 0.0
        %6732 = vmatprep.subr.mxu0 0.0
        %6733 = vmatpush1.msra.mxu0 0.0
        %6734 = vmatprep.subr.mxu0 0.0
        %6735 = vmatpush1.msra.mxu0 0.0
        %6736 = vmatprep.subr.mxu0 0.0
        %6737 = vmatpush1.msra.mxu0 0.0
        %6738 = vmatprep.subr.mxu0 0.0
        %6739 = vmatpush1.msra.mxu0 0.0
        %6740 = vmatprep.subr.mxu0 0.0
        %6741 = vmatpush1.msra.mxu0 0.0
        %6742 = vmatprep.mubr.f32.mxu0 0.0
        %v6743 = vand.u32 %v5830, 4294901760
        %6744 = vmatmul.mubr.f32.gmra.mrb[0].mxu0 %v6743
        %v6745 = vpop.f32.mrb[0].mxu0
        %v6746 = vadd.f32 %v6674, %v6745
        %v6747 = vpop.f32.mrb[0].mxu0
        %6748 = vdwg.mxu0
        %v6749 = vadd.f32 %v5806, %v6299
        %v6750 = vadd.f32 %v5807, %v6301
        %v6751 = vadd.f32 %v5808, %v6746
        %v6752 = vld [vmem:[%s168] sm:$0xff]
        %v6753 = vld [vmem:[%s168 + $0x8] sm:$0xff]
        %s6754 = scalar_lea.vmem %s1, 56
        %v6755 = vld [vmem:[%s6754] sm:$0xff]
        %v6758 = vcombine.high %v6752, %v6752
        %v6759 = vcombine.high %v6753, %v6753
        %6760 = vrot.lane.b32.xlu0 %v6752, 91
        %v6761 = vpop.permute.xlu0 %6760
        %6762 = vrot.lane.b32.xlu0 %v6758, 91
        %v6763 = vpop.permute.xlu0 %6762
        %6764 = vrot.lane.b32.xlu0 %v6753, 91
        %v6765 = vpop.permute.xlu0 %6764
        %6766 = vrot.lane.b32.xlu0 %v6759, 91
        %v6767 = vpop.permute.xlu0 %6766
        %vm6768 = vcmask 744448
        %v6769 = vsel %vm6768, %v6761, %v6763
        %v6770 = vsel %vm6768, %v6763, %v6765
        %v6771 = vsel %vm6768, %v6765, %v6767
        %v6773 = vsel %vm192, %v6755, 0
        %v6775 = vsel %vm196, %v6769, 0
        %v6777 = vsel %vm196, %v6770, 0
        %v6779 = vsel %vm196, %v6771, 0
        %v6781 = vand.u32 %v6777, 4294901760
        %6782 = vmatprep.subr.mxu0 %v6781
        %v6783 = vand.u32 %v6775, 4294901760
        %6784 = vmatpush1.msra.mxu0 %v6783
        %6785 = vmatprep.subr.mxu0 0.0
        %6786 = vmatpush1.msra.mxu0 0.0
        %6787 = vmatprep.subr.mxu0 0.0
        %6788 = vmatpush1.msra.mxu0 0.0
        %6789 = vmatprep.subr.mxu0 0.0
        %6790 = vmatpush1.msra.mxu0 0.0
        %6791 = vmatprep.subr.mxu0 0.0
        %6792 = vmatpush1.msra.mxu0 0.0
        %6793 = vmatprep.subr.mxu0 0.0
        %6794 = vmatpush1.msra.mxu0 0.0
        %6795 = vmatprep.subr.mxu0 0.0
        %6796 = vmatpush1.msra.mxu0 0.0
        %6797 = vmatprep.subr.mxu0 0.0
        %6798 = vmatpush1.msra.mxu0 0.0
        %6799 = vmatprep.subr.mxu0 0.0
        %6800 = vmatpush1.msra.mxu0 0.0
        %6801 = vmatprep.subr.mxu0 0.0
        %6802 = vmatpush1.msra.mxu0 0.0
        %6803 = vmatprep.subr.mxu0 0.0
        %6804 = vmatpush1.msra.mxu0 0.0
        %6805 = vmatprep.subr.mxu0 0.0
        %6806 = vmatpush1.msra.mxu0 0.0
        %6807 = vmatprep.subr.mxu0 0.0
        %6808 = vmatpush1.msra.mxu0 0.0
        %6809 = vmatprep.subr.mxu0 0.0
        %6810 = vmatpush1.msra.mxu0 0.0
        %6811 = vmatprep.subr.mxu0 0.0
        %6812 = vmatpush1.msra.mxu0 0.0
        %6813 = vmatprep.subr.mxu0 0.0
        %6814 = vmatpush1.msra.mxu0 0.0
        %6815 = vmatprep.subr.mxu0 0.0
        %6816 = vmatpush1.msra.mxu0 0.0
        %6817 = vmatprep.subr.mxu0 0.0
        %6818 = vmatpush1.msra.mxu0 0.0
        %6819 = vmatprep.subr.mxu0 0.0
        %6820 = vmatpush1.msra.mxu0 0.0
        %6821 = vmatprep.subr.mxu0 0.0
        %6822 = vmatpush1.msra.mxu0 0.0
        %6823 = vmatprep.subr.mxu0 0.0
        %6824 = vmatpush1.msra.mxu0 0.0
        %6825 = vmatprep.subr.mxu0 0.0
        %6826 = vmatpush1.msra.mxu0 0.0
        %6827 = vmatprep.subr.mxu0 0.0
        %6828 = vmatpush1.msra.mxu0 0.0
        %6829 = vmatprep.subr.mxu0 0.0
        %6830 = vmatpush1.msra.mxu0 0.0
        %6831 = vmatprep.subr.mxu0 0.0
        %6832 = vmatpush1.msra.mxu0 0.0
        %6833 = vmatprep.subr.mxu0 0.0
        %6834 = vmatpush1.msra.mxu0 0.0
        %6835 = vmatprep.subr.mxu0 0.0
        %6836 = vmatpush1.msra.mxu0 0.0
        %6837 = vmatprep.subr.mxu0 0.0
        %6838 = vmatpush1.msra.mxu0 0.0
        %6839 = vmatprep.subr.mxu0 0.0
        %6840 = vmatpush1.msra.mxu0 0.0
        %6841 = vmatprep.subr.mxu0 0.0
        %6842 = vmatpush1.msra.mxu0 0.0
        %6843 = vmatprep.subr.mxu0 0.0
        %6844 = vmatpush1.msra.mxu0 0.0
        %6845 = vmatprep.subr.mxu0 0.0
        %6846 = vmatpush1.msra.mxu0 0.0
        %6847 = vmatprep.mubr.f32.mxu0 0.0
        %v6848 = vand.u32 %v6773, 4294901760
        %v6849 = vsub.f32 %v6773, %v6848
        %v6850 = vand.u32 %v6849, 4294901760
        %v6851 = vsub.f32 %v6849, %v6850
        %v6852 = vand.u32 %v6851, 4294901760
        %6853 = vmatmul.mubr.f32.gmra.mrb[0].mxu0 %v6852
        %v6854 = vpop.f32.mrb[0].mxu0
        %v6855 = vadd.f32 0.0, %v6854
        %v6856 = vpop.f32.mrb[0].mxu0
        %v6857 = vadd.f32 0.0, %v6856
        %6858 = vdwg.mxu0
        %v6859 = vand.u32 %v6777, 4294901760
        %v6860 = vsub.f32 %v6777, %v6859
        %v6861 = vand.u32 %v6860, 4294901760
        %v6862 = vsub.f32 %v6860, %v6861
        %v6863 = vand.u32 %v6862, 4294901760
        %6864 = vmatprep.subr.mxu0 %v6863
        %v6865 = vand.u32 %v6775, 4294901760
        %v6866 = vsub.f32 %v6775, %v6865
        %v6867 = vand.u32 %v6866, 4294901760
        %v6868 = vsub.f32 %v6866, %v6867
        %v6869 = vand.u32 %v6868, 4294901760
        %6870 = vmatpush1.msra.mxu0 %v6869
        %6871 = vmatprep.subr.mxu0 0.0
        %6872 = vmatpush1.msra.mxu0 0.0
        %6873 = vmatprep.subr.mxu0 0.0
        %6874 = vmatpush1.msra.mxu0 0.0
        %6875 = vmatprep.subr.mxu0 0.0
        %6876 = vmatpush1.msra.mxu0 0.0
        %6877 = vmatprep.subr.mxu0 0.0
        %6878 = vmatpush1.msra.mxu0 0.0
        %6879 = vmatprep.subr.mxu0 0.0
        %6880 = vmatpush1.msra.mxu0 0.0
        %6881 = vmatprep.subr.mxu0 0.0
        %6882 = vmatpush1.msra.mxu0 0.0
        %6883 = vmatprep.subr.mxu0 0.0
        %6884 = vmatpush1.msra.mxu0 0.0
        %6885 = vmatprep.subr.mxu0 0.0
        %6886 = vmatpush1.msra.mxu0 0.0
        %6887 = vmatprep.subr.mxu0 0.0
        %6888 = vmatpush1.msra.mxu0 0.0
        %6889 = vmatprep.subr.mxu0 0.0
        %6890 = vmatpush1.msra.mxu0 0.0
        %6891 = vmatprep.subr.mxu0 0.0
        %6892 = vmatpush1.msra.mxu0 0.0
        %6893 = vmatprep.subr.mxu0 0.0
        %6894 = vmatpush1.msra.mxu0 0.0
        %6895 = vmatprep.subr.mxu0 0.0
        %6896 = vmatpush1.msra.mxu0 0.0
        %6897 = vmatprep.subr.mxu0 0.0
        %6898 = vmatpush1.msra.mxu0 0.0
        %6899 = vmatprep.subr.mxu0 0.0
        %6900 = vmatpush1.msra.mxu0 0.0
        %6901 = vmatprep.subr.mxu0 0.0
        %6902 = vmatpush1.msra.mxu0 0.0
        %6903 = vmatprep.subr.mxu0 0.0
        %6904 = vmatpush1.msra.mxu0 0.0
        %6905 = vmatprep.subr.mxu0 0.0
        %6906 = vmatpush1.msra.mxu0 0.0
        %6907 = vmatprep.subr.mxu0 0.0
        %6908 = vmatpush1.msra.mxu0 0.0
        %6909 = vmatprep.subr.mxu0 0.0
        %6910 = vmatpush1.msra.mxu0 0.0
        %6911 = vmatprep.subr.mxu0 0.0
        %6912 = vmatpush1.msra.mxu0 0.0
        %6913 = vmatprep.subr.mxu0 0.0
        %6914 = vmatpush1.msra.mxu0 0.0
        %6915 = vmatprep.subr.mxu0 0.0
        %6916 = vmatpush1.msra.mxu0 0.0
        %6917 = vmatprep.subr.mxu0 0.0
        %6918 = vmatpush1.msra.mxu0 0.0
        %6919 = vmatprep.subr.mxu0 0.0
        %6920 = vmatpush1.msra.mxu0 0.0
        %6921 = vmatprep.subr.mxu0 0.0
        %6922 = vmatpush1.msra.mxu0 0.0
        %6923 = vmatprep.subr.mxu0 0.0
        %6924 = vmatpush1.msra.mxu0 0.0
        %6925 = vmatprep.subr.mxu0 0.0
        %6926 = vmatpush1.msra.mxu0 0.0
        %6927 = vmatprep.subr.mxu0 0.0
        %6928 = vmatpush1.msra.mxu0 0.0
        %6929 = vmatprep.subr.mxu0 0.0
        %6930 = vmatpush1.msra.mxu0 0.0
        %6931 = vmatprep.subr.mxu0 0.0
        %6932 = vmatpush1.msra.mxu0 0.0
        %6933 = vmatprep.mubr.f32.mxu0 0.0
        %v6934 = vand.u32 %v6773, 4294901760
        %6935 = vmatmul.mubr.f32.gmra.mrb[0].mxu0 %v6934
        %v6936 = vpop.f32.mrb[0].mxu0
        %v6937 = vadd.f32 %v6855, %v6936
        %v6938 = vpop.f32.mrb[0].mxu0
        %v6939 = vadd.f32 %v6857, %v6938
        %6940 = vdwg.mxu0
        %v6941 = vand.u32 %v6777, 4294901760
        %v6942 = vsub.f32 %v6777, %v6941
        %6943 = vmatprep.subr.mxu0 %v6942
        %v6944 = vand.u32 %v6775, 4294901760
        %v6945 = vsub.f32 %v6775, %v6944
        %6946 = vmatpush1.msra.mxu0 %v6945
        %6947 = vmatprep.subr.mxu0 0.0
        %6948 = vmatpush1.msra.mxu0 0.0
        %6949 = vmatprep.subr.mxu0 0.0
        %6950 = vmatpush1.msra.mxu0 0.0
        %6951 = vmatprep.subr.mxu0 0.0
        %6952 = vmatpush1.msra.mxu0 0.0
        %6953 = vmatprep.subr.mxu0 0.0
        %6954 = vmatpush1.msra.mxu0 0.0
        %6955 = vmatprep.subr.mxu0 0.0
        %6956 = vmatpush1.msra.mxu0 0.0
        %6957 = vmatprep.subr.mxu0 0.0
        %6958 = vmatpush1.msra.mxu0 0.0
        %6959 = vmatprep.subr.mxu0 0.0
        %6960 = vmatpush1.msra.mxu0 0.0
        %6961 = vmatprep.subr.mxu0 0.0
        %6962 = vmatpush1.msra.mxu0 0.0
        %6963 = vmatprep.subr.mxu0 0.0
        %6964 = vmatpush1.msra.mxu0 0.0
        %6965 = vmatprep.subr.mxu0 0.0
        %6966 = vmatpush1.msra.mxu0 0.0
        %6967 = vmatprep.subr.mxu0 0.0
        %6968 = vmatpush1.msra.mxu0 0.0
        %6969 = vmatprep.subr.mxu0 0.0
        %6970 = vmatpush1.msra.mxu0 0.0
        %6971 = vmatprep.subr.mxu0 0.0
        %6972 = vmatpush1.msra.mxu0 0.0
        %6973 = vmatprep.subr.mxu0 0.0
        %6974 = vmatpush1.msra.mxu0 0.0
        %6975 = vmatprep.subr.mxu0 0.0
        %6976 = vmatpush1.msra.mxu0 0.0
        %6977 = vmatprep.subr.mxu0 0.0
        %6978 = vmatpush1.msra.mxu0 0.0
        %6979 = vmatprep.subr.mxu0 0.0
        %6980 = vmatpush1.msra.mxu0 0.0
        %6981 = vmatprep.subr.mxu0 0.0
        %6982 = vmatpush1.msra.mxu0 0.0
        %6983 = vmatprep.subr.mxu0 0.0
        %6984 = vmatpush1.msra.mxu0 0.0
        %6985 = vmatprep.subr.mxu0 0.0
        %6986 = vmatpush1.msra.mxu0 0.0
        %6987 = vmatprep.subr.mxu0 0.0
        %6988 = vmatpush1.msra.mxu0 0.0
        %6989 = vmatprep.subr.mxu0 0.0
        %6990 = vmatpush1.msra.mxu0 0.0
        %6991 = vmatprep.subr.mxu0 0.0
        %6992 = vmatpush1.msra.mxu0 0.0
        %6993 = vmatprep.subr.mxu0 0.0
        %6994 = vmatpush1.msra.mxu0 0.0
        %6995 = vmatprep.subr.mxu0 0.0
        %6996 = vmatpush1.msra.mxu0 0.0
        %6997 = vmatprep.subr.mxu0 0.0
        %6998 = vmatpush1.msra.mxu0 0.0
        %6999 = vmatprep.subr.mxu0 0.0
        %7000 = vmatpush1.msra.mxu0 0.0
        %7001 = vmatprep.subr.mxu0 0.0
        %7002 = vmatpush1.msra.mxu0 0.0
        %7003 = vmatprep.subr.mxu0 0.0
        %7004 = vmatpush1.msra.mxu0 0.0
        %7005 = vmatprep.subr.mxu0 0.0
        %7006 = vmatpush1.msra.mxu0 0.0
        %7007 = vmatprep.subr.mxu0 0.0
        %7008 = vmatpush1.msra.mxu0 0.0
        %7009 = vmatprep.mubr.f32.mxu0 0.0
        %v7010 = vand.u32 %v6773, 4294901760
        %v7011 = vsub.f32 %v6773, %v7010
        %7012 = vmatmul.mubr.f32.gmra.mrb[0].mxu0 %v7011
        %v7013 = vpop.f32.mrb[0].mxu0
        %v7014 = vadd.f32 %v6937, %v7013
        %v7015 = vpop.f32.mrb[0].mxu0
        %v7016 = vadd.f32 %v6939, %v7015
        %7017 = vdwg.mxu0
        %v7018 = vand.u32 %v6777, 4294901760
        %7019 = vmatprep.subr.mxu0 %v7018
        %v7020 = vand.u32 %v6775, 4294901760
        %7021 = vmatpush1.msra.mxu0 %v7020
        %7022 = vmatprep.subr.mxu0 0.0
        %7023 = vmatpush1.msra.mxu0 0.0
        %7024 = vmatprep.subr.mxu0 0.0
        %7025 = vmatpush1.msra.mxu0 0.0
        %7026 = vmatprep.subr.mxu0 0.0
        %7027 = vmatpush1.msra.mxu0 0.0
        %7028 = vmatprep.subr.mxu0 0.0
        %7029 = vmatpush1.msra.mxu0 0.0
        %7030 = vmatprep.subr.mxu0 0.0
        %7031 = vmatpush1.msra.mxu0 0.0
        %7032 = vmatprep.subr.mxu0 0.0
        %7033 = vmatpush1.msra.mxu0 0.0
        %7034 = vmatprep.subr.mxu0 0.0
        %7035 = vmatpush1.msra.mxu0 0.0
        %7036 = vmatprep.subr.mxu0 0.0
        %7037 = vmatpush1.msra.mxu0 0.0
        %7038 = vmatprep.subr.mxu0 0.0
        %7039 = vmatpush1.msra.mxu0 0.0
        %7040 = vmatprep.subr.mxu0 0.0
        %7041 = vmatpush1.msra.mxu0 0.0
        %7042 = vmatprep.subr.mxu0 0.0
        %7043 = vmatpush1.msra.mxu0 0.0
        %7044 = vmatprep.subr.mxu0 0.0
        %7045 = vmatpush1.msra.mxu0 0.0
        %7046 = vmatprep.subr.mxu0 0.0
        %7047 = vmatpush1.msra.mxu0 0.0
        %7048 = vmatprep.subr.mxu0 0.0
        %7049 = vmatpush1.msra.mxu0 0.0
        %7050 = vmatprep.subr.mxu0 0.0
        %7051 = vmatpush1.msra.mxu0 0.0
        %7052 = vmatprep.subr.mxu0 0.0
        %7053 = vmatpush1.msra.mxu0 0.0
        %7054 = vmatprep.subr.mxu0 0.0
        %7055 = vmatpush1.msra.mxu0 0.0
        %7056 = vmatprep.subr.mxu0 0.0
        %7057 = vmatpush1.msra.mxu0 0.0
        %7058 = vmatprep.subr.mxu0 0.0
        %7059 = vmatpush1.msra.mxu0 0.0
        %7060 = vmatprep.subr.mxu0 0.0
        %7061 = vmatpush1.msra.mxu0 0.0
        %7062 = vmatprep.subr.mxu0 0.0
        %7063 = vmatpush1.msra.mxu0 0.0
        %7064 = vmatprep.subr.mxu0 0.0
        %7065 = vmatpush1.msra.mxu0 0.0
        %7066 = vmatprep.subr.mxu0 0.0
        %7067 = vmatpush1.msra.mxu0 0.0
        %7068 = vmatprep.subr.mxu0 0.0
        %7069 = vmatpush1.msra.mxu0 0.0
        %7070 = vmatprep.subr.mxu0 0.0
        %7071 = vmatpush1.msra.mxu0 0.0
        %7072 = vmatprep.subr.mxu0 0.0
        %7073 = vmatpush1.msra.mxu0 0.0
        %7074 = vmatprep.subr.mxu0 0.0
        %7075 = vmatpush1.msra.mxu0 0.0
        %7076 = vmatprep.subr.mxu0 0.0
        %7077 = vmatpush1.msra.mxu0 0.0
        %7078 = vmatprep.subr.mxu0 0.0
        %7079 = vmatpush1.msra.mxu0 0.0
        %7080 = vmatprep.subr.mxu0 0.0
        %7081 = vmatpush1.msra.mxu0 0.0
        %7082 = vmatprep.subr.mxu0 0.0
        %7083 = vmatpush1.msra.mxu0 0.0
        %7084 = vmatprep.mubr.f32.mxu0 0.0
        %v7085 = vand.u32 %v6773, 4294901760
        %v7086 = vsub.f32 %v6773, %v7085
        %v7087 = vand.u32 %v7086, 4294901760
        %7088 = vmatmul.mubr.f32.gmra.mrb[0].mxu0 %v7087
        %v7089 = vpop.f32.mrb[0].mxu0
        %v7090 = vadd.f32 %v7014, %v7089
        %v7091 = vpop.f32.mrb[0].mxu0
        %v7092 = vadd.f32 %v7016, %v7091
        %7093 = vdwg.mxu0
        %v7094 = vand.u32 %v6777, 4294901760
        %v7095 = vsub.f32 %v6777, %v7094
        %v7096 = vand.u32 %v7095, 4294901760
        %7097 = vmatprep.subr.mxu0 %v7096
        %v7098 = vand.u32 %v6775, 4294901760
        %v7099 = vsub.f32 %v6775, %v7098
        %v7100 = vand.u32 %v7099, 4294901760
        %7101 = vmatpush1.msra.mxu0 %v7100
        %7102 = vmatprep.subr.mxu0 0.0
        %7103 = vmatpush1.msra.mxu0 0.0
        %7104 = vmatprep.subr.mxu0 0.0
        %7105 = vmatpush1.msra.mxu0 0.0
        %7106 = vmatprep.subr.mxu0 0.0
        %7107 = vmatpush1.msra.mxu0 0.0
        %7108 = vmatprep.subr.mxu0 0.0
        %7109 = vmatpush1.msra.mxu0 0.0
        %7110 = vmatprep.subr.mxu0 0.0
        %7111 = vmatpush1.msra.mxu0 0.0
        %7112 = vmatprep.subr.mxu0 0.0
        %7113 = vmatpush1.msra.mxu0 0.0
        %7114 = vmatprep.subr.mxu0 0.0
        %7115 = vmatpush1.msra.mxu0 0.0
        %7116 = vmatprep.subr.mxu0 0.0
        %7117 = vmatpush1.msra.mxu0 0.0
        %7118 = vmatprep.subr.mxu0 0.0
        %7119 = vmatpush1.msra.mxu0 0.0
        %7120 = vmatprep.subr.mxu0 0.0
        %7121 = vmatpush1.msra.mxu0 0.0
        %7122 = vmatprep.subr.mxu0 0.0
        %7123 = vmatpush1.msra.mxu0 0.0
        %7124 = vmatprep.subr.mxu0 0.0
        %7125 = vmatpush1.msra.mxu0 0.0
        %7126 = vmatprep.subr.mxu0 0.0
        %7127 = vmatpush1.msra.mxu0 0.0
        %7128 = vmatprep.subr.mxu0 0.0
        %7129 = vmatpush1.msra.mxu0 0.0
        %7130 = vmatprep.subr.mxu0 0.0
        %7131 = vmatpush1.msra.mxu0 0.0
        %7132 = vmatprep.subr.mxu0 0.0
        %7133 = vmatpush1.msra.mxu0 0.0
        %7134 = vmatprep.subr.mxu0 0.0
        %7135 = vmatpush1.msra.mxu0 0.0
        %7136 = vmatprep.subr.mxu0 0.0
        %7137 = vmatpush1.msra.mxu0 0.0
        %7138 = vmatprep.subr.mxu0 0.0
        %7139 = vmatpush1.msra.mxu0 0.0
        %7140 = vmatprep.subr.mxu0 0.0
        %7141 = vmatpush1.msra.mxu0 0.0
        %7142 = vmatprep.subr.mxu0 0.0
        %7143 = vmatpush1.msra.mxu0 0.0
        %7144 = vmatprep.subr.mxu0 0.0
        %7145 = vmatpush1.msra.mxu0 0.0
        %7146 = vmatprep.subr.mxu0 0.0
        %7147 = vmatpush1.msra.mxu0 0.0
        %7148 = vmatprep.subr.mxu0 0.0
        %7149 = vmatpush1.msra.mxu0 0.0
        %7150 = vmatprep.subr.mxu0 0.0
        %7151 = vmatpush1.msra.mxu0 0.0
        %7152 = vmatprep.subr.mxu0 0.0
        %7153 = vmatpush1.msra.mxu0 0.0
        %7154 = vmatprep.subr.mxu0 0.0
        %7155 = vmatpush1.msra.mxu0 0.0
        %7156 = vmatprep.subr.mxu0 0.0
        %7157 = vmatpush1.msra.mxu0 0.0
        %7158 = vmatprep.subr.mxu0 0.0
        %7159 = vmatpush1.msra.mxu0 0.0
        %7160 = vmatprep.subr.mxu0 0.0
        %7161 = vmatpush1.msra.mxu0 0.0
        %7162 = vmatprep.subr.mxu0 0.0
        %7163 = vmatpush1.msra.mxu0 0.0
        %7164 = vmatprep.mubr.f32.mxu0 0.0
        %v7165 = vand.u32 %v6773, 4294901760
        %7166 = vmatmul.mubr.f32.gmra.mrb[0].mxu0 %v7165
        %v7167 = vpop.f32.mrb[0].mxu0
        %v7168 = vadd.f32 %v7090, %v7167
        %v7169 = vpop.f32.mrb[0].mxu0
        %v7170 = vadd.f32 %v7092, %v7169
        %7171 = vdwg.mxu0
        %v7172 = vand.u32 %v6777, 4294901760
        %7173 = vmatprep.subr.mxu0 %v7172
        %v7174 = vand.u32 %v6775, 4294901760
        %7175 = vmatpush1.msra.mxu0 %v7174
        %7176 = vmatprep.subr.mxu0 0.0
        %7177 = vmatpush1.msra.mxu0 0.0
        %7178 = vmatprep.subr.mxu0 0.0
        %7179 = vmatpush1.msra.mxu0 0.0
        %7180 = vmatprep.subr.mxu0 0.0
        %7181 = vmatpush1.msra.mxu0 0.0
        %7182 = vmatprep.subr.mxu0 0.0
        %7183 = vmatpush1.msra.mxu0 0.0
        %7184 = vmatprep.subr.mxu0 0.0
        %7185 = vmatpush1.msra.mxu0 0.0
        %7186 = vmatprep.subr.mxu0 0.0
        %7187 = vmatpush1.msra.mxu0 0.0
        %7188 = vmatprep.subr.mxu0 0.0
        %7189 = vmatpush1.msra.mxu0 0.0
        %7190 = vmatprep.subr.mxu0 0.0
        %7191 = vmatpush1.msra.mxu0 0.0
        %7192 = vmatprep.subr.mxu0 0.0
        %7193 = vmatpush1.msra.mxu0 0.0
        %7194 = vmatprep.subr.mxu0 0.0
        %7195 = vmatpush1.msra.mxu0 0.0
        %7196 = vmatprep.subr.mxu0 0.0
        %7197 = vmatpush1.msra.mxu0 0.0
        %7198 = vmatprep.subr.mxu0 0.0
        %7199 = vmatpush1.msra.mxu0 0.0
        %7200 = vmatprep.subr.mxu0 0.0
        %7201 = vmatpush1.msra.mxu0 0.0
        %7202 = vmatprep.subr.mxu0 0.0
        %7203 = vmatpush1.msra.mxu0 0.0
        %7204 = vmatprep.subr.mxu0 0.0
        %7205 = vmatpush1.msra.mxu0 0.0
        %7206 = vmatprep.subr.mxu0 0.0
        %7207 = vmatpush1.msra.mxu0 0.0
        %7208 = vmatprep.subr.mxu0 0.0
        %7209 = vmatpush1.msra.mxu0 0.0
        %7210 = vmatprep.subr.mxu0 0.0
        %7211 = vmatpush1.msra.mxu0 0.0
        %7212 = vmatprep.subr.mxu0 0.0
        %7213 = vmatpush1.msra.mxu0 0.0
        %7214 = vmatprep.subr.mxu0 0.0
        %7215 = vmatpush1.msra.mxu0 0.0
        %7216 = vmatprep.subr.mxu0 0.0
        %7217 = vmatpush1.msra.mxu0 0.0
        %7218 = vmatprep.subr.mxu0 0.0
        %7219 = vmatpush1.msra.mxu0 0.0
        %7220 = vmatprep.subr.mxu0 0.0
        %7221 = vmatpush1.msra.mxu0 0.0
        %7222 = vmatprep.subr.mxu0 0.0
        %7223 = vmatpush1.msra.mxu0 0.0
        %7224 = vmatprep.subr.mxu0 0.0
        %7225 = vmatpush1.msra.mxu0 0.0
        %7226 = vmatprep.subr.mxu0 0.0
        %7227 = vmatpush1.msra.mxu0 0.0
        %7228 = vmatprep.subr.mxu0 0.0
        %7229 = vmatpush1.msra.mxu0 0.0
        %7230 = vmatprep.subr.mxu0 0.0
        %7231 = vmatpush1.msra.mxu0 0.0
        %7232 = vmatprep.subr.mxu0 0.0
        %7233 = vmatpush1.msra.mxu0 0.0
        %7234 = vmatprep.subr.mxu0 0.0
        %7235 = vmatpush1.msra.mxu0 0.0
        %7236 = vmatprep.subr.mxu0 0.0
        %7237 = vmatpush1.msra.mxu0 0.0
        %7238 = vmatprep.mubr.f32.mxu0 0.0
        %v7239 = vand.u32 %v6773, 4294901760
        %7240 = vmatmul.mubr.f32.gmra.mrb[0].mxu0 %v7239
        %v7241 = vpop.f32.mrb[0].mxu0
        %v7242 = vadd.f32 %v7168, %v7241
        %v7243 = vpop.f32.mrb[0].mxu0
        %v7244 = vadd.f32 %v7170, %v7243
        %7245 = vdwg.mxu0
        %7246 = vmatprep.subr.mxu0 0.0
        %v7247 = vand.u32 %v6779, 4294901760
        %7248 = vmatpush1.msra.mxu0 %v7247
        %7249 = vmatprep.subr.mxu0 0.0
        %7250 = vmatpush1.msra.mxu0 0.0
        %7251 = vmatprep.subr.mxu0 0.0
        %7252 = vmatpush1.msra.mxu0 0.0
        %7253 = vmatprep.subr.mxu0 0.0
        %7254 = vmatpush1.msra.mxu0 0.0
        %7255 = vmatprep.subr.mxu0 0.0
        %7256 = vmatpush1.msra.mxu0 0.0
        %7257 = vmatprep.subr.mxu0 0.0
        %7258 = vmatpush1.msra.mxu0 0.0
        %7259 = vmatprep.subr.mxu0 0.0
        %7260 = vmatpush1.msra.mxu0 0.0
        %7261 = vmatprep.subr.mxu0 0.0
        %7262 = vmatpush1.msra.mxu0 0.0
        %7263 = vmatprep.subr.mxu0 0.0
        %7264 = vmatpush1.msra.mxu0 0.0
        %7265 = vmatprep.subr.mxu0 0.0
        %7266 = vmatpush1.msra.mxu0 0.0
        %7267 = vmatprep.subr.mxu0 0.0
        %7268 = vmatpush1.msra.mxu0 0.0
        %7269 = vmatprep.subr.mxu0 0.0
        %7270 = vmatpush1.msra.mxu0 0.0
        %7271 = vmatprep.subr.mxu0 0.0
        %7272 = vmatpush1.msra.mxu0 0.0
        %7273 = vmatprep.subr.mxu0 0.0
        %7274 = vmatpush1.msra.mxu0 0.0
        %7275 = vmatprep.subr.mxu0 0.0
        %7276 = vmatpush1.msra.mxu0 0.0
        %7277 = vmatprep.subr.mxu0 0.0
        %7278 = vmatpush1.msra.mxu0 0.0
        %7279 = vmatprep.subr.mxu0 0.0
        %7280 = vmatpush1.msra.mxu0 0.0
        %7281 = vmatprep.subr.mxu0 0.0
        %7282 = vmatpush1.msra.mxu0 0.0
        %7283 = vmatprep.subr.mxu0 0.0
        %7284 = vmatpush1.msra.mxu0 0.0
        %7285 = vmatprep.subr.mxu0 0.0
        %7286 = vmatpush1.msra.mxu0 0.0
        %7287 = vmatprep.subr.mxu0 0.0
        %7288 = vmatpush1.msra.mxu0 0.0
        %7289 = vmatprep.subr.mxu0 0.0
        %7290 = vmatpush1.msra.mxu0 0.0
        %7291 = vmatprep.subr.mxu0 0.0
        %7292 = vmatpush1.msra.mxu0 0.0
        %7293 = vmatprep.subr.mxu0 0.0
        %7294 = vmatpush1.msra.mxu0 0.0
        %7295 = vmatprep.subr.mxu0 0.0
        %7296 = vmatpush1.msra.mxu0 0.0
        %7297 = vmatprep.subr.mxu0 0.0
        %7298 = vmatpush1.msra.mxu0 0.0
        %7299 = vmatprep.subr.mxu0 0.0
        %7300 = vmatpush1.msra.mxu0 0.0
        %7301 = vmatprep.subr.mxu0 0.0
        %7302 = vmatpush1.msra.mxu0 0.0
        %7303 = vmatprep.subr.mxu0 0.0
        %7304 = vmatpush1.msra.mxu0 0.0
        %7305 = vmatprep.subr.mxu0 0.0
        %7306 = vmatpush1.msra.mxu0 0.0
        %7307 = vmatprep.subr.mxu0 0.0
        %7308 = vmatpush1.msra.mxu0 0.0
        %7309 = vmatprep.subr.mxu0 0.0
        %7310 = vmatpush1.msra.mxu0 0.0
        %7311 = vmatprep.mubr.f32.mxu0 0.0
        %v7312 = vand.u32 %v6773, 4294901760
        %v7313 = vsub.f32 %v6773, %v7312
        %v7314 = vand.u32 %v7313, 4294901760
        %v7315 = vsub.f32 %v7313, %v7314
        %v7316 = vand.u32 %v7315, 4294901760
        %7317 = vmatmul.mubr.f32.gmra.mrb[0].mxu0 %v7316
        %v7318 = vpop.f32.mrb[0].mxu0
        %v7319 = vadd.f32 0.0, %v7318
        %v7320 = vpop.f32.mrb[0].mxu0
        %7321 = vdwg.mxu0
        %7322 = vmatprep.subr.mxu0 0.0
        %v7323 = vand.u32 %v6779, 4294901760
        %v7324 = vsub.f32 %v6779, %v7323
        %v7325 = vand.u32 %v7324, 4294901760
        %v7326 = vsub.f32 %v7324, %v7325
        %v7327 = vand.u32 %v7326, 4294901760
        %7328 = vmatpush1.msra.mxu0 %v7327
        %7329 = vmatprep.subr.mxu0 0.0
        %7330 = vmatpush1.msra.mxu0 0.0
        %7331 = vmatprep.subr.mxu0 0.0
        %7332 = vmatpush1.msra.mxu0 0.0
        %7333 = vmatprep.subr.mxu0 0.0
        %7334 = vmatpush1.msra.mxu0 0.0
        %7335 = vmatprep.subr.mxu0 0.0
        %7336 = vmatpush1.msra.mxu0 0.0
        %7337 = vmatprep.subr.mxu0 0.0
        %7338 = vmatpush1.msra.mxu0 0.0
        %7339 = vmatprep.subr.mxu0 0.0
        %7340 = vmatpush1.msra.mxu0 0.0
        %7341 = vmatprep.subr.mxu0 0.0
        %7342 = vmatpush1.msra.mxu0 0.0
        %7343 = vmatprep.subr.mxu0 0.0
        %7344 = vmatpush1.msra.mxu0 0.0
        %7345 = vmatprep.subr.mxu0 0.0
        %7346 = vmatpush1.msra.mxu0 0.0
        %7347 = vmatprep.subr.mxu0 0.0
        %7348 = vmatpush1.msra.mxu0 0.0
        %7349 = vmatprep.subr.mxu0 0.0
        %7350 = vmatpush1.msra.mxu0 0.0
        %7351 = vmatprep.subr.mxu0 0.0
        %7352 = vmatpush1.msra.mxu0 0.0
        %7353 = vmatprep.subr.mxu0 0.0
        %7354 = vmatpush1.msra.mxu0 0.0
        %7355 = vmatprep.subr.mxu0 0.0
        %7356 = vmatpush1.msra.mxu0 0.0
        %7357 = vmatprep.subr.mxu0 0.0
        %7358 = vmatpush1.msra.mxu0 0.0
        %7359 = vmatprep.subr.mxu0 0.0
        %7360 = vmatpush1.msra.mxu0 0.0
        %7361 = vmatprep.subr.mxu0 0.0
        %7362 = vmatpush1.msra.mxu0 0.0
        %7363 = vmatprep.subr.mxu0 0.0
        %7364 = vmatpush1.msra.mxu0 0.0
        %7365 = vmatprep.subr.mxu0 0.0
        %7366 = vmatpush1.msra.mxu0 0.0
        %7367 = vmatprep.subr.mxu0 0.0
        %7368 = vmatpush1.msra.mxu0 0.0
        %7369 = vmatprep.subr.mxu0 0.0
        %7370 = vmatpush1.msra.mxu0 0.0
        %7371 = vmatprep.subr.mxu0 0.0
        %7372 = vmatpush1.msra.mxu0 0.0
        %7373 = vmatprep.subr.mxu0 0.0
        %7374 = vmatpush1.msra.mxu0 0.0
        %7375 = vmatprep.subr.mxu0 0.0
        %7376 = vmatpush1.msra.mxu0 0.0
        %7377 = vmatprep.subr.mxu0 0.0
        %7378 = vmatpush1.msra.mxu0 0.0
        %7379 = vmatprep.subr.mxu0 0.0
        %7380 = vmatpush1.msra.mxu0 0.0
        %7381 = vmatprep.subr.mxu0 0.0
        %7382 = vmatpush1.msra.mxu0 0.0
        %7383 = vmatprep.subr.mxu0 0.0
        %7384 = vmatpush1.msra.mxu0 0.0
        %7385 = vmatprep.subr.mxu0 0.0
        %7386 = vmatpush1.msra.mxu0 0.0
        %7387 = vmatprep.subr.mxu0 0.0
        %7388 = vmatpush1.msra.mxu0 0.0
        %7389 = vmatprep.subr.mxu0 0.0
        %7390 = vmatpush1.msra.mxu0 0.0
        %7391 = vmatprep.mubr.f32.mxu0 0.0
        %v7392 = vand.u32 %v6773, 4294901760
        %7393 = vmatmul.mubr.f32.gmra.mrb[0].mxu0 %v7392
        %v7394 = vpop.f32.mrb[0].mxu0
        %v7395 = vadd.f32 %v7319, %v7394
        %v7396 = vpop.f32.mrb[0].mxu0
        %7397 = vdwg.mxu0
        %7398 = vmatprep.subr.mxu0 0.0
        %v7399 = vand.u32 %v6779, 4294901760
        %v7400 = vsub.f32 %v6779, %v7399
        %7401 = vmatpush1.msra.mxu0 %v7400
        %7402 = vmatprep.subr.mxu0 0.0
        %7403 = vmatpush1.msra.mxu0 0.0
        %7404 = vmatprep.subr.mxu0 0.0
        %7405 = vmatpush1.msra.mxu0 0.0
        %7406 = vmatprep.subr.mxu0 0.0
        %7407 = vmatpush1.msra.mxu0 0.0
        %7408 = vmatprep.subr.mxu0 0.0
        %7409 = vmatpush1.msra.mxu0 0.0
        %7410 = vmatprep.subr.mxu0 0.0
        %7411 = vmatpush1.msra.mxu0 0.0
        %7412 = vmatprep.subr.mxu0 0.0
        %7413 = vmatpush1.msra.mxu0 0.0
        %7414 = vmatprep.subr.mxu0 0.0
        %7415 = vmatpush1.msra.mxu0 0.0
        %7416 = vmatprep.subr.mxu0 0.0
        %7417 = vmatpush1.msra.mxu0 0.0
        %7418 = vmatprep.subr.mxu0 0.0
        %7419 = vmatpush1.msra.mxu0 0.0
        %7420 = vmatprep.subr.mxu0 0.0
        %7421 = vmatpush1.msra.mxu0 0.0
        %7422 = vmatprep.subr.mxu0 0.0
        %7423 = vmatpush1.msra.mxu0 0.0
        %7424 = vmatprep.subr.mxu0 0.0
        %7425 = vmatpush1.msra.mxu0 0.0
        %7426 = vmatprep.subr.mxu0 0.0
        %7427 = vmatpush1.msra.mxu0 0.0
        %7428 = vmatprep.subr.mxu0 0.0
        %7429 = vmatpush1.msra.mxu0 0.0
        %7430 = vmatprep.subr.mxu0 0.0
        %7431 = vmatpush1.msra.mxu0 0.0
        %7432 = vmatprep.subr.mxu0 0.0
        %7433 = vmatpush1.msra.mxu0 0.0
        %7434 = vmatprep.subr.mxu0 0.0
        %7435 = vmatpush1.msra.mxu0 0.0
        %7436 = vmatprep.subr.mxu0 0.0
        %7437 = vmatpush1.msra.mxu0 0.0
        %7438 = vmatprep.subr.mxu0 0.0
        %7439 = vmatpush1.msra.mxu0 0.0
        %7440 = vmatprep.subr.mxu0 0.0
        %7441 = vmatpush1.msra.mxu0 0.0
        %7442 = vmatprep.subr.mxu0 0.0
        %7443 = vmatpush1.msra.mxu0 0.0
        %7444 = vmatprep.subr.mxu0 0.0
        %7445 = vmatpush1.msra.mxu0 0.0
        %7446 = vmatprep.subr.mxu0 0.0
        %7447 = vmatpush1.msra.mxu0 0.0
        %7448 = vmatprep.subr.mxu0 0.0
        %7449 = vmatpush1.msra.mxu0 0.0
        %7450 = vmatprep.subr.mxu0 0.0
        %7451 = vmatpush1.msra.mxu0 0.0
        %7452 = vmatprep.subr.mxu0 0.0
        %7453 = vmatpush1.msra.mxu0 0.0
        %7454 = vmatprep.subr.mxu0 0.0
        %7455 = vmatpush1.msra.mxu0 0.0
        %7456 = vmatprep.subr.mxu0 0.0
        %7457 = vmatpush1.msra.mxu0 0.0
        %7458 = vmatprep.subr.mxu0 0.0
        %7459 = vmatpush1.msra.mxu0 0.0
        %7460 = vmatprep.subr.mxu0 0.0
        %7461 = vmatpush1.msra.mxu0 0.0
        %7462 = vmatprep.subr.mxu0 0.0
        %7463 = vmatpush1.msra.mxu0 0.0
        %7464 = vmatprep.mubr.f32.mxu0 0.0
        %v7465 = vand.u32 %v6773, 4294901760
        %v7466 = vsub.f32 %v6773, %v7465
        %7467 = vmatmul.mubr.f32.gmra.mrb[0].mxu0 %v7466
        %v7468 = vpop.f32.mrb[0].mxu0
        %v7469 = vadd.f32 %v7395, %v7468
        %v7470 = vpop.f32.mrb[0].mxu0
        %7471 = vdwg.mxu0
        %7472 = vmatprep.subr.mxu0 0.0
        %v7473 = vand.u32 %v6779, 4294901760
        %7474 = vmatpush1.msra.mxu0 %v7473
        %7475 = vmatprep.subr.mxu0 0.0
        %7476 = vmatpush1.msra.mxu0 0.0
        %7477 = vmatprep.subr.mxu0 0.0
        %7478 = vmatpush1.msra.mxu0 0.0
        %7479 = vmatprep.subr.mxu0 0.0
        %7480 = vmatpush1.msra.mxu0 0.0
        %7481 = vmatprep.subr.mxu0 0.0
        %7482 = vmatpush1.msra.mxu0 0.0
        %7483 = vmatprep.subr.mxu0 0.0
        %7484 = vmatpush1.msra.mxu0 0.0
        %7485 = vmatprep.subr.mxu0 0.0
        %7486 = vmatpush1.msra.mxu0 0.0
        %7487 = vmatprep.subr.mxu0 0.0
        %7488 = vmatpush1.msra.mxu0 0.0
        %7489 = vmatprep.subr.mxu0 0.0
        %7490 = vmatpush1.msra.mxu0 0.0
        %7491 = vmatprep.subr.mxu0 0.0
        %7492 = vmatpush1.msra.mxu0 0.0
        %7493 = vmatprep.subr.mxu0 0.0
        %7494 = vmatpush1.msra.mxu0 0.0
        %7495 = vmatprep.subr.mxu0 0.0
        %7496 = vmatpush1.msra.mxu0 0.0
        %7497 = vmatprep.subr.mxu0 0.0
        %7498 = vmatpush1.msra.mxu0 0.0
        %7499 = vmatprep.subr.mxu0 0.0
        %7500 = vmatpush1.msra.mxu0 0.0
        %7501 = vmatprep.subr.mxu0 0.0
        %7502 = vmatpush1.msra.mxu0 0.0
        %7503 = vmatprep.subr.mxu0 0.0
        %7504 = vmatpush1.msra.mxu0 0.0
        %7505 = vmatprep.subr.mxu0 0.0
        %7506 = vmatpush1.msra.mxu0 0.0
        %7507 = vmatprep.subr.mxu0 0.0
        %7508 = vmatpush1.msra.mxu0 0.0
        %7509 = vmatprep.subr.mxu0 0.0
        %7510 = vmatpush1.msra.mxu0 0.0
        %7511 = vmatprep.subr.mxu0 0.0
        %7512 = vmatpush1.msra.mxu0 0.0
        %7513 = vmatprep.subr.mxu0 0.0
        %7514 = vmatpush1.msra.mxu0 0.0
        %7515 = vmatprep.subr.mxu0 0.0
        %7516 = vmatpush1.msra.mxu0 0.0
        %7517 = vmatprep.subr.mxu0 0.0
        %7518 = vmatpush1.msra.mxu0 0.0
        %7519 = vmatprep.subr.mxu0 0.0
        %7520 = vmatpush1.msra.mxu0 0.0
        %7521 = vmatprep.subr.mxu0 0.0
        %7522 = vmatpush1.msra.mxu0 0.0
        %7523 = vmatprep.subr.mxu0 0.0
        %7524 = vmatpush1.msra.mxu0 0.0
        %7525 = vmatprep.subr.mxu0 0.0
        %7526 = vmatpush1.msra.mxu0 0.0
        %7527 = vmatprep.subr.mxu0 0.0
        %7528 = vmatpush1.msra.mxu0 0.0
        %7529 = vmatprep.subr.mxu0 0.0
        %7530 = vmatpush1.msra.mxu0 0.0
        %7531 = vmatprep.subr.mxu0 0.0
        %7532 = vmatpush1.msra.mxu0 0.0
        %7533 = vmatprep.subr.mxu0 0.0
        %7534 = vmatpush1.msra.mxu0 0.0
        %7535 = vmatprep.subr.mxu0 0.0
        %7536 = vmatpush1.msra.mxu0 0.0
        %7537 = vmatprep.mubr.f32.mxu0 0.0
        %v7538 = vand.u32 %v6773, 4294901760
        %v7539 = vsub.f32 %v6773, %v7538
        %v7540 = vand.u32 %v7539, 4294901760
        %7541 = vmatmul.mubr.f32.gmra.mrb[0].mxu0 %v7540
        %v7542 = vpop.f32.mrb[0].mxu0
        %v7543 = vadd.f32 %v7469, %v7542
        %v7544 = vpop.f32.mrb[0].mxu0
        %7545 = vdwg.mxu0
        %7546 = vmatprep.subr.mxu0 0.0
        %v7547 = vand.u32 %v6779, 4294901760
        %v7548 = vsub.f32 %v6779, %v7547
        %v7549 = vand.u32 %v7548, 4294901760
        %7550 = vmatpush1.msra.mxu0 %v7549
        %7551 = vmatprep.subr.mxu0 0.0
        %7552 = vmatpush1.msra.mxu0 0.0
        %7553 = vmatprep.subr.mxu0 0.0
        %7554 = vmatpush1.msra.mxu0 0.0
        %7555 = vmatprep.subr.mxu0 0.0
        %7556 = vmatpush1.msra.mxu0 0.0
        %7557 = vmatprep.subr.mxu0 0.0
        %7558 = vmatpush1.msra.mxu0 0.0
        %7559 = vmatprep.subr.mxu0 0.0
        %7560 = vmatpush1.msra.mxu0 0.0
        %7561 = vmatprep.subr.mxu0 0.0
        %7562 = vmatpush1.msra.mxu0 0.0
        %7563 = vmatprep.subr.mxu0 0.0
        %7564 = vmatpush1.msra.mxu0 0.0
        %7565 = vmatprep.subr.mxu0 0.0
        %7566 = vmatpush1.msra.mxu0 0.0
        %7567 = vmatprep.subr.mxu0 0.0
        %7568 = vmatpush1.msra.mxu0 0.0
        %7569 = vmatprep.subr.mxu0 0.0
        %7570 = vmatpush1.msra.mxu0 0.0
        %7571 = vmatprep.subr.mxu0 0.0
        %7572 = vmatpush1.msra.mxu0 0.0
        %7573 = vmatprep.subr.mxu0 0.0
        %7574 = vmatpush1.msra.mxu0 0.0
        %7575 = vmatprep.subr.mxu0 0.0
        %7576 = vmatpush1.msra.mxu0 0.0
        %7577 = vmatprep.subr.mxu0 0.0
        %7578 = vmatpush1.msra.mxu0 0.0
        %7579 = vmatprep.subr.mxu0 0.0
        %7580 = vmatpush1.msra.mxu0 0.0
        %7581 = vmatprep.subr.mxu0 0.0
        %7582 = vmatpush1.msra.mxu0 0.0
        %7583 = vmatprep.subr.mxu0 0.0
        %7584 = vmatpush1.msra.mxu0 0.0
        %7585 = vmatprep.subr.mxu0 0.0
        %7586 = vmatpush1.msra.mxu0 0.0
        %7587 = vmatprep.subr.mxu0 0.0
        %7588 = vmatpush1.msra.mxu0 0.0
        %7589 = vmatprep.subr.mxu0 0.0
        %7590 = vmatpush1.msra.mxu0 0.0
        %7591 = vmatprep.subr.mxu0 0.0
        %7592 = vmatpush1.msra.mxu0 0.0
        %7593 = vmatprep.subr.mxu0 0.0
        %7594 = vmatpush1.msra.mxu0 0.0
        %7595 = vmatprep.subr.mxu0 0.0
        %7596 = vmatpush1.msra.mxu0 0.0
        %7597 = vmatprep.subr.mxu0 0.0
        %7598 = vmatpush1.msra.mxu0 0.0
        %7599 = vmatprep.subr.mxu0 0.0
        %7600 = vmatpush1.msra.mxu0 0.0
        %7601 = vmatprep.subr.mxu0 0.0
        %7602 = vmatpush1.msra.mxu0 0.0
        %7603 = vmatprep.subr.mxu0 0.0
        %7604 = vmatpush1.msra.mxu0 0.0
        %7605 = vmatprep.subr.mxu0 0.0
        %7606 = vmatpush1.msra.mxu0 0.0
        %7607 = vmatprep.subr.mxu0 0.0
        %7608 = vmatpush1.msra.mxu0 0.0
        %7609 = vmatprep.subr.mxu0 0.0
        %7610 = vmatpush1.msra.mxu0 0.0
        %7611 = vmatprep.subr.mxu0 0.0
        %7612 = vmatpush1.msra.mxu0 0.0
        %7613 = vmatprep.mubr.f32.mxu0 0.0
        %v7614 = vand.u32 %v6773, 4294901760
        %7615 = vmatmul.mubr.f32.gmra.mrb[0].mxu0 %v7614
        %v7616 = vpop.f32.mrb[0].mxu0
        %v7617 = vadd.f32 %v7543, %v7616
        %v7618 = vpop.f32.mrb[0].mxu0
        %7619 = vdwg.mxu0
        %7620 = vmatprep.subr.mxu0 0.0
        %v7621 = vand.u32 %v6779, 4294901760
        %7622 = vmatpush1.msra.mxu0 %v7621
        %7623 = vmatprep.subr.mxu0 0.0
        %7624 = vmatpush1.msra.mxu0 0.0
        %7625 = vmatprep.subr.mxu0 0.0
        %7626 = vmatpush1.msra.mxu0 0.0
        %7627 = vmatprep.subr.mxu0 0.0
        %7628 = vmatpush1.msra.mxu0 0.0
        %7629 = vmatprep.subr.mxu0 0.0
        %7630 = vmatpush1.msra.mxu0 0.0
        %7631 = vmatprep.subr.mxu0 0.0
        %7632 = vmatpush1.msra.mxu0 0.0
        %7633 = vmatprep.subr.mxu0 0.0
        %7634 = vmatpush1.msra.mxu0 0.0
        %7635 = vmatprep.subr.mxu0 0.0
        %7636 = vmatpush1.msra.mxu0 0.0
        %7637 = vmatprep.subr.mxu0 0.0
        %7638 = vmatpush1.msra.mxu0 0.0
        %7639 = vmatprep.subr.mxu0 0.0
        %7640 = vmatpush1.msra.mxu0 0.0
        %7641 = vmatprep.subr.mxu0 0.0
        %7642 = vmatpush1.msra.mxu0 0.0
        %7643 = vmatprep.subr.mxu0 0.0
        %7644 = vmatpush1.msra.mxu0 0.0
        %7645 = vmatprep.subr.mxu0 0.0
        %7646 = vmatpush1.msra.mxu0 0.0
        %7647 = vmatprep.subr.mxu0 0.0
        %7648 = vmatpush1.msra.mxu0 0.0
        %7649 = vmatprep.subr.mxu0 0.0
        %7650 = vmatpush1.msra.mxu0 0.0
        %7651 = vmatprep.subr.mxu0 0.0
        %7652 = vmatpush1.msra.mxu0 0.0
        %7653 = vmatprep.subr.mxu0 0.0
        %7654 = vmatpush1.msra.mxu0 0.0
        %7655 = vmatprep.subr.mxu0 0.0
        %7656 = vmatpush1.msra.mxu0 0.0
        %7657 = vmatprep.subr.mxu0 0.0
        %7658 = vmatpush1.msra.mxu0 0.0
        %7659 = vmatprep.subr.mxu0 0.0
        %7660 = vmatpush1.msra.mxu0 0.0
        %7661 = vmatprep.subr.mxu0 0.0
        %7662 = vmatpush1.msra.mxu0 0.0
        %7663 = vmatprep.subr.mxu0 0.0
        %7664 = vmatpush1.msra.mxu0 0.0
        %7665 = vmatprep.subr.mxu0 0.0
        %7666 = vmatpush1.msra.mxu0 0.0
        %7667 = vmatprep.subr.mxu0 0.0
        %7668 = vmatpush1.msra.mxu0 0.0
        %7669 = vmatprep.subr.mxu0 0.0
        %7670 = vmatpush1.msra.mxu0 0.0
        %7671 = vmatprep.subr.mxu0 0.0
        %7672 = vmatpush1.msra.mxu0 0.0
        %7673 = vmatprep.subr.mxu0 0.0
        %7674 = vmatpush1.msra.mxu0 0.0
        %7675 = vmatprep.subr.mxu0 0.0
        %7676 = vmatpush1.msra.mxu0 0.0
        %7677 = vmatprep.subr.mxu0 0.0
        %7678 = vmatpush1.msra.mxu0 0.0
        %7679 = vmatprep.subr.mxu0 0.0
        %7680 = vmatpush1.msra.mxu0 0.0
        %7681 = vmatprep.subr.mxu0 0.0
        %7682 = vmatpush1.msra.mxu0 0.0
        %7683 = vmatprep.subr.mxu0 0.0
        %7684 = vmatpush1.msra.mxu0 0.0
        %7685 = vmatprep.mubr.f32.mxu0 0.0
        %v7686 = vand.u32 %v6773, 4294901760
        %7687 = vmatmul.mubr.f32.gmra.mrb[0].mxu0 %v7686
        %v7688 = vpop.f32.mrb[0].mxu0
        %v7689 = vadd.f32 %v7617, %v7688
        %v7690 = vpop.f32.mrb[0].mxu0
        %7691 = vdwg.mxu0
        %v7692 = vadd.f32 %v6749, %v7242
        %v7693 = vadd.f32 %v6750, %v7244
        %v7694 = vadd.f32 %v6751, %v7689
        %v7695 = vld [vmem:[%s168] sm:$0xff]
        %v7696 = vld [vmem:[%s168 + $0x8] sm:$0xff]
        %s7697 = scalar_lea.vmem %s1, 64
        %v7698 = vld [vmem:[%s7697] sm:$0xff]
        %v7701 = vcombine.high %v7695, %v7695
        %v7702 = vcombine.high %v7696, %v7696
        %7703 = vrot.lane.b32.xlu0 %v7695, 90
        %v7704 = vpop.permute.xlu0 %7703
        %7705 = vrot.lane.b32.xlu0 %v7701, 90
        %v7706 = vpop.permute.xlu0 %7705
        %7707 = vrot.lane.b32.xlu0 %v7696, 90
        %v7708 = vpop.permute.xlu0 %7707
        %7709 = vrot.lane.b32.xlu0 %v7702, 90
        %v7710 = vpop.permute.xlu0 %7709
        %vm7711 = vcmask 736256
        %v7712 = vsel %vm7711, %v7704, %v7706
        %v7713 = vsel %vm7711, %v7706, %v7708
        %v7714 = vsel %vm7711, %v7708, %v7710
        %v7716 = vsel %vm192, %v7698, 0
        %v7718 = vsel %vm196, %v7712, 0
        %v7720 = vsel %vm196, %v7713, 0
        %v7722 = vsel %vm196, %v7714, 0
        %v7724 = vand.u32 %v7720, 4294901760
        %7725 = vmatprep.subr.mxu0 %v7724
        %v7726 = vand.u32 %v7718, 4294901760
        %7727 = vmatpush1.msra.mxu0 %v7726
        %7728 = vmatprep.subr.mxu0 0.0
        %7729 = vmatpush1.msra.mxu0 0.0
        %7730 = vmatprep.subr.mxu0 0.0
        %7731 = vmatpush1.msra.mxu0 0.0
        %7732 = vmatprep.subr.mxu0 0.0
        %7733 = vmatpush1.msra.mxu0 0.0
        %7734 = vmatprep.subr.mxu0 0.0
        %7735 = vmatpush1.msra.mxu0 0.0
        %7736 = vmatprep.subr.mxu0 0.0
        %7737 = vmatpush1.msra.mxu0 0.0
        %7738 = vmatprep.subr.mxu0 0.0
        %7739 = vmatpush1.msra.mxu0 0.0
        %7740 = vmatprep.subr.mxu0 0.0
        %7741 = vmatpush1.msra.mxu0 0.0
        %7742 = vmatprep.subr.mxu0 0.0
        %7743 = vmatpush1.msra.mxu0 0.0
        %7744 = vmatprep.subr.mxu0 0.0
        %7745 = vmatpush1.msra.mxu0 0.0
        %7746 = vmatprep.subr.mxu0 0.0
        %7747 = vmatpush1.msra.mxu0 0.0
        %7748 = vmatprep.subr.mxu0 0.0
        %7749 = vmatpush1.msra.mxu0 0.0
        %7750 = vmatprep.subr.mxu0 0.0
        %7751 = vmatpush1.msra.mxu0 0.0
        %7752 = vmatprep.subr.mxu0 0.0
        %7753 = vmatpush1.msra.mxu0 0.0
        %7754 = vmatprep.subr.mxu0 0.0
        %7755 = vmatpush1.msra.mxu0 0.0
        %7756 = vmatprep.subr.mxu0 0.0
        %7757 = vmatpush1.msra.mxu0 0.0
        %7758 = vmatprep.subr.mxu0 0.0
        %7759 = vmatpush1.msra.mxu0 0.0
        %7760 = vmatprep.subr.mxu0 0.0
        %7761 = vmatpush1.msra.mxu0 0.0
        %7762 = vmatprep.subr.mxu0 0.0
        %7763 = vmatpush1.msra.mxu0 0.0
        %7764 = vmatprep.subr.mxu0 0.0
        %7765 = vmatpush1.msra.mxu0 0.0
        %7766 = vmatprep.subr.mxu0 0.0
        %7767 = vmatpush1.msra.mxu0 0.0
        %7768 = vmatprep.subr.mxu0 0.0
        %7769 = vmatpush1.msra.mxu0 0.0
        %7770 = vmatprep.subr.mxu0 0.0
        %7771 = vmatpush1.msra.mxu0 0.0
        %7772 = vmatprep.subr.mxu0 0.0
        %7773 = vmatpush1.msra.mxu0 0.0
        %7774 = vmatprep.subr.mxu0 0.0
        %7775 = vmatpush1.msra.mxu0 0.0
        %7776 = vmatprep.subr.mxu0 0.0
        %7777 = vmatpush1.msra.mxu0 0.0
        %7778 = vmatprep.subr.mxu0 0.0
        %7779 = vmatpush1.msra.mxu0 0.0
        %7780 = vmatprep.subr.mxu0 0.0
        %7781 = vmatpush1.msra.mxu0 0.0
        %7782 = vmatprep.subr.mxu0 0.0
        %7783 = vmatpush1.msra.mxu0 0.0
        %7784 = vmatprep.subr.mxu0 0.0
        %7785 = vmatpush1.msra.mxu0 0.0
        %7786 = vmatprep.subr.mxu0 0.0
        %7787 = vmatpush1.msra.mxu0 0.0
        %7788 = vmatprep.subr.mxu0 0.0
        %7789 = vmatpush1.msra.mxu0 0.0
        %7790 = vmatprep.mubr.f32.mxu0 0.0
        %v7791 = vand.u32 %v7716, 4294901760
        %v7792 = vsub.f32 %v7716, %v7791
        %v7793 = vand.u32 %v7792, 4294901760
        %v7794 = vsub.f32 %v7792, %v7793
        %v7795 = vand.u32 %v7794, 4294901760
        %7796 = vmatmul.mubr.f32.gmra.mrb[0].mxu0 %v7795
        %v7797 = vpop.f32.mrb[0].mxu0
        %v7798 = vadd.f32 0.0, %v7797
        %v7799 = vpop.f32.mrb[0].mxu0
        %v7800 = vadd.f32 0.0, %v7799
        %7801 = vdwg.mxu0
        %v7802 = vand.u32 %v7720, 4294901760
        %v7803 = vsub.f32 %v7720, %v7802
        %v7804 = vand.u32 %v7803, 4294901760
        %v7805 = vsub.f32 %v7803, %v7804
        %v7806 = vand.u32 %v7805, 4294901760
        %7807 = vmatprep.subr.mxu0 %v7806
        %v7808 = vand.u32 %v7718, 4294901760
        %v7809 = vsub.f32 %v7718, %v7808
        %v7810 = vand.u32 %v7809, 4294901760
        %v7811 = vsub.f32 %v7809, %v7810
        %v7812 = vand.u32 %v7811, 4294901760
        %7813 = vmatpush1.msra.mxu0 %v7812
        %7814 = vmatprep.subr.mxu0 0.0
        %7815 = vmatpush1.msra.mxu0 0.0
        %7816 = vmatprep.subr.mxu0 0.0
        %7817 = vmatpush1.msra.mxu0 0.0
        %7818 = vmatprep.subr.mxu0 0.0
        %7819 = vmatpush1.msra.mxu0 0.0
        %7820 = vmatprep.subr.mxu0 0.0
        %7821 = vmatpush1.msra.mxu0 0.0
        %7822 = vmatprep.subr.mxu0 0.0
        %7823 = vmatpush1.msra.mxu0 0.0
        %7824 = vmatprep.subr.mxu0 0.0
        %7825 = vmatpush1.msra.mxu0 0.0
        %7826 = vmatprep.subr.mxu0 0.0
        %7827 = vmatpush1.msra.mxu0 0.0
        %7828 = vmatprep.subr.mxu0 0.0
        %7829 = vmatpush1.msra.mxu0 0.0
        %7830 = vmatprep.subr.mxu0 0.0
        %7831 = vmatpush1.msra.mxu0 0.0
        %7832 = vmatprep.subr.mxu0 0.0
        %7833 = vmatpush1.msra.mxu0 0.0
        %7834 = vmatprep.subr.mxu0 0.0
        %7835 = vmatpush1.msra.mxu0 0.0
        %7836 = vmatprep.subr.mxu0 0.0
        %7837 = vmatpush1.msra.mxu0 0.0
        %7838 = vmatprep.subr.mxu0 0.0
        %7839 = vmatpush1.msra.mxu0 0.0
        %7840 = vmatprep.subr.mxu0 0.0
        %7841 = vmatpush1.msra.mxu0 0.0
        %7842 = vmatprep.subr.mxu0 0.0
        %7843 = vmatpush1.msra.mxu0 0.0
        %7844 = vmatprep.subr.mxu0 0.0
        %7845 = vmatpush1.msra.mxu0 0.0
        %7846 = vmatprep.subr.mxu0 0.0
        %7847 = vmatpush1.msra.mxu0 0.0
        %7848 = vmatprep.subr.mxu0 0.0
        %7849 = vmatpush1.msra.mxu0 0.0
        %7850 = vmatprep.subr.mxu0 0.0
        %7851 = vmatpush1.msra.mxu0 0.0
        %7852 = vmatprep.subr.mxu0 0.0
        %7853 = vmatpush1.msra.mxu0 0.0
        %7854 = vmatprep.subr.mxu0 0.0
        %7855 = vmatpush1.msra.mxu0 0.0
        %7856 = vmatprep.subr.mxu0 0.0
        %7857 = vmatpush1.msra.mxu0 0.0
        %7858 = vmatprep.subr.mxu0 0.0
        %7859 = vmatpush1.msra.mxu0 0.0
        %7860 = vmatprep.subr.mxu0 0.0
        %7861 = vmatpush1.msra.mxu0 0.0
        %7862 = vmatprep.subr.mxu0 0.0
        %7863 = vmatpush1.msra.mxu0 0.0
        %7864 = vmatprep.subr.mxu0 0.0
        %7865 = vmatpush1.msra.mxu0 0.0
        %7866 = vmatprep.subr.mxu0 0.0
        %7867 = vmatpush1.msra.mxu0 0.0
        %7868 = vmatprep.subr.mxu0 0.0
        %7869 = vmatpush1.msra.mxu0 0.0
        %7870 = vmatprep.subr.mxu0 0.0
        %7871 = vmatpush1.msra.mxu0 0.0
        %7872 = vmatprep.subr.mxu0 0.0
        %7873 = vmatpush1.msra.mxu0 0.0
        %7874 = vmatprep.subr.mxu0 0.0
        %7875 = vmatpush1.msra.mxu0 0.0
        %7876 = vmatprep.mubr.f32.mxu0 0.0
        %v7877 = vand.u32 %v7716, 4294901760
        %7878 = vmatmul.mubr.f32.gmra.mrb[0].mxu0 %v7877
        %v7879 = vpop.f32.mrb[0].mxu0
        %v7880 = vadd.f32 %v7798, %v7879
        %v7881 = vpop.f32.mrb[0].mxu0
        %v7882 = vadd.f32 %v7800, %v7881
        %7883 = vdwg.mxu0
        %v7884 = vand.u32 %v7720, 4294901760
        %v7885 = vsub.f32 %v7720, %v7884
        %7886 = vmatprep.subr.mxu0 %v7885
        %v7887 = vand.u32 %v7718, 4294901760
        %v7888 = vsub.f32 %v7718, %v7887
        %7889 = vmatpush1.msra.mxu0 %v7888
        %7890 = vmatprep.subr.mxu0 0.0
        %7891 = vmatpush1.msra.mxu0 0.0
        %7892 = vmatprep.subr.mxu0 0.0
        %7893 = vmatpush1.msra.mxu0 0.0
        %7894 = vmatprep.subr.mxu0 0.0
        %7895 = vmatpush1.msra.mxu0 0.0
        %7896 = vmatprep.subr.mxu0 0.0
        %7897 = vmatpush1.msra.mxu0 0.0
        %7898 = vmatprep.subr.mxu0 0.0
        %7899 = vmatpush1.msra.mxu0 0.0
        %7900 = vmatprep.subr.mxu0 0.0
        %7901 = vmatpush1.msra.mxu0 0.0
        %7902 = vmatprep.subr.mxu0 0.0
        %7903 = vmatpush1.msra.mxu0 0.0
        %7904 = vmatprep.subr.mxu0 0.0
        %7905 = vmatpush1.msra.mxu0 0.0
        %7906 = vmatprep.subr.mxu0 0.0
        %7907 = vmatpush1.msra.mxu0 0.0
        %7908 = vmatprep.subr.mxu0 0.0
        %7909 = vmatpush1.msra.mxu0 0.0
        %7910 = vmatprep.subr.mxu0 0.0
        %7911 = vmatpush1.msra.mxu0 0.0
        %7912 = vmatprep.subr.mxu0 0.0
        %7913 = vmatpush1.msra.mxu0 0.0
        %7914 = vmatprep.subr.mxu0 0.0
        %7915 = vmatpush1.msra.mxu0 0.0
        %7916 = vmatprep.subr.mxu0 0.0
        %7917 = vmatpush1.msra.mxu0 0.0
        %7918 = vmatprep.subr.mxu0 0.0
        %7919 = vmatpush1.msra.mxu0 0.0
        %7920 = vmatprep.subr.mxu0 0.0
        %7921 = vmatpush1.msra.mxu0 0.0
        %7922 = vmatprep.subr.mxu0 0.0
        %7923 = vmatpush1.msra.mxu0 0.0
        %7924 = vmatprep.subr.mxu0 0.0
        %7925 = vmatpush1.msra.mxu0 0.0
        %7926 = vmatprep.subr.mxu0 0.0
        %7927 = vmatpush1.msra.mxu0 0.0
        %7928 = vmatprep.subr.mxu0 0.0
        %7929 = vmatpush1.msra.mxu0 0.0
        %7930 = vmatprep.subr.mxu0 0.0
        %7931 = vmatpush1.msra.mxu0 0.0
        %7932 = vmatprep.subr.mxu0 0.0
        %7933 = vmatpush1.msra.mxu0 0.0
        %7934 = vmatprep.subr.mxu0 0.0
        %7935 = vmatpush1.msra.mxu0 0.0
        %7936 = vmatprep.subr.mxu0 0.0
        %7937 = vmatpush1.msra.mxu0 0.0
        %7938 = vmatprep.subr.mxu0 0.0
        %7939 = vmatpush1.msra.mxu0 0.0
        %7940 = vmatprep.subr.mxu0 0.0
        %7941 = vmatpush1.msra.mxu0 0.0
        %7942 = vmatprep.subr.mxu0 0.0
        %7943 = vmatpush1.msra.mxu0 0.0
        %7944 = vmatprep.subr.mxu0 0.0
        %7945 = vmatpush1.msra.mxu0 0.0
        %7946 = vmatprep.subr.mxu0 0.0
        %7947 = vmatpush1.msra.mxu0 0.0
        %7948 = vmatprep.subr.mxu0 0.0
        %7949 = vmatpush1.msra.mxu0 0.0
        %7950 = vmatprep.subr.mxu0 0.0
        %7951 = vmatpush1.msra.mxu0 0.0
        %7952 = vmatprep.mubr.f32.mxu0 0.0
        %v7953 = vand.u32 %v7716, 4294901760
        %v7954 = vsub.f32 %v7716, %v7953
        %7955 = vmatmul.mubr.f32.gmra.mrb[0].mxu0 %v7954
        %v7956 = vpop.f32.mrb[0].mxu0
        %v7957 = vadd.f32 %v7880, %v7956
        %v7958 = vpop.f32.mrb[0].mxu0
        %v7959 = vadd.f32 %v7882, %v7958
        %7960 = vdwg.mxu0
        %v7961 = vand.u32 %v7720, 4294901760
        %7962 = vmatprep.subr.mxu0 %v7961
        %v7963 = vand.u32 %v7718, 4294901760
        %7964 = vmatpush1.msra.mxu0 %v7963
        %7965 = vmatprep.subr.mxu0 0.0
        %7966 = vmatpush1.msra.mxu0 0.0
        %7967 = vmatprep.subr.mxu0 0.0
        %7968 = vmatpush1.msra.mxu0 0.0
        %7969 = vmatprep.subr.mxu0 0.0
        %7970 = vmatpush1.msra.mxu0 0.0
        %7971 = vmatprep.subr.mxu0 0.0
        %7972 = vmatpush1.msra.mxu0 0.0
        %7973 = vmatprep.subr.mxu0 0.0
        %7974 = vmatpush1.msra.mxu0 0.0
        %7975 = vmatprep.subr.mxu0 0.0
        %7976 = vmatpush1.msra.mxu0 0.0
        %7977 = vmatprep.subr.mxu0 0.0
        %7978 = vmatpush1.msra.mxu0 0.0
        %7979 = vmatprep.subr.mxu0 0.0
        %7980 = vmatpush1.msra.mxu0 0.0
        %7981 = vmatprep.subr.mxu0 0.0
        %7982 = vmatpush1.msra.mxu0 0.0
        %7983 = vmatprep.subr.mxu0 0.0
        %7984 = vmatpush1.msra.mxu0 0.0
        %7985 = vmatprep.subr.mxu0 0.0
        %7986 = vmatpush1.msra.mxu0 0.0
        %7987 = vmatprep.subr.mxu0 0.0
        %7988 = vmatpush1.msra.mxu0 0.0
        %7989 = vmatprep.subr.mxu0 0.0
        %7990 = vmatpush1.msra.mxu0 0.0
        %7991 = vmatprep.subr.mxu0 0.0
        %7992 = vmatpush1.msra.mxu0 0.0
        %7993 = vmatprep.subr.mxu0 0.0
        %7994 = vmatpush1.msra.mxu0 0.0
        %7995 = vmatprep.subr.mxu0 0.0
        %7996 = vmatpush1.msra.mxu0 0.0
        %7997 = vmatprep.subr.mxu0 0.0
        %7998 = vmatpush1.msra.mxu0 0.0
        %7999 = vmatprep.subr.mxu0 0.0
        %8000 = vmatpush1.msra.mxu0 0.0
        %8001 = vmatprep.subr.mxu0 0.0
        %8002 = vmatpush1.msra.mxu0 0.0
        %8003 = vmatprep.subr.mxu0 0.0
        %8004 = vmatpush1.msra.mxu0 0.0
        %8005 = vmatprep.subr.mxu0 0.0
        %8006 = vmatpush1.msra.mxu0 0.0
        %8007 = vmatprep.subr.mxu0 0.0
        %8008 = vmatpush1.msra.mxu0 0.0
        %8009 = vmatprep.subr.mxu0 0.0
        %8010 = vmatpush1.msra.mxu0 0.0
        %8011 = vmatprep.subr.mxu0 0.0
        %8012 = vmatpush1.msra.mxu0 0.0
        %8013 = vmatprep.subr.mxu0 0.0
        %8014 = vmatpush1.msra.mxu0 0.0
        %8015 = vmatprep.subr.mxu0 0.0
        %8016 = vmatpush1.msra.mxu0 0.0
        %8017 = vmatprep.subr.mxu0 0.0
        %8018 = vmatpush1.msra.mxu0 0.0
        %8019 = vmatprep.subr.mxu0 0.0
        %8020 = vmatpush1.msra.mxu0 0.0
        %8021 = vmatprep.subr.mxu0 0.0
        %8022 = vmatpush1.msra.mxu0 0.0
        %8023 = vmatprep.subr.mxu0 0.0
        %8024 = vmatpush1.msra.mxu0 0.0
        %8025 = vmatprep.subr.mxu0 0.0
        %8026 = vmatpush1.msra.mxu0 0.0
        %8027 = vmatprep.mubr.f32.mxu0 0.0
        %v8028 = vand.u32 %v7716, 4294901760
        %v8029 = vsub.f32 %v7716, %v8028
        %v8030 = vand.u32 %v8029, 4294901760
        %8031 = vmatmul.mubr.f32.gmra.mrb[0].mxu0 %v8030
        %v8032 = vpop.f32.mrb[0].mxu0
        %v8033 = vadd.f32 %v7957, %v8032
        %v8034 = vpop.f32.mrb[0].mxu0
        %v8035 = vadd.f32 %v7959, %v8034
        %8036 = vdwg.mxu0
        %v8037 = vand.u32 %v7720, 4294901760
        %v8038 = vsub.f32 %v7720, %v8037
        %v8039 = vand.u32 %v8038, 4294901760
        %8040 = vmatprep.subr.mxu0 %v8039
        %v8041 = vand.u32 %v7718, 4294901760
        %v8042 = vsub.f32 %v7718, %v8041
        %v8043 = vand.u32 %v8042, 4294901760
        %8044 = vmatpush1.msra.mxu0 %v8043
        %8045 = vmatprep.subr.mxu0 0.0
        %8046 = vmatpush1.msra.mxu0 0.0
        %8047 = vmatprep.subr.mxu0 0.0
        %8048 = vmatpush1.msra.mxu0 0.0
        %8049 = vmatprep.subr.mxu0 0.0
        %8050 = vmatpush1.msra.mxu0 0.0
        %8051 = vmatprep.subr.mxu0 0.0
        %8052 = vmatpush1.msra.mxu0 0.0
        %8053 = vmatprep.subr.mxu0 0.0
        %8054 = vmatpush1.msra.mxu0 0.0
        %8055 = vmatprep.subr.mxu0 0.0
        %8056 = vmatpush1.msra.mxu0 0.0
        %8057 = vmatprep.subr.mxu0 0.0
        %8058 = vmatpush1.msra.mxu0 0.0
        %8059 = vmatprep.subr.mxu0 0.0
        %8060 = vmatpush1.msra.mxu0 0.0
        %8061 = vmatprep.subr.mxu0 0.0
        %8062 = vmatpush1.msra.mxu0 0.0
        %8063 = vmatprep.subr.mxu0 0.0
        %8064 = vmatpush1.msra.mxu0 0.0
        %8065 = vmatprep.subr.mxu0 0.0
        %8066 = vmatpush1.msra.mxu0 0.0
        %8067 = vmatprep.subr.mxu0 0.0
        %8068 = vmatpush1.msra.mxu0 0.0
        %8069 = vmatprep.subr.mxu0 0.0
        %8070 = vmatpush1.msra.mxu0 0.0
        %8071 = vmatprep.subr.mxu0 0.0
        %8072 = vmatpush1.msra.mxu0 0.0
        %8073 = vmatprep.subr.mxu0 0.0
        %8074 = vmatpush1.msra.mxu0 0.0
        %8075 = vmatprep.subr.mxu0 0.0
        %8076 = vmatpush1.msra.mxu0 0.0
        %8077 = vmatprep.subr.mxu0 0.0
        %8078 = vmatpush1.msra.mxu0 0.0
        %8079 = vmatprep.subr.mxu0 0.0
        %8080 = vmatpush1.msra.mxu0 0.0
        %8081 = vmatprep.subr.mxu0 0.0
        %8082 = vmatpush1.msra.mxu0 0.0
        %8083 = vmatprep.subr.mxu0 0.0
        %8084 = vmatpush1.msra.mxu0 0.0
        %8085 = vmatprep.subr.mxu0 0.0
        %8086 = vmatpush1.msra.mxu0 0.0
        %8087 = vmatprep.subr.mxu0 0.0
        %8088 = vmatpush1.msra.mxu0 0.0
        %8089 = vmatprep.subr.mxu0 0.0
        %8090 = vmatpush1.msra.mxu0 0.0
        %8091 = vmatprep.subr.mxu0 0.0
        %8092 = vmatpush1.msra.mxu0 0.0
        %8093 = vmatprep.subr.mxu0 0.0
        %8094 = vmatpush1.msra.mxu0 0.0
        %8095 = vmatprep.subr.mxu0 0.0
        %8096 = vmatpush1.msra.mxu0 0.0
        %8097 = vmatprep.subr.mxu0 0.0
        %8098 = vmatpush1.msra.mxu0 0.0
        %8099 = vmatprep.subr.mxu0 0.0
        %8100 = vmatpush1.msra.mxu0 0.0
        %8101 = vmatprep.subr.mxu0 0.0
        %8102 = vmatpush1.msra.mxu0 0.0
        %8103 = vmatprep.subr.mxu0 0.0
        %8104 = vmatpush1.msra.mxu0 0.0
        %8105 = vmatprep.subr.mxu0 0.0
        %8106 = vmatpush1.msra.mxu0 0.0
        %8107 = vmatprep.mubr.f32.mxu0 0.0
        %v8108 = vand.u32 %v7716, 4294901760
        %8109 = vmatmul.mubr.f32.gmra.mrb[0].mxu0 %v8108
        %v8110 = vpop.f32.mrb[0].mxu0
        %v8111 = vadd.f32 %v8033, %v8110
        %v8112 = vpop.f32.mrb[0].mxu0
        %v8113 = vadd.f32 %v8035, %v8112
        %8114 = vdwg.mxu0
        %v8115 = vand.u32 %v7720, 4294901760
        %8116 = vmatprep.subr.mxu0 %v8115
        %v8117 = vand.u32 %v7718, 4294901760
        %8118 = vmatpush1.msra.mxu0 %v8117
        %8119 = vmatprep.subr.mxu0 0.0
        %8120 = vmatpush1.msra.mxu0 0.0
        %8121 = vmatprep.subr.mxu0 0.0
        %8122 = vmatpush1.msra.mxu0 0.0
        %8123 = vmatprep.subr.mxu0 0.0
        %8124 = vmatpush1.msra.mxu0 0.0
        %8125 = vmatprep.subr.mxu0 0.0
        %8126 = vmatpush1.msra.mxu0 0.0
        %8127 = vmatprep.subr.mxu0 0.0
        %8128 = vmatpush1.msra.mxu0 0.0
        %8129 = vmatprep.subr.mxu0 0.0
        %8130 = vmatpush1.msra.mxu0 0.0
        %8131 = vmatprep.subr.mxu0 0.0
        %8132 = vmatpush1.msra.mxu0 0.0
        %8133 = vmatprep.subr.mxu0 0.0
        %8134 = vmatpush1.msra.mxu0 0.0
        %8135 = vmatprep.subr.mxu0 0.0
        %8136 = vmatpush1.msra.mxu0 0.0
        %8137 = vmatprep.subr.mxu0 0.0
        %8138 = vmatpush1.msra.mxu0 0.0
        %8139 = vmatprep.subr.mxu0 0.0
        %8140 = vmatpush1.msra.mxu0 0.0
        %8141 = vmatprep.subr.mxu0 0.0
        %8142 = vmatpush1.msra.mxu0 0.0
        %8143 = vmatprep.subr.mxu0 0.0
        %8144 = vmatpush1.msra.mxu0 0.0
        %8145 = vmatprep.subr.mxu0 0.0
        %8146 = vmatpush1.msra.mxu0 0.0
        %8147 = vmatprep.subr.mxu0 0.0
        %8148 = vmatpush1.msra.mxu0 0.0
        %8149 = vmatprep.subr.mxu0 0.0
        %8150 = vmatpush1.msra.mxu0 0.0
        %8151 = vmatprep.subr.mxu0 0.0
        %8152 = vmatpush1.msra.mxu0 0.0
        %8153 = vmatprep.subr.mxu0 0.0
        %8154 = vmatpush1.msra.mxu0 0.0
        %8155 = vmatprep.subr.mxu0 0.0
        %8156 = vmatpush1.msra.mxu0 0.0
        %8157 = vmatprep.subr.mxu0 0.0
        %8158 = vmatpush1.msra.mxu0 0.0
        %8159 = vmatprep.subr.mxu0 0.0
        %8160 = vmatpush1.msra.mxu0 0.0
        %8161 = vmatprep.subr.mxu0 0.0
        %8162 = vmatpush1.msra.mxu0 0.0
        %8163 = vmatprep.subr.mxu0 0.0
        %8164 = vmatpush1.msra.mxu0 0.0
        %8165 = vmatprep.subr.mxu0 0.0
        %8166 = vmatpush1.msra.mxu0 0.0
        %8167 = vmatprep.subr.mxu0 0.0
        %8168 = vmatpush1.msra.mxu0 0.0
        %8169 = vmatprep.subr.mxu0 0.0
        %8170 = vmatpush1.msra.mxu0 0.0
        %8171 = vmatprep.subr.mxu0 0.0
        %8172 = vmatpush1.msra.mxu0 0.0
        %8173 = vmatprep.subr.mxu0 0.0
        %8174 = vmatpush1.msra.mxu0 0.0
        %8175 = vmatprep.subr.mxu0 0.0
        %8176 = vmatpush1.msra.mxu0 0.0
        %8177 = vmatprep.subr.mxu0 0.0
        %8178 = vmatpush1.msra.mxu0 0.0
        %8179 = vmatprep.subr.mxu0 0.0
        %8180 = vmatpush1.msra.mxu0 0.0
        %8181 = vmatprep.mubr.f32.mxu0 0.0
        %v8182 = vand.u32 %v7716, 4294901760
        %8183 = vmatmul.mubr.f32.gmra.mrb[0].mxu0 %v8182
        %v8184 = vpop.f32.mrb[0].mxu0
        %v8185 = vadd.f32 %v8111, %v8184
        %v8186 = vpop.f32.mrb[0].mxu0
        %v8187 = vadd.f32 %v8113, %v8186
        %8188 = vdwg.mxu0
        %8189 = vmatprep.subr.mxu0 0.0
        %v8190 = vand.u32 %v7722, 4294901760
        %8191 = vmatpush1.msra.mxu0 %v8190
        %8192 = vmatprep.subr.mxu0 0.0
        %8193 = vmatpush1.msra.mxu0 0.0
        %8194 = vmatprep.subr.mxu0 0.0
        %8195 = vmatpush1.msra.mxu0 0.0
        %8196 = vmatprep.subr.mxu0 0.0
        %8197 = vmatpush1.msra.mxu0 0.0
        %8198 = vmatprep.subr.mxu0 0.0
        %8199 = vmatpush1.msra.mxu0 0.0
        %8200 = vmatprep.subr.mxu0 0.0
        %8201 = vmatpush1.msra.mxu0 0.0
        %8202 = vmatprep.subr.mxu0 0.0
        %8203 = vmatpush1.msra.mxu0 0.0
        %8204 = vmatprep.subr.mxu0 0.0
        %8205 = vmatpush1.msra.mxu0 0.0
        %8206 = vmatprep.subr.mxu0 0.0
        %8207 = vmatpush1.msra.mxu0 0.0
        %8208 = vmatprep.subr.mxu0 0.0
        %8209 = vmatpush1.msra.mxu0 0.0
        %8210 = vmatprep.subr.mxu0 0.0
        %8211 = vmatpush1.msra.mxu0 0.0
        %8212 = vmatprep.subr.mxu0 0.0
        %8213 = vmatpush1.msra.mxu0 0.0
        %8214 = vmatprep.subr.mxu0 0.0
        %8215 = vmatpush1.msra.mxu0 0.0
        %8216 = vmatprep.subr.mxu0 0.0
        %8217 = vmatpush1.msra.mxu0 0.0
        %8218 = vmatprep.subr.mxu0 0.0
        %8219 = vmatpush1.msra.mxu0 0.0
        %8220 = vmatprep.subr.mxu0 0.0
        %8221 = vmatpush1.msra.mxu0 0.0
        %8222 = vmatprep.subr.mxu0 0.0
        %8223 = vmatpush1.msra.mxu0 0.0
        %8224 = vmatprep.subr.mxu0 0.0
        %8225 = vmatpush1.msra.mxu0 0.0
        %8226 = vmatprep.subr.mxu0 0.0
        %8227 = vmatpush1.msra.mxu0 0.0
        %8228 = vmatprep.subr.mxu0 0.0
        %8229 = vmatpush1.msra.mxu0 0.0
        %8230 = vmatprep.subr.mxu0 0.0
        %8231 = vmatpush1.msra.mxu0 0.0
        %8232 = vmatprep.subr.mxu0 0.0
        %8233 = vmatpush1.msra.mxu0 0.0
        %8234 = vmatprep.subr.mxu0 0.0
        %8235 = vmatpush1.msra.mxu0 0.0
        %8236 = vmatprep.subr.mxu0 0.0
        %8237 = vmatpush1.msra.mxu0 0.0
        %8238 = vmatprep.subr.mxu0 0.0
        %8239 = vmatpush1.msra.mxu0 0.0
        %8240 = vmatprep.subr.mxu0 0.0
        %8241 = vmatpush1.msra.mxu0 0.0
        %8242 = vmatprep.subr.mxu0 0.0
        %8243 = vmatpush1.msra.mxu0 0.0
        %8244 = vmatprep.subr.mxu0 0.0
        %8245 = vmatpush1.msra.mxu0 0.0
        %8246 = vmatprep.subr.mxu0 0.0
        %8247 = vmatpush1.msra.mxu0 0.0
        %8248 = vmatprep.subr.mxu0 0.0
        %8249 = vmatpush1.msra.mxu0 0.0
        %8250 = vmatprep.subr.mxu0 0.0
        %8251 = vmatpush1.msra.mxu0 0.0
        %8252 = vmatprep.subr.mxu0 0.0
        %8253 = vmatpush1.msra.mxu0 0.0
        %8254 = vmatprep.mubr.f32.mxu0 0.0
        %v8255 = vand.u32 %v7716, 4294901760
        %v8256 = vsub.f32 %v7716, %v8255
        %v8257 = vand.u32 %v8256, 4294901760
        %v8258 = vsub.f32 %v8256, %v8257
        %v8259 = vand.u32 %v8258, 4294901760
        %8260 = vmatmul.mubr.f32.gmra.mrb[0].mxu0 %v8259
        %v8261 = vpop.f32.mrb[0].mxu0
        %v8262 = vadd.f32 0.0, %v8261
        %v8263 = vpop.f32.mrb[0].mxu0
        %8264 = vdwg.mxu0
        %8265 = vmatprep.subr.mxu0 0.0
        %v8266 = vand.u32 %v7722, 4294901760
        %v8267 = vsub.f32 %v7722, %v8266
        %v8268 = vand.u32 %v8267, 4294901760
        %v8269 = vsub.f32 %v8267, %v8268
        %v8270 = vand.u32 %v8269, 4294901760
        %8271 = vmatpush1.msra.mxu0 %v8270
        %8272 = vmatprep.subr.mxu0 0.0
        %8273 = vmatpush1.msra.mxu0 0.0
        %8274 = vmatprep.subr.mxu0 0.0
        %8275 = vmatpush1.msra.mxu0 0.0
        %8276 = vmatprep.subr.mxu0 0.0
        %8277 = vmatpush1.msra.mxu0 0.0
        %8278 = vmatprep.subr.mxu0 0.0
        %8279 = vmatpush1.msra.mxu0 0.0
        %8280 = vmatprep.subr.mxu0 0.0
        %8281 = vmatpush1.msra.mxu0 0.0
        %8282 = vmatprep.subr.mxu0 0.0
        %8283 = vmatpush1.msra.mxu0 0.0
        %8284 = vmatprep.subr.mxu0 0.0
        %8285 = vmatpush1.msra.mxu0 0.0
        %8286 = vmatprep.subr.mxu0 0.0
        %8287 = vmatpush1.msra.mxu0 0.0
        %8288 = vmatprep.subr.mxu0 0.0
        %8289 = vmatpush1.msra.mxu0 0.0
        %8290 = vmatprep.subr.mxu0 0.0
        %8291 = vmatpush1.msra.mxu0 0.0
        %8292 = vmatprep.subr.mxu0 0.0
        %8293 = vmatpush1.msra.mxu0 0.0
        %8294 = vmatprep.subr.mxu0 0.0
        %8295 = vmatpush1.msra.mxu0 0.0
        %8296 = vmatprep.subr.mxu0 0.0
        %8297 = vmatpush1.msra.mxu0 0.0
        %8298 = vmatprep.subr.mxu0 0.0
        %8299 = vmatpush1.msra.mxu0 0.0
        %8300 = vmatprep.subr.mxu0 0.0
        %8301 = vmatpush1.msra.mxu0 0.0
        %8302 = vmatprep.subr.mxu0 0.0
        %8303 = vmatpush1.msra.mxu0 0.0
        %8304 = vmatprep.subr.mxu0 0.0
        %8305 = vmatpush1.msra.mxu0 0.0
        %8306 = vmatprep.subr.mxu0 0.0
        %8307 = vmatpush1.msra.mxu0 0.0
        %8308 = vmatprep.subr.mxu0 0.0
        %8309 = vmatpush1.msra.mxu0 0.0
        %8310 = vmatprep.subr.mxu0 0.0
        %8311 = vmatpush1.msra.mxu0 0.0
        %8312 = vmatprep.subr.mxu0 0.0
        %8313 = vmatpush1.msra.mxu0 0.0
        %8314 = vmatprep.subr.mxu0 0.0
        %8315 = vmatpush1.msra.mxu0 0.0
        %8316 = vmatprep.subr.mxu0 0.0
        %8317 = vmatpush1.msra.mxu0 0.0
        %8318 = vmatprep.subr.mxu0 0.0
        %8319 = vmatpush1.msra.mxu0 0.0
        %8320 = vmatprep.subr.mxu0 0.0
        %8321 = vmatpush1.msra.mxu0 0.0
        %8322 = vmatprep.subr.mxu0 0.0
        %8323 = vmatpush1.msra.mxu0 0.0
        %8324 = vmatprep.subr.mxu0 0.0
        %8325 = vmatpush1.msra.mxu0 0.0
        %8326 = vmatprep.subr.mxu0 0.0
        %8327 = vmatpush1.msra.mxu0 0.0
        %8328 = vmatprep.subr.mxu0 0.0
        %8329 = vmatpush1.msra.mxu0 0.0
        %8330 = vmatprep.subr.mxu0 0.0
        %8331 = vmatpush1.msra.mxu0 0.0
        %8332 = vmatprep.subr.mxu0 0.0
        %8333 = vmatpush1.msra.mxu0 0.0
        %8334 = vmatprep.mubr.f32.mxu0 0.0
        %v8335 = vand.u32 %v7716, 4294901760
        %8336 = vmatmul.mubr.f32.gmra.mrb[0].mxu0 %v8335
        %v8337 = vpop.f32.mrb[0].mxu0
        %v8338 = vadd.f32 %v8262, %v8337
        %v8339 = vpop.f32.mrb[0].mxu0
        %8340 = vdwg.mxu0
        %8341 = vmatprep.subr.mxu0 0.0
        %v8342 = vand.u32 %v7722, 4294901760
        %v8343 = vsub.f32 %v7722, %v8342
        %8344 = vmatpush1.msra.mxu0 %v8343
        %8345 = vmatprep.subr.mxu0 0.0
        %8346 = vmatpush1.msra.mxu0 0.0
        %8347 = vmatprep.subr.mxu0 0.0
        %8348 = vmatpush1.msra.mxu0 0.0
        %8349 = vmatprep.subr.mxu0 0.0
        %8350 = vmatpush1.msra.mxu0 0.0
        %8351 = vmatprep.subr.mxu0 0.0
        %8352 = vmatpush1.msra.mxu0 0.0
        %8353 = vmatprep.subr.mxu0 0.0
        %8354 = vmatpush1.msra.mxu0 0.0
        %8355 = vmatprep.subr.mxu0 0.0
        %8356 = vmatpush1.msra.mxu0 0.0
        %8357 = vmatprep.subr.mxu0 0.0
        %8358 = vmatpush1.msra.mxu0 0.0
        %8359 = vmatprep.subr.mxu0 0.0
        %8360 = vmatpush1.msra.mxu0 0.0
        %8361 = vmatprep.subr.mxu0 0.0
        %8362 = vmatpush1.msra.mxu0 0.0
        %8363 = vmatprep.subr.mxu0 0.0
        %8364 = vmatpush1.msra.mxu0 0.0
        %8365 = vmatprep.subr.mxu0 0.0
        %8366 = vmatpush1.msra.mxu0 0.0
        %8367 = vmatprep.subr.mxu0 0.0
        %8368 = vmatpush1.msra.mxu0 0.0
        %8369 = vmatprep.subr.mxu0 0.0
        %8370 = vmatpush1.msra.mxu0 0.0
        %8371 = vmatprep.subr.mxu0 0.0
        %8372 = vmatpush1.msra.mxu0 0.0
        %8373 = vmatprep.subr.mxu0 0.0
        %8374 = vmatpush1.msra.mxu0 0.0
        %8375 = vmatprep.subr.mxu0 0.0
        %8376 = vmatpush1.msra.mxu0 0.0
        %8377 = vmatprep.subr.mxu0 0.0
        %8378 = vmatpush1.msra.mxu0 0.0
        %8379 = vmatprep.subr.mxu0 0.0
        %8380 = vmatpush1.msra.mxu0 0.0
        %8381 = vmatprep.subr.mxu0 0.0
        %8382 = vmatpush1.msra.mxu0 0.0
        %8383 = vmatprep.subr.mxu0 0.0
        %8384 = vmatpush1.msra.mxu0 0.0
        %8385 = vmatprep.subr.mxu0 0.0
        %8386 = vmatpush1.msra.mxu0 0.0
        %8387 = vmatprep.subr.mxu0 0.0
        %8388 = vmatpush1.msra.mxu0 0.0
        %8389 = vmatprep.subr.mxu0 0.0
        %8390 = vmatpush1.msra.mxu0 0.0
        %8391 = vmatprep.subr.mxu0 0.0
        %8392 = vmatpush1.msra.mxu0 0.0
        %8393 = vmatprep.subr.mxu0 0.0
        %8394 = vmatpush1.msra.mxu0 0.0
        %8395 = vmatprep.subr.mxu0 0.0
        %8396 = vmatpush1.msra.mxu0 0.0
        %8397 = vmatprep.subr.mxu0 0.0
        %8398 = vmatpush1.msra.mxu0 0.0
        %8399 = vmatprep.subr.mxu0 0.0
        %8400 = vmatpush1.msra.mxu0 0.0
        %8401 = vmatprep.subr.mxu0 0.0
        %8402 = vmatpush1.msra.mxu0 0.0
        %8403 = vmatprep.subr.mxu0 0.0
        %8404 = vmatpush1.msra.mxu0 0.0
        %8405 = vmatprep.subr.mxu0 0.0
        %8406 = vmatpush1.msra.mxu0 0.0
        %8407 = vmatprep.mubr.f32.mxu0 0.0
        %v8408 = vand.u32 %v7716, 4294901760
        %v8409 = vsub.f32 %v7716, %v8408
        %8410 = vmatmul.mubr.f32.gmra.mrb[0].mxu0 %v8409
        %v8411 = vpop.f32.mrb[0].mxu0
        %v8412 = vadd.f32 %v8338, %v8411
        %v8413 = vpop.f32.mrb[0].mxu0
        %8414 = vdwg.mxu0
        %8415 = vmatprep.subr.mxu0 0.0
        %v8416 = vand.u32 %v7722, 4294901760
        %8417 = vmatpush1.msra.mxu0 %v8416
        %8418 = vmatprep.subr.mxu0 0.0
        %8419 = vmatpush1.msra.mxu0 0.0
        %8420 = vmatprep.subr.mxu0 0.0
        %8421 = vmatpush1.msra.mxu0 0.0
        %8422 = vmatprep.subr.mxu0 0.0
        %8423 = vmatpush1.msra.mxu0 0.0
        %8424 = vmatprep.subr.mxu0 0.0
        %8425 = vmatpush1.msra.mxu0 0.0
        %8426 = vmatprep.subr.mxu0 0.0
        %8427 = vmatpush1.msra.mxu0 0.0
        %8428 = vmatprep.subr.mxu0 0.0
        %8429 = vmatpush1.msra.mxu0 0.0
        %8430 = vmatprep.subr.mxu0 0.0
        %8431 = vmatpush1.msra.mxu0 0.0
        %8432 = vmatprep.subr.mxu0 0.0
        %8433 = vmatpush1.msra.mxu0 0.0
        %8434 = vmatprep.subr.mxu0 0.0
        %8435 = vmatpush1.msra.mxu0 0.0
        %8436 = vmatprep.subr.mxu0 0.0
        %8437 = vmatpush1.msra.mxu0 0.0
        %8438 = vmatprep.subr.mxu0 0.0
        %8439 = vmatpush1.msra.mxu0 0.0
        %8440 = vmatprep.subr.mxu0 0.0
        %8441 = vmatpush1.msra.mxu0 0.0
        %8442 = vmatprep.subr.mxu0 0.0
        %8443 = vmatpush1.msra.mxu0 0.0
        %8444 = vmatprep.subr.mxu0 0.0
        %8445 = vmatpush1.msra.mxu0 0.0
        %8446 = vmatprep.subr.mxu0 0.0
        %8447 = vmatpush1.msra.mxu0 0.0
        %8448 = vmatprep.subr.mxu0 0.0
        %8449 = vmatpush1.msra.mxu0 0.0
        %8450 = vmatprep.subr.mxu0 0.0
        %8451 = vmatpush1.msra.mxu0 0.0
        %8452 = vmatprep.subr.mxu0 0.0
        %8453 = vmatpush1.msra.mxu0 0.0
        %8454 = vmatprep.subr.mxu0 0.0
        %8455 = vmatpush1.msra.mxu0 0.0
        %8456 = vmatprep.subr.mxu0 0.0
        %8457 = vmatpush1.msra.mxu0 0.0
        %8458 = vmatprep.subr.mxu0 0.0
        %8459 = vmatpush1.msra.mxu0 0.0
        %8460 = vmatprep.subr.mxu0 0.0
        %8461 = vmatpush1.msra.mxu0 0.0
        %8462 = vmatprep.subr.mxu0 0.0
        %8463 = vmatpush1.msra.mxu0 0.0
        %8464 = vmatprep.subr.mxu0 0.0
        %8465 = vmatpush1.msra.mxu0 0.0
        %8466 = vmatprep.subr.mxu0 0.0
        %8467 = vmatpush1.msra.mxu0 0.0
        %8468 = vmatprep.subr.mxu0 0.0
        %8469 = vmatpush1.msra.mxu0 0.0
        %8470 = vmatprep.subr.mxu0 0.0
        %8471 = vmatpush1.msra.mxu0 0.0
        %8472 = vmatprep.subr.mxu0 0.0
        %8473 = vmatpush1.msra.mxu0 0.0
        %8474 = vmatprep.subr.mxu0 0.0
        %8475 = vmatpush1.msra.mxu0 0.0
        %8476 = vmatprep.subr.mxu0 0.0
        %8477 = vmatpush1.msra.mxu0 0.0
        %8478 = vmatprep.subr.mxu0 0.0
        %8479 = vmatpush1.msra.mxu0 0.0
        %8480 = vmatprep.mubr.f32.mxu0 0.0
        %v8481 = vand.u32 %v7716, 4294901760
        %v8482 = vsub.f32 %v7716, %v8481
        %v8483 = vand.u32 %v8482, 4294901760
        %8484 = vmatmul.mubr.f32.gmra.mrb[0].mxu0 %v8483
        %v8485 = vpop.f32.mrb[0].mxu0
        %v8486 = vadd.f32 %v8412, %v8485
        %v8487 = vpop.f32.mrb[0].mxu0
        %8488 = vdwg.mxu0
        %8489 = vmatprep.subr.mxu0 0.0
        %v8490 = vand.u32 %v7722, 4294901760
        %v8491 = vsub.f32 %v7722, %v8490
        %v8492 = vand.u32 %v8491, 4294901760
        %8493 = vmatpush1.msra.mxu0 %v8492
        %8494 = vmatprep.subr.mxu0 0.0
        %8495 = vmatpush1.msra.mxu0 0.0
        %8496 = vmatprep.subr.mxu0 0.0
        %8497 = vmatpush1.msra.mxu0 0.0
        %8498 = vmatprep.subr.mxu0 0.0
        %8499 = vmatpush1.msra.mxu0 0.0
        %8500 = vmatprep.subr.mxu0 0.0
        %8501 = vmatpush1.msra.mxu0 0.0
        %8502 = vmatprep.subr.mxu0 0.0
        %8503 = vmatpush1.msra.mxu0 0.0
        %8504 = vmatprep.subr.mxu0 0.0
        %8505 = vmatpush1.msra.mxu0 0.0
        %8506 = vmatprep.subr.mxu0 0.0
        %8507 = vmatpush1.msra.mxu0 0.0
        %8508 = vmatprep.subr.mxu0 0.0
        %8509 = vmatpush1.msra.mxu0 0.0
        %8510 = vmatprep.subr.mxu0 0.0
        %8511 = vmatpush1.msra.mxu0 0.0
        %8512 = vmatprep.subr.mxu0 0.0
        %8513 = vmatpush1.msra.mxu0 0.0
        %8514 = vmatprep.subr.mxu0 0.0
        %8515 = vmatpush1.msra.mxu0 0.0
        %8516 = vmatprep.subr.mxu0 0.0
        %8517 = vmatpush1.msra.mxu0 0.0
        %8518 = vmatprep.subr.mxu0 0.0
        %8519 = vmatpush1.msra.mxu0 0.0
        %8520 = vmatprep.subr.mxu0 0.0
        %8521 = vmatpush1.msra.mxu0 0.0
        %8522 = vmatprep.subr.mxu0 0.0
        %8523 = vmatpush1.msra.mxu0 0.0
        %8524 = vmatprep.subr.mxu0 0.0
        %8525 = vmatpush1.msra.mxu0 0.0
        %8526 = vmatprep.subr.mxu0 0.0
        %8527 = vmatpush1.msra.mxu0 0.0
        %8528 = vmatprep.subr.mxu0 0.0
        %8529 = vmatpush1.msra.mxu0 0.0
        %8530 = vmatprep.subr.mxu0 0.0
        %8531 = vmatpush1.msra.mxu0 0.0
        %8532 = vmatprep.subr.mxu0 0.0
        %8533 = vmatpush1.msra.mxu0 0.0
        %8534 = vmatprep.subr.mxu0 0.0
        %8535 = vmatpush1.msra.mxu0 0.0
        %8536 = vmatprep.subr.mxu0 0.0
        %8537 = vmatpush1.msra.mxu0 0.0
        %8538 = vmatprep.subr.mxu0 0.0
        %8539 = vmatpush1.msra.mxu0 0.0
        %8540 = vmatprep.subr.mxu0 0.0
        %8541 = vmatpush1.msra.mxu0 0.0
        %8542 = vmatprep.subr.mxu0 0.0
        %8543 = vmatpush1.msra.mxu0 0.0
        %8544 = vmatprep.subr.mxu0 0.0
        %8545 = vmatpush1.msra.mxu0 0.0
        %8546 = vmatprep.subr.mxu0 0.0
        %8547 = vmatpush1.msra.mxu0 0.0
        %8548 = vmatprep.subr.mxu0 0.0
        %8549 = vmatpush1.msra.mxu0 0.0
        %8550 = vmatprep.subr.mxu0 0.0
        %8551 = vmatpush1.msra.mxu0 0.0
        %8552 = vmatprep.subr.mxu0 0.0
        %8553 = vmatpush1.msra.mxu0 0.0
        %8554 = vmatprep.subr.mxu0 0.0
        %8555 = vmatpush1.msra.mxu0 0.0
        %8556 = vmatprep.mubr.f32.mxu0 0.0
        %v8557 = vand.u32 %v7716, 4294901760
        %8558 = vmatmul.mubr.f32.gmra.mrb[0].mxu0 %v8557
        %v8559 = vpop.f32.mrb[0].mxu0
        %v8560 = vadd.f32 %v8486, %v8559
        %v8561 = vpop.f32.mrb[0].mxu0
        %8562 = vdwg.mxu0
        %8563 = vmatprep.subr.mxu0 0.0
        %v8564 = vand.u32 %v7722, 4294901760
        %8565 = vmatpush1.msra.mxu0 %v8564
        %8566 = vmatprep.subr.mxu0 0.0
        %8567 = vmatpush1.msra.mxu0 0.0
        %8568 = vmatprep.subr.mxu0 0.0
        %8569 = vmatpush1.msra.mxu0 0.0
        %8570 = vmatprep.subr.mxu0 0.0
        %8571 = vmatpush1.msra.mxu0 0.0
        %8572 = vmatprep.subr.mxu0 0.0
        %8573 = vmatpush1.msra.mxu0 0.0
        %8574 = vmatprep.subr.mxu0 0.0
        %8575 = vmatpush1.msra.mxu0 0.0
        %8576 = vmatprep.subr.mxu0 0.0
        %8577 = vmatpush1.msra.mxu0 0.0
        %8578 = vmatprep.subr.mxu0 0.0
        %8579 = vmatpush1.msra.mxu0 0.0
        %8580 = vmatprep.subr.mxu0 0.0
        %8581 = vmatpush1.msra.mxu0 0.0
        %8582 = vmatprep.subr.mxu0 0.0
        %8583 = vmatpush1.msra.mxu0 0.0
        %8584 = vmatprep.subr.mxu0 0.0
        %8585 = vmatpush1.msra.mxu0 0.0
        %8586 = vmatprep.subr.mxu0 0.0
        %8587 = vmatpush1.msra.mxu0 0.0
        %8588 = vmatprep.subr.mxu0 0.0
        %8589 = vmatpush1.msra.mxu0 0.0
        %8590 = vmatprep.subr.mxu0 0.0
        %8591 = vmatpush1.msra.mxu0 0.0
        %8592 = vmatprep.subr.mxu0 0.0
        %8593 = vmatpush1.msra.mxu0 0.0
        %8594 = vmatprep.subr.mxu0 0.0
        %8595 = vmatpush1.msra.mxu0 0.0
        %8596 = vmatprep.subr.mxu0 0.0
        %8597 = vmatpush1.msra.mxu0 0.0
        %8598 = vmatprep.subr.mxu0 0.0
        %8599 = vmatpush1.msra.mxu0 0.0
        %8600 = vmatprep.subr.mxu0 0.0
        %8601 = vmatpush1.msra.mxu0 0.0
        %8602 = vmatprep.subr.mxu0 0.0
        %8603 = vmatpush1.msra.mxu0 0.0
        %8604 = vmatprep.subr.mxu0 0.0
        %8605 = vmatpush1.msra.mxu0 0.0
        %8606 = vmatprep.subr.mxu0 0.0
        %8607 = vmatpush1.msra.mxu0 0.0
        %8608 = vmatprep.subr.mxu0 0.0
        %8609 = vmatpush1.msra.mxu0 0.0
        %8610 = vmatprep.subr.mxu0 0.0
        %8611 = vmatpush1.msra.mxu0 0.0
        %8612 = vmatprep.subr.mxu0 0.0
        %8613 = vmatpush1.msra.mxu0 0.0
        %8614 = vmatprep.subr.mxu0 0.0
        %8615 = vmatpush1.msra.mxu0 0.0
        %8616 = vmatprep.subr.mxu0 0.0
        %8617 = vmatpush1.msra.mxu0 0.0
        %8618 = vmatprep.subr.mxu0 0.0
        %8619 = vmatpush1.msra.mxu0 0.0
        %8620 = vmatprep.subr.mxu0 0.0
        %8621 = vmatpush1.msra.mxu0 0.0
        %8622 = vmatprep.subr.mxu0 0.0
        %8623 = vmatpush1.msra.mxu0 0.0
        %8624 = vmatprep.subr.mxu0 0.0
        %8625 = vmatpush1.msra.mxu0 0.0
        %8626 = vmatprep.subr.mxu0 0.0
        %8627 = vmatpush1.msra.mxu0 0.0
        %8628 = vmatprep.mubr.f32.mxu0 0.0
        %v8629 = vand.u32 %v7716, 4294901760
        %8630 = vmatmul.mubr.f32.gmra.mrb[0].mxu0 %v8629
        %v8631 = vpop.f32.mrb[0].mxu0
        %v8632 = vadd.f32 %v8560, %v8631
        %v8633 = vpop.f32.mrb[0].mxu0
        %8634 = vdwg.mxu0
        %v8635 = vadd.f32 %v7692, %v8185
        %v8636 = vadd.f32 %v7693, %v8187
        %v8637 = vadd.f32 %v7694, %v8632
        %v8638 = vld [vmem:[%s2] sm:$0x7]
        %v8640 = vlaneseq
        %v8641 = vshrl.u32 %v8640, 7
        %v8642 = vsub.s32 0, %v8641
        %v8643 = vrot.slane %v8638, %v8642
        %v8644 = vlaneseq
        %v8645 = vshrl.u32 %v8644, 7
        %v8646 = vsub.s32 1, %v8645
        %v8647 = vrot.slane %v8638, %v8646
        %v8648 = vlaneseq
        %v8649 = vshrl.u32 %v8648, 7
        %v8650 = vsub.s32 2, %v8649
        %v8651 = vrot.slane %v8638, %v8650
        %v8655 = vmul.f32 %v8635, %v8643
        %v8656 = vmul.f32 %v8636, %v8647
        %v8657 = vmul.f32 %v8637, %v8651
        %v8658 = vadd.f32 %v8655, %v8656
        %v8659 = vadd.f32 %v8658, %v8657
        %8660 = vadd.xlane.f32.xlu0 %v8659
        %v8661 = vpop.xlane.xlu0 %8660
        %v8662 = vmul.f32 %v8635, %v8635
        %v8663 = vmul.f32 %v8636, %v8636
        %v8664 = vmul.f32 %v8637, %v8637
        %v8665 = vmul.f32 %v8662, %v8643
        %v8666 = vmul.f32 %v8663, %v8647
        %v8667 = vmul.f32 %v8664, %v8651
        %v8668 = vadd.f32 %v8665, %v8666
        %v8669 = vadd.f32 %v8668, %v8667
        %8670 = vadd.xlane.f32.xlu0 %v8669
        %v8671 = vpop.xlane.xlu0 %8670
        %v8672 = vmul.f32 %v8661, 0.00390625
        %v8673 = vmul.f32 %v8671, 0.00390625
        %v8674 = vmul.f32 %v8672, %v8672
        %v8675 = vsub.f32 %v8673, %v8674
        %v8676 = vmax.f32 %v8675, 0.0
        %v8677 = vsub.f32 %v8635, %v8672
        %v8678 = vsub.f32 %v8636, %v8672
        %v8679 = vsub.f32 %v8637, %v8672
        %v8680 = vadd.f32 %v8676, 1e-05
        %v8681 = vrsqrt.pop %v8680
        %v8682 = vmul.f32 %v8677, %v8681
        %v8683 = vmul.f32 %v8678, %v8681
        %v8684 = vmul.f32 %v8679, %v8681
        %vm8685 = vcmp.ge.f32.partialorder %v8682, 0.0
        %vm8686 = vcmp.ge.f32.partialorder %v8683, 0.0
        %vm8687 = vcmp.ge.f32.partialorder %v8684, 0.0
        %v8688 = vmul.f32 %v8682, 0.01
        %v8689 = vmul.f32 %v8683, 0.01
        %v8690 = vmul.f32 %v8684, 0.01
        %v8691 = vsel %vm8685, %v8682, %v8688
        %v8692 = vsel %vm8686, %v8683, %v8689
        %v8693 = vsel %vm8687, %v8684, %v8690
        %8694 = vst [vmem:[%s163] sm:$0xff] %v8691
        %8695 = vst [vmem:[%s163 + $0x8] sm:$0xff] %v8692
        %8696 = vst [vmem:[%s163 + $0x10] sm:$0xff] %v8693
        %s8697 = sand.u32 %s93, 1
        %s8698 = scalar_lea.sflag [#allocation3], %s8697
        %s8699 = sand.u32 %s93, 1
        %s8700 = smul.addr %s8699, 24
        %s8701 = scalar_lea.vmem [#allocation2], %s8700
        // Predicated region
        $region33: #{tpu_custom_call.1} parent=31 // pred_check
          %p8702 = pneg %p103
        $region34: #{tpu_custom_call.1} parent=31 // pred_check_branch
          %8704 = sbr.rel (%p8702) target = $region36
        $region35: #{tpu_custom_call.1} parent=31 // pred_region
          %s8706 = ssub.s32 384, 384
          %8707 = vsyncadd %s8698, %s8706
          %s8708 = smul.addr %s17, 3
          %s8709 = smul.addr %s8708, 128
          %s8710 = scalar_lea.hbm %s3, %s8709
          %s8712 = sshll.u32 %s8701, 4
          %s8713 = int_to_ptr.vmem [resolvable:$true] %s8712
          %8715 = dma.vmem_to_hbm [thread:$0]  %s8713, 384, %s8710, %s8698
        $region36: #{tpu_custom_call.1} parent=31 // pred_fallthru
          _
      $region32: #{tpu_custom_call.1} parent=5 // pred_fallthru
        _
      %p8716 = scmp.le.s32.totalorder 2, %s12
      // Predicated region
      $region37: #{tpu_custom_call.1} parent=5 // pred_check
        %p8717 = pneg %p8716
      $region38: #{tpu_custom_call.1} parent=5 // pred_check_branch
        %8719 = sbr.rel (%p8717) target = $region40
      $region39: #{tpu_custom_call.1} parent=5 // pred_region
        %s8720 = ssub.s32 %s12, 2
        // Predicated region
        $region41: #{tpu_custom_call.1} parent=39 // pred_check
          %p8721 = pneg %p109
        $region42: #{tpu_custom_call.1} parent=39 // pred_check_branch
          %8723 = sbr.rel (%p8721) target = $region44
        $region43: #{tpu_custom_call.1} parent=39 // pred_region
          %s8724 = sand.u32 %s94, 1
          %s8725 = scalar_lea.sflag [#allocation3], %s8724
          %s8726 = sand.u32 %s94, 1
          %s8727 = smul.addr %s8726, 24
          %s8728 = scalar_lea.vmem [#allocation2], %s8727
          %8729 = dma.done %s8725, 384
        $region44: #{tpu_custom_call.1} parent=39 // pred_fallthru
          _
      $region40: #{tpu_custom_call.1} parent=5 // pred_fallthru
        _
    $region6: #{tpu_custom_call.1} parent=1 // loop_footer
      %s16 = sadd.s32 1, %s12
    $region7: #{tpu_custom_call.1} parent=1 // loop_footer_branch
      %11 = sbr.rel target = $region3
    $region8: #{tpu_custom_call.1} parent=1 // loop_exit
      _
    %8730 = vsyncpa [#allocation3], 1
    %s8731 = scalar_lea.sflag [#allocation3], 1
    %8732 = vsyncpa %s8731, 1

</llo_original>
